<compile_context>
chip_gen: v5e
topology: v5e:2x2
jax: 0.10.0
libtpu: 0.0.40
codegen_flags: <defaults>
</compile_context>

<pallas_src>
import functools
import math

import jax
import jax.numpy as jnp
from jax import lax
from jax.experimental import pallas as pl
from jax.experimental.pallas import tpu as pltpu


# ----------------------------------------------------------------------------
# Helpers
# ----------------------------------------------------------------------------
def _round_up(x, m):
    return ((x + m - 1) // m) * m


def _vmem_capacity_bytes():
    """Physical VMEM of the local TPU (fallback: 64 MiB == v7x per-core)."""
    try:
        cap = getattr(pltpu.get_tpu_info(), "vmem_capacity_bytes", None)
        if cap:
            return int(cap)
    except Exception:
        pass
    return 64 << 20


def _vmem_limit_bytes(need_bytes, cap):
    """Scoped-VMEM request: 2x the resident estimate, clamped to [32, 48] MiB
    (48 MiB stays safely under v7x's 64 MiB physical VMEM)."""
    hi = max(32 << 20, min(cap * 3 // 4, 48 << 20))
    return int(min(max(2 * need_bytes, 32 << 20), hi))


def _sigmoid_eup(x_f32):
    # sigmoid via EUP exp + EUP approx reciprocal; keeps the VPU divide off the
    # tile's critical path.  Clamp so exp never overflows to inf.
    x = jnp.clip(x_f32, -60.0, 60.0)
    return pl.reciprocal(1.0 + jnp.exp(-x), approx=True)


# ----------------------------------------------------------------------------
# Tiled GNN layer:  y = (adj @ x) @ W
#   grid = (n/tm row tiles ["parallel"], n/tk contraction tiles ["arbitrary"])
# ----------------------------------------------------------------------------
def _gnn_accumulate(adj_ref, x_ref, acc_ref):
    @pl.when(pl.program_id(1) == 0)
    def _():
        acc_ref[...] = jnp.zeros_like(acc_ref)

    acc_ref[...] += jnp.dot(adj_ref[...], x_ref[...],
                            preferred_element_type=jnp.float32)


def gnn_layer_kernel(adj_ref, x_ref, w_ref, y_ref, acc_ref):
    _gnn_accumulate(adj_ref, x_ref, acc_ref)

    @pl.when(pl.program_id(1) == pl.num_programs(1) - 1)
    def _():
        y = jnp.dot(acc_ref[...].astype(jnp.bfloat16), w_ref[...],
                    preferred_element_type=jnp.float32)
        y_ref[...] = y.astype(y_ref.dtype)


def gnn_layer_dual_kernel(adj_ref, x_ref, w_ref, y_f32_ref, y_bf16_ref,
                          acc_ref):
    _gnn_accumulate(adj_ref, x_ref, acc_ref)

    @pl.when(pl.program_id(1) == pl.num_programs(1) - 1)
    def _():
        y = jnp.dot(acc_ref[...].astype(jnp.bfloat16), w_ref[...],
                    preferred_element_type=jnp.float32)
        y_f32_ref[...] = y
        y_bf16_ref[...] = y.astype(jnp.bfloat16)


def _gnn_layer(adj_b, x_b, w_b, *, tm, tk, dual_output, vmem_cap):
    n = adj_b.shape[0]
    d_in = x_b.shape[1]
    d_out = w_b.shape[1]
    grid = (n // tm, n // tk)

    out_block = pl.BlockSpec((tm, d_out), lambda i, k: (i, 0))
    if dual_output:
        kernel = gnn_layer_dual_kernel
        out_shape = (jax.ShapeDtypeStruct((n, d_out), jnp.float32),
                     jax.ShapeDtypeStruct((n, d_out), jnp.bfloat16))
        out_specs = (out_block, out_block)
        out_bytes = 6
    else:
        kernel = gnn_layer_kernel
        out_shape = jax.ShapeDtypeStruct((n, d_out), jnp.bfloat16)
        out_specs = out_block
        out_bytes = 2

    resident = (2 * tm * tk * 2            # adj blocks (bf16, double-buffered)
                + 2 * tk * d_in * 2        # x blocks
                + 2 * d_in * d_out * 2     # resident weight
                + 2 * tm * d_out * out_bytes
                + tm * d_in * 4)           # f32 accumulator scratch
    cost = pl.CostEstimate(
        flops=int(2 * n * n * d_in + 2 * n * d_in * d_out),
        transcendentals=0,
        bytes_accessed=int(2 * n * n + grid[0] * n * d_in * 2
                           + d_in * d_out * 2 + n * d_out * out_bytes),
    )
    return pl.pallas_call(
        kernel,
        grid=grid,
        in_specs=[pl.BlockSpec((tm, tk), lambda i, k: (i, k)),
                  pl.BlockSpec((tk, d_in), lambda i, k: (k, 0)),
                  pl.BlockSpec((d_in, d_out), lambda i, k: (0, 0))],
        out_specs=out_specs,
        out_shape=out_shape,
        scratch_shapes=[pltpu.VMEM((tm, d_in), jnp.float32)],
        compiler_params=pltpu.CompilerParams(
            dimension_semantics=("parallel", "arbitrary"),
            vmem_limit_bytes=_vmem_limit_bytes(resident, vmem_cap)),
        cost_estimate=cost,
    )(adj_b, x_b, w_b)


# ----------------------------------------------------------------------------
# Gram + sigmoid:  out[i_tile, j_tile] = sigmoid(z_hat[i] @ z_hat[j].T)
# ----------------------------------------------------------------------------
def gram_sigmoid_kernel(zi_ref, zj_ref, out_ref):
    logits = lax.dot_general(
        zi_ref[...], zj_ref[...],
        dimension_numbers=(((1,), (1,)), ((), ())),   # no explicit transpose
        preferred_element_type=jnp.float32)
    out_ref[...] = _sigmoid_eup(logits).astype(out_ref.dtype)


def _gram(z_b, *, tile, out_dtype, vmem_cap):
    n, d = z_b.shape
    grid = (n // tile, n // tile)
    out_bytes = jnp.dtype(out_dtype).itemsize
    resident = (2 * 2 * tile * d * 2          # two bf16 input blocks, 2-buffered
                + 2 * tile * tile * out_bytes
                + tile * tile * 4)            # f32 logits temp
    cost = pl.CostEstimate(
        flops=int(2 * n * n * d),
        transcendentals=int(n * n),
        bytes_accessed=int(grid[0] * grid[1] * 2 * tile * d * 2
                           + n * n * out_bytes),
    )
    return pl.pallas_call(
        gram_sigmoid_kernel,
        grid=grid,
        in_specs=[pl.BlockSpec((tile, d), lambda i, j: (i, 0)),
                  pl.BlockSpec((tile, d), lambda i, j: (j, 0))],
        out_specs=pl.BlockSpec((tile, tile), lambda i, j: (i, j)),
        out_shape=jax.ShapeDtypeStruct((n, n), out_dtype),
        compiler_params=pltpu.CompilerParams(
            dimension_semantics=("parallel", "parallel"),
            vmem_limit_bytes=_vmem_limit_bytes(resident, vmem_cap)),
        cost_estimate=cost,
    )(z_b, z_b)


# ----------------------------------------------------------------------------
# Small-n fully fused fast path (single pallas_call, z_hat never leaves VMEM)
# ----------------------------------------------------------------------------
def fused_decoder_kernel(adj_ref, z_ref, w4_ref, w5_ref, w6_ref,
                         zhat_ref, zadj_ref):
    adj = adj_ref[...]                            # already bf16

    def layer(x_bf16, w_ref):
        agg = jnp.dot(adj, x_bf16, preferred_element_type=jnp.float32)
        return jnp.dot(agg.astype(jnp.bfloat16), w_ref[...],
                       preferred_element_type=jnp.float32)

    z1 = layer(z_ref[...], w4_ref)
    z2 = layer(z1.astype(jnp.bfloat16), w5_ref)
    z_hat = layer(z2.astype(jnp.bfloat16), w6_ref)
    zhat_ref[...] = z_hat.astype(zhat_ref.dtype)

    zh_b = z_hat.astype(jnp.bfloat16)
    logits = lax.dot_general(zh_b, zh_b,
                             dimension_numbers=(((1,), (1,)), ((), ())),
                             preferred_element_type=jnp.float32)
    zadj_ref[...] = _sigmoid_eup(logits).astype(zadj_ref.dtype)


# ----------------------------------------------------------------------------
# Tile selection (generation-aware via VMEM capacity)
# ----------------------------------------------------------------------------
def _pick_chain_tile(n, d_in_max, d_out_max, budget):
    for t in (1024, 512, 256, 128):
        if n % t:
            continue
        need = (2 * t * t * 2 + 2 * t * d_in_max * 2
                + 2 * t * d_out_max * 6 + t * d_in_max * 4)
        if need <= budget:
            return t
    return 128          # n is padded to a multiple of 128, so this divides


def _pick_gram_tile(n, d, out_bytes, budget):
    for t in (1024, 512, 256, 128):
        if n % t:
            continue
        need = 2 * 2 * t * d * 2 + 2 * t * t * out_bytes + t * t * 4
        if need <= budget:
            return t
    return 128


# ----------------------------------------------------------------------------
# Public wrapper
# ----------------------------------------------------------------------------
def sgae_decoder(z_sgae, adj, w4, w5, w6, *,
                 adj_recon_dtype=jnp.float32,
                 force_tiled=False,
                 chain_tile=None,
                 gram_tile=None):
    """SGAE_decoder forward.  Returns (z_hat [f32], z_hat_adj)."""
    n, d1 = z_sgae.shape
    d2 = w4.shape[1]
    d3 = w5.shape[1]
    n_input = w6.shape[1]
    out_bytes = jnp.dtype(adj_recon_dtype).itemsize

    # bf16 operands everywhere (f32 accumulation inside the kernels).  Callers
    # should ideally store adj in bf16 already; we skip the cast if they do.
    adj_b = adj if adj.dtype == jnp.bfloat16 else adj.astype(jnp.bfloat16)
    z_b = z_sgae.astype(jnp.bfloat16)
    w4_b = w4.astype(jnp.bfloat16)
    w5_b = w5.astype(jnp.bfloat16)
    w6_b = w6.astype(jnp.bfloat16)

    # Pad n to a multiple of 128 so every stage stays tiled and lane-dense.
    n_pad = _round_up(n, 128)
    if n_pad != n:
        pad = n_pad - n
        adj_b = jnp.pad(adj_b, ((0, pad), (0, pad)))
        z_b = jnp.pad(z_b, ((0, pad), (0, 0)))

    cap = _vmem_capacity_bytes()

    fused_resident = (n_pad * n_pad * (2 + 4 + out_bytes)
                      + n_pad * n_input * 6
                      + n_pad * (d2 + d3) * 4
                      + 2 * (d1 * d2 + d2 * d3 + d3 * n_input))
    if not force_tiled and fused_resident <= (12 << 20):
        # ---- fully fused single kernel ------------------------------------
        vmem = pl.BlockSpec(memory_space=pltpu.MemorySpace.VMEM)
        cost = pl.CostEstimate(
            flops=int(2 * n_pad * n_pad * (d1 + d2 + d3 + n_input)
                      + 2 * n_pad * (d1 * d2 + d2 * d3 + d3 * n_input)),
            transcendentals=int(n_pad * n_pad),
            bytes_accessed=int(2 * n_pad * n_pad + 2 * n_pad * d1
                               + 4 * n_pad * n_input
                               + out_bytes * n_pad * n_pad),
        )
        z_hat, z_hat_adj = pl.pallas_call(
            fused_decoder_kernel,
            in_specs=[vmem] * 5,
            out_specs=(vmem, vmem),
            out_shape=(jax.ShapeDtypeStruct((n_pad, n_input), jnp.float32),
                       jax.ShapeDtypeStruct((n_pad, n_pad), adj_recon_dtype)),
            compiler_params=pltpu.CompilerParams(
                vmem_limit_bytes=_vmem_limit_bytes(fused_resident, cap)),
            cost_estimate=cost,
        )(adj_b, z_b, w4_b, w5_b, w6_b)
    else:
        # ---- row-tiled, pipelined per-layer path --------------------------
        budget = min(cap // 3, 24 << 20)
        tc = chain_tile or _pick_chain_tile(n_pad, d3, n_input, budget)
        tg = gram_tile or _pick_gram_tile(n_pad, n_input, out_bytes, budget)
        assert n_pad % tc == 0 and n_pad % tg == 0, (n_pad, tc, tg)

        z1_b = _gnn_layer(adj_b, z_b, w4_b, tm=tc, tk=tc,
                          dual_output=False, vmem_cap=cap)
        z2_b = _gnn_layer(adj_b, z1_b, w5_b, tm=tc, tk=tc,
                          dual_output=False, vmem_cap=cap)
        z_hat, z_hat_b = _gnn_layer(adj_b, z2_b, w6_b, tm=tc, tk=tc,
                                    dual_output=True, vmem_cap=cap)
        z_hat_adj = _gram(z_hat_b, tile=tg, out_dtype=adj_recon_dtype,
                          vmem_cap=cap)

    if n_pad != n:
        z_hat = z_hat[:n]
        z_hat_adj = z_hat_adj[:n, :n]
    return z_hat, z_hat_adj


def xavier_uniform(key, shape, dtype=jnp.float32):
    fan_in, fan_out = shape
    bound = math.sqrt(6.0 / (fan_in + fan_out))
    return jax.random.uniform(key, shape, dtype, minval=-bound, maxval=bound)


if __name__ == "__main__":
    # Module hyperparameters (small, TPU-friendly).
    gae_n_dec_1, gae_n_dec_2, gae_n_dec_3, n_input = 32, 64, 128, 256
    n_nodes = 512

    key = jax.random.PRNGKey(0)
    k_z, k_adj, k4, k5, k6 = jax.random.split(key, 5)

    z_sgae = jax.random.normal(k_z, (n_nodes, gae_n_dec_1), jnp.float32)
    # Dense row-normalized "adjacency" (torch.spmm with a dense adj is mm).
    adj_raw = jax.random.uniform(k_adj, (n_nodes, n_nodes), jnp.float32)
    adj = adj_raw / jnp.sum(adj_raw, axis=1, keepdims=True)

    w4 = xavier_uniform(k4, (gae_n_dec_1, gae_n_dec_2))
    w5 = xavier_uniform(k5, (gae_n_dec_2, gae_n_dec_3))
    w6 = xavier_uniform(k6, (gae_n_dec_3, n_input))

    # Plain-JAX f32 reference.
    z1 = adj @ (z_sgae @ w4)
    z2 = adj @ (z1 @ w5)
    zh_ref = adj @ (z2 @ w6)
    za_ref = jax.nn.sigmoid(zh_ref @ zh_ref.T)

    def check(zh, za, tag):
        zh = jnp.asarray(zh, jnp.float32)
        za = jnp.asarray(za, jnp.float32)
        err_h = float(jnp.max(jnp.abs(zh - zh_ref)))
        err_a = float(jnp.max(jnp.abs(za - za_ref)))
        assert jnp.allclose(zh, zh_ref, atol=2e-2, rtol=2e-2), (tag, err_h)
        assert jnp.allclose(za, za_ref, atol=2e-2, rtol=2e-2), (tag, err_a)

    # 1) Default path: at this size the whole decoder runs as one fused kernel.
    z_hat, z_hat_adj = jax.jit(sgae_decoder)(z_sgae, adj, w4, w5, w6)
    jax.block_until_ready((z_hat, z_hat_adj))
    check(z_hat, z_hat_adj, "fused")

    # 2) Tiled / gridded path (what large N uses), with small tiles so the
    #    row-parallel + K-accumulation grids and the bf16 z_hat_adj variant
    #    are actually exercised.
    tiled = jax.jit(functools.partial(
        sgae_decoder, force_tiled=True, chain_tile=256, gram_tile=128,
        adj_recon_dtype=jnp.bfloat16))
    z_hat_t, z_hat_adj_t = tiled(z_sgae, adj, w4, w5, w6)
    jax.block_until_ready((z_hat_t, z_hat_adj_t))
    check(z_hat_t, z_hat_adj_t, "tiled")

    print("KERNEL_OK")
</pallas_src>

<mosaic_0001>
module attributes {stable_mosaic.version = 11 : i64} {
  func.func @fused_decoder_kernel(%arg0: memref<512x512xbf16, #tpu.memory_space<vmem>>, %arg1: memref<512x32xbf16, #tpu.memory_space<vmem>>, %arg2: memref<32x64xbf16, #tpu.memory_space<vmem>>, %arg3: memref<64x128xbf16, #tpu.memory_space<vmem>>, %arg4: memref<128x256xbf16, #tpu.memory_space<vmem>>, %arg5: memref<512x256xf32, #tpu.memory_space<vmem>>, %arg6: memref<512x512xf32, #tpu.memory_space<vmem>>) attributes {dimension_semantics = [], scalar_prefetch = 0 : i64, scratch_operands = 0 : i64, tpu.core_type = #tpu.core_type<tc>} {
    %c0 = arith.constant 0 : index
    %c0_0 = arith.constant 0 : index
    %0 = vector.load %arg0[%c0, %c0_0] : memref<512x512xbf16, #tpu.memory_space<vmem>>, vector<512x512xbf16>
    %c0_1 = arith.constant 0 : index
    %c0_2 = arith.constant 0 : index
    %1 = vector.load %arg1[%c0_1, %c0_2] : memref<512x32xbf16, #tpu.memory_space<vmem>>, vector<512x32xbf16>
    %cst = arith.constant dense<0.000000e+00> : vector<512x32xf32>
    %2 = tpu.matmul %0, %1, %cst {dimension_numbers = #tpu.dot_dimension_numbers<[1], [0], [0], [1], [0, 0, 1, 1], [], []>} : vector<512x512xbf16>, vector<512x32xbf16>, vector<512x32xf32> -> vector<512x32xf32>
    %3 = arith.truncf %2 : vector<512x32xf32> to vector<512x32xbf16>
    %c0_3 = arith.constant 0 : index
    %c0_4 = arith.constant 0 : index
    %4 = vector.load %arg2[%c0_3, %c0_4] : memref<32x64xbf16, #tpu.memory_space<vmem>>, vector<32x64xbf16>
    %cst_5 = arith.constant dense<0.000000e+00> : vector<512x64xf32>
    %5 = tpu.matmul %3, %4, %cst_5 {dimension_numbers = #tpu.dot_dimension_numbers<[1], [0], [0], [1], [0, 0, 1, 1], [], []>} : vector<512x32xbf16>, vector<32x64xbf16>, vector<512x64xf32> -> vector<512x64xf32>
    %6 = arith.truncf %5 : vector<512x64xf32> to vector<512x64xbf16>
    %cst_6 = arith.constant dense<0.000000e+00> : vector<512x64xf32>
    %7 = tpu.matmul %0, %6, %cst_6 {dimension_numbers = #tpu.dot_dimension_numbers<[1], [0], [0], [1], [0, 0, 1, 1], [], []>} : vector<512x512xbf16>, vector<512x64xbf16>, vector<512x64xf32> -> vector<512x64xf32>
    %8 = arith.truncf %7 : vector<512x64xf32> to vector<512x64xbf16>
    %c0_7 = arith.constant 0 : index
    %c0_8 = arith.constant 0 : index
    %9 = vector.load %arg3[%c0_7, %c0_8] : memref<64x128xbf16, #tpu.memory_space<vmem>>, vector<64x128xbf16>
    %cst_9 = arith.constant dense<0.000000e+00> : vector<512x128xf32>
    %10 = tpu.matmul %8, %9, %cst_9 {dimension_numbers = #tpu.dot_dimension_numbers<[1], [0], [0], [1], [0, 0, 1, 1], [], []>} : vector<512x64xbf16>, vector<64x128xbf16>, vector<512x128xf32> -> vector<512x128xf32>
    %11 = arith.truncf %10 : vector<512x128xf32> to vector<512x128xbf16>
    %cst_10 = arith.constant dense<0.000000e+00> : vector<512x128xf32>
    %12 = tpu.matmul %0, %11, %cst_10 {dimension_numbers = #tpu.dot_dimension_numbers<[1], [0], [0], [1], [0, 0, 1, 1], [], []>} : vector<512x512xbf16>, vector<512x128xbf16>, vector<512x128xf32> -> vector<512x128xf32>
    %13 = arith.truncf %12 : vector<512x128xf32> to vector<512x128xbf16>
    %c0_11 = arith.constant 0 : index
    %c0_12 = arith.constant 0 : index
    %14 = vector.load %arg4[%c0_11, %c0_12] : memref<128x256xbf16, #tpu.memory_space<vmem>>, vector<128x256xbf16>
    %cst_13 = arith.constant dense<0.000000e+00> : vector<512x256xf32>
    %15 = tpu.matmul %13, %14, %cst_13 {dimension_numbers = #tpu.dot_dimension_numbers<[1], [0], [0], [1], [0, 0, 1, 1], [], []>} : vector<512x128xbf16>, vector<128x256xbf16>, vector<512x256xf32> -> vector<512x256xf32>
    %c0_14 = arith.constant 0 : index
    %c0_15 = arith.constant 0 : index
    %16 = vector.load %arg5[%c0_14, %c0_15] : memref<512x256xf32, #tpu.memory_space<vmem>>, vector<512x256xf32>
    tpu.vector_store %arg5[%c0_14, %c0_15], %15 {strides = array<i32>} : memref<512x256xf32, #tpu.memory_space<vmem>>, vector<512x256xf32>,
    %17 = arith.truncf %15 : vector<512x256xf32> to vector<512x256xbf16>
    %cst_16 = arith.constant dense<0.000000e+00> : vector<512x512xf32>
    %18 = tpu.matmul %17, %17, %cst_16 {dimension_numbers = #tpu.dot_dimension_numbers<[1], [1], [0], [0], [0, 0, 1, 0], [], []>} : vector<512x256xbf16>, vector<512x256xbf16>, vector<512x512xf32> -> vector<512x512xf32>
    %cst_17 = arith.constant -6.000000e+01 : f32
    %cst_18 = arith.constant 6.000000e+01 : f32
    %19 = vector.broadcast %cst_17 : f32 to vector<512x512xf32>
    %20 = arith.maximumf %19, %18 : vector<512x512xf32>
    %21 = vector.broadcast %cst_18 : f32 to vector<512x512xf32>
    %22 = arith.minimumf %21, %20 : vector<512x512xf32>
    %cst_19 = arith.constant 0.000000e+00 : f32
    %23 = vector.broadcast %cst_19 : f32 to vector<512x512xf32>
    %24 = arith.subf %23, %22 : vector<512x512xf32>
    %25 = math.exp %24 : vector<512x512xf32>
    %cst_20 = arith.constant 1.000000e+00 : f32
    %26 = vector.broadcast %cst_20 : f32 to vector<512x512xf32>
    %27 = arith.addf %26, %25 : vector<512x512xf32>
    %28 = tpu.reciprocal %27 {approx = true} : vector<512x512xf32> -> vector<512x512xf32>
    %c0_21 = arith.constant 0 : index
    %c0_22 = arith.constant 0 : index
    %29 = vector.load %arg6[%c0_21, %c0_22] : memref<512x512xf32, #tpu.memory_space<vmem>>, vector<512x512xf32>
    tpu.vector_store %arg6[%c0_21, %c0_22], %28 {strides = array<i32>} : memref<512x512xf32, #tpu.memory_space<vmem>>, vector<512x512xf32>,
    return
  }
}

</mosaic_0001>

<llo_original>
// kernel: sgae_decoder.1
$region0: #{sgae_decoder.1}
  #allocation0 [shape = 'u32[]', space=smem, size = 0x4, offset = 0x4, fixed_abs, tag = 'smem constant byte address 0x4 - core index']
  #allocation1 [shape = 'u32[72,128]{1,0:T(1,128)}', space=vmem, size = 0x9000, scoped, tag = 'internal scratch']
  %s0 = inlined_call_operand.vmem [shape: bf16[512,512], index: 0, kind: input, shape index: {}]
  %s1 = inlined_call_operand.vmem [shape: bf16[512,32], index: 1, kind: input, shape index: {}]
  %s2 = inlined_call_operand.vmem [shape: bf16[32,64], index: 2, kind: input, shape index: {}]
  %s3 = inlined_call_operand.vmem [shape: bf16[64,128], index: 3, kind: input, shape index: {}]
  %s4 = inlined_call_operand.vmem [shape: bf16[128,256], index: 4, kind: input, shape index: {}]
  %s5 = inlined_call_operand.hbm [shape: f32[512,256], index: 5, kind: output, shape index: {0}]
  %s6 = inlined_call_operand.hbm [shape: f32[512,512], index: 6, kind: output, shape index: {1}]
  %7 = xla_tuple %s5, %s6
  %s8 = sld [smem:[#allocation0]]
  $region38: #{sgae_decoder.1} parent=0
    _
  %s10 = ssub.s32 1, %s8
  %s11 = scalar_select 0, %s10, %s8
  $region1: #{sgae_decoder.1} parent=0
    #allocation2 [shape = 'u8[524288]{0}', space=vmem, size = 0x80000, scoped, tag = 'output window, operand 0, single buffered']
    #allocation3 [shape = 's32[1]{0}', space=sflag, size = 0x4, scoped, tag = 'scoped memory for sgae_decoder.1']
    #allocation4 [shape = 'u8[1048576]{0}', space=vmem, size = 0x100000, scoped, tag = 'output window, operand 1, single buffered']
    #allocation5 [shape = 's32[1]{0}', space=sflag, size = 0x4, scoped, tag = 'scoped memory for sgae_decoder.1']
    %12 = vsyncpa [#allocation3], 0
    %13 = vsyncpa [#allocation5], 0
    // Predicated region
    $region2: #{sgae_decoder.1} parent=1 // pred_check
      _
    $region3: #{sgae_decoder.1} parent=1 // pred_check_branch
      %15 = sbr.rel (0) target = $region5
    $region4: #{sgae_decoder.1} parent=1 // pred_region
      _
    $region5: #{sgae_decoder.1} parent=1 // pred_fallthru
      _
    // Predicated region
    $region6: #{sgae_decoder.1} parent=1 // pred_check
      _
    $region7: #{sgae_decoder.1} parent=1 // pred_check_branch
      %17 = sbr.rel (0) target = $region9
    $region8: #{sgae_decoder.1} parent=1 // pred_region
      _
    $region9: #{sgae_decoder.1} parent=1 // pred_fallthru
      _
    // Predicated region
    $region10: #{sgae_decoder.1} parent=1 // pred_check
      _
    $region11: #{sgae_decoder.1} parent=1 // pred_check_branch
      %19 = sbr.rel (0) target = $region13
    $region12: #{sgae_decoder.1} parent=1 // pred_region
      _
    $region13: #{sgae_decoder.1} parent=1 // pred_fallthru
      _
    // Predicated region
    $region14: #{sgae_decoder.1} parent=1 // pred_check
      _
    $region15: #{sgae_decoder.1} parent=1 // pred_check_branch
      %21 = sbr.rel (0) target = $region17
    $region16: #{sgae_decoder.1} parent=1 // pred_region
      _
    $region17: #{sgae_decoder.1} parent=1 // pred_fallthru
      _
    // Predicated region
    $region18: #{sgae_decoder.1} parent=1 // pred_check
      _
    $region19: #{sgae_decoder.1} parent=1 // pred_check_branch
      %23 = sbr.rel (0) target = $region21
    $region20: #{sgae_decoder.1} parent=1 // pred_region
      _
    $region21: #{sgae_decoder.1} parent=1 // pred_fallthru
      _
    %v25 = vld [vmem:[%s0] sm:$0xff]
    %v26 = vld [vmem:[%s0 + $0x8] sm:$0xff]
    %v27 = vld [vmem:[%s0 + $0x10] sm:$0xff]
    %v28 = vld [vmem:[%s0 + $0x18] sm:$0xff]
    %v29 = vld [vmem:[%s0 + $0x20] sm:$0xff]
    %v30 = vld [vmem:[%s0 + $0x28] sm:$0xff]
    %v31 = vld [vmem:[%s0 + $0x30] sm:$0xff]
    %v32 = vld [vmem:[%s0 + $0x38] sm:$0xff]
    %v33 = vld [vmem:[%s0 + $0x40] sm:$0xff]
    %v34 = vld [vmem:[%s0 + $0x48] sm:$0xff]
    %v35 = vld [vmem:[%s0 + $0x50] sm:$0xff]
    %v36 = vld [vmem:[%s0 + $0x58] sm:$0xff]
    %v37 = vld [vmem:[%s0 + $0x60] sm:$0xff]
    %v38 = vld [vmem:[%s0 + $0x68] sm:$0xff]
    %v39 = vld [vmem:[%s0 + $0x70] sm:$0xff]
    %v40 = vld [vmem:[%s0 + $0x78] sm:$0xff]
    %v41 = vld [vmem:[%s0 + $0x80] sm:$0xff]
    %v42 = vld [vmem:[%s0 + $0x88] sm:$0xff]
    %v43 = vld [vmem:[%s0 + $0x90] sm:$0xff]
    %v44 = vld [vmem:[%s0 + $0x98] sm:$0xff]
    %v45 = vld [vmem:[%s0 + $0xa0] sm:$0xff]
    %v46 = vld [vmem:[%s0 + $0xa8] sm:$0xff]
    %v47 = vld [vmem:[%s0 + $0xb0] sm:$0xff]
    %v48 = vld [vmem:[%s0 + $0xb8] sm:$0xff]
    %v49 = vld [vmem:[%s0 + $0xc0] sm:$0xff]
    %v50 = vld [vmem:[%s0 + $0xc8] sm:$0xff]
    %v51 = vld [vmem:[%s0 + $0xd0] sm:$0xff]
    %v52 = vld [vmem:[%s0 + $0xd8] sm:$0xff]
    %v53 = vld [vmem:[%s0 + $0xe0] sm:$0xff]
    %v54 = vld [vmem:[%s0 + $0xe8] sm:$0xff]
    %v55 = vld [vmem:[%s0 + $0xf0] sm:$0xff]
    %v56 = vld [vmem:[%s0 + $0xf8] sm:$0xff]
    %v57 = vld [vmem:[%s0 + $0x100] sm:$0xff]
    %v58 = vld [vmem:[%s0 + $0x108] sm:$0xff]
    %v59 = vld [vmem:[%s0 + $0x110] sm:$0xff]
    %v60 = vld [vmem:[%s0 + $0x118] sm:$0xff]
    %v61 = vld [vmem:[%s0 + $0x120] sm:$0xff]
    %v62 = vld [vmem:[%s0 + $0x128] sm:$0xff]
    %v63 = vld [vmem:[%s0 + $0x130] sm:$0xff]
    %v64 = vld [vmem:[%s0 + $0x138] sm:$0xff]
    %v65 = vld [vmem:[%s0 + $0x140] sm:$0xff]
    %v66 = vld [vmem:[%s0 + $0x148] sm:$0xff]
    %v67 = vld [vmem:[%s0 + $0x150] sm:$0xff]
    %v68 = vld [vmem:[%s0 + $0x158] sm:$0xff]
    %v69 = vld [vmem:[%s0 + $0x160] sm:$0xff]
    %v70 = vld [vmem:[%s0 + $0x168] sm:$0xff]
    %v71 = vld [vmem:[%s0 + $0x170] sm:$0xff]
    %v72 = vld [vmem:[%s0 + $0x178] sm:$0xff]
    %v73 = vld [vmem:[%s0 + $0x180] sm:$0xff]
    %v74 = vld [vmem:[%s0 + $0x188] sm:$0xff]
    %v75 = vld [vmem:[%s0 + $0x190] sm:$0xff]
    %v76 = vld [vmem:[%s0 + $0x198] sm:$0xff]
    %v77 = vld [vmem:[%s0 + $0x1a0] sm:$0xff]
    %v78 = vld [vmem:[%s0 + $0x1a8] sm:$0xff]
    %v79 = vld [vmem:[%s0 + $0x1b0] sm:$0xff]
    %v80 = vld [vmem:[%s0 + $0x1b8] sm:$0xff]
    %v81 = vld [vmem:[%s0 + $0x1c0] sm:$0xff]
    %v82 = vld [vmem:[%s0 + $0x1c8] sm:$0xff]
    %v83 = vld [vmem:[%s0 + $0x1d0] sm:$0xff]
    %v84 = vld [vmem:[%s0 + $0x1d8] sm:$0xff]
    %v85 = vld [vmem:[%s0 + $0x1e0] sm:$0xff]
    %v86 = vld [vmem:[%s0 + $0x1e8] sm:$0xff]
    %v87 = vld [vmem:[%s0 + $0x1f0] sm:$0xff]
    %v88 = vld [vmem:[%s0 + $0x1f8] sm:$0xff]
    %v89 = vld [vmem:[%s0 + $0x200] sm:$0xff]
    %v90 = vld [vmem:[%s0 + $0x208] sm:$0xff]
    %v91 = vld [vmem:[%s0 + $0x210] sm:$0xff]
    %v92 = vld [vmem:[%s0 + $0x218] sm:$0xff]
    %v93 = vld [vmem:[%s0 + $0x220] sm:$0xff]
    %v94 = vld [vmem:[%s0 + $0x228] sm:$0xff]
    %v95 = vld [vmem:[%s0 + $0x230] sm:$0xff]
    %v96 = vld [vmem:[%s0 + $0x238] sm:$0xff]
    %v97 = vld [vmem:[%s0 + $0x240] sm:$0xff]
    %v98 = vld [vmem:[%s0 + $0x248] sm:$0xff]
    %v99 = vld [vmem:[%s0 + $0x250] sm:$0xff]
    %v100 = vld [vmem:[%s0 + $0x258] sm:$0xff]
    %v101 = vld [vmem:[%s0 + $0x260] sm:$0xff]
    %v102 = vld [vmem:[%s0 + $0x268] sm:$0xff]
    %v103 = vld [vmem:[%s0 + $0x270] sm:$0xff]
    %v104 = vld [vmem:[%s0 + $0x278] sm:$0xff]
    %v105 = vld [vmem:[%s0 + $0x280] sm:$0xff]
    %v106 = vld [vmem:[%s0 + $0x288] sm:$0xff]
    %v107 = vld [vmem:[%s0 + $0x290] sm:$0xff]
    %v108 = vld [vmem:[%s0 + $0x298] sm:$0xff]
    %v109 = vld [vmem:[%s0 + $0x2a0] sm:$0xff]
    %v110 = vld [vmem:[%s0 + $0x2a8] sm:$0xff]
    %v111 = vld [vmem:[%s0 + $0x2b0] sm:$0xff]
    %v112 = vld [vmem:[%s0 + $0x2b8] sm:$0xff]
    %v113 = vld [vmem:[%s0 + $0x2c0] sm:$0xff]
    %v114 = vld [vmem:[%s0 + $0x2c8] sm:$0xff]
    %v115 = vld [vmem:[%s0 + $0x2d0] sm:$0xff]
    %v116 = vld [vmem:[%s0 + $0x2d8] sm:$0xff]
    %v117 = vld [vmem:[%s0 + $0x2e0] sm:$0xff]
    %v118 = vld [vmem:[%s0 + $0x2e8] sm:$0xff]
    %v119 = vld [vmem:[%s0 + $0x2f0] sm:$0xff]
    %v120 = vld [vmem:[%s0 + $0x2f8] sm:$0xff]
    %v121 = vld [vmem:[%s0 + $0x300] sm:$0xff]
    %v122 = vld [vmem:[%s0 + $0x308] sm:$0xff]
    %v123 = vld [vmem:[%s0 + $0x310] sm:$0xff]
    %v124 = vld [vmem:[%s0 + $0x318] sm:$0xff]
    %v125 = vld [vmem:[%s0 + $0x320] sm:$0xff]
    %v126 = vld [vmem:[%s0 + $0x328] sm:$0xff]
    %v127 = vld [vmem:[%s0 + $0x330] sm:$0xff]
    %v128 = vld [vmem:[%s0 + $0x338] sm:$0xff]
    %v129 = vld [vmem:[%s0 + $0x340] sm:$0xff]
    %v130 = vld [vmem:[%s0 + $0x348] sm:$0xff]
    %v131 = vld [vmem:[%s0 + $0x350] sm:$0xff]
    %v132 = vld [vmem:[%s0 + $0x358] sm:$0xff]
    %v133 = vld [vmem:[%s0 + $0x360] sm:$0xff]
    %v134 = vld [vmem:[%s0 + $0x368] sm:$0xff]
    %v135 = vld [vmem:[%s0 + $0x370] sm:$0xff]
    %v136 = vld [vmem:[%s0 + $0x378] sm:$0xff]
    %v137 = vld [vmem:[%s0 + $0x380] sm:$0xff]
    %v138 = vld [vmem:[%s0 + $0x388] sm:$0xff]
    %v139 = vld [vmem:[%s0 + $0x390] sm:$0xff]
    %v140 = vld [vmem:[%s0 + $0x398] sm:$0xff]
    %v141 = vld [vmem:[%s0 + $0x3a0] sm:$0xff]
    %v142 = vld [vmem:[%s0 + $0x3a8] sm:$0xff]
    %v143 = vld [vmem:[%s0 + $0x3b0] sm:$0xff]
    %v144 = vld [vmem:[%s0 + $0x3b8] sm:$0xff]
    %v145 = vld [vmem:[%s0 + $0x3c0] sm:$0xff]
    %v146 = vld [vmem:[%s0 + $0x3c8] sm:$0xff]
    %v147 = vld [vmem:[%s0 + $0x3d0] sm:$0xff]
    %v148 = vld [vmem:[%s0 + $0x3d8] sm:$0xff]
    %v149 = vld [vmem:[%s0 + $0x3e0] sm:$0xff]
    %v150 = vld [vmem:[%s0 + $0x3e8] sm:$0xff]
    %v151 = vld [vmem:[%s0 + $0x3f0] sm:$0xff]
    %v152 = vld [vmem:[%s0 + $0x3f8] sm:$0xff]
    %v153 = vld [vmem:[%s1] sm:$0xf]
    %v154 = vld [vmem:[%s1 + $0x4] sm:$0xf]
    %v155 = vld [vmem:[%s1 + $0x8] sm:$0xf]
    %v156 = vld [vmem:[%s1 + $0xc] sm:$0xf]
    %v157 = vld [vmem:[%s1 + $0x10] sm:$0xf]
    %v158 = vld [vmem:[%s1 + $0x14] sm:$0xf]
    %v159 = vld [vmem:[%s1 + $0x18] sm:$0xf]
    %v160 = vld [vmem:[%s1 + $0x1c] sm:$0xf]
    %v161 = vld [vmem:[%s1 + $0x20] sm:$0xf]
    %v162 = vld [vmem:[%s1 + $0x24] sm:$0xf]
    %v163 = vld [vmem:[%s1 + $0x28] sm:$0xf]
    %v164 = vld [vmem:[%s1 + $0x2c] sm:$0xf]
    %v165 = vld [vmem:[%s1 + $0x30] sm:$0xf]
    %v166 = vld [vmem:[%s1 + $0x34] sm:$0xf]
    %v167 = vld [vmem:[%s1 + $0x38] sm:$0xf]
    %v168 = vld [vmem:[%s1 + $0x3c] sm:$0xf]
    %v169 = vld [vmem:[%s1 + $0x40] sm:$0xf]
    %v170 = vld [vmem:[%s1 + $0x44] sm:$0xf]
    %v171 = vld [vmem:[%s1 + $0x48] sm:$0xf]
    %v172 = vld [vmem:[%s1 + $0x4c] sm:$0xf]
    %v173 = vld [vmem:[%s1 + $0x50] sm:$0xf]
    %v174 = vld [vmem:[%s1 + $0x54] sm:$0xf]
    %v175 = vld [vmem:[%s1 + $0x58] sm:$0xf]
    %v176 = vld [vmem:[%s1 + $0x5c] sm:$0xf]
    %v177 = vld [vmem:[%s1 + $0x60] sm:$0xf]
    %v178 = vld [vmem:[%s1 + $0x64] sm:$0xf]
    %v179 = vld [vmem:[%s1 + $0x68] sm:$0xf]
    %v180 = vld [vmem:[%s1 + $0x6c] sm:$0xf]
    %v181 = vld [vmem:[%s1 + $0x70] sm:$0xf]
    %v182 = vld [vmem:[%s1 + $0x74] sm:$0xf]
    %v183 = vld [vmem:[%s1 + $0x78] sm:$0xf]
    %v184 = vld [vmem:[%s1 + $0x7c] sm:$0xf]
    %v185 = vld [vmem:[%s1 + $0x80] sm:$0xf]
    %v186 = vld [vmem:[%s1 + $0x84] sm:$0xf]
    %v187 = vld [vmem:[%s1 + $0x88] sm:$0xf]
    %v188 = vld [vmem:[%s1 + $0x8c] sm:$0xf]
    %v189 = vld [vmem:[%s1 + $0x90] sm:$0xf]
    %v190 = vld [vmem:[%s1 + $0x94] sm:$0xf]
    %v191 = vld [vmem:[%s1 + $0x98] sm:$0xf]
    %v192 = vld [vmem:[%s1 + $0x9c] sm:$0xf]
    %v193 = vld [vmem:[%s1 + $0xa0] sm:$0xf]
    %v194 = vld [vmem:[%s1 + $0xa4] sm:$0xf]
    %v195 = vld [vmem:[%s1 + $0xa8] sm:$0xf]
    %v196 = vld [vmem:[%s1 + $0xac] sm:$0xf]
    %v197 = vld [vmem:[%s1 + $0xb0] sm:$0xf]
    %v198 = vld [vmem:[%s1 + $0xb4] sm:$0xf]
    %v199 = vld [vmem:[%s1 + $0xb8] sm:$0xf]
    %v200 = vld [vmem:[%s1 + $0xbc] sm:$0xf]
    %v201 = vld [vmem:[%s1 + $0xc0] sm:$0xf]
    %v202 = vld [vmem:[%s1 + $0xc4] sm:$0xf]
    %v203 = vld [vmem:[%s1 + $0xc8] sm:$0xf]
    %v204 = vld [vmem:[%s1 + $0xcc] sm:$0xf]
    %v205 = vld [vmem:[%s1 + $0xd0] sm:$0xf]
    %v206 = vld [vmem:[%s1 + $0xd4] sm:$0xf]
    %v207 = vld [vmem:[%s1 + $0xd8] sm:$0xf]
    %v208 = vld [vmem:[%s1 + $0xdc] sm:$0xf]
    %v209 = vld [vmem:[%s1 + $0xe0] sm:$0xf]
    %v210 = vld [vmem:[%s1 + $0xe4] sm:$0xf]
    %v211 = vld [vmem:[%s1 + $0xe8] sm:$0xf]
    %v212 = vld [vmem:[%s1 + $0xec] sm:$0xf]
    %v213 = vld [vmem:[%s1 + $0xf0] sm:$0xf]
    %v214 = vld [vmem:[%s1 + $0xf4] sm:$0xf]
    %v215 = vld [vmem:[%s1 + $0xf8] sm:$0xf]
    %v216 = vld [vmem:[%s1 + $0xfc] sm:$0xf]
    %v345 = vunpack.c.l.b16 %v25
    %v346 = vunpack.c.h.b16 %v25
    %v347 = vunpack.c.l.b16 %v26
    %v348 = vunpack.c.h.b16 %v26
    %v349 = vunpack.c.l.b16 %v27
    %v350 = vunpack.c.h.b16 %v27
    %v351 = vunpack.c.l.b16 %v28
    %v352 = vunpack.c.h.b16 %v28
    %v353 = vunpack.c.l.b16 %v29
    %v354 = vunpack.c.h.b16 %v29
    %v355 = vunpack.c.l.b16 %v30
    %v356 = vunpack.c.h.b16 %v30
    %v357 = vunpack.c.l.b16 %v31
    %v358 = vunpack.c.h.b16 %v31
    %v359 = vunpack.c.l.b16 %v32
    %v360 = vunpack.c.h.b16 %v32
    %v361 = vunpack.c.l.b16 %v33
    %v362 = vunpack.c.h.b16 %v33
    %v363 = vunpack.c.l.b16 %v34
    %v364 = vunpack.c.h.b16 %v34
    %v365 = vunpack.c.l.b16 %v35
    %v366 = vunpack.c.h.b16 %v35
    %v367 = vunpack.c.l.b16 %v36
    %v368 = vunpack.c.h.b16 %v36
    %v369 = vunpack.c.l.b16 %v37
    %v370 = vunpack.c.h.b16 %v37
    %v371 = vunpack.c.l.b16 %v38
    %v372 = vunpack.c.h.b16 %v38
    %v373 = vunpack.c.l.b16 %v39
    %v374 = vunpack.c.h.b16 %v39
    %v375 = vunpack.c.l.b16 %v40
    %v376 = vunpack.c.h.b16 %v40
    %v377 = vunpack.c.l.b16 %v41
    %v378 = vunpack.c.h.b16 %v41
    %v379 = vunpack.c.l.b16 %v42
    %v380 = vunpack.c.h.b16 %v42
    %v381 = vunpack.c.l.b16 %v43
    %v382 = vunpack.c.h.b16 %v43
    %v383 = vunpack.c.l.b16 %v44
    %v384 = vunpack.c.h.b16 %v44
    %v385 = vunpack.c.l.b16 %v45
    %v386 = vunpack.c.h.b16 %v45
    %v387 = vunpack.c.l.b16 %v46
    %v388 = vunpack.c.h.b16 %v46
    %v389 = vunpack.c.l.b16 %v47
    %v390 = vunpack.c.h.b16 %v47
    %v391 = vunpack.c.l.b16 %v48
    %v392 = vunpack.c.h.b16 %v48
    %v393 = vunpack.c.l.b16 %v49
    %v394 = vunpack.c.h.b16 %v49
    %v395 = vunpack.c.l.b16 %v50
    %v396 = vunpack.c.h.b16 %v50
    %v397 = vunpack.c.l.b16 %v51
    %v398 = vunpack.c.h.b16 %v51
    %v399 = vunpack.c.l.b16 %v52
    %v400 = vunpack.c.h.b16 %v52
    %v401 = vunpack.c.l.b16 %v53
    %v402 = vunpack.c.h.b16 %v53
    %v403 = vunpack.c.l.b16 %v54
    %v404 = vunpack.c.h.b16 %v54
    %v405 = vunpack.c.l.b16 %v55
    %v406 = vunpack.c.h.b16 %v55
    %v407 = vunpack.c.l.b16 %v56
    %v408 = vunpack.c.h.b16 %v56
    %v409 = vunpack.c.l.b16 %v57
    %v410 = vunpack.c.h.b16 %v57
    %v411 = vunpack.c.l.b16 %v58
    %v412 = vunpack.c.h.b16 %v58
    %v413 = vunpack.c.l.b16 %v59
    %v414 = vunpack.c.h.b16 %v59
    %v415 = vunpack.c.l.b16 %v60
    %v416 = vunpack.c.h.b16 %v60
    %v417 = vunpack.c.l.b16 %v61
    %v418 = vunpack.c.h.b16 %v61
    %v419 = vunpack.c.l.b16 %v62
    %v420 = vunpack.c.h.b16 %v62
    %v421 = vunpack.c.l.b16 %v63
    %v422 = vunpack.c.h.b16 %v63
    %v423 = vunpack.c.l.b16 %v64
    %v424 = vunpack.c.h.b16 %v64
    %v425 = vunpack.c.l.b16 %v65
    %v426 = vunpack.c.h.b16 %v65
    %v427 = vunpack.c.l.b16 %v66
    %v428 = vunpack.c.h.b16 %v66
    %v429 = vunpack.c.l.b16 %v67
    %v430 = vunpack.c.h.b16 %v67
    %v431 = vunpack.c.l.b16 %v68
    %v432 = vunpack.c.h.b16 %v68
    %v433 = vunpack.c.l.b16 %v69
    %v434 = vunpack.c.h.b16 %v69
    %v435 = vunpack.c.l.b16 %v70
    %v436 = vunpack.c.h.b16 %v70
    %v437 = vunpack.c.l.b16 %v71
    %v438 = vunpack.c.h.b16 %v71
    %v439 = vunpack.c.l.b16 %v72
    %v440 = vunpack.c.h.b16 %v72
    %v441 = vunpack.c.l.b16 %v73
    %v442 = vunpack.c.h.b16 %v73
    %v443 = vunpack.c.l.b16 %v74
    %v444 = vunpack.c.h.b16 %v74
    %v445 = vunpack.c.l.b16 %v75
    %v446 = vunpack.c.h.b16 %v75
    %v447 = vunpack.c.l.b16 %v76
    %v448 = vunpack.c.h.b16 %v76
    %v449 = vunpack.c.l.b16 %v77
    %v450 = vunpack.c.h.b16 %v77
    %v451 = vunpack.c.l.b16 %v78
    %v452 = vunpack.c.h.b16 %v78
    %v453 = vunpack.c.l.b16 %v79
    %v454 = vunpack.c.h.b16 %v79
    %v455 = vunpack.c.l.b16 %v80
    %v456 = vunpack.c.h.b16 %v80
    %v457 = vunpack.c.l.b16 %v81
    %v458 = vunpack.c.h.b16 %v81
    %v459 = vunpack.c.l.b16 %v82
    %v460 = vunpack.c.h.b16 %v82
    %v461 = vunpack.c.l.b16 %v83
    %v462 = vunpack.c.h.b16 %v83
    %v463 = vunpack.c.l.b16 %v84
    %v464 = vunpack.c.h.b16 %v84
    %v465 = vunpack.c.l.b16 %v85
    %v466 = vunpack.c.h.b16 %v85
    %v467 = vunpack.c.l.b16 %v86
    %v468 = vunpack.c.h.b16 %v86
    %v469 = vunpack.c.l.b16 %v87
    %v470 = vunpack.c.h.b16 %v87
    %v471 = vunpack.c.l.b16 %v88
    %v472 = vunpack.c.h.b16 %v88
    %v473 = vunpack.c.l.b16 %v89
    %v474 = vunpack.c.h.b16 %v89
    %v475 = vunpack.c.l.b16 %v90
    %v476 = vunpack.c.h.b16 %v90
    %v477 = vunpack.c.l.b16 %v91
    %v478 = vunpack.c.h.b16 %v91
    %v479 = vunpack.c.l.b16 %v92
    %v480 = vunpack.c.h.b16 %v92
    %v481 = vunpack.c.l.b16 %v93
    %v482 = vunpack.c.h.b16 %v93
    %v483 = vunpack.c.l.b16 %v94
    %v484 = vunpack.c.h.b16 %v94
    %v485 = vunpack.c.l.b16 %v95
    %v486 = vunpack.c.h.b16 %v95
    %v487 = vunpack.c.l.b16 %v96
    %v488 = vunpack.c.h.b16 %v96
    %v489 = vunpack.c.l.b16 %v97
    %v490 = vunpack.c.h.b16 %v97
    %v491 = vunpack.c.l.b16 %v98
    %v492 = vunpack.c.h.b16 %v98
    %v493 = vunpack.c.l.b16 %v99
    %v494 = vunpack.c.h.b16 %v99
    %v495 = vunpack.c.l.b16 %v100
    %v496 = vunpack.c.h.b16 %v100
    %v497 = vunpack.c.l.b16 %v101
    %v498 = vunpack.c.h.b16 %v101
    %v499 = vunpack.c.l.b16 %v102
    %v500 = vunpack.c.h.b16 %v102
    %v501 = vunpack.c.l.b16 %v103
    %v502 = vunpack.c.h.b16 %v103
    %v503 = vunpack.c.l.b16 %v104
    %v504 = vunpack.c.h.b16 %v104
    %v505 = vunpack.c.l.b16 %v105
    %v506 = vunpack.c.h.b16 %v105
    %v507 = vunpack.c.l.b16 %v106
    %v508 = vunpack.c.h.b16 %v106
    %v509 = vunpack.c.l.b16 %v107
    %v510 = vunpack.c.h.b16 %v107
    %v511 = vunpack.c.l.b16 %v108
    %v512 = vunpack.c.h.b16 %v108
    %v513 = vunpack.c.l.b16 %v109
    %v514 = vunpack.c.h.b16 %v109
    %v515 = vunpack.c.l.b16 %v110
    %v516 = vunpack.c.h.b16 %v110
    %v517 = vunpack.c.l.b16 %v111
    %v518 = vunpack.c.h.b16 %v111
    %v519 = vunpack.c.l.b16 %v112
    %v520 = vunpack.c.h.b16 %v112
    %v521 = vunpack.c.l.b16 %v113
    %v522 = vunpack.c.h.b16 %v113
    %v523 = vunpack.c.l.b16 %v114
    %v524 = vunpack.c.h.b16 %v114
    %v525 = vunpack.c.l.b16 %v115
    %v526 = vunpack.c.h.b16 %v115
    %v527 = vunpack.c.l.b16 %v116
    %v528 = vunpack.c.h.b16 %v116
    %v529 = vunpack.c.l.b16 %v117
    %v530 = vunpack.c.h.b16 %v117
    %v531 = vunpack.c.l.b16 %v118
    %v532 = vunpack.c.h.b16 %v118
    %v533 = vunpack.c.l.b16 %v119
    %v534 = vunpack.c.h.b16 %v119
    %v535 = vunpack.c.l.b16 %v120
    %v536 = vunpack.c.h.b16 %v120
    %v537 = vunpack.c.l.b16 %v121
    %v538 = vunpack.c.h.b16 %v121
    %v539 = vunpack.c.l.b16 %v122
    %v540 = vunpack.c.h.b16 %v122
    %v541 = vunpack.c.l.b16 %v123
    %v542 = vunpack.c.h.b16 %v123
    %v543 = vunpack.c.l.b16 %v124
    %v544 = vunpack.c.h.b16 %v124
    %v545 = vunpack.c.l.b16 %v125
    %v546 = vunpack.c.h.b16 %v125
    %v547 = vunpack.c.l.b16 %v126
    %v548 = vunpack.c.h.b16 %v126
    %v549 = vunpack.c.l.b16 %v127
    %v550 = vunpack.c.h.b16 %v127
    %v551 = vunpack.c.l.b16 %v128
    %v552 = vunpack.c.h.b16 %v128
    %v553 = vunpack.c.l.b16 %v129
    %v554 = vunpack.c.h.b16 %v129
    %v555 = vunpack.c.l.b16 %v130
    %v556 = vunpack.c.h.b16 %v130
    %v557 = vunpack.c.l.b16 %v131
    %v558 = vunpack.c.h.b16 %v131
    %v559 = vunpack.c.l.b16 %v132
    %v560 = vunpack.c.h.b16 %v132
    %v561 = vunpack.c.l.b16 %v133
    %v562 = vunpack.c.h.b16 %v133
    %v563 = vunpack.c.l.b16 %v134
    %v564 = vunpack.c.h.b16 %v134
    %v565 = vunpack.c.l.b16 %v135
    %v566 = vunpack.c.h.b16 %v135
    %v567 = vunpack.c.l.b16 %v136
    %v568 = vunpack.c.h.b16 %v136
    %v569 = vunpack.c.l.b16 %v137
    %v570 = vunpack.c.h.b16 %v137
    %v571 = vunpack.c.l.b16 %v138
    %v572 = vunpack.c.h.b16 %v138
    %v573 = vunpack.c.l.b16 %v139
    %v574 = vunpack.c.h.b16 %v139
    %v575 = vunpack.c.l.b16 %v140
    %v576 = vunpack.c.h.b16 %v140
    %v577 = vunpack.c.l.b16 %v141
    %v578 = vunpack.c.h.b16 %v141
    %v579 = vunpack.c.l.b16 %v142
    %v580 = vunpack.c.h.b16 %v142
    %v581 = vunpack.c.l.b16 %v143
    %v582 = vunpack.c.h.b16 %v143
    %v583 = vunpack.c.l.b16 %v144
    %v584 = vunpack.c.h.b16 %v144
    %v585 = vunpack.c.l.b16 %v145
    %v586 = vunpack.c.h.b16 %v145
    %v587 = vunpack.c.l.b16 %v146
    %v588 = vunpack.c.h.b16 %v146
    %v589 = vunpack.c.l.b16 %v147
    %v590 = vunpack.c.h.b16 %v147
    %v591 = vunpack.c.l.b16 %v148
    %v592 = vunpack.c.h.b16 %v148
    %v593 = vunpack.c.l.b16 %v149
    %v594 = vunpack.c.h.b16 %v149
    %v595 = vunpack.c.l.b16 %v150
    %v596 = vunpack.c.h.b16 %v150
    %v597 = vunpack.c.l.b16 %v151
    %v598 = vunpack.c.h.b16 %v151
    %v599 = vunpack.c.l.b16 %v152
    %v600 = vunpack.c.h.b16 %v152
    %v601 = vpack.c.b16 %v349, %v345
    %v602 = vpack.c.b16 %v350, %v346
    %v603 = vpack.c.b16 %v351, %v347
    %v604 = vpack.c.b16 %v352, %v348
    %v605 = vpack.c.b16 %v357, %v353
    %v606 = vpack.c.b16 %v358, %v354
    %v607 = vpack.c.b16 %v359, %v355
    %v608 = vpack.c.b16 %v360, %v356
    %v609 = vpack.c.b16 %v365, %v361
    %v610 = vpack.c.b16 %v366, %v362
    %v611 = vpack.c.b16 %v367, %v363
    %v612 = vpack.c.b16 %v368, %v364
    %v613 = vpack.c.b16 %v373, %v369
    %v614 = vpack.c.b16 %v374, %v370
    %v615 = vpack.c.b16 %v375, %v371
    %v616 = vpack.c.b16 %v376, %v372
    %v617 = vpack.c.b16 %v381, %v377
    %v618 = vpack.c.b16 %v382, %v378
    %v619 = vpack.c.b16 %v383, %v379
    %v620 = vpack.c.b16 %v384, %v380
    %v621 = vpack.c.b16 %v389, %v385
    %v622 = vpack.c.b16 %v390, %v386
    %v623 = vpack.c.b16 %v391, %v387
    %v624 = vpack.c.b16 %v392, %v388
    %v625 = vpack.c.b16 %v397, %v393
    %v626 = vpack.c.b16 %v398, %v394
    %v627 = vpack.c.b16 %v399, %v395
    %v628 = vpack.c.b16 %v400, %v396
    %v629 = vpack.c.b16 %v405, %v401
    %v630 = vpack.c.b16 %v406, %v402
    %v631 = vpack.c.b16 %v407, %v403
    %v632 = vpack.c.b16 %v408, %v404
    %v633 = vpack.c.b16 %v413, %v409
    %v634 = vpack.c.b16 %v414, %v410
    %v635 = vpack.c.b16 %v415, %v411
    %v636 = vpack.c.b16 %v416, %v412
    %v637 = vpack.c.b16 %v421, %v417
    %v638 = vpack.c.b16 %v422, %v418
    %v639 = vpack.c.b16 %v423, %v419
    %v640 = vpack.c.b16 %v424, %v420
    %v641 = vpack.c.b16 %v429, %v425
    %v642 = vpack.c.b16 %v430, %v426
    %v643 = vpack.c.b16 %v431, %v427
    %v644 = vpack.c.b16 %v432, %v428
    %v645 = vpack.c.b16 %v437, %v433
    %v646 = vpack.c.b16 %v438, %v434
    %v647 = vpack.c.b16 %v439, %v435
    %v648 = vpack.c.b16 %v440, %v436
    %v649 = vpack.c.b16 %v445, %v441
    %v650 = vpack.c.b16 %v446, %v442
    %v651 = vpack.c.b16 %v447, %v443
    %v652 = vpack.c.b16 %v448, %v444
    %v653 = vpack.c.b16 %v453, %v449
    %v654 = vpack.c.b16 %v454, %v450
    %v655 = vpack.c.b16 %v455, %v451
    %v656 = vpack.c.b16 %v456, %v452
    %v657 = vpack.c.b16 %v461, %v457
    %v658 = vpack.c.b16 %v462, %v458
    %v659 = vpack.c.b16 %v463, %v459
    %v660 = vpack.c.b16 %v464, %v460
    %v661 = vpack.c.b16 %v469, %v465
    %v662 = vpack.c.b16 %v470, %v466
    %v663 = vpack.c.b16 %v471, %v467
    %v664 = vpack.c.b16 %v472, %v468
    %v665 = vpack.c.b16 %v477, %v473
    %v666 = vpack.c.b16 %v478, %v474
    %v667 = vpack.c.b16 %v479, %v475
    %v668 = vpack.c.b16 %v480, %v476
    %v669 = vpack.c.b16 %v485, %v481
    %v670 = vpack.c.b16 %v486, %v482
    %v671 = vpack.c.b16 %v487, %v483
    %v672 = vpack.c.b16 %v488, %v484
    %v673 = vpack.c.b16 %v493, %v489
    %v674 = vpack.c.b16 %v494, %v490
    %v675 = vpack.c.b16 %v495, %v491
    %v676 = vpack.c.b16 %v496, %v492
    %v677 = vpack.c.b16 %v501, %v497
    %v678 = vpack.c.b16 %v502, %v498
    %v679 = vpack.c.b16 %v503, %v499
    %v680 = vpack.c.b16 %v504, %v500
    %v681 = vpack.c.b16 %v509, %v505
    %v682 = vpack.c.b16 %v510, %v506
    %v683 = vpack.c.b16 %v511, %v507
    %v684 = vpack.c.b16 %v512, %v508
    %v685 = vpack.c.b16 %v517, %v513
    %v686 = vpack.c.b16 %v518, %v514
    %v687 = vpack.c.b16 %v519, %v515
    %v688 = vpack.c.b16 %v520, %v516
    %v689 = vpack.c.b16 %v525, %v521
    %v690 = vpack.c.b16 %v526, %v522
    %v691 = vpack.c.b16 %v527, %v523
    %v692 = vpack.c.b16 %v528, %v524
    %v693 = vpack.c.b16 %v533, %v529
    %v694 = vpack.c.b16 %v534, %v530
    %v695 = vpack.c.b16 %v535, %v531
    %v696 = vpack.c.b16 %v536, %v532
    %v697 = vpack.c.b16 %v541, %v537
    %v698 = vpack.c.b16 %v542, %v538
    %v699 = vpack.c.b16 %v543, %v539
    %v700 = vpack.c.b16 %v544, %v540
    %v701 = vpack.c.b16 %v549, %v545
    %v702 = vpack.c.b16 %v550, %v546
    %v703 = vpack.c.b16 %v551, %v547
    %v704 = vpack.c.b16 %v552, %v548
    %v705 = vpack.c.b16 %v557, %v553
    %v706 = vpack.c.b16 %v558, %v554
    %v707 = vpack.c.b16 %v559, %v555
    %v708 = vpack.c.b16 %v560, %v556
    %v709 = vpack.c.b16 %v565, %v561
    %v710 = vpack.c.b16 %v566, %v562
    %v711 = vpack.c.b16 %v567, %v563
    %v712 = vpack.c.b16 %v568, %v564
    %v713 = vpack.c.b16 %v573, %v569
    %v714 = vpack.c.b16 %v574, %v570
    %v715 = vpack.c.b16 %v575, %v571
    %v716 = vpack.c.b16 %v576, %v572
    %v717 = vpack.c.b16 %v581, %v577
    %v718 = vpack.c.b16 %v582, %v578
    %v719 = vpack.c.b16 %v583, %v579
    %v720 = vpack.c.b16 %v584, %v580
    %v721 = vpack.c.b16 %v589, %v585
    %v722 = vpack.c.b16 %v590, %v586
    %v723 = vpack.c.b16 %v591, %v587
    %v724 = vpack.c.b16 %v592, %v588
    %v725 = vpack.c.b16 %v597, %v593
    %v726 = vpack.c.b16 %v598, %v594
    %v727 = vpack.c.b16 %v599, %v595
    %v728 = vpack.c.b16 %v600, %v596
    %v921 = vunpack.c.l.b16 %v153
    %v922 = vunpack.c.l.b16 %v154
    %v923 = vunpack.c.l.b16 %v155
    %v924 = vunpack.c.l.b16 %v156
    %v925 = vunpack.c.l.b16 %v157
    %v926 = vunpack.c.l.b16 %v158
    %v927 = vunpack.c.l.b16 %v159
    %v928 = vunpack.c.l.b16 %v160
    %v929 = vunpack.c.l.b16 %v161
    %v930 = vunpack.c.l.b16 %v162
    %v931 = vunpack.c.l.b16 %v163
    %v932 = vunpack.c.l.b16 %v164
    %v933 = vunpack.c.l.b16 %v165
    %v934 = vunpack.c.l.b16 %v166
    %v935 = vunpack.c.l.b16 %v167
    %v936 = vunpack.c.l.b16 %v168
    %v937 = vunpack.c.l.b16 %v169
    %v938 = vunpack.c.l.b16 %v170
    %v939 = vunpack.c.l.b16 %v171
    %v940 = vunpack.c.l.b16 %v172
    %v941 = vunpack.c.l.b16 %v173
    %v942 = vunpack.c.l.b16 %v174
    %v943 = vunpack.c.l.b16 %v175
    %v944 = vunpack.c.l.b16 %v176
    %v945 = vunpack.c.l.b16 %v177
    %v946 = vunpack.c.l.b16 %v178
    %v947 = vunpack.c.l.b16 %v179
    %v948 = vunpack.c.l.b16 %v180
    %v949 = vunpack.c.l.b16 %v181
    %v950 = vunpack.c.l.b16 %v182
    %v951 = vunpack.c.l.b16 %v183
    %v952 = vunpack.c.l.b16 %v184
    %v953 = vunpack.c.l.b16 %v185
    %v954 = vunpack.c.l.b16 %v186
    %v955 = vunpack.c.l.b16 %v187
    %v956 = vunpack.c.l.b16 %v188
    %v957 = vunpack.c.l.b16 %v189
    %v958 = vunpack.c.l.b16 %v190
    %v959 = vunpack.c.l.b16 %v191
    %v960 = vunpack.c.l.b16 %v192
    %v961 = vunpack.c.l.b16 %v193
    %v962 = vunpack.c.l.b16 %v194
    %v963 = vunpack.c.l.b16 %v195
    %v964 = vunpack.c.l.b16 %v196
    %v965 = vunpack.c.l.b16 %v197
    %v966 = vunpack.c.l.b16 %v198
    %v967 = vunpack.c.l.b16 %v199
    %v968 = vunpack.c.l.b16 %v200
    %v969 = vunpack.c.l.b16 %v201
    %v970 = vunpack.c.l.b16 %v202
    %v971 = vunpack.c.l.b16 %v203
    %v972 = vunpack.c.l.b16 %v204
    %v973 = vunpack.c.l.b16 %v205
    %v974 = vunpack.c.l.b16 %v206
    %v975 = vunpack.c.l.b16 %v207
    %v976 = vunpack.c.l.b16 %v208
    %v977 = vunpack.c.l.b16 %v209
    %v978 = vunpack.c.l.b16 %v210
    %v979 = vunpack.c.l.b16 %v211
    %v980 = vunpack.c.l.b16 %v212
    %v981 = vunpack.c.l.b16 %v213
    %v982 = vunpack.c.l.b16 %v214
    %v983 = vunpack.c.l.b16 %v215
    %v984 = vunpack.c.l.b16 %v216
    %v985 = vpack.c.b16 %v922, %v921
    %v986 = vpack.c.b16 %v924, %v923
    %v987 = vpack.c.b16 %v926, %v925
    %v988 = vpack.c.b16 %v928, %v927
    %v989 = vpack.c.b16 %v930, %v929
    %v990 = vpack.c.b16 %v932, %v931
    %v991 = vpack.c.b16 %v934, %v933
    %v992 = vpack.c.b16 %v936, %v935
    %v993 = vpack.c.b16 %v938, %v937
    %v994 = vpack.c.b16 %v940, %v939
    %v995 = vpack.c.b16 %v942, %v941
    %v996 = vpack.c.b16 %v944, %v943
    %v997 = vpack.c.b16 %v946, %v945
    %v998 = vpack.c.b16 %v948, %v947
    %v999 = vpack.c.b16 %v950, %v949
    %v1000 = vpack.c.b16 %v952, %v951
    %v1001 = vpack.c.b16 %v954, %v953
    %v1002 = vpack.c.b16 %v956, %v955
    %v1003 = vpack.c.b16 %v958, %v957
    %v1004 = vpack.c.b16 %v960, %v959
    %v1005 = vpack.c.b16 %v962, %v961
    %v1006 = vpack.c.b16 %v964, %v963
    %v1007 = vpack.c.b16 %v966, %v965
    %v1008 = vpack.c.b16 %v968, %v967
    %v1009 = vpack.c.b16 %v970, %v969
    %v1010 = vpack.c.b16 %v972, %v971
    %v1011 = vpack.c.b16 %v974, %v973
    %v1012 = vpack.c.b16 %v976, %v975
    %v1013 = vpack.c.b16 %v978, %v977
    %v1014 = vpack.c.b16 %v980, %v979
    %v1015 = vpack.c.b16 %v982, %v981
    %v1016 = vpack.c.b16 %v984, %v983
    %1049 = vmatpush.bf16.msra.mxu0 %v992
    %1050 = vmatpush.bf16.msra.mxu0 %v991
    %1051 = vmatpush.bf16.msra.mxu0 %v990
    %1052 = vmatpush.bf16.msra.mxu0 %v989
    %1053 = vmatpush.bf16.msra.mxu0 %v988
    %1054 = vmatpush.bf16.msra.mxu0 %v987
    %1055 = vmatpush.bf16.msra.mxu0 %v986
    %1056 = vmatpush.bf16.msra.mxu0 %v985
    %1057 = vmatmul.bf16.gmra.mxu0 %v601
    %v1058 = vpop.f32.mrf.mxu0
    %v1059 = vadd.f32 0.0, %v1058
    %v1060 = vpop.f32.mrf.mxu0
    %v1061 = vadd.f32 0.0, %v1060
    %1062 = vmatmul.bf16.gmra.mxu0 %v605
    %v1063 = vpop.f32.mrf.mxu0
    %v1064 = vadd.f32 0.0, %v1063
    %v1065 = vpop.f32.mrf.mxu0
    %v1066 = vadd.f32 0.0, %v1065
    %1067 = vmatmul.bf16.gmra.mxu0 %v609
    %v1068 = vpop.f32.mrf.mxu0
    %v1069 = vadd.f32 0.0, %v1068
    %v1070 = vpop.f32.mrf.mxu0
    %v1071 = vadd.f32 0.0, %v1070
    %1072 = vmatmul.bf16.gmra.mxu0 %v613
    %v1073 = vpop.f32.mrf.mxu0
    %v1074 = vadd.f32 0.0, %v1073
    %v1075 = vpop.f32.mrf.mxu0
    %v1076 = vadd.f32 0.0, %v1075
    %1077 = vmatmul.bf16.gmra.mxu0 %v617
    %v1078 = vpop.f32.mrf.mxu0
    %v1079 = vadd.f32 0.0, %v1078
    %v1080 = vpop.f32.mrf.mxu0
    %v1081 = vadd.f32 0.0, %v1080
    %1082 = vmatmul.bf16.gmra.mxu0 %v621
    %v1083 = vpop.f32.mrf.mxu0
    %v1084 = vadd.f32 0.0, %v1083
    %v1085 = vpop.f32.mrf.mxu0
    %v1086 = vadd.f32 0.0, %v1085
    %1087 = vmatmul.bf16.gmra.mxu0 %v625
    %v1088 = vpop.f32.mrf.mxu0
    %v1089 = vadd.f32 0.0, %v1088
    %v1090 = vpop.f32.mrf.mxu0
    %v1091 = vadd.f32 0.0, %v1090
    %1092 = vmatmul.bf16.gmra.mxu0 %v629
    %v1093 = vpop.f32.mrf.mxu0
    %v1094 = vadd.f32 0.0, %v1093
    %v1095 = vpop.f32.mrf.mxu0
    %v1096 = vadd.f32 0.0, %v1095
    %1097 = vmatmul.bf16.gmra.mxu0 %v633
    %v1098 = vpop.f32.mrf.mxu0
    %v1099 = vadd.f32 0.0, %v1098
    %v1100 = vpop.f32.mrf.mxu0
    %v1101 = vadd.f32 0.0, %v1100
    %1102 = vmatmul.bf16.gmra.mxu0 %v637
    %v1103 = vpop.f32.mrf.mxu0
    %v1104 = vadd.f32 0.0, %v1103
    %v1105 = vpop.f32.mrf.mxu0
    %v1106 = vadd.f32 0.0, %v1105
    %1107 = vmatmul.bf16.gmra.mxu0 %v641
    %v1108 = vpop.f32.mrf.mxu0
    %v1109 = vadd.f32 0.0, %v1108
    %v1110 = vpop.f32.mrf.mxu0
    %v1111 = vadd.f32 0.0, %v1110
    %1112 = vmatmul.bf16.gmra.mxu0 %v645
    %v1113 = vpop.f32.mrf.mxu0
    %v1114 = vadd.f32 0.0, %v1113
    %v1115 = vpop.f32.mrf.mxu0
    %v1116 = vadd.f32 0.0, %v1115
    %1117 = vmatmul.bf16.gmra.mxu0 %v649
    %v1118 = vpop.f32.mrf.mxu0
    %v1119 = vadd.f32 0.0, %v1118
    %v1120 = vpop.f32.mrf.mxu0
    %v1121 = vadd.f32 0.0, %v1120
    %1122 = vmatmul.bf16.gmra.mxu0 %v653
    %v1123 = vpop.f32.mrf.mxu0
    %v1124 = vadd.f32 0.0, %v1123
    %v1125 = vpop.f32.mrf.mxu0
    %v1126 = vadd.f32 0.0, %v1125
    %1127 = vmatmul.bf16.gmra.mxu0 %v657
    %v1128 = vpop.f32.mrf.mxu0
    %v1129 = vadd.f32 0.0, %v1128
    %v1130 = vpop.f32.mrf.mxu0
    %v1131 = vadd.f32 0.0, %v1130
    %1132 = vmatmul.bf16.gmra.mxu0 %v661
    %v1133 = vpop.f32.mrf.mxu0
    %v1134 = vadd.f32 0.0, %v1133
    %v1135 = vpop.f32.mrf.mxu0
    %v1136 = vadd.f32 0.0, %v1135
    %1137 = vmatmul.bf16.gmra.mxu0 %v665
    %v1138 = vpop.f32.mrf.mxu0
    %v1139 = vadd.f32 0.0, %v1138
    %v1140 = vpop.f32.mrf.mxu0
    %v1141 = vadd.f32 0.0, %v1140
    %1142 = vmatmul.bf16.gmra.mxu0 %v669
    %v1143 = vpop.f32.mrf.mxu0
    %v1144 = vadd.f32 0.0, %v1143
    %v1145 = vpop.f32.mrf.mxu0
    %v1146 = vadd.f32 0.0, %v1145
    %1147 = vmatmul.bf16.gmra.mxu0 %v673
    %v1148 = vpop.f32.mrf.mxu0
    %v1149 = vadd.f32 0.0, %v1148
    %v1150 = vpop.f32.mrf.mxu0
    %v1151 = vadd.f32 0.0, %v1150
    %1152 = vmatmul.bf16.gmra.mxu0 %v677
    %v1153 = vpop.f32.mrf.mxu0
    %v1154 = vadd.f32 0.0, %v1153
    %v1155 = vpop.f32.mrf.mxu0
    %v1156 = vadd.f32 0.0, %v1155
    %1157 = vmatmul.bf16.gmra.mxu0 %v681
    %v1158 = vpop.f32.mrf.mxu0
    %v1159 = vadd.f32 0.0, %v1158
    %v1160 = vpop.f32.mrf.mxu0
    %v1161 = vadd.f32 0.0, %v1160
    %1162 = vmatmul.bf16.gmra.mxu0 %v685
    %v1163 = vpop.f32.mrf.mxu0
    %v1164 = vadd.f32 0.0, %v1163
    %v1165 = vpop.f32.mrf.mxu0
    %v1166 = vadd.f32 0.0, %v1165
    %1167 = vmatmul.bf16.gmra.mxu0 %v689
    %v1168 = vpop.f32.mrf.mxu0
    %v1169 = vadd.f32 0.0, %v1168
    %v1170 = vpop.f32.mrf.mxu0
    %v1171 = vadd.f32 0.0, %v1170
    %1172 = vmatmul.bf16.gmra.mxu0 %v693
    %v1173 = vpop.f32.mrf.mxu0
    %v1174 = vadd.f32 0.0, %v1173
    %v1175 = vpop.f32.mrf.mxu0
    %v1176 = vadd.f32 0.0, %v1175
    %1177 = vmatmul.bf16.gmra.mxu0 %v697
    %v1178 = vpop.f32.mrf.mxu0
    %v1179 = vadd.f32 0.0, %v1178
    %v1180 = vpop.f32.mrf.mxu0
    %v1181 = vadd.f32 0.0, %v1180
    %1182 = vmatmul.bf16.gmra.mxu0 %v701
    %v1183 = vpop.f32.mrf.mxu0
    %v1184 = vadd.f32 0.0, %v1183
    %v1185 = vpop.f32.mrf.mxu0
    %v1186 = vadd.f32 0.0, %v1185
    %1187 = vmatmul.bf16.gmra.mxu0 %v705
    %v1188 = vpop.f32.mrf.mxu0
    %v1189 = vadd.f32 0.0, %v1188
    %v1190 = vpop.f32.mrf.mxu0
    %v1191 = vadd.f32 0.0, %v1190
    %1192 = vmatmul.bf16.gmra.mxu0 %v709
    %v1193 = vpop.f32.mrf.mxu0
    %v1194 = vadd.f32 0.0, %v1193
    %v1195 = vpop.f32.mrf.mxu0
    %v1196 = vadd.f32 0.0, %v1195
    %1197 = vmatmul.bf16.gmra.mxu0 %v713
    %v1198 = vpop.f32.mrf.mxu0
    %v1199 = vadd.f32 0.0, %v1198
    %v1200 = vpop.f32.mrf.mxu0
    %v1201 = vadd.f32 0.0, %v1200
    %1202 = vmatmul.bf16.gmra.mxu0 %v717
    %v1203 = vpop.f32.mrf.mxu0
    %v1204 = vadd.f32 0.0, %v1203
    %v1205 = vpop.f32.mrf.mxu0
    %v1206 = vadd.f32 0.0, %v1205
    %1207 = vmatmul.bf16.gmra.mxu0 %v721
    %v1208 = vpop.f32.mrf.mxu0
    %v1209 = vadd.f32 0.0, %v1208
    %v1210 = vpop.f32.mrf.mxu0
    %v1211 = vadd.f32 0.0, %v1210
    %1212 = vmatmul.bf16.gmra.mxu0 %v725
    %v1213 = vpop.f32.mrf.mxu0
    %v1214 = vadd.f32 0.0, %v1213
    %v1215 = vpop.f32.mrf.mxu0
    %v1216 = vadd.f32 0.0, %v1215
    %1217 = vdwg.mxu0
    %1218 = vmatpush.bf16.msra.mxu0 %v1000
    %1219 = vmatpush.bf16.msra.mxu0 %v999
    %1220 = vmatpush.bf16.msra.mxu0 %v998
    %1221 = vmatpush.bf16.msra.mxu0 %v997
    %1222 = vmatpush.bf16.msra.mxu0 %v996
    %1223 = vmatpush.bf16.msra.mxu0 %v995
    %1224 = vmatpush.bf16.msra.mxu0 %v994
    %1225 = vmatpush.bf16.msra.mxu0 %v993
    %1226 = vmatmul.bf16.gmra.mxu0 %v602
    %v1227 = vpop.f32.mrf.mxu0
    %v1228 = vadd.f32 %v1059, %v1227
    %v1229 = vpop.f32.mrf.mxu0
    %v1230 = vadd.f32 %v1061, %v1229
    %1231 = vmatmul.bf16.gmra.mxu0 %v606
    %v1232 = vpop.f32.mrf.mxu0
    %v1233 = vadd.f32 %v1064, %v1232
    %v1234 = vpop.f32.mrf.mxu0
    %v1235 = vadd.f32 %v1066, %v1234
    %1236 = vmatmul.bf16.gmra.mxu0 %v610
    %v1237 = vpop.f32.mrf.mxu0
    %v1238 = vadd.f32 %v1069, %v1237
    %v1239 = vpop.f32.mrf.mxu0
    %v1240 = vadd.f32 %v1071, %v1239
    %1241 = vmatmul.bf16.gmra.mxu0 %v614
    %v1242 = vpop.f32.mrf.mxu0
    %v1243 = vadd.f32 %v1074, %v1242
    %v1244 = vpop.f32.mrf.mxu0
    %v1245 = vadd.f32 %v1076, %v1244
    %1246 = vmatmul.bf16.gmra.mxu0 %v618
    %v1247 = vpop.f32.mrf.mxu0
    %v1248 = vadd.f32 %v1079, %v1247
    %v1249 = vpop.f32.mrf.mxu0
    %v1250 = vadd.f32 %v1081, %v1249
    %1251 = vmatmul.bf16.gmra.mxu0 %v622
    %v1252 = vpop.f32.mrf.mxu0
    %v1253 = vadd.f32 %v1084, %v1252
    %v1254 = vpop.f32.mrf.mxu0
    %v1255 = vadd.f32 %v1086, %v1254
    %1256 = vmatmul.bf16.gmra.mxu0 %v626
    %v1257 = vpop.f32.mrf.mxu0
    %v1258 = vadd.f32 %v1089, %v1257
    %v1259 = vpop.f32.mrf.mxu0
    %v1260 = vadd.f32 %v1091, %v1259
    %1261 = vmatmul.bf16.gmra.mxu0 %v630
    %v1262 = vpop.f32.mrf.mxu0
    %v1263 = vadd.f32 %v1094, %v1262
    %v1264 = vpop.f32.mrf.mxu0
    %v1265 = vadd.f32 %v1096, %v1264
    %1266 = vmatmul.bf16.gmra.mxu0 %v634
    %v1267 = vpop.f32.mrf.mxu0
    %v1268 = vadd.f32 %v1099, %v1267
    %v1269 = vpop.f32.mrf.mxu0
    %v1270 = vadd.f32 %v1101, %v1269
    %1271 = vmatmul.bf16.gmra.mxu0 %v638
    %v1272 = vpop.f32.mrf.mxu0
    %v1273 = vadd.f32 %v1104, %v1272
    %v1274 = vpop.f32.mrf.mxu0
    %v1275 = vadd.f32 %v1106, %v1274
    %1276 = vmatmul.bf16.gmra.mxu0 %v642
    %v1277 = vpop.f32.mrf.mxu0
    %v1278 = vadd.f32 %v1109, %v1277
    %v1279 = vpop.f32.mrf.mxu0
    %v1280 = vadd.f32 %v1111, %v1279
    %1281 = vmatmul.bf16.gmra.mxu0 %v646
    %v1282 = vpop.f32.mrf.mxu0
    %v1283 = vadd.f32 %v1114, %v1282
    %v1284 = vpop.f32.mrf.mxu0
    %v1285 = vadd.f32 %v1116, %v1284
    %1286 = vmatmul.bf16.gmra.mxu0 %v650
    %v1287 = vpop.f32.mrf.mxu0
    %v1288 = vadd.f32 %v1119, %v1287
    %v1289 = vpop.f32.mrf.mxu0
    %v1290 = vadd.f32 %v1121, %v1289
    %1291 = vmatmul.bf16.gmra.mxu0 %v654
    %v1292 = vpop.f32.mrf.mxu0
    %v1293 = vadd.f32 %v1124, %v1292
    %v1294 = vpop.f32.mrf.mxu0
    %v1295 = vadd.f32 %v1126, %v1294
    %1296 = vmatmul.bf16.gmra.mxu0 %v658
    %v1297 = vpop.f32.mrf.mxu0
    %v1298 = vadd.f32 %v1129, %v1297
    %v1299 = vpop.f32.mrf.mxu0
    %v1300 = vadd.f32 %v1131, %v1299
    %1301 = vmatmul.bf16.gmra.mxu0 %v662
    %v1302 = vpop.f32.mrf.mxu0
    %v1303 = vadd.f32 %v1134, %v1302
    %v1304 = vpop.f32.mrf.mxu0
    %v1305 = vadd.f32 %v1136, %v1304
    %1306 = vmatmul.bf16.gmra.mxu0 %v666
    %v1307 = vpop.f32.mrf.mxu0
    %v1308 = vadd.f32 %v1139, %v1307
    %v1309 = vpop.f32.mrf.mxu0
    %v1310 = vadd.f32 %v1141, %v1309
    %1311 = vmatmul.bf16.gmra.mxu0 %v670
    %v1312 = vpop.f32.mrf.mxu0
    %v1313 = vadd.f32 %v1144, %v1312
    %v1314 = vpop.f32.mrf.mxu0
    %v1315 = vadd.f32 %v1146, %v1314
    %1316 = vmatmul.bf16.gmra.mxu0 %v674
    %v1317 = vpop.f32.mrf.mxu0
    %v1318 = vadd.f32 %v1149, %v1317
    %v1319 = vpop.f32.mrf.mxu0
    %v1320 = vadd.f32 %v1151, %v1319
    %1321 = vmatmul.bf16.gmra.mxu0 %v678
    %v1322 = vpop.f32.mrf.mxu0
    %v1323 = vadd.f32 %v1154, %v1322
    %v1324 = vpop.f32.mrf.mxu0
    %v1325 = vadd.f32 %v1156, %v1324
    %1326 = vmatmul.bf16.gmra.mxu0 %v682
    %v1327 = vpop.f32.mrf.mxu0
    %v1328 = vadd.f32 %v1159, %v1327
    %v1329 = vpop.f32.mrf.mxu0
    %v1330 = vadd.f32 %v1161, %v1329
    %1331 = vmatmul.bf16.gmra.mxu0 %v686
    %v1332 = vpop.f32.mrf.mxu0
    %v1333 = vadd.f32 %v1164, %v1332
    %v1334 = vpop.f32.mrf.mxu0
    %v1335 = vadd.f32 %v1166, %v1334
    %1336 = vmatmul.bf16.gmra.mxu0 %v690
    %v1337 = vpop.f32.mrf.mxu0
    %v1338 = vadd.f32 %v1169, %v1337
    %v1339 = vpop.f32.mrf.mxu0
    %v1340 = vadd.f32 %v1171, %v1339
    %1341 = vmatmul.bf16.gmra.mxu0 %v694
    %v1342 = vpop.f32.mrf.mxu0
    %v1343 = vadd.f32 %v1174, %v1342
    %v1344 = vpop.f32.mrf.mxu0
    %v1345 = vadd.f32 %v1176, %v1344
    %1346 = vmatmul.bf16.gmra.mxu0 %v698
    %v1347 = vpop.f32.mrf.mxu0
    %v1348 = vadd.f32 %v1179, %v1347
    %v1349 = vpop.f32.mrf.mxu0
    %v1350 = vadd.f32 %v1181, %v1349
    %1351 = vmatmul.bf16.gmra.mxu0 %v702
    %v1352 = vpop.f32.mrf.mxu0
    %v1353 = vadd.f32 %v1184, %v1352
    %v1354 = vpop.f32.mrf.mxu0
    %v1355 = vadd.f32 %v1186, %v1354
    %1356 = vmatmul.bf16.gmra.mxu0 %v706
    %v1357 = vpop.f32.mrf.mxu0
    %v1358 = vadd.f32 %v1189, %v1357
    %v1359 = vpop.f32.mrf.mxu0
    %v1360 = vadd.f32 %v1191, %v1359
    %1361 = vmatmul.bf16.gmra.mxu0 %v710
    %v1362 = vpop.f32.mrf.mxu0
    %v1363 = vadd.f32 %v1194, %v1362
    %v1364 = vpop.f32.mrf.mxu0
    %v1365 = vadd.f32 %v1196, %v1364
    %1366 = vmatmul.bf16.gmra.mxu0 %v714
    %v1367 = vpop.f32.mrf.mxu0
    %v1368 = vadd.f32 %v1199, %v1367
    %v1369 = vpop.f32.mrf.mxu0
    %v1370 = vadd.f32 %v1201, %v1369
    %1371 = vmatmul.bf16.gmra.mxu0 %v718
    %v1372 = vpop.f32.mrf.mxu0
    %v1373 = vadd.f32 %v1204, %v1372
    %v1374 = vpop.f32.mrf.mxu0
    %v1375 = vadd.f32 %v1206, %v1374
    %1376 = vmatmul.bf16.gmra.mxu0 %v722
    %v1377 = vpop.f32.mrf.mxu0
    %v1378 = vadd.f32 %v1209, %v1377
    %v1379 = vpop.f32.mrf.mxu0
    %v1380 = vadd.f32 %v1211, %v1379
    %1381 = vmatmul.bf16.gmra.mxu0 %v726
    %v1382 = vpop.f32.mrf.mxu0
    %v1383 = vadd.f32 %v1214, %v1382
    %v1384 = vpop.f32.mrf.mxu0
    %v1385 = vadd.f32 %v1216, %v1384
    %1386 = vdwg.mxu0
    %1387 = vmatpush.bf16.msra.mxu0 %v1008
    %1388 = vmatpush.bf16.msra.mxu0 %v1007
    %1389 = vmatpush.bf16.msra.mxu0 %v1006
    %1390 = vmatpush.bf16.msra.mxu0 %v1005
    %1391 = vmatpush.bf16.msra.mxu0 %v1004
    %1392 = vmatpush.bf16.msra.mxu0 %v1003
    %1393 = vmatpush.bf16.msra.mxu0 %v1002
    %1394 = vmatpush.bf16.msra.mxu0 %v1001
    %1395 = vmatmul.bf16.gmra.mxu0 %v603
    %v1396 = vpop.f32.mrf.mxu0
    %v1397 = vadd.f32 %v1228, %v1396
    %v1398 = vpop.f32.mrf.mxu0
    %v1399 = vadd.f32 %v1230, %v1398
    %1400 = vmatmul.bf16.gmra.mxu0 %v607
    %v1401 = vpop.f32.mrf.mxu0
    %v1402 = vadd.f32 %v1233, %v1401
    %v1403 = vpop.f32.mrf.mxu0
    %v1404 = vadd.f32 %v1235, %v1403
    %1405 = vmatmul.bf16.gmra.mxu0 %v611
    %v1406 = vpop.f32.mrf.mxu0
    %v1407 = vadd.f32 %v1238, %v1406
    %v1408 = vpop.f32.mrf.mxu0
    %v1409 = vadd.f32 %v1240, %v1408
    %1410 = vmatmul.bf16.gmra.mxu0 %v615
    %v1411 = vpop.f32.mrf.mxu0
    %v1412 = vadd.f32 %v1243, %v1411
    %v1413 = vpop.f32.mrf.mxu0
    %v1414 = vadd.f32 %v1245, %v1413
    %1415 = vmatmul.bf16.gmra.mxu0 %v619
    %v1416 = vpop.f32.mrf.mxu0
    %v1417 = vadd.f32 %v1248, %v1416
    %v1418 = vpop.f32.mrf.mxu0
    %v1419 = vadd.f32 %v1250, %v1418
    %1420 = vmatmul.bf16.gmra.mxu0 %v623
    %v1421 = vpop.f32.mrf.mxu0
    %v1422 = vadd.f32 %v1253, %v1421
    %v1423 = vpop.f32.mrf.mxu0
    %v1424 = vadd.f32 %v1255, %v1423
    %1425 = vmatmul.bf16.gmra.mxu0 %v627
    %v1426 = vpop.f32.mrf.mxu0
    %v1427 = vadd.f32 %v1258, %v1426
    %v1428 = vpop.f32.mrf.mxu0
    %v1429 = vadd.f32 %v1260, %v1428
    %1430 = vmatmul.bf16.gmra.mxu0 %v631
    %v1431 = vpop.f32.mrf.mxu0
    %v1432 = vadd.f32 %v1263, %v1431
    %v1433 = vpop.f32.mrf.mxu0
    %v1434 = vadd.f32 %v1265, %v1433
    %1435 = vmatmul.bf16.gmra.mxu0 %v635
    %v1436 = vpop.f32.mrf.mxu0
    %v1437 = vadd.f32 %v1268, %v1436
    %v1438 = vpop.f32.mrf.mxu0
    %v1439 = vadd.f32 %v1270, %v1438
    %1440 = vmatmul.bf16.gmra.mxu0 %v639
    %v1441 = vpop.f32.mrf.mxu0
    %v1442 = vadd.f32 %v1273, %v1441
    %v1443 = vpop.f32.mrf.mxu0
    %v1444 = vadd.f32 %v1275, %v1443
    %1445 = vmatmul.bf16.gmra.mxu0 %v643
    %v1446 = vpop.f32.mrf.mxu0
    %v1447 = vadd.f32 %v1278, %v1446
    %v1448 = vpop.f32.mrf.mxu0
    %v1449 = vadd.f32 %v1280, %v1448
    %1450 = vmatmul.bf16.gmra.mxu0 %v647
    %v1451 = vpop.f32.mrf.mxu0
    %v1452 = vadd.f32 %v1283, %v1451
    %v1453 = vpop.f32.mrf.mxu0
    %v1454 = vadd.f32 %v1285, %v1453
    %1455 = vmatmul.bf16.gmra.mxu0 %v651
    %v1456 = vpop.f32.mrf.mxu0
    %v1457 = vadd.f32 %v1288, %v1456
    %v1458 = vpop.f32.mrf.mxu0
    %v1459 = vadd.f32 %v1290, %v1458
    %1460 = vmatmul.bf16.gmra.mxu0 %v655
    %v1461 = vpop.f32.mrf.mxu0
    %v1462 = vadd.f32 %v1293, %v1461
    %v1463 = vpop.f32.mrf.mxu0
    %v1464 = vadd.f32 %v1295, %v1463
    %1465 = vmatmul.bf16.gmra.mxu0 %v659
    %v1466 = vpop.f32.mrf.mxu0
    %v1467 = vadd.f32 %v1298, %v1466
    %v1468 = vpop.f32.mrf.mxu0
    %v1469 = vadd.f32 %v1300, %v1468
    %1470 = vmatmul.bf16.gmra.mxu0 %v663
    %v1471 = vpop.f32.mrf.mxu0
    %v1472 = vadd.f32 %v1303, %v1471
    %v1473 = vpop.f32.mrf.mxu0
    %v1474 = vadd.f32 %v1305, %v1473
    %1475 = vmatmul.bf16.gmra.mxu0 %v667
    %v1476 = vpop.f32.mrf.mxu0
    %v1477 = vadd.f32 %v1308, %v1476
    %v1478 = vpop.f32.mrf.mxu0
    %v1479 = vadd.f32 %v1310, %v1478
    %1480 = vmatmul.bf16.gmra.mxu0 %v671
    %v1481 = vpop.f32.mrf.mxu0
    %v1482 = vadd.f32 %v1313, %v1481
    %v1483 = vpop.f32.mrf.mxu0
    %v1484 = vadd.f32 %v1315, %v1483
    %1485 = vmatmul.bf16.gmra.mxu0 %v675
    %v1486 = vpop.f32.mrf.mxu0
    %v1487 = vadd.f32 %v1318, %v1486
    %v1488 = vpop.f32.mrf.mxu0
    %v1489 = vadd.f32 %v1320, %v1488
    %1490 = vmatmul.bf16.gmra.mxu0 %v679
    %v1491 = vpop.f32.mrf.mxu0
    %v1492 = vadd.f32 %v1323, %v1491
    %v1493 = vpop.f32.mrf.mxu0
    %v1494 = vadd.f32 %v1325, %v1493
    %1495 = vmatmul.bf16.gmra.mxu0 %v683
    %v1496 = vpop.f32.mrf.mxu0
    %v1497 = vadd.f32 %v1328, %v1496
    %v1498 = vpop.f32.mrf.mxu0
    %v1499 = vadd.f32 %v1330, %v1498
    %1500 = vmatmul.bf16.gmra.mxu0 %v687
    %v1501 = vpop.f32.mrf.mxu0
    %v1502 = vadd.f32 %v1333, %v1501
    %v1503 = vpop.f32.mrf.mxu0
    %v1504 = vadd.f32 %v1335, %v1503
    %1505 = vmatmul.bf16.gmra.mxu0 %v691
    %v1506 = vpop.f32.mrf.mxu0
    %v1507 = vadd.f32 %v1338, %v1506
    %v1508 = vpop.f32.mrf.mxu0
    %v1509 = vadd.f32 %v1340, %v1508
    %1510 = vmatmul.bf16.gmra.mxu0 %v695
    %v1511 = vpop.f32.mrf.mxu0
    %v1512 = vadd.f32 %v1343, %v1511
    %v1513 = vpop.f32.mrf.mxu0
    %v1514 = vadd.f32 %v1345, %v1513
    %1515 = vmatmul.bf16.gmra.mxu0 %v699
    %v1516 = vpop.f32.mrf.mxu0
    %v1517 = vadd.f32 %v1348, %v1516
    %v1518 = vpop.f32.mrf.mxu0
    %v1519 = vadd.f32 %v1350, %v1518
    %1520 = vmatmul.bf16.gmra.mxu0 %v703
    %v1521 = vpop.f32.mrf.mxu0
    %v1522 = vadd.f32 %v1353, %v1521
    %v1523 = vpop.f32.mrf.mxu0
    %v1524 = vadd.f32 %v1355, %v1523
    %1525 = vmatmul.bf16.gmra.mxu0 %v707
    %v1526 = vpop.f32.mrf.mxu0
    %v1527 = vadd.f32 %v1358, %v1526
    %v1528 = vpop.f32.mrf.mxu0
    %v1529 = vadd.f32 %v1360, %v1528
    %1530 = vmatmul.bf16.gmra.mxu0 %v711
    %v1531 = vpop.f32.mrf.mxu0
    %v1532 = vadd.f32 %v1363, %v1531
    %v1533 = vpop.f32.mrf.mxu0
    %v1534 = vadd.f32 %v1365, %v1533
    %1535 = vmatmul.bf16.gmra.mxu0 %v715
    %v1536 = vpop.f32.mrf.mxu0
    %v1537 = vadd.f32 %v1368, %v1536
    %v1538 = vpop.f32.mrf.mxu0
    %v1539 = vadd.f32 %v1370, %v1538
    %1540 = vmatmul.bf16.gmra.mxu0 %v719
    %v1541 = vpop.f32.mrf.mxu0
    %v1542 = vadd.f32 %v1373, %v1541
    %v1543 = vpop.f32.mrf.mxu0
    %v1544 = vadd.f32 %v1375, %v1543
    %1545 = vmatmul.bf16.gmra.mxu0 %v723
    %v1546 = vpop.f32.mrf.mxu0
    %v1547 = vadd.f32 %v1378, %v1546
    %v1548 = vpop.f32.mrf.mxu0
    %v1549 = vadd.f32 %v1380, %v1548
    %1550 = vmatmul.bf16.gmra.mxu0 %v727
    %v1551 = vpop.f32.mrf.mxu0
    %v1552 = vadd.f32 %v1383, %v1551
    %v1553 = vpop.f32.mrf.mxu0
    %v1554 = vadd.f32 %v1385, %v1553
    %1555 = vdwg.mxu0
    %1556 = vmatpush.bf16.msra.mxu0 %v1016
    %1557 = vmatpush.bf16.msra.mxu0 %v1015
    %1558 = vmatpush.bf16.msra.mxu0 %v1014
    %1559 = vmatpush.bf16.msra.mxu0 %v1013
    %1560 = vmatpush.bf16.msra.mxu0 %v1012
    %1561 = vmatpush.bf16.msra.mxu0 %v1011
    %1562 = vmatpush.bf16.msra.mxu0 %v1010
    %1563 = vmatpush.bf16.msra.mxu0 %v1009
    %1564 = vmatmul.bf16.gmra.mxu0 %v604
    %v1565 = vpop.f32.mrf.mxu0
    %v1566 = vadd.f32 %v1397, %v1565
    %v1567 = vpop.f32.mrf.mxu0
    %v1568 = vadd.f32 %v1399, %v1567
    %1569 = vmatmul.bf16.gmra.mxu0 %v608
    %v1570 = vpop.f32.mrf.mxu0
    %v1571 = vadd.f32 %v1402, %v1570
    %v1572 = vpop.f32.mrf.mxu0
    %v1573 = vadd.f32 %v1404, %v1572
    %1574 = vmatmul.bf16.gmra.mxu0 %v612
    %v1575 = vpop.f32.mrf.mxu0
    %v1576 = vadd.f32 %v1407, %v1575
    %v1577 = vpop.f32.mrf.mxu0
    %v1578 = vadd.f32 %v1409, %v1577
    %1579 = vmatmul.bf16.gmra.mxu0 %v616
    %v1580 = vpop.f32.mrf.mxu0
    %v1581 = vadd.f32 %v1412, %v1580
    %v1582 = vpop.f32.mrf.mxu0
    %v1583 = vadd.f32 %v1414, %v1582
    %1584 = vmatmul.bf16.gmra.mxu0 %v620
    %v1585 = vpop.f32.mrf.mxu0
    %v1586 = vadd.f32 %v1417, %v1585
    %v1587 = vpop.f32.mrf.mxu0
    %v1588 = vadd.f32 %v1419, %v1587
    %1589 = vmatmul.bf16.gmra.mxu0 %v624
    %v1590 = vpop.f32.mrf.mxu0
    %v1591 = vadd.f32 %v1422, %v1590
    %v1592 = vpop.f32.mrf.mxu0
    %v1593 = vadd.f32 %v1424, %v1592
    %1594 = vmatmul.bf16.gmra.mxu0 %v628
    %v1595 = vpop.f32.mrf.mxu0
    %v1596 = vadd.f32 %v1427, %v1595
    %v1597 = vpop.f32.mrf.mxu0
    %v1598 = vadd.f32 %v1429, %v1597
    %1599 = vmatmul.bf16.gmra.mxu0 %v632
    %v1600 = vpop.f32.mrf.mxu0
    %v1601 = vadd.f32 %v1432, %v1600
    %v1602 = vpop.f32.mrf.mxu0
    %v1603 = vadd.f32 %v1434, %v1602
    %1604 = vmatmul.bf16.gmra.mxu0 %v636
    %v1605 = vpop.f32.mrf.mxu0
    %v1606 = vadd.f32 %v1437, %v1605
    %v1607 = vpop.f32.mrf.mxu0
    %v1608 = vadd.f32 %v1439, %v1607
    %1609 = vmatmul.bf16.gmra.mxu0 %v640
    %v1610 = vpop.f32.mrf.mxu0
    %v1611 = vadd.f32 %v1442, %v1610
    %v1612 = vpop.f32.mrf.mxu0
    %v1613 = vadd.f32 %v1444, %v1612
    %1614 = vmatmul.bf16.gmra.mxu0 %v644
    %v1615 = vpop.f32.mrf.mxu0
    %v1616 = vadd.f32 %v1447, %v1615
    %v1617 = vpop.f32.mrf.mxu0
    %v1618 = vadd.f32 %v1449, %v1617
    %1619 = vmatmul.bf16.gmra.mxu0 %v648
    %v1620 = vpop.f32.mrf.mxu0
    %v1621 = vadd.f32 %v1452, %v1620
    %v1622 = vpop.f32.mrf.mxu0
    %v1623 = vadd.f32 %v1454, %v1622
    %1624 = vmatmul.bf16.gmra.mxu0 %v652
    %v1625 = vpop.f32.mrf.mxu0
    %v1626 = vadd.f32 %v1457, %v1625
    %v1627 = vpop.f32.mrf.mxu0
    %v1628 = vadd.f32 %v1459, %v1627
    %1629 = vmatmul.bf16.gmra.mxu0 %v656
    %v1630 = vpop.f32.mrf.mxu0
    %v1631 = vadd.f32 %v1462, %v1630
    %v1632 = vpop.f32.mrf.mxu0
    %v1633 = vadd.f32 %v1464, %v1632
    %1634 = vmatmul.bf16.gmra.mxu0 %v660
    %v1635 = vpop.f32.mrf.mxu0
    %v1636 = vadd.f32 %v1467, %v1635
    %v1637 = vpop.f32.mrf.mxu0
    %v1638 = vadd.f32 %v1469, %v1637
    %1639 = vmatmul.bf16.gmra.mxu0 %v664
    %v1640 = vpop.f32.mrf.mxu0
    %v1641 = vadd.f32 %v1472, %v1640
    %v1642 = vpop.f32.mrf.mxu0
    %v1643 = vadd.f32 %v1474, %v1642
    %1644 = vmatmul.bf16.gmra.mxu0 %v668
    %v1645 = vpop.f32.mrf.mxu0
    %v1646 = vadd.f32 %v1477, %v1645
    %v1647 = vpop.f32.mrf.mxu0
    %v1648 = vadd.f32 %v1479, %v1647
    %1649 = vmatmul.bf16.gmra.mxu0 %v672
    %v1650 = vpop.f32.mrf.mxu0
    %v1651 = vadd.f32 %v1482, %v1650
    %v1652 = vpop.f32.mrf.mxu0
    %v1653 = vadd.f32 %v1484, %v1652
    %1654 = vmatmul.bf16.gmra.mxu0 %v676
    %v1655 = vpop.f32.mrf.mxu0
    %v1656 = vadd.f32 %v1487, %v1655
    %v1657 = vpop.f32.mrf.mxu0
    %v1658 = vadd.f32 %v1489, %v1657
    %1659 = vmatmul.bf16.gmra.mxu0 %v680
    %v1660 = vpop.f32.mrf.mxu0
    %v1661 = vadd.f32 %v1492, %v1660
    %v1662 = vpop.f32.mrf.mxu0
    %v1663 = vadd.f32 %v1494, %v1662
    %1664 = vmatmul.bf16.gmra.mxu0 %v684
    %v1665 = vpop.f32.mrf.mxu0
    %v1666 = vadd.f32 %v1497, %v1665
    %v1667 = vpop.f32.mrf.mxu0
    %v1668 = vadd.f32 %v1499, %v1667
    %1669 = vmatmul.bf16.gmra.mxu0 %v688
    %v1670 = vpop.f32.mrf.mxu0
    %v1671 = vadd.f32 %v1502, %v1670
    %v1672 = vpop.f32.mrf.mxu0
    %v1673 = vadd.f32 %v1504, %v1672
    %1674 = vmatmul.bf16.gmra.mxu0 %v692
    %v1675 = vpop.f32.mrf.mxu0
    %v1676 = vadd.f32 %v1507, %v1675
    %v1677 = vpop.f32.mrf.mxu0
    %v1678 = vadd.f32 %v1509, %v1677
    %1679 = vmatmul.bf16.gmra.mxu0 %v696
    %v1680 = vpop.f32.mrf.mxu0
    %v1681 = vadd.f32 %v1512, %v1680
    %v1682 = vpop.f32.mrf.mxu0
    %v1683 = vadd.f32 %v1514, %v1682
    %1684 = vmatmul.bf16.gmra.mxu0 %v700
    %v1685 = vpop.f32.mrf.mxu0
    %v1686 = vadd.f32 %v1517, %v1685
    %v1687 = vpop.f32.mrf.mxu0
    %v1688 = vadd.f32 %v1519, %v1687
    %1689 = vmatmul.bf16.gmra.mxu0 %v704
    %v1690 = vpop.f32.mrf.mxu0
    %v1691 = vadd.f32 %v1522, %v1690
    %v1692 = vpop.f32.mrf.mxu0
    %v1693 = vadd.f32 %v1524, %v1692
    %1694 = vmatmul.bf16.gmra.mxu0 %v708
    %v1695 = vpop.f32.mrf.mxu0
    %v1696 = vadd.f32 %v1527, %v1695
    %v1697 = vpop.f32.mrf.mxu0
    %v1698 = vadd.f32 %v1529, %v1697
    %1699 = vmatmul.bf16.gmra.mxu0 %v712
    %v1700 = vpop.f32.mrf.mxu0
    %v1701 = vadd.f32 %v1532, %v1700
    %v1702 = vpop.f32.mrf.mxu0
    %v1703 = vadd.f32 %v1534, %v1702
    %1704 = vmatmul.bf16.gmra.mxu0 %v716
    %v1705 = vpop.f32.mrf.mxu0
    %v1706 = vadd.f32 %v1537, %v1705
    %v1707 = vpop.f32.mrf.mxu0
    %v1708 = vadd.f32 %v1539, %v1707
    %1709 = vmatmul.bf16.gmra.mxu0 %v720
    %v1710 = vpop.f32.mrf.mxu0
    %v1711 = vadd.f32 %v1542, %v1710
    %v1712 = vpop.f32.mrf.mxu0
    %v1713 = vadd.f32 %v1544, %v1712
    %1714 = vmatmul.bf16.gmra.mxu0 %v724
    %v1715 = vpop.f32.mrf.mxu0
    %v1716 = vadd.f32 %v1547, %v1715
    %v1717 = vpop.f32.mrf.mxu0
    %v1718 = vadd.f32 %v1549, %v1717
    %1719 = vmatmul.bf16.gmra.mxu0 %v728
    %v1720 = vpop.f32.mrf.mxu0
    %v1721 = vadd.f32 %v1552, %v1720
    %v1722 = vpop.f32.mrf.mxu0
    %v1723 = vadd.f32 %v1554, %v1722
    %1724 = vdwg.mxu0
    %v1725 = vpack.c.bf16 %v1568, %v1566
    %v1726 = vpack.c.bf16 %v1573, %v1571
    %v1727 = vpack.c.bf16 %v1578, %v1576
    %v1728 = vpack.c.bf16 %v1583, %v1581
    %v1729 = vpack.c.bf16 %v1588, %v1586
    %v1730 = vpack.c.bf16 %v1593, %v1591
    %v1731 = vpack.c.bf16 %v1598, %v1596
    %v1732 = vpack.c.bf16 %v1603, %v1601
    %v1733 = vpack.c.bf16 %v1608, %v1606
    %v1734 = vpack.c.bf16 %v1613, %v1611
    %v1735 = vpack.c.bf16 %v1618, %v1616
    %v1736 = vpack.c.bf16 %v1623, %v1621
    %v1737 = vpack.c.bf16 %v1628, %v1626
    %v1738 = vpack.c.bf16 %v1633, %v1631
    %v1739 = vpack.c.bf16 %v1638, %v1636
    %v1740 = vpack.c.bf16 %v1643, %v1641
    %v1741 = vpack.c.bf16 %v1648, %v1646
    %v1742 = vpack.c.bf16 %v1653, %v1651
    %v1743 = vpack.c.bf16 %v1658, %v1656
    %v1744 = vpack.c.bf16 %v1663, %v1661
    %v1745 = vpack.c.bf16 %v1668, %v1666
    %v1746 = vpack.c.bf16 %v1673, %v1671
    %v1747 = vpack.c.bf16 %v1678, %v1676
    %v1748 = vpack.c.bf16 %v1683, %v1681
    %v1749 = vpack.c.bf16 %v1688, %v1686
    %v1750 = vpack.c.bf16 %v1693, %v1691
    %v1751 = vpack.c.bf16 %v1698, %v1696
    %v1752 = vpack.c.bf16 %v1703, %v1701
    %v1753 = vpack.c.bf16 %v1708, %v1706
    %v1754 = vpack.c.bf16 %v1713, %v1711
    %v1755 = vpack.c.bf16 %v1718, %v1716
    %v1756 = vpack.c.bf16 %v1723, %v1721
    %v1757 = vld [vmem:[%s2] sm:$0xf]
    %v1758 = vld [vmem:[%s2 + $0x4] sm:$0xf]
    %v1759 = vld [vmem:[%s2 + $0x8] sm:$0xf]
    %v1760 = vld [vmem:[%s2 + $0xc] sm:$0xf]
    %v1765 = vunpack.c.l.b16 %v1757
    %v1766 = vunpack.c.l.b16 %v1758
    %v1767 = vunpack.c.l.b16 %v1759
    %v1768 = vunpack.c.l.b16 %v1760
    %v1769 = vpack.c.b16 %v1766, %v1765
    %v1770 = vpack.c.b16 %v1768, %v1767
    %vm1773 = vcmask 261120
    %v1775 = vsel %vm1773, %v1725, 0
    %v1778 = vsel %vm1773, %v1726, 0
    %v1781 = vsel %vm1773, %v1727, 0
    %v1784 = vsel %vm1773, %v1728, 0
    %v1787 = vsel %vm1773, %v1729, 0
    %v1790 = vsel %vm1773, %v1730, 0
    %v1793 = vsel %vm1773, %v1731, 0
    %v1796 = vsel %vm1773, %v1732, 0
    %v1799 = vsel %vm1773, %v1733, 0
    %v1802 = vsel %vm1773, %v1734, 0
    %v1805 = vsel %vm1773, %v1735, 0
    %v1808 = vsel %vm1773, %v1736, 0
    %v1811 = vsel %vm1773, %v1737, 0
    %v1814 = vsel %vm1773, %v1738, 0
    %v1817 = vsel %vm1773, %v1739, 0
    %v1820 = vsel %vm1773, %v1740, 0
    %v1823 = vsel %vm1773, %v1741, 0
    %v1826 = vsel %vm1773, %v1742, 0
    %v1829 = vsel %vm1773, %v1743, 0
    %v1832 = vsel %vm1773, %v1744, 0
    %v1835 = vsel %vm1773, %v1745, 0
    %v1838 = vsel %vm1773, %v1746, 0
    %v1841 = vsel %vm1773, %v1747, 0
    %v1844 = vsel %vm1773, %v1748, 0
    %v1847 = vsel %vm1773, %v1749, 0
    %v1850 = vsel %vm1773, %v1750, 0
    %v1853 = vsel %vm1773, %v1751, 0
    %v1856 = vsel %vm1773, %v1752, 0
    %v1859 = vsel %vm1773, %v1753, 0
    %v1862 = vsel %vm1773, %v1754, 0
    %v1865 = vsel %vm1773, %v1755, 0
    %v1868 = vsel %vm1773, %v1756, 0
    %1870 = vmatpush.bf16.msra.mxu0 0
    %1871 = vmatpush.bf16.msra.mxu0 0
    %1872 = vmatpush.bf16.msra.mxu0 0
    %1873 = vmatpush.bf16.msra.mxu0 0
    %1874 = vmatpush.bf16.msra.mxu0 0
    %1875 = vmatpush.bf16.msra.mxu0 0
    %1876 = vmatpush.bf16.msra.mxu0 %v1770
    %1877 = vmatpush.bf16.msra.mxu0 %v1769
    %1878 = vmatmul.bf16.gmra.mxu0 %v1775
    %v1879 = vpop.f32.mrf.mxu0
    %v1880 = vadd.f32 0.0, %v1879
    %v1881 = vpop.f32.mrf.mxu0
    %v1882 = vadd.f32 0.0, %v1881
    %1883 = vmatmul.bf16.gmra.mxu0 %v1778
    %v1884 = vpop.f32.mrf.mxu0
    %v1885 = vadd.f32 0.0, %v1884
    %v1886 = vpop.f32.mrf.mxu0
    %v1887 = vadd.f32 0.0, %v1886
    %1888 = vmatmul.bf16.gmra.mxu0 %v1781
    %v1889 = vpop.f32.mrf.mxu0
    %v1890 = vadd.f32 0.0, %v1889
    %v1891 = vpop.f32.mrf.mxu0
    %v1892 = vadd.f32 0.0, %v1891
    %1893 = vmatmul.bf16.gmra.mxu0 %v1784
    %v1894 = vpop.f32.mrf.mxu0
    %v1895 = vadd.f32 0.0, %v1894
    %v1896 = vpop.f32.mrf.mxu0
    %v1897 = vadd.f32 0.0, %v1896
    %1898 = vmatmul.bf16.gmra.mxu0 %v1787
    %v1899 = vpop.f32.mrf.mxu0
    %v1900 = vadd.f32 0.0, %v1899
    %v1901 = vpop.f32.mrf.mxu0
    %v1902 = vadd.f32 0.0, %v1901
    %1903 = vmatmul.bf16.gmra.mxu0 %v1790
    %v1904 = vpop.f32.mrf.mxu0
    %v1905 = vadd.f32 0.0, %v1904
    %v1906 = vpop.f32.mrf.mxu0
    %v1907 = vadd.f32 0.0, %v1906
    %1908 = vmatmul.bf16.gmra.mxu0 %v1793
    %v1909 = vpop.f32.mrf.mxu0
    %v1910 = vadd.f32 0.0, %v1909
    %v1911 = vpop.f32.mrf.mxu0
    %v1912 = vadd.f32 0.0, %v1911
    %1913 = vmatmul.bf16.gmra.mxu0 %v1796
    %v1914 = vpop.f32.mrf.mxu0
    %v1915 = vadd.f32 0.0, %v1914
    %v1916 = vpop.f32.mrf.mxu0
    %v1917 = vadd.f32 0.0, %v1916
    %1918 = vmatmul.bf16.gmra.mxu0 %v1799
    %v1919 = vpop.f32.mrf.mxu0
    %v1920 = vadd.f32 0.0, %v1919
    %v1921 = vpop.f32.mrf.mxu0
    %v1922 = vadd.f32 0.0, %v1921
    %1923 = vmatmul.bf16.gmra.mxu0 %v1802
    %v1924 = vpop.f32.mrf.mxu0
    %v1925 = vadd.f32 0.0, %v1924
    %v1926 = vpop.f32.mrf.mxu0
    %v1927 = vadd.f32 0.0, %v1926
    %1928 = vmatmul.bf16.gmra.mxu0 %v1805
    %v1929 = vpop.f32.mrf.mxu0
    %v1930 = vadd.f32 0.0, %v1929
    %v1931 = vpop.f32.mrf.mxu0
    %v1932 = vadd.f32 0.0, %v1931
    %1933 = vmatmul.bf16.gmra.mxu0 %v1808
    %v1934 = vpop.f32.mrf.mxu0
    %v1935 = vadd.f32 0.0, %v1934
    %v1936 = vpop.f32.mrf.mxu0
    %v1937 = vadd.f32 0.0, %v1936
    %1938 = vmatmul.bf16.gmra.mxu0 %v1811
    %v1939 = vpop.f32.mrf.mxu0
    %v1940 = vadd.f32 0.0, %v1939
    %v1941 = vpop.f32.mrf.mxu0
    %v1942 = vadd.f32 0.0, %v1941
    %1943 = vmatmul.bf16.gmra.mxu0 %v1814
    %v1944 = vpop.f32.mrf.mxu0
    %v1945 = vadd.f32 0.0, %v1944
    %v1946 = vpop.f32.mrf.mxu0
    %v1947 = vadd.f32 0.0, %v1946
    %1948 = vmatmul.bf16.gmra.mxu0 %v1817
    %v1949 = vpop.f32.mrf.mxu0
    %v1950 = vadd.f32 0.0, %v1949
    %v1951 = vpop.f32.mrf.mxu0
    %v1952 = vadd.f32 0.0, %v1951
    %1953 = vmatmul.bf16.gmra.mxu0 %v1820
    %v1954 = vpop.f32.mrf.mxu0
    %v1955 = vadd.f32 0.0, %v1954
    %v1956 = vpop.f32.mrf.mxu0
    %v1957 = vadd.f32 0.0, %v1956
    %1958 = vmatmul.bf16.gmra.mxu0 %v1823
    %v1959 = vpop.f32.mrf.mxu0
    %v1960 = vadd.f32 0.0, %v1959
    %v1961 = vpop.f32.mrf.mxu0
    %v1962 = vadd.f32 0.0, %v1961
    %1963 = vmatmul.bf16.gmra.mxu0 %v1826
    %v1964 = vpop.f32.mrf.mxu0
    %v1965 = vadd.f32 0.0, %v1964
    %v1966 = vpop.f32.mrf.mxu0
    %v1967 = vadd.f32 0.0, %v1966
    %1968 = vmatmul.bf16.gmra.mxu0 %v1829
    %v1969 = vpop.f32.mrf.mxu0
    %v1970 = vadd.f32 0.0, %v1969
    %v1971 = vpop.f32.mrf.mxu0
    %v1972 = vadd.f32 0.0, %v1971
    %1973 = vmatmul.bf16.gmra.mxu0 %v1832
    %v1974 = vpop.f32.mrf.mxu0
    %v1975 = vadd.f32 0.0, %v1974
    %v1976 = vpop.f32.mrf.mxu0
    %v1977 = vadd.f32 0.0, %v1976
    %1978 = vmatmul.bf16.gmra.mxu0 %v1835
    %v1979 = vpop.f32.mrf.mxu0
    %v1980 = vadd.f32 0.0, %v1979
    %v1981 = vpop.f32.mrf.mxu0
    %v1982 = vadd.f32 0.0, %v1981
    %1983 = vmatmul.bf16.gmra.mxu0 %v1838
    %v1984 = vpop.f32.mrf.mxu0
    %v1985 = vadd.f32 0.0, %v1984
    %v1986 = vpop.f32.mrf.mxu0
    %v1987 = vadd.f32 0.0, %v1986
    %1988 = vmatmul.bf16.gmra.mxu0 %v1841
    %v1989 = vpop.f32.mrf.mxu0
    %v1990 = vadd.f32 0.0, %v1989
    %v1991 = vpop.f32.mrf.mxu0
    %v1992 = vadd.f32 0.0, %v1991
    %1993 = vmatmul.bf16.gmra.mxu0 %v1844
    %v1994 = vpop.f32.mrf.mxu0
    %v1995 = vadd.f32 0.0, %v1994
    %v1996 = vpop.f32.mrf.mxu0
    %v1997 = vadd.f32 0.0, %v1996
    %1998 = vmatmul.bf16.gmra.mxu0 %v1847
    %v1999 = vpop.f32.mrf.mxu0
    %v2000 = vadd.f32 0.0, %v1999
    %v2001 = vpop.f32.mrf.mxu0
    %v2002 = vadd.f32 0.0, %v2001
    %2003 = vmatmul.bf16.gmra.mxu0 %v1850
    %v2004 = vpop.f32.mrf.mxu0
    %v2005 = vadd.f32 0.0, %v2004
    %v2006 = vpop.f32.mrf.mxu0
    %v2007 = vadd.f32 0.0, %v2006
    %2008 = vmatmul.bf16.gmra.mxu0 %v1853
    %v2009 = vpop.f32.mrf.mxu0
    %v2010 = vadd.f32 0.0, %v2009
    %v2011 = vpop.f32.mrf.mxu0
    %v2012 = vadd.f32 0.0, %v2011
    %2013 = vmatmul.bf16.gmra.mxu0 %v1856
    %v2014 = vpop.f32.mrf.mxu0
    %v2015 = vadd.f32 0.0, %v2014
    %v2016 = vpop.f32.mrf.mxu0
    %v2017 = vadd.f32 0.0, %v2016
    %2018 = vmatmul.bf16.gmra.mxu0 %v1859
    %v2019 = vpop.f32.mrf.mxu0
    %v2020 = vadd.f32 0.0, %v2019
    %v2021 = vpop.f32.mrf.mxu0
    %v2022 = vadd.f32 0.0, %v2021
    %2023 = vmatmul.bf16.gmra.mxu0 %v1862
    %v2024 = vpop.f32.mrf.mxu0
    %v2025 = vadd.f32 0.0, %v2024
    %v2026 = vpop.f32.mrf.mxu0
    %v2027 = vadd.f32 0.0, %v2026
    %2028 = vmatmul.bf16.gmra.mxu0 %v1865
    %v2029 = vpop.f32.mrf.mxu0
    %v2030 = vadd.f32 0.0, %v2029
    %v2031 = vpop.f32.mrf.mxu0
    %v2032 = vadd.f32 0.0, %v2031
    %2033 = vmatmul.bf16.gmra.mxu0 %v1868
    %v2034 = vpop.f32.mrf.mxu0
    %v2035 = vadd.f32 0.0, %v2034
    %v2036 = vpop.f32.mrf.mxu0
    %v2037 = vadd.f32 0.0, %v2036
    %2038 = vdwg.mxu0
    %v2039 = vpack.c.bf16 %v1882, %v1880
    %v2040 = vpack.c.bf16 %v1887, %v1885
    %v2041 = vpack.c.bf16 %v1892, %v1890
    %v2042 = vpack.c.bf16 %v1897, %v1895
    %v2043 = vpack.c.bf16 %v1902, %v1900
    %v2044 = vpack.c.bf16 %v1907, %v1905
    %v2045 = vpack.c.bf16 %v1912, %v1910
    %v2046 = vpack.c.bf16 %v1917, %v1915
    %v2047 = vpack.c.bf16 %v1922, %v1920
    %v2048 = vpack.c.bf16 %v1927, %v1925
    %v2049 = vpack.c.bf16 %v1932, %v1930
    %v2050 = vpack.c.bf16 %v1937, %v1935
    %v2051 = vpack.c.bf16 %v1942, %v1940
    %v2052 = vpack.c.bf16 %v1947, %v1945
    %v2053 = vpack.c.bf16 %v1952, %v1950
    %v2054 = vpack.c.bf16 %v1957, %v1955
    %v2055 = vpack.c.bf16 %v1962, %v1960
    %v2056 = vpack.c.bf16 %v1967, %v1965
    %v2057 = vpack.c.bf16 %v1972, %v1970
    %v2058 = vpack.c.bf16 %v1977, %v1975
    %v2059 = vpack.c.bf16 %v1982, %v1980
    %v2060 = vpack.c.bf16 %v1987, %v1985
    %v2061 = vpack.c.bf16 %v1992, %v1990
    %v2062 = vpack.c.bf16 %v1997, %v1995
    %v2063 = vpack.c.bf16 %v2002, %v2000
    %v2064 = vpack.c.bf16 %v2007, %v2005
    %v2065 = vpack.c.bf16 %v2012, %v2010
    %v2066 = vpack.c.bf16 %v2017, %v2015
    %v2067 = vpack.c.bf16 %v2022, %v2020
    %v2068 = vpack.c.bf16 %v2027, %v2025
    %v2069 = vpack.c.bf16 %v2032, %v2030
    %v2070 = vpack.c.bf16 %v2037, %v2035
    %2071 = vmatpush.bf16.msra.mxu0 %v2046
    %2072 = vmatpush.bf16.msra.mxu0 %v2045
    %2073 = vmatpush.bf16.msra.mxu0 %v2044
    %2074 = vmatpush.bf16.msra.mxu0 %v2043
    %2075 = vmatpush.bf16.msra.mxu0 %v2042
    %2076 = vmatpush.bf16.msra.mxu0 %v2041
    %2077 = vmatpush.bf16.msra.mxu0 %v2040
    %2078 = vmatpush.bf16.msra.mxu0 %v2039
    %2079 = vmatmul.bf16.gmra.mxu0 %v601
    %v2080 = vpop.f32.mrf.mxu0
    %v2081 = vadd.f32 0.0, %v2080
    %v2082 = vpop.f32.mrf.mxu0
    %v2083 = vadd.f32 0.0, %v2082
    %2084 = vmatmul.bf16.gmra.mxu0 %v605
    %v2085 = vpop.f32.mrf.mxu0
    %v2086 = vadd.f32 0.0, %v2085
    %v2087 = vpop.f32.mrf.mxu0
    %v2088 = vadd.f32 0.0, %v2087
    %2089 = vmatmul.bf16.gmra.mxu0 %v609
    %v2090 = vpop.f32.mrf.mxu0
    %v2091 = vadd.f32 0.0, %v2090
    %v2092 = vpop.f32.mrf.mxu0
    %v2093 = vadd.f32 0.0, %v2092
    %2094 = vmatmul.bf16.gmra.mxu0 %v613
    %v2095 = vpop.f32.mrf.mxu0
    %v2096 = vadd.f32 0.0, %v2095
    %v2097 = vpop.f32.mrf.mxu0
    %v2098 = vadd.f32 0.0, %v2097
    %2099 = vmatmul.bf16.gmra.mxu0 %v617
    %v2100 = vpop.f32.mrf.mxu0
    %v2101 = vadd.f32 0.0, %v2100
    %v2102 = vpop.f32.mrf.mxu0
    %v2103 = vadd.f32 0.0, %v2102
    %2104 = vmatmul.bf16.gmra.mxu0 %v621
    %v2105 = vpop.f32.mrf.mxu0
    %v2106 = vadd.f32 0.0, %v2105
    %v2107 = vpop.f32.mrf.mxu0
    %v2108 = vadd.f32 0.0, %v2107
    %2109 = vmatmul.bf16.gmra.mxu0 %v625
    %v2110 = vpop.f32.mrf.mxu0
    %v2111 = vadd.f32 0.0, %v2110
    %v2112 = vpop.f32.mrf.mxu0
    %v2113 = vadd.f32 0.0, %v2112
    %2114 = vmatmul.bf16.gmra.mxu0 %v629
    %v2115 = vpop.f32.mrf.mxu0
    %v2116 = vadd.f32 0.0, %v2115
    %v2117 = vpop.f32.mrf.mxu0
    %v2118 = vadd.f32 0.0, %v2117
    %2119 = vmatmul.bf16.gmra.mxu0 %v633
    %v2120 = vpop.f32.mrf.mxu0
    %v2121 = vadd.f32 0.0, %v2120
    %v2122 = vpop.f32.mrf.mxu0
    %v2123 = vadd.f32 0.0, %v2122
    %2124 = vmatmul.bf16.gmra.mxu0 %v637
    %v2125 = vpop.f32.mrf.mxu0
    %v2126 = vadd.f32 0.0, %v2125
    %v2127 = vpop.f32.mrf.mxu0
    %v2128 = vadd.f32 0.0, %v2127
    %2129 = vmatmul.bf16.gmra.mxu0 %v641
    %v2130 = vpop.f32.mrf.mxu0
    %v2131 = vadd.f32 0.0, %v2130
    %v2132 = vpop.f32.mrf.mxu0
    %v2133 = vadd.f32 0.0, %v2132
    %2134 = vmatmul.bf16.gmra.mxu0 %v645
    %v2135 = vpop.f32.mrf.mxu0
    %v2136 = vadd.f32 0.0, %v2135
    %v2137 = vpop.f32.mrf.mxu0
    %v2138 = vadd.f32 0.0, %v2137
    %2139 = vmatmul.bf16.gmra.mxu0 %v649
    %v2140 = vpop.f32.mrf.mxu0
    %v2141 = vadd.f32 0.0, %v2140
    %v2142 = vpop.f32.mrf.mxu0
    %v2143 = vadd.f32 0.0, %v2142
    %2144 = vmatmul.bf16.gmra.mxu0 %v653
    %v2145 = vpop.f32.mrf.mxu0
    %v2146 = vadd.f32 0.0, %v2145
    %v2147 = vpop.f32.mrf.mxu0
    %v2148 = vadd.f32 0.0, %v2147
    %2149 = vmatmul.bf16.gmra.mxu0 %v657
    %v2150 = vpop.f32.mrf.mxu0
    %v2151 = vadd.f32 0.0, %v2150
    %v2152 = vpop.f32.mrf.mxu0
    %v2153 = vadd.f32 0.0, %v2152
    %2154 = vmatmul.bf16.gmra.mxu0 %v661
    %v2155 = vpop.f32.mrf.mxu0
    %v2156 = vadd.f32 0.0, %v2155
    %v2157 = vpop.f32.mrf.mxu0
    %v2158 = vadd.f32 0.0, %v2157
    %2159 = vmatmul.bf16.gmra.mxu0 %v665
    %v2160 = vpop.f32.mrf.mxu0
    %v2161 = vadd.f32 0.0, %v2160
    %v2162 = vpop.f32.mrf.mxu0
    %v2163 = vadd.f32 0.0, %v2162
    %2164 = vmatmul.bf16.gmra.mxu0 %v669
    %v2165 = vpop.f32.mrf.mxu0
    %v2166 = vadd.f32 0.0, %v2165
    %v2167 = vpop.f32.mrf.mxu0
    %v2168 = vadd.f32 0.0, %v2167
    %2169 = vmatmul.bf16.gmra.mxu0 %v673
    %v2170 = vpop.f32.mrf.mxu0
    %v2171 = vadd.f32 0.0, %v2170
    %v2172 = vpop.f32.mrf.mxu0
    %v2173 = vadd.f32 0.0, %v2172
    %2174 = vmatmul.bf16.gmra.mxu0 %v677
    %v2175 = vpop.f32.mrf.mxu0
    %v2176 = vadd.f32 0.0, %v2175
    %v2177 = vpop.f32.mrf.mxu0
    %v2178 = vadd.f32 0.0, %v2177
    %2179 = vmatmul.bf16.gmra.mxu0 %v681
    %v2180 = vpop.f32.mrf.mxu0
    %v2181 = vadd.f32 0.0, %v2180
    %v2182 = vpop.f32.mrf.mxu0
    %v2183 = vadd.f32 0.0, %v2182
    %2184 = vmatmul.bf16.gmra.mxu0 %v685
    %v2185 = vpop.f32.mrf.mxu0
    %v2186 = vadd.f32 0.0, %v2185
    %v2187 = vpop.f32.mrf.mxu0
    %v2188 = vadd.f32 0.0, %v2187
    %2189 = vmatmul.bf16.gmra.mxu0 %v689
    %v2190 = vpop.f32.mrf.mxu0
    %v2191 = vadd.f32 0.0, %v2190
    %v2192 = vpop.f32.mrf.mxu0
    %v2193 = vadd.f32 0.0, %v2192
    %2194 = vmatmul.bf16.gmra.mxu0 %v693
    %v2195 = vpop.f32.mrf.mxu0
    %v2196 = vadd.f32 0.0, %v2195
    %v2197 = vpop.f32.mrf.mxu0
    %v2198 = vadd.f32 0.0, %v2197
    %2199 = vmatmul.bf16.gmra.mxu0 %v697
    %v2200 = vpop.f32.mrf.mxu0
    %v2201 = vadd.f32 0.0, %v2200
    %v2202 = vpop.f32.mrf.mxu0
    %v2203 = vadd.f32 0.0, %v2202
    %2204 = vmatmul.bf16.gmra.mxu0 %v701
    %v2205 = vpop.f32.mrf.mxu0
    %v2206 = vadd.f32 0.0, %v2205
    %v2207 = vpop.f32.mrf.mxu0
    %v2208 = vadd.f32 0.0, %v2207
    %2209 = vmatmul.bf16.gmra.mxu0 %v705
    %v2210 = vpop.f32.mrf.mxu0
    %v2211 = vadd.f32 0.0, %v2210
    %v2212 = vpop.f32.mrf.mxu0
    %v2213 = vadd.f32 0.0, %v2212
    %2214 = vmatmul.bf16.gmra.mxu0 %v709
    %v2215 = vpop.f32.mrf.mxu0
    %v2216 = vadd.f32 0.0, %v2215
    %v2217 = vpop.f32.mrf.mxu0
    %v2218 = vadd.f32 0.0, %v2217
    %2219 = vmatmul.bf16.gmra.mxu0 %v713
    %v2220 = vpop.f32.mrf.mxu0
    %v2221 = vadd.f32 0.0, %v2220
    %v2222 = vpop.f32.mrf.mxu0
    %v2223 = vadd.f32 0.0, %v2222
    %2224 = vmatmul.bf16.gmra.mxu0 %v717
    %v2225 = vpop.f32.mrf.mxu0
    %v2226 = vadd.f32 0.0, %v2225
    %v2227 = vpop.f32.mrf.mxu0
    %v2228 = vadd.f32 0.0, %v2227
    %2229 = vmatmul.bf16.gmra.mxu0 %v721
    %v2230 = vpop.f32.mrf.mxu0
    %v2231 = vadd.f32 0.0, %v2230
    %v2232 = vpop.f32.mrf.mxu0
    %v2233 = vadd.f32 0.0, %v2232
    %2234 = vmatmul.bf16.gmra.mxu0 %v725
    %v2235 = vpop.f32.mrf.mxu0
    %v2236 = vadd.f32 0.0, %v2235
    %v2237 = vpop.f32.mrf.mxu0
    %v2238 = vadd.f32 0.0, %v2237
    %2239 = vdwg.mxu0
    %2240 = vmatpush.bf16.msra.mxu0 %v2054
    %2241 = vmatpush.bf16.msra.mxu0 %v2053
    %2242 = vmatpush.bf16.msra.mxu0 %v2052
    %2243 = vmatpush.bf16.msra.mxu0 %v2051
    %2244 = vmatpush.bf16.msra.mxu0 %v2050
    %2245 = vmatpush.bf16.msra.mxu0 %v2049
    %2246 = vmatpush.bf16.msra.mxu0 %v2048
    %2247 = vmatpush.bf16.msra.mxu0 %v2047
    %2248 = vmatmul.bf16.gmra.mxu0 %v602
    %v2249 = vpop.f32.mrf.mxu0
    %v2250 = vadd.f32 %v2081, %v2249
    %v2251 = vpop.f32.mrf.mxu0
    %v2252 = vadd.f32 %v2083, %v2251
    %2253 = vmatmul.bf16.gmra.mxu0 %v606
    %v2254 = vpop.f32.mrf.mxu0
    %v2255 = vadd.f32 %v2086, %v2254
    %v2256 = vpop.f32.mrf.mxu0
    %v2257 = vadd.f32 %v2088, %v2256
    %2258 = vmatmul.bf16.gmra.mxu0 %v610
    %v2259 = vpop.f32.mrf.mxu0
    %v2260 = vadd.f32 %v2091, %v2259
    %v2261 = vpop.f32.mrf.mxu0
    %v2262 = vadd.f32 %v2093, %v2261
    %2263 = vmatmul.bf16.gmra.mxu0 %v614
    %v2264 = vpop.f32.mrf.mxu0
    %v2265 = vadd.f32 %v2096, %v2264
    %v2266 = vpop.f32.mrf.mxu0
    %v2267 = vadd.f32 %v2098, %v2266
    %2268 = vmatmul.bf16.gmra.mxu0 %v618
    %v2269 = vpop.f32.mrf.mxu0
    %v2270 = vadd.f32 %v2101, %v2269
    %v2271 = vpop.f32.mrf.mxu0
    %v2272 = vadd.f32 %v2103, %v2271
    %2273 = vmatmul.bf16.gmra.mxu0 %v622
    %v2274 = vpop.f32.mrf.mxu0
    %v2275 = vadd.f32 %v2106, %v2274
    %v2276 = vpop.f32.mrf.mxu0
    %v2277 = vadd.f32 %v2108, %v2276
    %2278 = vmatmul.bf16.gmra.mxu0 %v626
    %v2279 = vpop.f32.mrf.mxu0
    %v2280 = vadd.f32 %v2111, %v2279
    %v2281 = vpop.f32.mrf.mxu0
    %v2282 = vadd.f32 %v2113, %v2281
    %2283 = vmatmul.bf16.gmra.mxu0 %v630
    %v2284 = vpop.f32.mrf.mxu0
    %v2285 = vadd.f32 %v2116, %v2284
    %v2286 = vpop.f32.mrf.mxu0
    %v2287 = vadd.f32 %v2118, %v2286
    %2288 = vmatmul.bf16.gmra.mxu0 %v634
    %v2289 = vpop.f32.mrf.mxu0
    %v2290 = vadd.f32 %v2121, %v2289
    %v2291 = vpop.f32.mrf.mxu0
    %v2292 = vadd.f32 %v2123, %v2291
    %2293 = vmatmul.bf16.gmra.mxu0 %v638
    %v2294 = vpop.f32.mrf.mxu0
    %v2295 = vadd.f32 %v2126, %v2294
    %v2296 = vpop.f32.mrf.mxu0
    %v2297 = vadd.f32 %v2128, %v2296
    %2298 = vmatmul.bf16.gmra.mxu0 %v642
    %v2299 = vpop.f32.mrf.mxu0
    %v2300 = vadd.f32 %v2131, %v2299
    %v2301 = vpop.f32.mrf.mxu0
    %v2302 = vadd.f32 %v2133, %v2301
    %2303 = vmatmul.bf16.gmra.mxu0 %v646
    %v2304 = vpop.f32.mrf.mxu0
    %v2305 = vadd.f32 %v2136, %v2304
    %v2306 = vpop.f32.mrf.mxu0
    %v2307 = vadd.f32 %v2138, %v2306
    %2308 = vmatmul.bf16.gmra.mxu0 %v650
    %v2309 = vpop.f32.mrf.mxu0
    %v2310 = vadd.f32 %v2141, %v2309
    %v2311 = vpop.f32.mrf.mxu0
    %v2312 = vadd.f32 %v2143, %v2311
    %2313 = vmatmul.bf16.gmra.mxu0 %v654
    %v2314 = vpop.f32.mrf.mxu0
    %v2315 = vadd.f32 %v2146, %v2314
    %v2316 = vpop.f32.mrf.mxu0
    %v2317 = vadd.f32 %v2148, %v2316
    %2318 = vmatmul.bf16.gmra.mxu0 %v658
    %v2319 = vpop.f32.mrf.mxu0
    %v2320 = vadd.f32 %v2151, %v2319
    %v2321 = vpop.f32.mrf.mxu0
    %v2322 = vadd.f32 %v2153, %v2321
    %2323 = vmatmul.bf16.gmra.mxu0 %v662
    %v2324 = vpop.f32.mrf.mxu0
    %v2325 = vadd.f32 %v2156, %v2324
    %v2326 = vpop.f32.mrf.mxu0
    %v2327 = vadd.f32 %v2158, %v2326
    %2328 = vmatmul.bf16.gmra.mxu0 %v666
    %v2329 = vpop.f32.mrf.mxu0
    %v2330 = vadd.f32 %v2161, %v2329
    %v2331 = vpop.f32.mrf.mxu0
    %v2332 = vadd.f32 %v2163, %v2331
    %2333 = vmatmul.bf16.gmra.mxu0 %v670
    %v2334 = vpop.f32.mrf.mxu0
    %v2335 = vadd.f32 %v2166, %v2334
    %v2336 = vpop.f32.mrf.mxu0
    %v2337 = vadd.f32 %v2168, %v2336
    %2338 = vmatmul.bf16.gmra.mxu0 %v674
    %v2339 = vpop.f32.mrf.mxu0
    %v2340 = vadd.f32 %v2171, %v2339
    %v2341 = vpop.f32.mrf.mxu0
    %v2342 = vadd.f32 %v2173, %v2341
    %2343 = vmatmul.bf16.gmra.mxu0 %v678
    %v2344 = vpop.f32.mrf.mxu0
    %v2345 = vadd.f32 %v2176, %v2344
    %v2346 = vpop.f32.mrf.mxu0
    %v2347 = vadd.f32 %v2178, %v2346
    %2348 = vmatmul.bf16.gmra.mxu0 %v682
    %v2349 = vpop.f32.mrf.mxu0
    %v2350 = vadd.f32 %v2181, %v2349
    %v2351 = vpop.f32.mrf.mxu0
    %v2352 = vadd.f32 %v2183, %v2351
    %2353 = vmatmul.bf16.gmra.mxu0 %v686
    %v2354 = vpop.f32.mrf.mxu0
    %v2355 = vadd.f32 %v2186, %v2354
    %v2356 = vpop.f32.mrf.mxu0
    %v2357 = vadd.f32 %v2188, %v2356
    %2358 = vmatmul.bf16.gmra.mxu0 %v690
    %v2359 = vpop.f32.mrf.mxu0
    %v2360 = vadd.f32 %v2191, %v2359
    %v2361 = vpop.f32.mrf.mxu0
    %v2362 = vadd.f32 %v2193, %v2361
    %2363 = vmatmul.bf16.gmra.mxu0 %v694
    %v2364 = vpop.f32.mrf.mxu0
    %v2365 = vadd.f32 %v2196, %v2364
    %v2366 = vpop.f32.mrf.mxu0
    %v2367 = vadd.f32 %v2198, %v2366
    %2368 = vmatmul.bf16.gmra.mxu0 %v698
    %v2369 = vpop.f32.mrf.mxu0
    %v2370 = vadd.f32 %v2201, %v2369
    %v2371 = vpop.f32.mrf.mxu0
    %v2372 = vadd.f32 %v2203, %v2371
    %2373 = vmatmul.bf16.gmra.mxu0 %v702
    %v2374 = vpop.f32.mrf.mxu0
    %v2375 = vadd.f32 %v2206, %v2374
    %v2376 = vpop.f32.mrf.mxu0
    %v2377 = vadd.f32 %v2208, %v2376
    %2378 = vmatmul.bf16.gmra.mxu0 %v706
    %v2379 = vpop.f32.mrf.mxu0
    %v2380 = vadd.f32 %v2211, %v2379
    %v2381 = vpop.f32.mrf.mxu0
    %v2382 = vadd.f32 %v2213, %v2381
    %2383 = vmatmul.bf16.gmra.mxu0 %v710
    %v2384 = vpop.f32.mrf.mxu0
    %v2385 = vadd.f32 %v2216, %v2384
    %v2386 = vpop.f32.mrf.mxu0
    %v2387 = vadd.f32 %v2218, %v2386
    %2388 = vmatmul.bf16.gmra.mxu0 %v714
    %v2389 = vpop.f32.mrf.mxu0
    %v2390 = vadd.f32 %v2221, %v2389
    %v2391 = vpop.f32.mrf.mxu0
    %v2392 = vadd.f32 %v2223, %v2391
    %2393 = vmatmul.bf16.gmra.mxu0 %v718
    %v2394 = vpop.f32.mrf.mxu0
    %v2395 = vadd.f32 %v2226, %v2394
    %v2396 = vpop.f32.mrf.mxu0
    %v2397 = vadd.f32 %v2228, %v2396
    %2398 = vmatmul.bf16.gmra.mxu0 %v722
    %v2399 = vpop.f32.mrf.mxu0
    %v2400 = vadd.f32 %v2231, %v2399
    %v2401 = vpop.f32.mrf.mxu0
    %v2402 = vadd.f32 %v2233, %v2401
    %2403 = vmatmul.bf16.gmra.mxu0 %v726
    %v2404 = vpop.f32.mrf.mxu0
    %v2405 = vadd.f32 %v2236, %v2404
    %v2406 = vpop.f32.mrf.mxu0
    %v2407 = vadd.f32 %v2238, %v2406
    %2408 = vdwg.mxu0
    %2409 = vmatpush.bf16.msra.mxu0 %v2062
    %2410 = vmatpush.bf16.msra.mxu0 %v2061
    %2411 = vmatpush.bf16.msra.mxu0 %v2060
    %2412 = vmatpush.bf16.msra.mxu0 %v2059
    %2413 = vmatpush.bf16.msra.mxu0 %v2058
    %2414 = vmatpush.bf16.msra.mxu0 %v2057
    %2415 = vmatpush.bf16.msra.mxu0 %v2056
    %2416 = vmatpush.bf16.msra.mxu0 %v2055
    %2417 = vmatmul.bf16.gmra.mxu0 %v603
    %v2418 = vpop.f32.mrf.mxu0
    %v2419 = vadd.f32 %v2250, %v2418
    %v2420 = vpop.f32.mrf.mxu0
    %v2421 = vadd.f32 %v2252, %v2420
    %2422 = vmatmul.bf16.gmra.mxu0 %v607
    %v2423 = vpop.f32.mrf.mxu0
    %v2424 = vadd.f32 %v2255, %v2423
    %v2425 = vpop.f32.mrf.mxu0
    %v2426 = vadd.f32 %v2257, %v2425
    %2427 = vmatmul.bf16.gmra.mxu0 %v611
    %v2428 = vpop.f32.mrf.mxu0
    %v2429 = vadd.f32 %v2260, %v2428
    %v2430 = vpop.f32.mrf.mxu0
    %v2431 = vadd.f32 %v2262, %v2430
    %2432 = vmatmul.bf16.gmra.mxu0 %v615
    %v2433 = vpop.f32.mrf.mxu0
    %v2434 = vadd.f32 %v2265, %v2433
    %v2435 = vpop.f32.mrf.mxu0
    %v2436 = vadd.f32 %v2267, %v2435
    %2437 = vmatmul.bf16.gmra.mxu0 %v619
    %v2438 = vpop.f32.mrf.mxu0
    %v2439 = vadd.f32 %v2270, %v2438
    %v2440 = vpop.f32.mrf.mxu0
    %v2441 = vadd.f32 %v2272, %v2440
    %2442 = vmatmul.bf16.gmra.mxu0 %v623
    %v2443 = vpop.f32.mrf.mxu0
    %v2444 = vadd.f32 %v2275, %v2443
    %v2445 = vpop.f32.mrf.mxu0
    %v2446 = vadd.f32 %v2277, %v2445
    %2447 = vmatmul.bf16.gmra.mxu0 %v627
    %v2448 = vpop.f32.mrf.mxu0
    %v2449 = vadd.f32 %v2280, %v2448
    %v2450 = vpop.f32.mrf.mxu0
    %v2451 = vadd.f32 %v2282, %v2450
    %2452 = vmatmul.bf16.gmra.mxu0 %v631
    %v2453 = vpop.f32.mrf.mxu0
    %v2454 = vadd.f32 %v2285, %v2453
    %v2455 = vpop.f32.mrf.mxu0
    %v2456 = vadd.f32 %v2287, %v2455
    %2457 = vmatmul.bf16.gmra.mxu0 %v635
    %v2458 = vpop.f32.mrf.mxu0
    %v2459 = vadd.f32 %v2290, %v2458
    %v2460 = vpop.f32.mrf.mxu0
    %v2461 = vadd.f32 %v2292, %v2460
    %2462 = vmatmul.bf16.gmra.mxu0 %v639
    %v2463 = vpop.f32.mrf.mxu0
    %v2464 = vadd.f32 %v2295, %v2463
    %v2465 = vpop.f32.mrf.mxu0
    %v2466 = vadd.f32 %v2297, %v2465
    %2467 = vmatmul.bf16.gmra.mxu0 %v643
    %v2468 = vpop.f32.mrf.mxu0
    %v2469 = vadd.f32 %v2300, %v2468
    %v2470 = vpop.f32.mrf.mxu0
    %v2471 = vadd.f32 %v2302, %v2470
    %2472 = vmatmul.bf16.gmra.mxu0 %v647
    %v2473 = vpop.f32.mrf.mxu0
    %v2474 = vadd.f32 %v2305, %v2473
    %v2475 = vpop.f32.mrf.mxu0
    %v2476 = vadd.f32 %v2307, %v2475
    %2477 = vmatmul.bf16.gmra.mxu0 %v651
    %v2478 = vpop.f32.mrf.mxu0
    %v2479 = vadd.f32 %v2310, %v2478
    %v2480 = vpop.f32.mrf.mxu0
    %v2481 = vadd.f32 %v2312, %v2480
    %2482 = vmatmul.bf16.gmra.mxu0 %v655
    %v2483 = vpop.f32.mrf.mxu0
    %v2484 = vadd.f32 %v2315, %v2483
    %v2485 = vpop.f32.mrf.mxu0
    %v2486 = vadd.f32 %v2317, %v2485
    %2487 = vmatmul.bf16.gmra.mxu0 %v659
    %v2488 = vpop.f32.mrf.mxu0
    %v2489 = vadd.f32 %v2320, %v2488
    %v2490 = vpop.f32.mrf.mxu0
    %v2491 = vadd.f32 %v2322, %v2490
    %2492 = vmatmul.bf16.gmra.mxu0 %v663
    %v2493 = vpop.f32.mrf.mxu0
    %v2494 = vadd.f32 %v2325, %v2493
    %v2495 = vpop.f32.mrf.mxu0
    %v2496 = vadd.f32 %v2327, %v2495
    %2497 = vmatmul.bf16.gmra.mxu0 %v667
    %v2498 = vpop.f32.mrf.mxu0
    %v2499 = vadd.f32 %v2330, %v2498
    %v2500 = vpop.f32.mrf.mxu0
    %v2501 = vadd.f32 %v2332, %v2500
    %2502 = vmatmul.bf16.gmra.mxu0 %v671
    %v2503 = vpop.f32.mrf.mxu0
    %v2504 = vadd.f32 %v2335, %v2503
    %v2505 = vpop.f32.mrf.mxu0
    %v2506 = vadd.f32 %v2337, %v2505
    %2507 = vmatmul.bf16.gmra.mxu0 %v675
    %v2508 = vpop.f32.mrf.mxu0
    %v2509 = vadd.f32 %v2340, %v2508
    %v2510 = vpop.f32.mrf.mxu0
    %v2511 = vadd.f32 %v2342, %v2510
    %2512 = vmatmul.bf16.gmra.mxu0 %v679
    %v2513 = vpop.f32.mrf.mxu0
    %v2514 = vadd.f32 %v2345, %v2513
    %v2515 = vpop.f32.mrf.mxu0
    %v2516 = vadd.f32 %v2347, %v2515
    %2517 = vmatmul.bf16.gmra.mxu0 %v683
    %v2518 = vpop.f32.mrf.mxu0
    %v2519 = vadd.f32 %v2350, %v2518
    %v2520 = vpop.f32.mrf.mxu0
    %v2521 = vadd.f32 %v2352, %v2520
    %2522 = vmatmul.bf16.gmra.mxu0 %v687
    %v2523 = vpop.f32.mrf.mxu0
    %v2524 = vadd.f32 %v2355, %v2523
    %v2525 = vpop.f32.mrf.mxu0
    %v2526 = vadd.f32 %v2357, %v2525
    %2527 = vmatmul.bf16.gmra.mxu0 %v691
    %v2528 = vpop.f32.mrf.mxu0
    %v2529 = vadd.f32 %v2360, %v2528
    %v2530 = vpop.f32.mrf.mxu0
    %v2531 = vadd.f32 %v2362, %v2530
    %2532 = vmatmul.bf16.gmra.mxu0 %v695
    %v2533 = vpop.f32.mrf.mxu0
    %v2534 = vadd.f32 %v2365, %v2533
    %v2535 = vpop.f32.mrf.mxu0
    %v2536 = vadd.f32 %v2367, %v2535
    %2537 = vmatmul.bf16.gmra.mxu0 %v699
    %v2538 = vpop.f32.mrf.mxu0
    %v2539 = vadd.f32 %v2370, %v2538
    %v2540 = vpop.f32.mrf.mxu0
    %v2541 = vadd.f32 %v2372, %v2540
    %2542 = vmatmul.bf16.gmra.mxu0 %v703
    %v2543 = vpop.f32.mrf.mxu0
    %v2544 = vadd.f32 %v2375, %v2543
    %v2545 = vpop.f32.mrf.mxu0
    %v2546 = vadd.f32 %v2377, %v2545
    %2547 = vmatmul.bf16.gmra.mxu0 %v707
    %v2548 = vpop.f32.mrf.mxu0
    %v2549 = vadd.f32 %v2380, %v2548
    %v2550 = vpop.f32.mrf.mxu0
    %v2551 = vadd.f32 %v2382, %v2550
    %2552 = vmatmul.bf16.gmra.mxu0 %v711
    %v2553 = vpop.f32.mrf.mxu0
    %v2554 = vadd.f32 %v2385, %v2553
    %v2555 = vpop.f32.mrf.mxu0
    %v2556 = vadd.f32 %v2387, %v2555
    %2557 = vmatmul.bf16.gmra.mxu0 %v715
    %v2558 = vpop.f32.mrf.mxu0
    %v2559 = vadd.f32 %v2390, %v2558
    %v2560 = vpop.f32.mrf.mxu0
    %v2561 = vadd.f32 %v2392, %v2560
    %2562 = vmatmul.bf16.gmra.mxu0 %v719
    %v2563 = vpop.f32.mrf.mxu0
    %v2564 = vadd.f32 %v2395, %v2563
    %v2565 = vpop.f32.mrf.mxu0
    %v2566 = vadd.f32 %v2397, %v2565
    %2567 = vmatmul.bf16.gmra.mxu0 %v723
    %v2568 = vpop.f32.mrf.mxu0
    %v2569 = vadd.f32 %v2400, %v2568
    %v2570 = vpop.f32.mrf.mxu0
    %v2571 = vadd.f32 %v2402, %v2570
    %2572 = vmatmul.bf16.gmra.mxu0 %v727
    %v2573 = vpop.f32.mrf.mxu0
    %v2574 = vadd.f32 %v2405, %v2573
    %v2575 = vpop.f32.mrf.mxu0
    %v2576 = vadd.f32 %v2407, %v2575
    %2577 = vdwg.mxu0
    %2578 = vmatpush.bf16.msra.mxu0 %v2070
    %2579 = vmatpush.bf16.msra.mxu0 %v2069
    %2580 = vmatpush.bf16.msra.mxu0 %v2068
    %2581 = vmatpush.bf16.msra.mxu0 %v2067
    %2582 = vmatpush.bf16.msra.mxu0 %v2066
    %2583 = vmatpush.bf16.msra.mxu0 %v2065
    %2584 = vmatpush.bf16.msra.mxu0 %v2064
    %2585 = vmatpush.bf16.msra.mxu0 %v2063
    %2586 = vmatmul.bf16.gmra.mxu0 %v604
    %v2587 = vpop.f32.mrf.mxu0
    %v2588 = vadd.f32 %v2419, %v2587
    %v2589 = vpop.f32.mrf.mxu0
    %v2590 = vadd.f32 %v2421, %v2589
    %2591 = vmatmul.bf16.gmra.mxu0 %v608
    %v2592 = vpop.f32.mrf.mxu0
    %v2593 = vadd.f32 %v2424, %v2592
    %v2594 = vpop.f32.mrf.mxu0
    %v2595 = vadd.f32 %v2426, %v2594
    %2596 = vmatmul.bf16.gmra.mxu0 %v612
    %v2597 = vpop.f32.mrf.mxu0
    %v2598 = vadd.f32 %v2429, %v2597
    %v2599 = vpop.f32.mrf.mxu0
    %v2600 = vadd.f32 %v2431, %v2599
    %2601 = vmatmul.bf16.gmra.mxu0 %v616
    %v2602 = vpop.f32.mrf.mxu0
    %v2603 = vadd.f32 %v2434, %v2602
    %v2604 = vpop.f32.mrf.mxu0
    %v2605 = vadd.f32 %v2436, %v2604
    %2606 = vmatmul.bf16.gmra.mxu0 %v620
    %v2607 = vpop.f32.mrf.mxu0
    %v2608 = vadd.f32 %v2439, %v2607
    %v2609 = vpop.f32.mrf.mxu0
    %v2610 = vadd.f32 %v2441, %v2609
    %2611 = vmatmul.bf16.gmra.mxu0 %v624
    %v2612 = vpop.f32.mrf.mxu0
    %v2613 = vadd.f32 %v2444, %v2612
    %v2614 = vpop.f32.mrf.mxu0
    %v2615 = vadd.f32 %v2446, %v2614
    %2616 = vmatmul.bf16.gmra.mxu0 %v628
    %v2617 = vpop.f32.mrf.mxu0
    %v2618 = vadd.f32 %v2449, %v2617
    %v2619 = vpop.f32.mrf.mxu0
    %v2620 = vadd.f32 %v2451, %v2619
    %2621 = vmatmul.bf16.gmra.mxu0 %v632
    %v2622 = vpop.f32.mrf.mxu0
    %v2623 = vadd.f32 %v2454, %v2622
    %v2624 = vpop.f32.mrf.mxu0
    %v2625 = vadd.f32 %v2456, %v2624
    %2626 = vmatmul.bf16.gmra.mxu0 %v636
    %v2627 = vpop.f32.mrf.mxu0
    %v2628 = vadd.f32 %v2459, %v2627
    %v2629 = vpop.f32.mrf.mxu0
    %v2630 = vadd.f32 %v2461, %v2629
    %2631 = vmatmul.bf16.gmra.mxu0 %v640
    %v2632 = vpop.f32.mrf.mxu0
    %v2633 = vadd.f32 %v2464, %v2632
    %v2634 = vpop.f32.mrf.mxu0
    %v2635 = vadd.f32 %v2466, %v2634
    %2636 = vmatmul.bf16.gmra.mxu0 %v644
    %v2637 = vpop.f32.mrf.mxu0
    %v2638 = vadd.f32 %v2469, %v2637
    %v2639 = vpop.f32.mrf.mxu0
    %v2640 = vadd.f32 %v2471, %v2639
    %2641 = vmatmul.bf16.gmra.mxu0 %v648
    %v2642 = vpop.f32.mrf.mxu0
    %v2643 = vadd.f32 %v2474, %v2642
    %v2644 = vpop.f32.mrf.mxu0
    %v2645 = vadd.f32 %v2476, %v2644
    %2646 = vmatmul.bf16.gmra.mxu0 %v652
    %v2647 = vpop.f32.mrf.mxu0
    %v2648 = vadd.f32 %v2479, %v2647
    %v2649 = vpop.f32.mrf.mxu0
    %v2650 = vadd.f32 %v2481, %v2649
    %2651 = vmatmul.bf16.gmra.mxu0 %v656
    %v2652 = vpop.f32.mrf.mxu0
    %v2653 = vadd.f32 %v2484, %v2652
    %v2654 = vpop.f32.mrf.mxu0
    %v2655 = vadd.f32 %v2486, %v2654
    %2656 = vmatmul.bf16.gmra.mxu0 %v660
    %v2657 = vpop.f32.mrf.mxu0
    %v2658 = vadd.f32 %v2489, %v2657
    %v2659 = vpop.f32.mrf.mxu0
    %v2660 = vadd.f32 %v2491, %v2659
    %2661 = vmatmul.bf16.gmra.mxu0 %v664
    %v2662 = vpop.f32.mrf.mxu0
    %v2663 = vadd.f32 %v2494, %v2662
    %v2664 = vpop.f32.mrf.mxu0
    %v2665 = vadd.f32 %v2496, %v2664
    %2666 = vmatmul.bf16.gmra.mxu0 %v668
    %v2667 = vpop.f32.mrf.mxu0
    %v2668 = vadd.f32 %v2499, %v2667
    %v2669 = vpop.f32.mrf.mxu0
    %v2670 = vadd.f32 %v2501, %v2669
    %2671 = vmatmul.bf16.gmra.mxu0 %v672
    %v2672 = vpop.f32.mrf.mxu0
    %v2673 = vadd.f32 %v2504, %v2672
    %v2674 = vpop.f32.mrf.mxu0
    %v2675 = vadd.f32 %v2506, %v2674
    %2676 = vmatmul.bf16.gmra.mxu0 %v676
    %v2677 = vpop.f32.mrf.mxu0
    %v2678 = vadd.f32 %v2509, %v2677
    %v2679 = vpop.f32.mrf.mxu0
    %v2680 = vadd.f32 %v2511, %v2679
    %2681 = vmatmul.bf16.gmra.mxu0 %v680
    %v2682 = vpop.f32.mrf.mxu0
    %v2683 = vadd.f32 %v2514, %v2682
    %v2684 = vpop.f32.mrf.mxu0
    %v2685 = vadd.f32 %v2516, %v2684
    %2686 = vmatmul.bf16.gmra.mxu0 %v684
    %v2687 = vpop.f32.mrf.mxu0
    %v2688 = vadd.f32 %v2519, %v2687
    %v2689 = vpop.f32.mrf.mxu0
    %v2690 = vadd.f32 %v2521, %v2689
    %2691 = vmatmul.bf16.gmra.mxu0 %v688
    %v2692 = vpop.f32.mrf.mxu0
    %v2693 = vadd.f32 %v2524, %v2692
    %v2694 = vpop.f32.mrf.mxu0
    %v2695 = vadd.f32 %v2526, %v2694
    %2696 = vmatmul.bf16.gmra.mxu0 %v692
    %v2697 = vpop.f32.mrf.mxu0
    %v2698 = vadd.f32 %v2529, %v2697
    %v2699 = vpop.f32.mrf.mxu0
    %v2700 = vadd.f32 %v2531, %v2699
    %2701 = vmatmul.bf16.gmra.mxu0 %v696
    %v2702 = vpop.f32.mrf.mxu0
    %v2703 = vadd.f32 %v2534, %v2702
    %v2704 = vpop.f32.mrf.mxu0
    %v2705 = vadd.f32 %v2536, %v2704
    %2706 = vmatmul.bf16.gmra.mxu0 %v700
    %v2707 = vpop.f32.mrf.mxu0
    %v2708 = vadd.f32 %v2539, %v2707
    %v2709 = vpop.f32.mrf.mxu0
    %v2710 = vadd.f32 %v2541, %v2709
    %2711 = vmatmul.bf16.gmra.mxu0 %v704
    %v2712 = vpop.f32.mrf.mxu0
    %v2713 = vadd.f32 %v2544, %v2712
    %v2714 = vpop.f32.mrf.mxu0
    %v2715 = vadd.f32 %v2546, %v2714
    %2716 = vmatmul.bf16.gmra.mxu0 %v708
    %v2717 = vpop.f32.mrf.mxu0
    %v2718 = vadd.f32 %v2549, %v2717
    %v2719 = vpop.f32.mrf.mxu0
    %v2720 = vadd.f32 %v2551, %v2719
    %2721 = vmatmul.bf16.gmra.mxu0 %v712
    %v2722 = vpop.f32.mrf.mxu0
    %v2723 = vadd.f32 %v2554, %v2722
    %v2724 = vpop.f32.mrf.mxu0
    %v2725 = vadd.f32 %v2556, %v2724
    %2726 = vmatmul.bf16.gmra.mxu0 %v716
    %v2727 = vpop.f32.mrf.mxu0
    %v2728 = vadd.f32 %v2559, %v2727
    %v2729 = vpop.f32.mrf.mxu0
    %v2730 = vadd.f32 %v2561, %v2729
    %2731 = vmatmul.bf16.gmra.mxu0 %v720
    %v2732 = vpop.f32.mrf.mxu0
    %v2733 = vadd.f32 %v2564, %v2732
    %v2734 = vpop.f32.mrf.mxu0
    %v2735 = vadd.f32 %v2566, %v2734
    %2736 = vmatmul.bf16.gmra.mxu0 %v724
    %v2737 = vpop.f32.mrf.mxu0
    %v2738 = vadd.f32 %v2569, %v2737
    %v2739 = vpop.f32.mrf.mxu0
    %v2740 = vadd.f32 %v2571, %v2739
    %2741 = vmatmul.bf16.gmra.mxu0 %v728
    %v2742 = vpop.f32.mrf.mxu0
    %v2743 = vadd.f32 %v2574, %v2742
    %v2744 = vpop.f32.mrf.mxu0
    %v2745 = vadd.f32 %v2576, %v2744
    %2746 = vdwg.mxu0
    %v2747 = vpack.c.bf16 %v2590, %v2588
    %v2748 = vpack.c.bf16 %v2595, %v2593
    %v2749 = vpack.c.bf16 %v2600, %v2598
    %v2750 = vpack.c.bf16 %v2605, %v2603
    %v2751 = vpack.c.bf16 %v2610, %v2608
    %v2752 = vpack.c.bf16 %v2615, %v2613
    %v2753 = vpack.c.bf16 %v2620, %v2618
    %v2754 = vpack.c.bf16 %v2625, %v2623
    %v2755 = vpack.c.bf16 %v2630, %v2628
    %v2756 = vpack.c.bf16 %v2635, %v2633
    %v2757 = vpack.c.bf16 %v2640, %v2638
    %v2758 = vpack.c.bf16 %v2645, %v2643
    %v2759 = vpack.c.bf16 %v2650, %v2648
    %v2760 = vpack.c.bf16 %v2655, %v2653
    %v2761 = vpack.c.bf16 %v2660, %v2658
    %v2762 = vpack.c.bf16 %v2665, %v2663
    %v2763 = vpack.c.bf16 %v2670, %v2668
    %v2764 = vpack.c.bf16 %v2675, %v2673
    %v2765 = vpack.c.bf16 %v2680, %v2678
    %v2766 = vpack.c.bf16 %v2685, %v2683
    %v2767 = vpack.c.bf16 %v2690, %v2688
    %v2768 = vpack.c.bf16 %v2695, %v2693
    %v2769 = vpack.c.bf16 %v2700, %v2698
    %v2770 = vpack.c.bf16 %v2705, %v2703
    %v2771 = vpack.c.bf16 %v2710, %v2708
    %v2772 = vpack.c.bf16 %v2715, %v2713
    %v2773 = vpack.c.bf16 %v2720, %v2718
    %v2774 = vpack.c.bf16 %v2725, %v2723
    %v2775 = vpack.c.bf16 %v2730, %v2728
    %v2776 = vpack.c.bf16 %v2735, %v2733
    %v2777 = vpack.c.bf16 %v2740, %v2738
    %v2778 = vpack.c.bf16 %v2745, %v2743
    %v2779 = vld [vmem:[%s3] sm:$0xf]
    %v2780 = vld [vmem:[%s3 + $0x4] sm:$0xf]
    %v2781 = vld [vmem:[%s3 + $0x8] sm:$0xf]
    %v2782 = vld [vmem:[%s3 + $0xc] sm:$0xf]
    %v2783 = vld [vmem:[%s3 + $0x10] sm:$0xf]
    %v2784 = vld [vmem:[%s3 + $0x14] sm:$0xf]
    %v2785 = vld [vmem:[%s3 + $0x18] sm:$0xf]
    %v2786 = vld [vmem:[%s3 + $0x1c] sm:$0xf]
    %v2795 = vunpack.c.l.b16 %v2779
    %v2796 = vunpack.c.l.b16 %v2780
    %v2797 = vunpack.c.l.b16 %v2781
    %v2798 = vunpack.c.l.b16 %v2782
    %v2799 = vunpack.c.l.b16 %v2783
    %v2800 = vunpack.c.l.b16 %v2784
    %v2801 = vunpack.c.l.b16 %v2785
    %v2802 = vunpack.c.l.b16 %v2786
    %v2803 = vpack.c.b16 %v2796, %v2795
    %v2804 = vpack.c.b16 %v2798, %v2797
    %v2805 = vpack.c.b16 %v2800, %v2799
    %v2806 = vpack.c.b16 %v2802, %v2801
    %vm2811 = vcmask 523264
    %v2813 = vsel %vm2811, %v2747, 0
    %v2816 = vsel %vm2811, %v2748, 0
    %v2819 = vsel %vm2811, %v2749, 0
    %v2822 = vsel %vm2811, %v2750, 0
    %v2825 = vsel %vm2811, %v2751, 0
    %v2828 = vsel %vm2811, %v2752, 0
    %v2831 = vsel %vm2811, %v2753, 0
    %v2834 = vsel %vm2811, %v2754, 0
    %v2837 = vsel %vm2811, %v2755, 0
    %v2840 = vsel %vm2811, %v2756, 0
    %v2843 = vsel %vm2811, %v2757, 0
    %v2846 = vsel %vm2811, %v2758, 0
    %v2849 = vsel %vm2811, %v2759, 0
    %v2852 = vsel %vm2811, %v2760, 0
    %v2855 = vsel %vm2811, %v2761, 0
    %v2858 = vsel %vm2811, %v2762, 0
    %v2861 = vsel %vm2811, %v2763, 0
    %v2864 = vsel %vm2811, %v2764, 0
    %v2867 = vsel %vm2811, %v2765, 0
    %v2870 = vsel %vm2811, %v2766, 0
    %v2873 = vsel %vm2811, %v2767, 0
    %v2876 = vsel %vm2811, %v2768, 0
    %v2879 = vsel %vm2811, %v2769, 0
    %v2882 = vsel %vm2811, %v2770, 0
    %v2885 = vsel %vm2811, %v2771, 0
    %v2888 = vsel %vm2811, %v2772, 0
    %v2891 = vsel %vm2811, %v2773, 0
    %v2894 = vsel %vm2811, %v2774, 0
    %v2897 = vsel %vm2811, %v2775, 0
    %v2900 = vsel %vm2811, %v2776, 0
    %v2903 = vsel %vm2811, %v2777, 0
    %v2906 = vsel %vm2811, %v2778, 0
    %2908 = vmatpush.bf16.msra.mxu0 0
    %2909 = vmatpush.bf16.msra.mxu0 0
    %2910 = vmatpush.bf16.msra.mxu0 0
    %2911 = vmatpush.bf16.msra.mxu0 0
    %2912 = vmatpush.bf16.msra.mxu0 %v2806
    %2913 = vmatpush.bf16.msra.mxu0 %v2805
    %2914 = vmatpush.bf16.msra.mxu0 %v2804
    %2915 = vmatpush.bf16.msra.mxu0 %v2803
    %2916 = vmatmul.bf16.gmra.mxu0 %v2813
    %v2917 = vpop.f32.mrf.mxu0
    %v2918 = vadd.f32 0.0, %v2917
    %v2919 = vpop.f32.mrf.mxu0
    %v2920 = vadd.f32 0.0, %v2919
    %2921 = vmatmul.bf16.gmra.mxu0 %v2816
    %v2922 = vpop.f32.mrf.mxu0
    %v2923 = vadd.f32 0.0, %v2922
    %v2924 = vpop.f32.mrf.mxu0
    %v2925 = vadd.f32 0.0, %v2924
    %2926 = vmatmul.bf16.gmra.mxu0 %v2819
    %v2927 = vpop.f32.mrf.mxu0
    %v2928 = vadd.f32 0.0, %v2927
    %v2929 = vpop.f32.mrf.mxu0
    %v2930 = vadd.f32 0.0, %v2929
    %2931 = vmatmul.bf16.gmra.mxu0 %v2822
    %v2932 = vpop.f32.mrf.mxu0
    %v2933 = vadd.f32 0.0, %v2932
    %v2934 = vpop.f32.mrf.mxu0
    %v2935 = vadd.f32 0.0, %v2934
    %2936 = vmatmul.bf16.gmra.mxu0 %v2825
    %v2937 = vpop.f32.mrf.mxu0
    %v2938 = vadd.f32 0.0, %v2937
    %v2939 = vpop.f32.mrf.mxu0
    %v2940 = vadd.f32 0.0, %v2939
    %2941 = vmatmul.bf16.gmra.mxu0 %v2828
    %v2942 = vpop.f32.mrf.mxu0
    %v2943 = vadd.f32 0.0, %v2942
    %v2944 = vpop.f32.mrf.mxu0
    %v2945 = vadd.f32 0.0, %v2944
    %2946 = vmatmul.bf16.gmra.mxu0 %v2831
    %v2947 = vpop.f32.mrf.mxu0
    %v2948 = vadd.f32 0.0, %v2947
    %v2949 = vpop.f32.mrf.mxu0
    %v2950 = vadd.f32 0.0, %v2949
    %2951 = vmatmul.bf16.gmra.mxu0 %v2834
    %v2952 = vpop.f32.mrf.mxu0
    %v2953 = vadd.f32 0.0, %v2952
    %v2954 = vpop.f32.mrf.mxu0
    %v2955 = vadd.f32 0.0, %v2954
    %2956 = vmatmul.bf16.gmra.mxu0 %v2837
    %v2957 = vpop.f32.mrf.mxu0
    %v2958 = vadd.f32 0.0, %v2957
    %v2959 = vpop.f32.mrf.mxu0
    %v2960 = vadd.f32 0.0, %v2959
    %2961 = vmatmul.bf16.gmra.mxu0 %v2840
    %v2962 = vpop.f32.mrf.mxu0
    %v2963 = vadd.f32 0.0, %v2962
    %v2964 = vpop.f32.mrf.mxu0
    %v2965 = vadd.f32 0.0, %v2964
    %2966 = vmatmul.bf16.gmra.mxu0 %v2843
    %v2967 = vpop.f32.mrf.mxu0
    %v2968 = vadd.f32 0.0, %v2967
    %v2969 = vpop.f32.mrf.mxu0
    %v2970 = vadd.f32 0.0, %v2969
    %2971 = vmatmul.bf16.gmra.mxu0 %v2846
    %v2972 = vpop.f32.mrf.mxu0
    %v2973 = vadd.f32 0.0, %v2972
    %v2974 = vpop.f32.mrf.mxu0
    %v2975 = vadd.f32 0.0, %v2974
    %2976 = vmatmul.bf16.gmra.mxu0 %v2849
    %v2977 = vpop.f32.mrf.mxu0
    %v2978 = vadd.f32 0.0, %v2977
    %v2979 = vpop.f32.mrf.mxu0
    %v2980 = vadd.f32 0.0, %v2979
    %2981 = vmatmul.bf16.gmra.mxu0 %v2852
    %v2982 = vpop.f32.mrf.mxu0
    %v2983 = vadd.f32 0.0, %v2982
    %v2984 = vpop.f32.mrf.mxu0
    %v2985 = vadd.f32 0.0, %v2984
    %2986 = vmatmul.bf16.gmra.mxu0 %v2855
    %v2987 = vpop.f32.mrf.mxu0
    %v2988 = vadd.f32 0.0, %v2987
    %v2989 = vpop.f32.mrf.mxu0
    %v2990 = vadd.f32 0.0, %v2989
    %2991 = vmatmul.bf16.gmra.mxu0 %v2858
    %v2992 = vpop.f32.mrf.mxu0
    %v2993 = vadd.f32 0.0, %v2992
    %v2994 = vpop.f32.mrf.mxu0
    %v2995 = vadd.f32 0.0, %v2994
    %2996 = vmatmul.bf16.gmra.mxu0 %v2861
    %v2997 = vpop.f32.mrf.mxu0
    %v2998 = vadd.f32 0.0, %v2997
    %v2999 = vpop.f32.mrf.mxu0
    %v3000 = vadd.f32 0.0, %v2999
    %3001 = vmatmul.bf16.gmra.mxu0 %v2864
    %v3002 = vpop.f32.mrf.mxu0
    %v3003 = vadd.f32 0.0, %v3002
    %v3004 = vpop.f32.mrf.mxu0
    %v3005 = vadd.f32 0.0, %v3004
    %3006 = vmatmul.bf16.gmra.mxu0 %v2867
    %v3007 = vpop.f32.mrf.mxu0
    %v3008 = vadd.f32 0.0, %v3007
    %v3009 = vpop.f32.mrf.mxu0
    %v3010 = vadd.f32 0.0, %v3009
    %3011 = vmatmul.bf16.gmra.mxu0 %v2870
    %v3012 = vpop.f32.mrf.mxu0
    %v3013 = vadd.f32 0.0, %v3012
    %v3014 = vpop.f32.mrf.mxu0
    %v3015 = vadd.f32 0.0, %v3014
    %3016 = vmatmul.bf16.gmra.mxu0 %v2873
    %v3017 = vpop.f32.mrf.mxu0
    %v3018 = vadd.f32 0.0, %v3017
    %v3019 = vpop.f32.mrf.mxu0
    %v3020 = vadd.f32 0.0, %v3019
    %3021 = vmatmul.bf16.gmra.mxu0 %v2876
    %v3022 = vpop.f32.mrf.mxu0
    %v3023 = vadd.f32 0.0, %v3022
    %v3024 = vpop.f32.mrf.mxu0
    %v3025 = vadd.f32 0.0, %v3024
    %3026 = vmatmul.bf16.gmra.mxu0 %v2879
    %v3027 = vpop.f32.mrf.mxu0
    %v3028 = vadd.f32 0.0, %v3027
    %v3029 = vpop.f32.mrf.mxu0
    %v3030 = vadd.f32 0.0, %v3029
    %3031 = vmatmul.bf16.gmra.mxu0 %v2882
    %v3032 = vpop.f32.mrf.mxu0
    %v3033 = vadd.f32 0.0, %v3032
    %v3034 = vpop.f32.mrf.mxu0
    %v3035 = vadd.f32 0.0, %v3034
    %3036 = vmatmul.bf16.gmra.mxu0 %v2885
    %v3037 = vpop.f32.mrf.mxu0
    %v3038 = vadd.f32 0.0, %v3037
    %v3039 = vpop.f32.mrf.mxu0
    %v3040 = vadd.f32 0.0, %v3039
    %3041 = vmatmul.bf16.gmra.mxu0 %v2888
    %v3042 = vpop.f32.mrf.mxu0
    %v3043 = vadd.f32 0.0, %v3042
    %v3044 = vpop.f32.mrf.mxu0
    %v3045 = vadd.f32 0.0, %v3044
    %3046 = vmatmul.bf16.gmra.mxu0 %v2891
    %v3047 = vpop.f32.mrf.mxu0
    %v3048 = vadd.f32 0.0, %v3047
    %v3049 = vpop.f32.mrf.mxu0
    %v3050 = vadd.f32 0.0, %v3049
    %3051 = vmatmul.bf16.gmra.mxu0 %v2894
    %v3052 = vpop.f32.mrf.mxu0
    %v3053 = vadd.f32 0.0, %v3052
    %v3054 = vpop.f32.mrf.mxu0
    %v3055 = vadd.f32 0.0, %v3054
    %3056 = vmatmul.bf16.gmra.mxu0 %v2897
    %v3057 = vpop.f32.mrf.mxu0
    %v3058 = vadd.f32 0.0, %v3057
    %v3059 = vpop.f32.mrf.mxu0
    %v3060 = vadd.f32 0.0, %v3059
    %3061 = vmatmul.bf16.gmra.mxu0 %v2900
    %v3062 = vpop.f32.mrf.mxu0
    %v3063 = vadd.f32 0.0, %v3062
    %v3064 = vpop.f32.mrf.mxu0
    %v3065 = vadd.f32 0.0, %v3064
    %3066 = vmatmul.bf16.gmra.mxu0 %v2903
    %v3067 = vpop.f32.mrf.mxu0
    %v3068 = vadd.f32 0.0, %v3067
    %v3069 = vpop.f32.mrf.mxu0
    %v3070 = vadd.f32 0.0, %v3069
    %3071 = vmatmul.bf16.gmra.mxu0 %v2906
    %v3072 = vpop.f32.mrf.mxu0
    %v3073 = vadd.f32 0.0, %v3072
    %v3074 = vpop.f32.mrf.mxu0
    %v3075 = vadd.f32 0.0, %v3074
    %3076 = vdwg.mxu0
    %v3077 = vpack.c.bf16 %v2920, %v2918
    %v3078 = vpack.c.bf16 %v2925, %v2923
    %v3079 = vpack.c.bf16 %v2930, %v2928
    %v3080 = vpack.c.bf16 %v2935, %v2933
    %v3081 = vpack.c.bf16 %v2940, %v2938
    %v3082 = vpack.c.bf16 %v2945, %v2943
    %v3083 = vpack.c.bf16 %v2950, %v2948
    %v3084 = vpack.c.bf16 %v2955, %v2953
    %v3085 = vpack.c.bf16 %v2960, %v2958
    %v3086 = vpack.c.bf16 %v2965, %v2963
    %v3087 = vpack.c.bf16 %v2970, %v2968
    %v3088 = vpack.c.bf16 %v2975, %v2973
    %v3089 = vpack.c.bf16 %v2980, %v2978
    %v3090 = vpack.c.bf16 %v2985, %v2983
    %v3091 = vpack.c.bf16 %v2990, %v2988
    %v3092 = vpack.c.bf16 %v2995, %v2993
    %v3093 = vpack.c.bf16 %v3000, %v2998
    %v3094 = vpack.c.bf16 %v3005, %v3003
    %v3095 = vpack.c.bf16 %v3010, %v3008
    %v3096 = vpack.c.bf16 %v3015, %v3013
    %v3097 = vpack.c.bf16 %v3020, %v3018
    %v3098 = vpack.c.bf16 %v3025, %v3023
    %v3099 = vpack.c.bf16 %v3030, %v3028
    %v3100 = vpack.c.bf16 %v3035, %v3033
    %v3101 = vpack.c.bf16 %v3040, %v3038
    %v3102 = vpack.c.bf16 %v3045, %v3043
    %v3103 = vpack.c.bf16 %v3050, %v3048
    %v3104 = vpack.c.bf16 %v3055, %v3053
    %v3105 = vpack.c.bf16 %v3060, %v3058
    %v3106 = vpack.c.bf16 %v3065, %v3063
    %v3107 = vpack.c.bf16 %v3070, %v3068
    %v3108 = vpack.c.bf16 %v3075, %v3073
    %3109 = vmatpush.bf16.msra.mxu0 %v3084
    %3110 = vmatpush.bf16.msra.mxu0 %v3083
    %3111 = vmatpush.bf16.msra.mxu0 %v3082
    %3112 = vmatpush.bf16.msra.mxu0 %v3081
    %3113 = vmatpush.bf16.msra.mxu0 %v3080
    %3114 = vmatpush.bf16.msra.mxu0 %v3079
    %3115 = vmatpush.bf16.msra.mxu0 %v3078
    %3116 = vmatpush.bf16.msra.mxu0 %v3077
    %3117 = vmatmul.bf16.gmra.mxu0 %v601
    %v3118 = vpop.f32.mrf.mxu0
    %v3119 = vadd.f32 0.0, %v3118
    %v3120 = vpop.f32.mrf.mxu0
    %v3121 = vadd.f32 0.0, %v3120
    %3122 = vmatmul.bf16.gmra.mxu0 %v605
    %v3123 = vpop.f32.mrf.mxu0
    %v3124 = vadd.f32 0.0, %v3123
    %v3125 = vpop.f32.mrf.mxu0
    %v3126 = vadd.f32 0.0, %v3125
    %3127 = vmatmul.bf16.gmra.mxu0 %v609
    %v3128 = vpop.f32.mrf.mxu0
    %v3129 = vadd.f32 0.0, %v3128
    %v3130 = vpop.f32.mrf.mxu0
    %v3131 = vadd.f32 0.0, %v3130
    %3132 = vmatmul.bf16.gmra.mxu0 %v613
    %v3133 = vpop.f32.mrf.mxu0
    %v3134 = vadd.f32 0.0, %v3133
    %v3135 = vpop.f32.mrf.mxu0
    %v3136 = vadd.f32 0.0, %v3135
    %3137 = vmatmul.bf16.gmra.mxu0 %v617
    %v3138 = vpop.f32.mrf.mxu0
    %v3139 = vadd.f32 0.0, %v3138
    %v3140 = vpop.f32.mrf.mxu0
    %v3141 = vadd.f32 0.0, %v3140
    %3142 = vmatmul.bf16.gmra.mxu0 %v621
    %v3143 = vpop.f32.mrf.mxu0
    %v3144 = vadd.f32 0.0, %v3143
    %v3145 = vpop.f32.mrf.mxu0
    %v3146 = vadd.f32 0.0, %v3145
    %3147 = vmatmul.bf16.gmra.mxu0 %v625
    %v3148 = vpop.f32.mrf.mxu0
    %v3149 = vadd.f32 0.0, %v3148
    %v3150 = vpop.f32.mrf.mxu0
    %v3151 = vadd.f32 0.0, %v3150
    %3152 = vmatmul.bf16.gmra.mxu0 %v629
    %v3153 = vpop.f32.mrf.mxu0
    %v3154 = vadd.f32 0.0, %v3153
    %v3155 = vpop.f32.mrf.mxu0
    %v3156 = vadd.f32 0.0, %v3155
    %3157 = vmatmul.bf16.gmra.mxu0 %v633
    %v3158 = vpop.f32.mrf.mxu0
    %v3159 = vadd.f32 0.0, %v3158
    %v3160 = vpop.f32.mrf.mxu0
    %v3161 = vadd.f32 0.0, %v3160
    %3162 = vmatmul.bf16.gmra.mxu0 %v637
    %v3163 = vpop.f32.mrf.mxu0
    %v3164 = vadd.f32 0.0, %v3163
    %v3165 = vpop.f32.mrf.mxu0
    %v3166 = vadd.f32 0.0, %v3165
    %3167 = vmatmul.bf16.gmra.mxu0 %v641
    %v3168 = vpop.f32.mrf.mxu0
    %v3169 = vadd.f32 0.0, %v3168
    %v3170 = vpop.f32.mrf.mxu0
    %v3171 = vadd.f32 0.0, %v3170
    %3172 = vmatmul.bf16.gmra.mxu0 %v645
    %v3173 = vpop.f32.mrf.mxu0
    %v3174 = vadd.f32 0.0, %v3173
    %v3175 = vpop.f32.mrf.mxu0
    %v3176 = vadd.f32 0.0, %v3175
    %3177 = vmatmul.bf16.gmra.mxu0 %v649
    %v3178 = vpop.f32.mrf.mxu0
    %v3179 = vadd.f32 0.0, %v3178
    %v3180 = vpop.f32.mrf.mxu0
    %v3181 = vadd.f32 0.0, %v3180
    %3182 = vmatmul.bf16.gmra.mxu0 %v653
    %v3183 = vpop.f32.mrf.mxu0
    %v3184 = vadd.f32 0.0, %v3183
    %v3185 = vpop.f32.mrf.mxu0
    %v3186 = vadd.f32 0.0, %v3185
    %3187 = vmatmul.bf16.gmra.mxu0 %v657
    %v3188 = vpop.f32.mrf.mxu0
    %v3189 = vadd.f32 0.0, %v3188
    %v3190 = vpop.f32.mrf.mxu0
    %v3191 = vadd.f32 0.0, %v3190
    %3192 = vmatmul.bf16.gmra.mxu0 %v661
    %v3193 = vpop.f32.mrf.mxu0
    %v3194 = vadd.f32 0.0, %v3193
    %v3195 = vpop.f32.mrf.mxu0
    %v3196 = vadd.f32 0.0, %v3195
    %3197 = vmatmul.bf16.gmra.mxu0 %v665
    %v3198 = vpop.f32.mrf.mxu0
    %v3199 = vadd.f32 0.0, %v3198
    %v3200 = vpop.f32.mrf.mxu0
    %v3201 = vadd.f32 0.0, %v3200
    %3202 = vmatmul.bf16.gmra.mxu0 %v669
    %v3203 = vpop.f32.mrf.mxu0
    %v3204 = vadd.f32 0.0, %v3203
    %v3205 = vpop.f32.mrf.mxu0
    %v3206 = vadd.f32 0.0, %v3205
    %3207 = vmatmul.bf16.gmra.mxu0 %v673
    %v3208 = vpop.f32.mrf.mxu0
    %v3209 = vadd.f32 0.0, %v3208
    %v3210 = vpop.f32.mrf.mxu0
    %v3211 = vadd.f32 0.0, %v3210
    %3212 = vmatmul.bf16.gmra.mxu0 %v677
    %v3213 = vpop.f32.mrf.mxu0
    %v3214 = vadd.f32 0.0, %v3213
    %v3215 = vpop.f32.mrf.mxu0
    %v3216 = vadd.f32 0.0, %v3215
    %3217 = vmatmul.bf16.gmra.mxu0 %v681
    %v3218 = vpop.f32.mrf.mxu0
    %v3219 = vadd.f32 0.0, %v3218
    %v3220 = vpop.f32.mrf.mxu0
    %v3221 = vadd.f32 0.0, %v3220
    %3222 = vmatmul.bf16.gmra.mxu0 %v685
    %v3223 = vpop.f32.mrf.mxu0
    %v3224 = vadd.f32 0.0, %v3223
    %v3225 = vpop.f32.mrf.mxu0
    %v3226 = vadd.f32 0.0, %v3225
    %3227 = vmatmul.bf16.gmra.mxu0 %v689
    %v3228 = vpop.f32.mrf.mxu0
    %v3229 = vadd.f32 0.0, %v3228
    %v3230 = vpop.f32.mrf.mxu0
    %v3231 = vadd.f32 0.0, %v3230
    %3232 = vmatmul.bf16.gmra.mxu0 %v693
    %v3233 = vpop.f32.mrf.mxu0
    %v3234 = vadd.f32 0.0, %v3233
    %v3235 = vpop.f32.mrf.mxu0
    %v3236 = vadd.f32 0.0, %v3235
    %3237 = vmatmul.bf16.gmra.mxu0 %v697
    %v3238 = vpop.f32.mrf.mxu0
    %v3239 = vadd.f32 0.0, %v3238
    %v3240 = vpop.f32.mrf.mxu0
    %v3241 = vadd.f32 0.0, %v3240
    %3242 = vmatmul.bf16.gmra.mxu0 %v701
    %v3243 = vpop.f32.mrf.mxu0
    %v3244 = vadd.f32 0.0, %v3243
    %v3245 = vpop.f32.mrf.mxu0
    %v3246 = vadd.f32 0.0, %v3245
    %3247 = vmatmul.bf16.gmra.mxu0 %v705
    %v3248 = vpop.f32.mrf.mxu0
    %v3249 = vadd.f32 0.0, %v3248
    %v3250 = vpop.f32.mrf.mxu0
    %v3251 = vadd.f32 0.0, %v3250
    %3252 = vmatmul.bf16.gmra.mxu0 %v709
    %v3253 = vpop.f32.mrf.mxu0
    %v3254 = vadd.f32 0.0, %v3253
    %v3255 = vpop.f32.mrf.mxu0
    %v3256 = vadd.f32 0.0, %v3255
    %3257 = vmatmul.bf16.gmra.mxu0 %v713
    %v3258 = vpop.f32.mrf.mxu0
    %v3259 = vadd.f32 0.0, %v3258
    %v3260 = vpop.f32.mrf.mxu0
    %v3261 = vadd.f32 0.0, %v3260
    %3262 = vmatmul.bf16.gmra.mxu0 %v717
    %v3263 = vpop.f32.mrf.mxu0
    %v3264 = vadd.f32 0.0, %v3263
    %v3265 = vpop.f32.mrf.mxu0
    %v3266 = vadd.f32 0.0, %v3265
    %3267 = vmatmul.bf16.gmra.mxu0 %v721
    %v3268 = vpop.f32.mrf.mxu0
    %v3269 = vadd.f32 0.0, %v3268
    %v3270 = vpop.f32.mrf.mxu0
    %v3271 = vadd.f32 0.0, %v3270
    %3272 = vmatmul.bf16.gmra.mxu0 %v725
    %v3273 = vpop.f32.mrf.mxu0
    %v3274 = vadd.f32 0.0, %v3273
    %v3275 = vpop.f32.mrf.mxu0
    %v3276 = vadd.f32 0.0, %v3275
    %3277 = vdwg.mxu0
    %3278 = vmatpush.bf16.msra.mxu0 %v3092
    %3279 = vmatpush.bf16.msra.mxu0 %v3091
    %3280 = vmatpush.bf16.msra.mxu0 %v3090
    %3281 = vmatpush.bf16.msra.mxu0 %v3089
    %3282 = vmatpush.bf16.msra.mxu0 %v3088
    %3283 = vmatpush.bf16.msra.mxu0 %v3087
    %3284 = vmatpush.bf16.msra.mxu0 %v3086
    %3285 = vmatpush.bf16.msra.mxu0 %v3085
    %3286 = vmatmul.bf16.gmra.mxu0 %v602
    %v3287 = vpop.f32.mrf.mxu0
    %v3288 = vadd.f32 %v3119, %v3287
    %v3289 = vpop.f32.mrf.mxu0
    %v3290 = vadd.f32 %v3121, %v3289
    %3291 = vmatmul.bf16.gmra.mxu0 %v606
    %v3292 = vpop.f32.mrf.mxu0
    %v3293 = vadd.f32 %v3124, %v3292
    %v3294 = vpop.f32.mrf.mxu0
    %v3295 = vadd.f32 %v3126, %v3294
    %3296 = vmatmul.bf16.gmra.mxu0 %v610
    %v3297 = vpop.f32.mrf.mxu0
    %v3298 = vadd.f32 %v3129, %v3297
    %v3299 = vpop.f32.mrf.mxu0
    %v3300 = vadd.f32 %v3131, %v3299
    %3301 = vmatmul.bf16.gmra.mxu0 %v614
    %v3302 = vpop.f32.mrf.mxu0
    %v3303 = vadd.f32 %v3134, %v3302
    %v3304 = vpop.f32.mrf.mxu0
    %v3305 = vadd.f32 %v3136, %v3304
    %3306 = vmatmul.bf16.gmra.mxu0 %v618
    %v3307 = vpop.f32.mrf.mxu0
    %v3308 = vadd.f32 %v3139, %v3307
    %v3309 = vpop.f32.mrf.mxu0
    %v3310 = vadd.f32 %v3141, %v3309
    %3311 = vmatmul.bf16.gmra.mxu0 %v622
    %v3312 = vpop.f32.mrf.mxu0
    %v3313 = vadd.f32 %v3144, %v3312
    %v3314 = vpop.f32.mrf.mxu0
    %v3315 = vadd.f32 %v3146, %v3314
    %3316 = vmatmul.bf16.gmra.mxu0 %v626
    %v3317 = vpop.f32.mrf.mxu0
    %v3318 = vadd.f32 %v3149, %v3317
    %v3319 = vpop.f32.mrf.mxu0
    %v3320 = vadd.f32 %v3151, %v3319
    %3321 = vmatmul.bf16.gmra.mxu0 %v630
    %v3322 = vpop.f32.mrf.mxu0
    %v3323 = vadd.f32 %v3154, %v3322
    %v3324 = vpop.f32.mrf.mxu0
    %v3325 = vadd.f32 %v3156, %v3324
    %3326 = vmatmul.bf16.gmra.mxu0 %v634
    %v3327 = vpop.f32.mrf.mxu0
    %v3328 = vadd.f32 %v3159, %v3327
    %v3329 = vpop.f32.mrf.mxu0
    %v3330 = vadd.f32 %v3161, %v3329
    %3331 = vmatmul.bf16.gmra.mxu0 %v638
    %v3332 = vpop.f32.mrf.mxu0
    %v3333 = vadd.f32 %v3164, %v3332
    %v3334 = vpop.f32.mrf.mxu0
    %v3335 = vadd.f32 %v3166, %v3334
    %3336 = vmatmul.bf16.gmra.mxu0 %v642
    %v3337 = vpop.f32.mrf.mxu0
    %v3338 = vadd.f32 %v3169, %v3337
    %v3339 = vpop.f32.mrf.mxu0
    %v3340 = vadd.f32 %v3171, %v3339
    %3341 = vmatmul.bf16.gmra.mxu0 %v646
    %v3342 = vpop.f32.mrf.mxu0
    %v3343 = vadd.f32 %v3174, %v3342
    %v3344 = vpop.f32.mrf.mxu0
    %v3345 = vadd.f32 %v3176, %v3344
    %3346 = vmatmul.bf16.gmra.mxu0 %v650
    %v3347 = vpop.f32.mrf.mxu0
    %v3348 = vadd.f32 %v3179, %v3347
    %v3349 = vpop.f32.mrf.mxu0
    %v3350 = vadd.f32 %v3181, %v3349
    %3351 = vmatmul.bf16.gmra.mxu0 %v654
    %v3352 = vpop.f32.mrf.mxu0
    %v3353 = vadd.f32 %v3184, %v3352
    %v3354 = vpop.f32.mrf.mxu0
    %v3355 = vadd.f32 %v3186, %v3354
    %3356 = vmatmul.bf16.gmra.mxu0 %v658
    %v3357 = vpop.f32.mrf.mxu0
    %v3358 = vadd.f32 %v3189, %v3357
    %v3359 = vpop.f32.mrf.mxu0
    %v3360 = vadd.f32 %v3191, %v3359
    %3361 = vmatmul.bf16.gmra.mxu0 %v662
    %v3362 = vpop.f32.mrf.mxu0
    %v3363 = vadd.f32 %v3194, %v3362
    %v3364 = vpop.f32.mrf.mxu0
    %v3365 = vadd.f32 %v3196, %v3364
    %3366 = vmatmul.bf16.gmra.mxu0 %v666
    %v3367 = vpop.f32.mrf.mxu0
    %v3368 = vadd.f32 %v3199, %v3367
    %v3369 = vpop.f32.mrf.mxu0
    %v3370 = vadd.f32 %v3201, %v3369
    %3371 = vmatmul.bf16.gmra.mxu0 %v670
    %v3372 = vpop.f32.mrf.mxu0
    %v3373 = vadd.f32 %v3204, %v3372
    %v3374 = vpop.f32.mrf.mxu0
    %v3375 = vadd.f32 %v3206, %v3374
    %3376 = vmatmul.bf16.gmra.mxu0 %v674
    %v3377 = vpop.f32.mrf.mxu0
    %v3378 = vadd.f32 %v3209, %v3377
    %v3379 = vpop.f32.mrf.mxu0
    %v3380 = vadd.f32 %v3211, %v3379
    %3381 = vmatmul.bf16.gmra.mxu0 %v678
    %v3382 = vpop.f32.mrf.mxu0
    %v3383 = vadd.f32 %v3214, %v3382
    %v3384 = vpop.f32.mrf.mxu0
    %v3385 = vadd.f32 %v3216, %v3384
    %3386 = vmatmul.bf16.gmra.mxu0 %v682
    %v3387 = vpop.f32.mrf.mxu0
    %v3388 = vadd.f32 %v3219, %v3387
    %v3389 = vpop.f32.mrf.mxu0
    %v3390 = vadd.f32 %v3221, %v3389
    %3391 = vmatmul.bf16.gmra.mxu0 %v686
    %v3392 = vpop.f32.mrf.mxu0
    %v3393 = vadd.f32 %v3224, %v3392
    %v3394 = vpop.f32.mrf.mxu0
    %v3395 = vadd.f32 %v3226, %v3394
    %3396 = vmatmul.bf16.gmra.mxu0 %v690
    %v3397 = vpop.f32.mrf.mxu0
    %v3398 = vadd.f32 %v3229, %v3397
    %v3399 = vpop.f32.mrf.mxu0
    %v3400 = vadd.f32 %v3231, %v3399
    %3401 = vmatmul.bf16.gmra.mxu0 %v694
    %v3402 = vpop.f32.mrf.mxu0
    %v3403 = vadd.f32 %v3234, %v3402
    %v3404 = vpop.f32.mrf.mxu0
    %v3405 = vadd.f32 %v3236, %v3404
    %3406 = vmatmul.bf16.gmra.mxu0 %v698
    %v3407 = vpop.f32.mrf.mxu0
    %v3408 = vadd.f32 %v3239, %v3407
    %v3409 = vpop.f32.mrf.mxu0
    %v3410 = vadd.f32 %v3241, %v3409
    %3411 = vmatmul.bf16.gmra.mxu0 %v702
    %v3412 = vpop.f32.mrf.mxu0
    %v3413 = vadd.f32 %v3244, %v3412
    %v3414 = vpop.f32.mrf.mxu0
    %v3415 = vadd.f32 %v3246, %v3414
    %3416 = vmatmul.bf16.gmra.mxu0 %v706
    %v3417 = vpop.f32.mrf.mxu0
    %v3418 = vadd.f32 %v3249, %v3417
    %v3419 = vpop.f32.mrf.mxu0
    %v3420 = vadd.f32 %v3251, %v3419
    %3421 = vmatmul.bf16.gmra.mxu0 %v710
    %v3422 = vpop.f32.mrf.mxu0
    %v3423 = vadd.f32 %v3254, %v3422
    %v3424 = vpop.f32.mrf.mxu0
    %v3425 = vadd.f32 %v3256, %v3424
    %3426 = vmatmul.bf16.gmra.mxu0 %v714
    %v3427 = vpop.f32.mrf.mxu0
    %v3428 = vadd.f32 %v3259, %v3427
    %v3429 = vpop.f32.mrf.mxu0
    %v3430 = vadd.f32 %v3261, %v3429
    %3431 = vmatmul.bf16.gmra.mxu0 %v718
    %v3432 = vpop.f32.mrf.mxu0
    %v3433 = vadd.f32 %v3264, %v3432
    %v3434 = vpop.f32.mrf.mxu0
    %v3435 = vadd.f32 %v3266, %v3434
    %3436 = vmatmul.bf16.gmra.mxu0 %v722
    %v3437 = vpop.f32.mrf.mxu0
    %v3438 = vadd.f32 %v3269, %v3437
    %v3439 = vpop.f32.mrf.mxu0
    %v3440 = vadd.f32 %v3271, %v3439
    %3441 = vmatmul.bf16.gmra.mxu0 %v726
    %v3442 = vpop.f32.mrf.mxu0
    %v3443 = vadd.f32 %v3274, %v3442
    %v3444 = vpop.f32.mrf.mxu0
    %v3445 = vadd.f32 %v3276, %v3444
    %3446 = vdwg.mxu0
    %3447 = vmatpush.bf16.msra.mxu0 %v3100
    %3448 = vmatpush.bf16.msra.mxu0 %v3099
    %3449 = vmatpush.bf16.msra.mxu0 %v3098
    %3450 = vmatpush.bf16.msra.mxu0 %v3097
    %3451 = vmatpush.bf16.msra.mxu0 %v3096
    %3452 = vmatpush.bf16.msra.mxu0 %v3095
    %3453 = vmatpush.bf16.msra.mxu0 %v3094
    %3454 = vmatpush.bf16.msra.mxu0 %v3093
    %3455 = vmatmul.bf16.gmra.mxu0 %v603
    %v3456 = vpop.f32.mrf.mxu0
    %v3457 = vadd.f32 %v3288, %v3456
    %v3458 = vpop.f32.mrf.mxu0
    %v3459 = vadd.f32 %v3290, %v3458
    %3460 = vmatmul.bf16.gmra.mxu0 %v607
    %v3461 = vpop.f32.mrf.mxu0
    %v3462 = vadd.f32 %v3293, %v3461
    %v3463 = vpop.f32.mrf.mxu0
    %v3464 = vadd.f32 %v3295, %v3463
    %3465 = vmatmul.bf16.gmra.mxu0 %v611
    %v3466 = vpop.f32.mrf.mxu0
    %v3467 = vadd.f32 %v3298, %v3466
    %v3468 = vpop.f32.mrf.mxu0
    %v3469 = vadd.f32 %v3300, %v3468
    %3470 = vmatmul.bf16.gmra.mxu0 %v615
    %v3471 = vpop.f32.mrf.mxu0
    %v3472 = vadd.f32 %v3303, %v3471
    %v3473 = vpop.f32.mrf.mxu0
    %v3474 = vadd.f32 %v3305, %v3473
    %3475 = vmatmul.bf16.gmra.mxu0 %v619
    %v3476 = vpop.f32.mrf.mxu0
    %v3477 = vadd.f32 %v3308, %v3476
    %v3478 = vpop.f32.mrf.mxu0
    %v3479 = vadd.f32 %v3310, %v3478
    %3480 = vmatmul.bf16.gmra.mxu0 %v623
    %v3481 = vpop.f32.mrf.mxu0
    %v3482 = vadd.f32 %v3313, %v3481
    %v3483 = vpop.f32.mrf.mxu0
    %v3484 = vadd.f32 %v3315, %v3483
    %3485 = vmatmul.bf16.gmra.mxu0 %v627
    %v3486 = vpop.f32.mrf.mxu0
    %v3487 = vadd.f32 %v3318, %v3486
    %v3488 = vpop.f32.mrf.mxu0
    %v3489 = vadd.f32 %v3320, %v3488
    %3490 = vmatmul.bf16.gmra.mxu0 %v631
    %v3491 = vpop.f32.mrf.mxu0
    %v3492 = vadd.f32 %v3323, %v3491
    %v3493 = vpop.f32.mrf.mxu0
    %v3494 = vadd.f32 %v3325, %v3493
    %3495 = vmatmul.bf16.gmra.mxu0 %v635
    %v3496 = vpop.f32.mrf.mxu0
    %v3497 = vadd.f32 %v3328, %v3496
    %v3498 = vpop.f32.mrf.mxu0
    %v3499 = vadd.f32 %v3330, %v3498
    %3500 = vmatmul.bf16.gmra.mxu0 %v639
    %v3501 = vpop.f32.mrf.mxu0
    %v3502 = vadd.f32 %v3333, %v3501
    %v3503 = vpop.f32.mrf.mxu0
    %v3504 = vadd.f32 %v3335, %v3503
    %3505 = vmatmul.bf16.gmra.mxu0 %v643
    %v3506 = vpop.f32.mrf.mxu0
    %v3507 = vadd.f32 %v3338, %v3506
    %v3508 = vpop.f32.mrf.mxu0
    %v3509 = vadd.f32 %v3340, %v3508
    %3510 = vmatmul.bf16.gmra.mxu0 %v647
    %v3511 = vpop.f32.mrf.mxu0
    %v3512 = vadd.f32 %v3343, %v3511
    %v3513 = vpop.f32.mrf.mxu0
    %v3514 = vadd.f32 %v3345, %v3513
    %3515 = vmatmul.bf16.gmra.mxu0 %v651
    %v3516 = vpop.f32.mrf.mxu0
    %v3517 = vadd.f32 %v3348, %v3516
    %v3518 = vpop.f32.mrf.mxu0
    %v3519 = vadd.f32 %v3350, %v3518
    %3520 = vmatmul.bf16.gmra.mxu0 %v655
    %v3521 = vpop.f32.mrf.mxu0
    %v3522 = vadd.f32 %v3353, %v3521
    %v3523 = vpop.f32.mrf.mxu0
    %v3524 = vadd.f32 %v3355, %v3523
    %3525 = vmatmul.bf16.gmra.mxu0 %v659
    %v3526 = vpop.f32.mrf.mxu0
    %v3527 = vadd.f32 %v3358, %v3526
    %v3528 = vpop.f32.mrf.mxu0
    %v3529 = vadd.f32 %v3360, %v3528
    %3530 = vmatmul.bf16.gmra.mxu0 %v663
    %v3531 = vpop.f32.mrf.mxu0
    %v3532 = vadd.f32 %v3363, %v3531
    %v3533 = vpop.f32.mrf.mxu0
    %v3534 = vadd.f32 %v3365, %v3533
    %3535 = vmatmul.bf16.gmra.mxu0 %v667
    %v3536 = vpop.f32.mrf.mxu0
    %v3537 = vadd.f32 %v3368, %v3536
    %v3538 = vpop.f32.mrf.mxu0
    %v3539 = vadd.f32 %v3370, %v3538
    %3540 = vmatmul.bf16.gmra.mxu0 %v671
    %v3541 = vpop.f32.mrf.mxu0
    %v3542 = vadd.f32 %v3373, %v3541
    %v3543 = vpop.f32.mrf.mxu0
    %v3544 = vadd.f32 %v3375, %v3543
    %3545 = vmatmul.bf16.gmra.mxu0 %v675
    %v3546 = vpop.f32.mrf.mxu0
    %v3547 = vadd.f32 %v3378, %v3546
    %v3548 = vpop.f32.mrf.mxu0
    %v3549 = vadd.f32 %v3380, %v3548
    %3550 = vmatmul.bf16.gmra.mxu0 %v679
    %v3551 = vpop.f32.mrf.mxu0
    %v3552 = vadd.f32 %v3383, %v3551
    %v3553 = vpop.f32.mrf.mxu0
    %v3554 = vadd.f32 %v3385, %v3553
    %3555 = vmatmul.bf16.gmra.mxu0 %v683
    %v3556 = vpop.f32.mrf.mxu0
    %v3557 = vadd.f32 %v3388, %v3556
    %v3558 = vpop.f32.mrf.mxu0
    %v3559 = vadd.f32 %v3390, %v3558
    %3560 = vmatmul.bf16.gmra.mxu0 %v687
    %v3561 = vpop.f32.mrf.mxu0
    %v3562 = vadd.f32 %v3393, %v3561
    %v3563 = vpop.f32.mrf.mxu0
    %v3564 = vadd.f32 %v3395, %v3563
    %3565 = vmatmul.bf16.gmra.mxu0 %v691
    %v3566 = vpop.f32.mrf.mxu0
    %v3567 = vadd.f32 %v3398, %v3566
    %v3568 = vpop.f32.mrf.mxu0
    %v3569 = vadd.f32 %v3400, %v3568
    %3570 = vmatmul.bf16.gmra.mxu0 %v695
    %v3571 = vpop.f32.mrf.mxu0
    %v3572 = vadd.f32 %v3403, %v3571
    %v3573 = vpop.f32.mrf.mxu0
    %v3574 = vadd.f32 %v3405, %v3573
    %3575 = vmatmul.bf16.gmra.mxu0 %v699
    %v3576 = vpop.f32.mrf.mxu0
    %v3577 = vadd.f32 %v3408, %v3576
    %v3578 = vpop.f32.mrf.mxu0
    %v3579 = vadd.f32 %v3410, %v3578
    %3580 = vmatmul.bf16.gmra.mxu0 %v703
    %v3581 = vpop.f32.mrf.mxu0
    %v3582 = vadd.f32 %v3413, %v3581
    %v3583 = vpop.f32.mrf.mxu0
    %v3584 = vadd.f32 %v3415, %v3583
    %3585 = vmatmul.bf16.gmra.mxu0 %v707
    %v3586 = vpop.f32.mrf.mxu0
    %v3587 = vadd.f32 %v3418, %v3586
    %v3588 = vpop.f32.mrf.mxu0
    %v3589 = vadd.f32 %v3420, %v3588
    %3590 = vmatmul.bf16.gmra.mxu0 %v711
    %v3591 = vpop.f32.mrf.mxu0
    %v3592 = vadd.f32 %v3423, %v3591
    %v3593 = vpop.f32.mrf.mxu0
    %v3594 = vadd.f32 %v3425, %v3593
    %3595 = vmatmul.bf16.gmra.mxu0 %v715
    %v3596 = vpop.f32.mrf.mxu0
    %v3597 = vadd.f32 %v3428, %v3596
    %v3598 = vpop.f32.mrf.mxu0
    %v3599 = vadd.f32 %v3430, %v3598
    %3600 = vmatmul.bf16.gmra.mxu0 %v719
    %v3601 = vpop.f32.mrf.mxu0
    %v3602 = vadd.f32 %v3433, %v3601
    %v3603 = vpop.f32.mrf.mxu0
    %v3604 = vadd.f32 %v3435, %v3603
    %3605 = vmatmul.bf16.gmra.mxu0 %v723
    %v3606 = vpop.f32.mrf.mxu0
    %v3607 = vadd.f32 %v3438, %v3606
    %v3608 = vpop.f32.mrf.mxu0
    %v3609 = vadd.f32 %v3440, %v3608
    %3610 = vmatmul.bf16.gmra.mxu0 %v727
    %v3611 = vpop.f32.mrf.mxu0
    %v3612 = vadd.f32 %v3443, %v3611
    %v3613 = vpop.f32.mrf.mxu0
    %v3614 = vadd.f32 %v3445, %v3613
    %3615 = vdwg.mxu0
    %3616 = vmatpush.bf16.msra.mxu0 %v3108
    %3617 = vmatpush.bf16.msra.mxu0 %v3107
    %3618 = vmatpush.bf16.msra.mxu0 %v3106
    %3619 = vmatpush.bf16.msra.mxu0 %v3105
    %3620 = vmatpush.bf16.msra.mxu0 %v3104
    %3621 = vmatpush.bf16.msra.mxu0 %v3103
    %3622 = vmatpush.bf16.msra.mxu0 %v3102
    %3623 = vmatpush.bf16.msra.mxu0 %v3101
    %3624 = vmatmul.bf16.gmra.mxu0 %v604
    %v3625 = vpop.f32.mrf.mxu0
    %v3626 = vadd.f32 %v3457, %v3625
    %v3627 = vpop.f32.mrf.mxu0
    %v3628 = vadd.f32 %v3459, %v3627
    %3629 = vmatmul.bf16.gmra.mxu0 %v608
    %v3630 = vpop.f32.mrf.mxu0
    %v3631 = vadd.f32 %v3462, %v3630
    %v3632 = vpop.f32.mrf.mxu0
    %v3633 = vadd.f32 %v3464, %v3632
    %3634 = vmatmul.bf16.gmra.mxu0 %v612
    %v3635 = vpop.f32.mrf.mxu0
    %v3636 = vadd.f32 %v3467, %v3635
    %v3637 = vpop.f32.mrf.mxu0
    %v3638 = vadd.f32 %v3469, %v3637
    %3639 = vmatmul.bf16.gmra.mxu0 %v616
    %v3640 = vpop.f32.mrf.mxu0
    %v3641 = vadd.f32 %v3472, %v3640
    %v3642 = vpop.f32.mrf.mxu0
    %v3643 = vadd.f32 %v3474, %v3642
    %3644 = vmatmul.bf16.gmra.mxu0 %v620
    %v3645 = vpop.f32.mrf.mxu0
    %v3646 = vadd.f32 %v3477, %v3645
    %v3647 = vpop.f32.mrf.mxu0
    %v3648 = vadd.f32 %v3479, %v3647
    %3649 = vmatmul.bf16.gmra.mxu0 %v624
    %v3650 = vpop.f32.mrf.mxu0
    %v3651 = vadd.f32 %v3482, %v3650
    %v3652 = vpop.f32.mrf.mxu0
    %v3653 = vadd.f32 %v3484, %v3652
    %3654 = vmatmul.bf16.gmra.mxu0 %v628
    %v3655 = vpop.f32.mrf.mxu0
    %v3656 = vadd.f32 %v3487, %v3655
    %v3657 = vpop.f32.mrf.mxu0
    %v3658 = vadd.f32 %v3489, %v3657
    %3659 = vmatmul.bf16.gmra.mxu0 %v632
    %v3660 = vpop.f32.mrf.mxu0
    %v3661 = vadd.f32 %v3492, %v3660
    %v3662 = vpop.f32.mrf.mxu0
    %v3663 = vadd.f32 %v3494, %v3662
    %3664 = vmatmul.bf16.gmra.mxu0 %v636
    %v3665 = vpop.f32.mrf.mxu0
    %v3666 = vadd.f32 %v3497, %v3665
    %v3667 = vpop.f32.mrf.mxu0
    %v3668 = vadd.f32 %v3499, %v3667
    %3669 = vmatmul.bf16.gmra.mxu0 %v640
    %v3670 = vpop.f32.mrf.mxu0
    %v3671 = vadd.f32 %v3502, %v3670
    %v3672 = vpop.f32.mrf.mxu0
    %v3673 = vadd.f32 %v3504, %v3672
    %3674 = vmatmul.bf16.gmra.mxu0 %v644
    %v3675 = vpop.f32.mrf.mxu0
    %v3676 = vadd.f32 %v3507, %v3675
    %v3677 = vpop.f32.mrf.mxu0
    %v3678 = vadd.f32 %v3509, %v3677
    %3679 = vmatmul.bf16.gmra.mxu0 %v648
    %v3680 = vpop.f32.mrf.mxu0
    %v3681 = vadd.f32 %v3512, %v3680
    %v3682 = vpop.f32.mrf.mxu0
    %v3683 = vadd.f32 %v3514, %v3682
    %3684 = vmatmul.bf16.gmra.mxu0 %v652
    %v3685 = vpop.f32.mrf.mxu0
    %v3686 = vadd.f32 %v3517, %v3685
    %v3687 = vpop.f32.mrf.mxu0
    %v3688 = vadd.f32 %v3519, %v3687
    %3689 = vmatmul.bf16.gmra.mxu0 %v656
    %v3690 = vpop.f32.mrf.mxu0
    %v3691 = vadd.f32 %v3522, %v3690
    %v3692 = vpop.f32.mrf.mxu0
    %v3693 = vadd.f32 %v3524, %v3692
    %3694 = vmatmul.bf16.gmra.mxu0 %v660
    %v3695 = vpop.f32.mrf.mxu0
    %v3696 = vadd.f32 %v3527, %v3695
    %v3697 = vpop.f32.mrf.mxu0
    %v3698 = vadd.f32 %v3529, %v3697
    %3699 = vmatmul.bf16.gmra.mxu0 %v664
    %v3700 = vpop.f32.mrf.mxu0
    %v3701 = vadd.f32 %v3532, %v3700
    %v3702 = vpop.f32.mrf.mxu0
    %v3703 = vadd.f32 %v3534, %v3702
    %3704 = vmatmul.bf16.gmra.mxu0 %v668
    %v3705 = vpop.f32.mrf.mxu0
    %v3706 = vadd.f32 %v3537, %v3705
    %v3707 = vpop.f32.mrf.mxu0
    %v3708 = vadd.f32 %v3539, %v3707
    %3709 = vmatmul.bf16.gmra.mxu0 %v672
    %v3710 = vpop.f32.mrf.mxu0
    %v3711 = vadd.f32 %v3542, %v3710
    %v3712 = vpop.f32.mrf.mxu0
    %v3713 = vadd.f32 %v3544, %v3712
    %3714 = vmatmul.bf16.gmra.mxu0 %v676
    %v3715 = vpop.f32.mrf.mxu0
    %v3716 = vadd.f32 %v3547, %v3715
    %v3717 = vpop.f32.mrf.mxu0
    %v3718 = vadd.f32 %v3549, %v3717
    %3719 = vmatmul.bf16.gmra.mxu0 %v680
    %v3720 = vpop.f32.mrf.mxu0
    %v3721 = vadd.f32 %v3552, %v3720
    %v3722 = vpop.f32.mrf.mxu0
    %v3723 = vadd.f32 %v3554, %v3722
    %3724 = vmatmul.bf16.gmra.mxu0 %v684
    %v3725 = vpop.f32.mrf.mxu0
    %v3726 = vadd.f32 %v3557, %v3725
    %v3727 = vpop.f32.mrf.mxu0
    %v3728 = vadd.f32 %v3559, %v3727
    %3729 = vmatmul.bf16.gmra.mxu0 %v688
    %v3730 = vpop.f32.mrf.mxu0
    %v3731 = vadd.f32 %v3562, %v3730
    %v3732 = vpop.f32.mrf.mxu0
    %v3733 = vadd.f32 %v3564, %v3732
    %3734 = vmatmul.bf16.gmra.mxu0 %v692
    %v3735 = vpop.f32.mrf.mxu0
    %v3736 = vadd.f32 %v3567, %v3735
    %v3737 = vpop.f32.mrf.mxu0
    %v3738 = vadd.f32 %v3569, %v3737
    %3739 = vmatmul.bf16.gmra.mxu0 %v696
    %v3740 = vpop.f32.mrf.mxu0
    %v3741 = vadd.f32 %v3572, %v3740
    %v3742 = vpop.f32.mrf.mxu0
    %v3743 = vadd.f32 %v3574, %v3742
    %3744 = vmatmul.bf16.gmra.mxu0 %v700
    %v3745 = vpop.f32.mrf.mxu0
    %v3746 = vadd.f32 %v3577, %v3745
    %v3747 = vpop.f32.mrf.mxu0
    %v3748 = vadd.f32 %v3579, %v3747
    %3749 = vmatmul.bf16.gmra.mxu0 %v704
    %v3750 = vpop.f32.mrf.mxu0
    %v3751 = vadd.f32 %v3582, %v3750
    %v3752 = vpop.f32.mrf.mxu0
    %v3753 = vadd.f32 %v3584, %v3752
    %3754 = vmatmul.bf16.gmra.mxu0 %v708
    %v3755 = vpop.f32.mrf.mxu0
    %v3756 = vadd.f32 %v3587, %v3755
    %v3757 = vpop.f32.mrf.mxu0
    %v3758 = vadd.f32 %v3589, %v3757
    %3759 = vmatmul.bf16.gmra.mxu0 %v712
    %v3760 = vpop.f32.mrf.mxu0
    %v3761 = vadd.f32 %v3592, %v3760
    %v3762 = vpop.f32.mrf.mxu0
    %v3763 = vadd.f32 %v3594, %v3762
    %3764 = vmatmul.bf16.gmra.mxu0 %v716
    %v3765 = vpop.f32.mrf.mxu0
    %v3766 = vadd.f32 %v3597, %v3765
    %v3767 = vpop.f32.mrf.mxu0
    %v3768 = vadd.f32 %v3599, %v3767
    %3769 = vmatmul.bf16.gmra.mxu0 %v720
    %v3770 = vpop.f32.mrf.mxu0
    %v3771 = vadd.f32 %v3602, %v3770
    %v3772 = vpop.f32.mrf.mxu0
    %v3773 = vadd.f32 %v3604, %v3772
    %3774 = vmatmul.bf16.gmra.mxu0 %v724
    %v3775 = vpop.f32.mrf.mxu0
    %v3776 = vadd.f32 %v3607, %v3775
    %v3777 = vpop.f32.mrf.mxu0
    %v3778 = vadd.f32 %v3609, %v3777
    %3779 = vmatmul.bf16.gmra.mxu0 %v728
    %v3780 = vpop.f32.mrf.mxu0
    %v3781 = vadd.f32 %v3612, %v3780
    %v3782 = vpop.f32.mrf.mxu0
    %v3783 = vadd.f32 %v3614, %v3782
    %3784 = vdwg.mxu0
    %v3785 = vpack.c.bf16 %v3628, %v3626
    %v3786 = vpack.c.bf16 %v3633, %v3631
    %v3787 = vpack.c.bf16 %v3638, %v3636
    %v3788 = vpack.c.bf16 %v3643, %v3641
    %v3789 = vpack.c.bf16 %v3648, %v3646
    %v3790 = vpack.c.bf16 %v3653, %v3651
    %v3791 = vpack.c.bf16 %v3658, %v3656
    %v3792 = vpack.c.bf16 %v3663, %v3661
    %v3793 = vpack.c.bf16 %v3668, %v3666
    %v3794 = vpack.c.bf16 %v3673, %v3671
    %v3795 = vpack.c.bf16 %v3678, %v3676
    %v3796 = vpack.c.bf16 %v3683, %v3681
    %v3797 = vpack.c.bf16 %v3688, %v3686
    %v3798 = vpack.c.bf16 %v3693, %v3691
    %v3799 = vpack.c.bf16 %v3698, %v3696
    %v3800 = vpack.c.bf16 %v3703, %v3701
    %v3801 = vpack.c.bf16 %v3708, %v3706
    %v3802 = vpack.c.bf16 %v3713, %v3711
    %v3803 = vpack.c.bf16 %v3718, %v3716
    %v3804 = vpack.c.bf16 %v3723, %v3721
    %v3805 = vpack.c.bf16 %v3728, %v3726
    %v3806 = vpack.c.bf16 %v3733, %v3731
    %v3807 = vpack.c.bf16 %v3738, %v3736
    %v3808 = vpack.c.bf16 %v3743, %v3741
    %v3809 = vpack.c.bf16 %v3748, %v3746
    %v3810 = vpack.c.bf16 %v3753, %v3751
    %v3811 = vpack.c.bf16 %v3758, %v3756
    %v3812 = vpack.c.bf16 %v3763, %v3761
    %v3813 = vpack.c.bf16 %v3768, %v3766
    %v3814 = vpack.c.bf16 %v3773, %v3771
    %v3815 = vpack.c.bf16 %v3778, %v3776
    %v3816 = vpack.c.bf16 %v3783, %v3781
    %v3817 = vld [vmem:[%s4] sm:$0xff]
    %v3818 = vld [vmem:[%s4 + $0x8] sm:$0xff]
    %v3819 = vld [vmem:[%s4 + $0x10] sm:$0xff]
    %v3820 = vld [vmem:[%s4 + $0x18] sm:$0xff]
    %v3821 = vld [vmem:[%s4 + $0x20] sm:$0xff]
    %v3822 = vld [vmem:[%s4 + $0x28] sm:$0xff]
    %v3823 = vld [vmem:[%s4 + $0x30] sm:$0xff]
    %v3824 = vld [vmem:[%s4 + $0x38] sm:$0xff]
    %v3825 = vld [vmem:[%s4 + $0x40] sm:$0xff]
    %v3826 = vld [vmem:[%s4 + $0x48] sm:$0xff]
    %v3827 = vld [vmem:[%s4 + $0x50] sm:$0xff]
    %v3828 = vld [vmem:[%s4 + $0x58] sm:$0xff]
    %v3829 = vld [vmem:[%s4 + $0x60] sm:$0xff]
    %v3830 = vld [vmem:[%s4 + $0x68] sm:$0xff]
    %v3831 = vld [vmem:[%s4 + $0x70] sm:$0xff]
    %v3832 = vld [vmem:[%s4 + $0x78] sm:$0xff]
    %v3849 = vunpack.c.l.b16 %v3817
    %v3850 = vunpack.c.h.b16 %v3817
    %v3851 = vunpack.c.l.b16 %v3818
    %v3852 = vunpack.c.h.b16 %v3818
    %v3853 = vunpack.c.l.b16 %v3819
    %v3854 = vunpack.c.h.b16 %v3819
    %v3855 = vunpack.c.l.b16 %v3820
    %v3856 = vunpack.c.h.b16 %v3820
    %v3857 = vunpack.c.l.b16 %v3821
    %v3858 = vunpack.c.h.b16 %v3821
    %v3859 = vunpack.c.l.b16 %v3822
    %v3860 = vunpack.c.h.b16 %v3822
    %v3861 = vunpack.c.l.b16 %v3823
    %v3862 = vunpack.c.h.b16 %v3823
    %v3863 = vunpack.c.l.b16 %v3824
    %v3864 = vunpack.c.h.b16 %v3824
    %v3865 = vunpack.c.l.b16 %v3825
    %v3866 = vunpack.c.h.b16 %v3825
    %v3867 = vunpack.c.l.b16 %v3826
    %v3868 = vunpack.c.h.b16 %v3826
    %v3869 = vunpack.c.l.b16 %v3827
    %v3870 = vunpack.c.h.b16 %v3827
    %v3871 = vunpack.c.l.b16 %v3828
    %v3872 = vunpack.c.h.b16 %v3828
    %v3873 = vunpack.c.l.b16 %v3829
    %v3874 = vunpack.c.h.b16 %v3829
    %v3875 = vunpack.c.l.b16 %v3830
    %v3876 = vunpack.c.h.b16 %v3830
    %v3877 = vunpack.c.l.b16 %v3831
    %v3878 = vunpack.c.h.b16 %v3831
    %v3879 = vunpack.c.l.b16 %v3832
    %v3880 = vunpack.c.h.b16 %v3832
    %v3881 = vpack.c.b16 %v3851, %v3849
    %v3882 = vpack.c.b16 %v3852, %v3850
    %v3883 = vpack.c.b16 %v3855, %v3853
    %v3884 = vpack.c.b16 %v3856, %v3854
    %v3885 = vpack.c.b16 %v3859, %v3857
    %v3886 = vpack.c.b16 %v3860, %v3858
    %v3887 = vpack.c.b16 %v3863, %v3861
    %v3888 = vpack.c.b16 %v3864, %v3862
    %v3889 = vpack.c.b16 %v3867, %v3865
    %v3890 = vpack.c.b16 %v3868, %v3866
    %v3891 = vpack.c.b16 %v3871, %v3869
    %v3892 = vpack.c.b16 %v3872, %v3870
    %v3893 = vpack.c.b16 %v3875, %v3873
    %v3894 = vpack.c.b16 %v3876, %v3874
    %v3895 = vpack.c.b16 %v3879, %v3877
    %v3896 = vpack.c.b16 %v3880, %v3878
    %3913 = vmatpush.bf16.msra.mxu0 %v3895
    %3914 = vmatpush.bf16.msra.mxu0 %v3893
    %3915 = vmatpush.bf16.msra.mxu0 %v3891
    %3916 = vmatpush.bf16.msra.mxu0 %v3889
    %3917 = vmatpush.bf16.msra.mxu0 %v3887
    %3918 = vmatpush.bf16.msra.mxu0 %v3885
    %3919 = vmatpush.bf16.msra.mxu0 %v3883
    %3920 = vmatpush.bf16.msra.mxu0 %v3881
    %3921 = vmatmul.bf16.gmra.mxu0 %v3785
    %v3922 = vpop.f32.mrf.mxu0
    %v3923 = vadd.f32 0.0, %v3922
    %v3924 = vpop.f32.mrf.mxu0
    %v3925 = vadd.f32 0.0, %v3924
    %3926 = vmatmul.bf16.gmra.mxu0 %v3786
    %v3927 = vpop.f32.mrf.mxu0
    %v3928 = vadd.f32 0.0, %v3927
    %v3929 = vpop.f32.mrf.mxu0
    %v3930 = vadd.f32 0.0, %v3929
    %3931 = vmatmul.bf16.gmra.mxu0 %v3787
    %v3932 = vpop.f32.mrf.mxu0
    %v3933 = vadd.f32 0.0, %v3932
    %v3934 = vpop.f32.mrf.mxu0
    %v3935 = vadd.f32 0.0, %v3934
    %3936 = vmatmul.bf16.gmra.mxu0 %v3788
    %v3937 = vpop.f32.mrf.mxu0
    %v3938 = vadd.f32 0.0, %v3937
    %v3939 = vpop.f32.mrf.mxu0
    %v3940 = vadd.f32 0.0, %v3939
    %3941 = vmatmul.bf16.gmra.mxu0 %v3789
    %v3942 = vpop.f32.mrf.mxu0
    %v3943 = vadd.f32 0.0, %v3942
    %v3944 = vpop.f32.mrf.mxu0
    %v3945 = vadd.f32 0.0, %v3944
    %3946 = vmatmul.bf16.gmra.mxu0 %v3790
    %v3947 = vpop.f32.mrf.mxu0
    %v3948 = vadd.f32 0.0, %v3947
    %v3949 = vpop.f32.mrf.mxu0
    %v3950 = vadd.f32 0.0, %v3949
    %3951 = vmatmul.bf16.gmra.mxu0 %v3791
    %v3952 = vpop.f32.mrf.mxu0
    %v3953 = vadd.f32 0.0, %v3952
    %v3954 = vpop.f32.mrf.mxu0
    %v3955 = vadd.f32 0.0, %v3954
    %3956 = vmatmul.bf16.gmra.mxu0 %v3792
    %v3957 = vpop.f32.mrf.mxu0
    %v3958 = vadd.f32 0.0, %v3957
    %v3959 = vpop.f32.mrf.mxu0
    %v3960 = vadd.f32 0.0, %v3959
    %3961 = vmatmul.bf16.gmra.mxu0 %v3793
    %v3962 = vpop.f32.mrf.mxu0
    %v3963 = vadd.f32 0.0, %v3962
    %v3964 = vpop.f32.mrf.mxu0
    %v3965 = vadd.f32 0.0, %v3964
    %3966 = vmatmul.bf16.gmra.mxu0 %v3794
    %v3967 = vpop.f32.mrf.mxu0
    %v3968 = vadd.f32 0.0, %v3967
    %v3969 = vpop.f32.mrf.mxu0
    %v3970 = vadd.f32 0.0, %v3969
    %3971 = vmatmul.bf16.gmra.mxu0 %v3795
    %v3972 = vpop.f32.mrf.mxu0
    %v3973 = vadd.f32 0.0, %v3972
    %v3974 = vpop.f32.mrf.mxu0
    %v3975 = vadd.f32 0.0, %v3974
    %3976 = vmatmul.bf16.gmra.mxu0 %v3796
    %v3977 = vpop.f32.mrf.mxu0
    %v3978 = vadd.f32 0.0, %v3977
    %v3979 = vpop.f32.mrf.mxu0
    %v3980 = vadd.f32 0.0, %v3979
    %3981 = vmatmul.bf16.gmra.mxu0 %v3797
    %v3982 = vpop.f32.mrf.mxu0
    %v3983 = vadd.f32 0.0, %v3982
    %v3984 = vpop.f32.mrf.mxu0
    %v3985 = vadd.f32 0.0, %v3984
    %3986 = vmatmul.bf16.gmra.mxu0 %v3798
    %v3987 = vpop.f32.mrf.mxu0
    %v3988 = vadd.f32 0.0, %v3987
    %v3989 = vpop.f32.mrf.mxu0
    %v3990 = vadd.f32 0.0, %v3989
    %3991 = vmatmul.bf16.gmra.mxu0 %v3799
    %v3992 = vpop.f32.mrf.mxu0
    %v3993 = vadd.f32 0.0, %v3992
    %v3994 = vpop.f32.mrf.mxu0
    %v3995 = vadd.f32 0.0, %v3994
    %3996 = vmatmul.bf16.gmra.mxu0 %v3800
    %v3997 = vpop.f32.mrf.mxu0
    %v3998 = vadd.f32 0.0, %v3997
    %v3999 = vpop.f32.mrf.mxu0
    %v4000 = vadd.f32 0.0, %v3999
    %4001 = vmatmul.bf16.gmra.mxu0 %v3801
    %v4002 = vpop.f32.mrf.mxu0
    %v4003 = vadd.f32 0.0, %v4002
    %v4004 = vpop.f32.mrf.mxu0
    %v4005 = vadd.f32 0.0, %v4004
    %4006 = vmatmul.bf16.gmra.mxu0 %v3802
    %v4007 = vpop.f32.mrf.mxu0
    %v4008 = vadd.f32 0.0, %v4007
    %v4009 = vpop.f32.mrf.mxu0
    %v4010 = vadd.f32 0.0, %v4009
    %4011 = vmatmul.bf16.gmra.mxu0 %v3803
    %v4012 = vpop.f32.mrf.mxu0
    %v4013 = vadd.f32 0.0, %v4012
    %v4014 = vpop.f32.mrf.mxu0
    %v4015 = vadd.f32 0.0, %v4014
    %4016 = vmatmul.bf16.gmra.mxu0 %v3804
    %v4017 = vpop.f32.mrf.mxu0
    %v4018 = vadd.f32 0.0, %v4017
    %v4019 = vpop.f32.mrf.mxu0
    %v4020 = vadd.f32 0.0, %v4019
    %4021 = vmatmul.bf16.gmra.mxu0 %v3805
    %v4022 = vpop.f32.mrf.mxu0
    %v4023 = vadd.f32 0.0, %v4022
    %v4024 = vpop.f32.mrf.mxu0
    %v4025 = vadd.f32 0.0, %v4024
    %4026 = vmatmul.bf16.gmra.mxu0 %v3806
    %v4027 = vpop.f32.mrf.mxu0
    %v4028 = vadd.f32 0.0, %v4027
    %v4029 = vpop.f32.mrf.mxu0
    %v4030 = vadd.f32 0.0, %v4029
    %4031 = vmatmul.bf16.gmra.mxu0 %v3807
    %v4032 = vpop.f32.mrf.mxu0
    %v4033 = vadd.f32 0.0, %v4032
    %v4034 = vpop.f32.mrf.mxu0
    %v4035 = vadd.f32 0.0, %v4034
    %4036 = vmatmul.bf16.gmra.mxu0 %v3808
    %v4037 = vpop.f32.mrf.mxu0
    %v4038 = vadd.f32 0.0, %v4037
    %v4039 = vpop.f32.mrf.mxu0
    %v4040 = vadd.f32 0.0, %v4039
    %4041 = vmatmul.bf16.gmra.mxu0 %v3809
    %v4042 = vpop.f32.mrf.mxu0
    %v4043 = vadd.f32 0.0, %v4042
    %v4044 = vpop.f32.mrf.mxu0
    %v4045 = vadd.f32 0.0, %v4044
    %4046 = vmatmul.bf16.gmra.mxu0 %v3810
    %v4047 = vpop.f32.mrf.mxu0
    %v4048 = vadd.f32 0.0, %v4047
    %v4049 = vpop.f32.mrf.mxu0
    %v4050 = vadd.f32 0.0, %v4049
    %4051 = vmatmul.bf16.gmra.mxu0 %v3811
    %v4052 = vpop.f32.mrf.mxu0
    %v4053 = vadd.f32 0.0, %v4052
    %v4054 = vpop.f32.mrf.mxu0
    %v4055 = vadd.f32 0.0, %v4054
    %4056 = vmatmul.bf16.gmra.mxu0 %v3812
    %v4057 = vpop.f32.mrf.mxu0
    %v4058 = vadd.f32 0.0, %v4057
    %v4059 = vpop.f32.mrf.mxu0
    %v4060 = vadd.f32 0.0, %v4059
    %4061 = vmatmul.bf16.gmra.mxu0 %v3813
    %v4062 = vpop.f32.mrf.mxu0
    %v4063 = vadd.f32 0.0, %v4062
    %v4064 = vpop.f32.mrf.mxu0
    %v4065 = vadd.f32 0.0, %v4064
    %4066 = vmatmul.bf16.gmra.mxu0 %v3814
    %v4067 = vpop.f32.mrf.mxu0
    %v4068 = vadd.f32 0.0, %v4067
    %v4069 = vpop.f32.mrf.mxu0
    %v4070 = vadd.f32 0.0, %v4069
    %4071 = vmatmul.bf16.gmra.mxu0 %v3815
    %v4072 = vpop.f32.mrf.mxu0
    %v4073 = vadd.f32 0.0, %v4072
    %v4074 = vpop.f32.mrf.mxu0
    %v4075 = vadd.f32 0.0, %v4074
    %4076 = vmatmul.bf16.gmra.mxu0 %v3816
    %v4077 = vpop.f32.mrf.mxu0
    %v4078 = vadd.f32 0.0, %v4077
    %v4079 = vpop.f32.mrf.mxu0
    %v4080 = vadd.f32 0.0, %v4079
    %4081 = vdwg.mxu0
    %4082 = vmatpush.bf16.msra.mxu0 %v3896
    %4083 = vmatpush.bf16.msra.mxu0 %v3894
    %4084 = vmatpush.bf16.msra.mxu0 %v3892
    %4085 = vmatpush.bf16.msra.mxu0 %v3890
    %4086 = vmatpush.bf16.msra.mxu0 %v3888
    %4087 = vmatpush.bf16.msra.mxu0 %v3886
    %4088 = vmatpush.bf16.msra.mxu0 %v3884
    %4089 = vmatpush.bf16.msra.mxu0 %v3882
    %4090 = vmatmul.bf16.gmra.mxu0 %v3785
    %v4091 = vpop.f32.mrf.mxu0
    %v4092 = vadd.f32 0.0, %v4091
    %v4093 = vpop.f32.mrf.mxu0
    %v4094 = vadd.f32 0.0, %v4093
    %4095 = vmatmul.bf16.gmra.mxu0 %v3786
    %v4096 = vpop.f32.mrf.mxu0
    %v4097 = vadd.f32 0.0, %v4096
    %v4098 = vpop.f32.mrf.mxu0
    %v4099 = vadd.f32 0.0, %v4098
    %4100 = vmatmul.bf16.gmra.mxu0 %v3787
    %v4101 = vpop.f32.mrf.mxu0
    %v4102 = vadd.f32 0.0, %v4101
    %v4103 = vpop.f32.mrf.mxu0
    %v4104 = vadd.f32 0.0, %v4103
    %4105 = vmatmul.bf16.gmra.mxu0 %v3788
    %v4106 = vpop.f32.mrf.mxu0
    %v4107 = vadd.f32 0.0, %v4106
    %v4108 = vpop.f32.mrf.mxu0
    %v4109 = vadd.f32 0.0, %v4108
    %4110 = vmatmul.bf16.gmra.mxu0 %v3789
    %v4111 = vpop.f32.mrf.mxu0
    %v4112 = vadd.f32 0.0, %v4111
    %v4113 = vpop.f32.mrf.mxu0
    %v4114 = vadd.f32 0.0, %v4113
    %4115 = vmatmul.bf16.gmra.mxu0 %v3790
    %v4116 = vpop.f32.mrf.mxu0
    %v4117 = vadd.f32 0.0, %v4116
    %v4118 = vpop.f32.mrf.mxu0
    %v4119 = vadd.f32 0.0, %v4118
    %4120 = vmatmul.bf16.gmra.mxu0 %v3791
    %v4121 = vpop.f32.mrf.mxu0
    %v4122 = vadd.f32 0.0, %v4121
    %v4123 = vpop.f32.mrf.mxu0
    %v4124 = vadd.f32 0.0, %v4123
    %4125 = vmatmul.bf16.gmra.mxu0 %v3792
    %v4126 = vpop.f32.mrf.mxu0
    %v4127 = vadd.f32 0.0, %v4126
    %v4128 = vpop.f32.mrf.mxu0
    %v4129 = vadd.f32 0.0, %v4128
    %4130 = vmatmul.bf16.gmra.mxu0 %v3793
    %v4131 = vpop.f32.mrf.mxu0
    %v4132 = vadd.f32 0.0, %v4131
    %v4133 = vpop.f32.mrf.mxu0
    %v4134 = vadd.f32 0.0, %v4133
    %4135 = vmatmul.bf16.gmra.mxu0 %v3794
    %v4136 = vpop.f32.mrf.mxu0
    %v4137 = vadd.f32 0.0, %v4136
    %v4138 = vpop.f32.mrf.mxu0
    %v4139 = vadd.f32 0.0, %v4138
    %4140 = vmatmul.bf16.gmra.mxu0 %v3795
    %v4141 = vpop.f32.mrf.mxu0
    %v4142 = vadd.f32 0.0, %v4141
    %v4143 = vpop.f32.mrf.mxu0
    %v4144 = vadd.f32 0.0, %v4143
    %4145 = vmatmul.bf16.gmra.mxu0 %v3796
    %v4146 = vpop.f32.mrf.mxu0
    %v4147 = vadd.f32 0.0, %v4146
    %v4148 = vpop.f32.mrf.mxu0
    %v4149 = vadd.f32 0.0, %v4148
    %4150 = vmatmul.bf16.gmra.mxu0 %v3797
    %v4151 = vpop.f32.mrf.mxu0
    %v4152 = vadd.f32 0.0, %v4151
    %v4153 = vpop.f32.mrf.mxu0
    %v4154 = vadd.f32 0.0, %v4153
    %4155 = vmatmul.bf16.gmra.mxu0 %v3798
    %v4156 = vpop.f32.mrf.mxu0
    %v4157 = vadd.f32 0.0, %v4156
    %v4158 = vpop.f32.mrf.mxu0
    %v4159 = vadd.f32 0.0, %v4158
    %4160 = vmatmul.bf16.gmra.mxu0 %v3799
    %v4161 = vpop.f32.mrf.mxu0
    %v4162 = vadd.f32 0.0, %v4161
    %v4163 = vpop.f32.mrf.mxu0
    %v4164 = vadd.f32 0.0, %v4163
    %4165 = vmatmul.bf16.gmra.mxu0 %v3800
    %v4166 = vpop.f32.mrf.mxu0
    %v4167 = vadd.f32 0.0, %v4166
    %v4168 = vpop.f32.mrf.mxu0
    %v4169 = vadd.f32 0.0, %v4168
    %4170 = vmatmul.bf16.gmra.mxu0 %v3801
    %v4171 = vpop.f32.mrf.mxu0
    %v4172 = vadd.f32 0.0, %v4171
    %v4173 = vpop.f32.mrf.mxu0
    %v4174 = vadd.f32 0.0, %v4173
    %4175 = vmatmul.bf16.gmra.mxu0 %v3802
    %v4176 = vpop.f32.mrf.mxu0
    %v4177 = vadd.f32 0.0, %v4176
    %v4178 = vpop.f32.mrf.mxu0
    %v4179 = vadd.f32 0.0, %v4178
    %4180 = vmatmul.bf16.gmra.mxu0 %v3803
    %v4181 = vpop.f32.mrf.mxu0
    %v4182 = vadd.f32 0.0, %v4181
    %v4183 = vpop.f32.mrf.mxu0
    %v4184 = vadd.f32 0.0, %v4183
    %4185 = vmatmul.bf16.gmra.mxu0 %v3804
    %v4186 = vpop.f32.mrf.mxu0
    %v4187 = vadd.f32 0.0, %v4186
    %v4188 = vpop.f32.mrf.mxu0
    %v4189 = vadd.f32 0.0, %v4188
    %4190 = vmatmul.bf16.gmra.mxu0 %v3805
    %v4191 = vpop.f32.mrf.mxu0
    %v4192 = vadd.f32 0.0, %v4191
    %v4193 = vpop.f32.mrf.mxu0
    %v4194 = vadd.f32 0.0, %v4193
    %4195 = vmatmul.bf16.gmra.mxu0 %v3806
    %v4196 = vpop.f32.mrf.mxu0
    %v4197 = vadd.f32 0.0, %v4196
    %v4198 = vpop.f32.mrf.mxu0
    %v4199 = vadd.f32 0.0, %v4198
    %4200 = vmatmul.bf16.gmra.mxu0 %v3807
    %v4201 = vpop.f32.mrf.mxu0
    %v4202 = vadd.f32 0.0, %v4201
    %v4203 = vpop.f32.mrf.mxu0
    %v4204 = vadd.f32 0.0, %v4203
    %4205 = vmatmul.bf16.gmra.mxu0 %v3808
    %v4206 = vpop.f32.mrf.mxu0
    %v4207 = vadd.f32 0.0, %v4206
    %v4208 = vpop.f32.mrf.mxu0
    %v4209 = vadd.f32 0.0, %v4208
    %4210 = vmatmul.bf16.gmra.mxu0 %v3809
    %v4211 = vpop.f32.mrf.mxu0
    %v4212 = vadd.f32 0.0, %v4211
    %v4213 = vpop.f32.mrf.mxu0
    %v4214 = vadd.f32 0.0, %v4213
    %4215 = vmatmul.bf16.gmra.mxu0 %v3810
    %v4216 = vpop.f32.mrf.mxu0
    %v4217 = vadd.f32 0.0, %v4216
    %v4218 = vpop.f32.mrf.mxu0
    %v4219 = vadd.f32 0.0, %v4218
    %4220 = vmatmul.bf16.gmra.mxu0 %v3811
    %v4221 = vpop.f32.mrf.mxu0
    %v4222 = vadd.f32 0.0, %v4221
    %v4223 = vpop.f32.mrf.mxu0
    %v4224 = vadd.f32 0.0, %v4223
    %4225 = vmatmul.bf16.gmra.mxu0 %v3812
    %v4226 = vpop.f32.mrf.mxu0
    %v4227 = vadd.f32 0.0, %v4226
    %v4228 = vpop.f32.mrf.mxu0
    %v4229 = vadd.f32 0.0, %v4228
    %4230 = vmatmul.bf16.gmra.mxu0 %v3813
    %v4231 = vpop.f32.mrf.mxu0
    %v4232 = vadd.f32 0.0, %v4231
    %v4233 = vpop.f32.mrf.mxu0
    %v4234 = vadd.f32 0.0, %v4233
    %4235 = vmatmul.bf16.gmra.mxu0 %v3814
    %v4236 = vpop.f32.mrf.mxu0
    %v4237 = vadd.f32 0.0, %v4236
    %v4238 = vpop.f32.mrf.mxu0
    %v4239 = vadd.f32 0.0, %v4238
    %4240 = vmatmul.bf16.gmra.mxu0 %v3815
    %v4241 = vpop.f32.mrf.mxu0
    %v4242 = vadd.f32 0.0, %v4241
    %v4243 = vpop.f32.mrf.mxu0
    %v4244 = vadd.f32 0.0, %v4243
    %4245 = vmatmul.bf16.gmra.mxu0 %v3816
    %v4246 = vpop.f32.mrf.mxu0
    %v4247 = vadd.f32 0.0, %v4246
    %v4248 = vpop.f32.mrf.mxu0
    %v4249 = vadd.f32 0.0, %v4248
    %4250 = vdwg.mxu0
    %4251 = vst [vmem:[#allocation2] sm:$0xff] %v3923
    %4252 = vst [vmem:[#allocation2 + $0x8] sm:$0xff] %v4092
    %4253 = vst [vmem:[#allocation2 + $0x10] sm:$0xff] %v3925
    %4254 = vst [vmem:[#allocation2 + $0x18] sm:$0xff] %v4094
    %4255 = vst [vmem:[#allocation2 + $0x20] sm:$0xff] %v3928
    %4256 = vst [vmem:[#allocation2 + $0x28] sm:$0xff] %v4097
    %4257 = vst [vmem:[#allocation2 + $0x30] sm:$0xff] %v3930
    %4258 = vst [vmem:[#allocation2 + $0x38] sm:$0xff] %v4099
    %4259 = vst [vmem:[#allocation2 + $0x40] sm:$0xff] %v3933
    %4260 = vst [vmem:[#allocation2 + $0x48] sm:$0xff] %v4102
    %4261 = vst [vmem:[#allocation2 + $0x50] sm:$0xff] %v3935
    %4262 = vst [vmem:[#allocation2 + $0x58] sm:$0xff] %v4104
    %4263 = vst [vmem:[#allocation2 + $0x60] sm:$0xff] %v3938
    %4264 = vst [vmem:[#allocation2 + $0x68] sm:$0xff] %v4107
    %4265 = vst [vmem:[#allocation2 + $0x70] sm:$0xff] %v3940
    %4266 = vst [vmem:[#allocation2 + $0x78] sm:$0xff] %v4109
    %4267 = vst [vmem:[#allocation2 + $0x80] sm:$0xff] %v3943
    %4268 = vst [vmem:[#allocation2 + $0x88] sm:$0xff] %v4112
    %4269 = vst [vmem:[#allocation2 + $0x90] sm:$0xff] %v3945
    %4270 = vst [vmem:[#allocation2 + $0x98] sm:$0xff] %v4114
    %4271 = vst [vmem:[#allocation2 + $0xa0] sm:$0xff] %v3948
    %4272 = vst [vmem:[#allocation2 + $0xa8] sm:$0xff] %v4117
    %4273 = vst [vmem:[#allocation2 + $0xb0] sm:$0xff] %v3950
    %4274 = vst [vmem:[#allocation2 + $0xb8] sm:$0xff] %v4119
    %4275 = vst [vmem:[#allocation2 + $0xc0] sm:$0xff] %v3953
    %4276 = vst [vmem:[#allocation2 + $0xc8] sm:$0xff] %v4122
    %4277 = vst [vmem:[#allocation2 + $0xd0] sm:$0xff] %v3955
    %4278 = vst [vmem:[#allocation2 + $0xd8] sm:$0xff] %v4124
    %4279 = vst [vmem:[#allocation2 + $0xe0] sm:$0xff] %v3958
    %4280 = vst [vmem:[#allocation2 + $0xe8] sm:$0xff] %v4127
    %4281 = vst [vmem:[#allocation2 + $0xf0] sm:$0xff] %v3960
    %4282 = vst [vmem:[#allocation2 + $0xf8] sm:$0xff] %v4129
    %4283 = vst [vmem:[#allocation2 + $0x100] sm:$0xff] %v3963
    %4284 = vst [vmem:[#allocation2 + $0x108] sm:$0xff] %v4132
    %4285 = vst [vmem:[#allocation2 + $0x110] sm:$0xff] %v3965
    %4286 = vst [vmem:[#allocation2 + $0x118] sm:$0xff] %v4134
    %4287 = vst [vmem:[#allocation2 + $0x120] sm:$0xff] %v3968
    %4288 = vst [vmem:[#allocation2 + $0x128] sm:$0xff] %v4137
    %4289 = vst [vmem:[#allocation2 + $0x130] sm:$0xff] %v3970
    %4290 = vst [vmem:[#allocation2 + $0x138] sm:$0xff] %v4139
    %4291 = vst [vmem:[#allocation2 + $0x140] sm:$0xff] %v3973
    %4292 = vst [vmem:[#allocation2 + $0x148] sm:$0xff] %v4142
    %4293 = vst [vmem:[#allocation2 + $0x150] sm:$0xff] %v3975
    %4294 = vst [vmem:[#allocation2 + $0x158] sm:$0xff] %v4144
    %4295 = vst [vmem:[#allocation2 + $0x160] sm:$0xff] %v3978
    %4296 = vst [vmem:[#allocation2 + $0x168] sm:$0xff] %v4147
    %4297 = vst [vmem:[#allocation2 + $0x170] sm:$0xff] %v3980
    %4298 = vst [vmem:[#allocation2 + $0x178] sm:$0xff] %v4149
    %4299 = vst [vmem:[#allocation2 + $0x180] sm:$0xff] %v3983
    %4300 = vst [vmem:[#allocation2 + $0x188] sm:$0xff] %v4152
    %4301 = vst [vmem:[#allocation2 + $0x190] sm:$0xff] %v3985
    %4302 = vst [vmem:[#allocation2 + $0x198] sm:$0xff] %v4154
    %4303 = vst [vmem:[#allocation2 + $0x1a0] sm:$0xff] %v3988
    %4304 = vst [vmem:[#allocation2 + $0x1a8] sm:$0xff] %v4157
    %4305 = vst [vmem:[#allocation2 + $0x1b0] sm:$0xff] %v3990
    %4306 = vst [vmem:[#allocation2 + $0x1b8] sm:$0xff] %v4159
    %4307 = vst [vmem:[#allocation2 + $0x1c0] sm:$0xff] %v3993
    %4308 = vst [vmem:[#allocation2 + $0x1c8] sm:$0xff] %v4162
    %4309 = vst [vmem:[#allocation2 + $0x1d0] sm:$0xff] %v3995
    %4310 = vst [vmem:[#allocation2 + $0x1d8] sm:$0xff] %v4164
    %4311 = vst [vmem:[#allocation2 + $0x1e0] sm:$0xff] %v3998
    %4312 = vst [vmem:[#allocation2 + $0x1e8] sm:$0xff] %v4167
    %4313 = vst [vmem:[#allocation2 + $0x1f0] sm:$0xff] %v4000
    %4314 = vst [vmem:[#allocation2 + $0x1f8] sm:$0xff] %v4169
    %4315 = vst [vmem:[#allocation2 + $0x200] sm:$0xff] %v4003
    %4316 = vst [vmem:[#allocation2 + $0x208] sm:$0xff] %v4172
    %4317 = vst [vmem:[#allocation2 + $0x210] sm:$0xff] %v4005
    %4318 = vst [vmem:[#allocation2 + $0x218] sm:$0xff] %v4174
    %4319 = vst [vmem:[#allocation2 + $0x220] sm:$0xff] %v4008
    %4320 = vst [vmem:[#allocation2 + $0x228] sm:$0xff] %v4177
    %4321 = vst [vmem:[#allocation2 + $0x230] sm:$0xff] %v4010
    %4322 = vst [vmem:[#allocation2 + $0x238] sm:$0xff] %v4179
    %4323 = vst [vmem:[#allocation2 + $0x240] sm:$0xff] %v4013
    %4324 = vst [vmem:[#allocation2 + $0x248] sm:$0xff] %v4182
    %4325 = vst [vmem:[#allocation2 + $0x250] sm:$0xff] %v4015
    %4326 = vst [vmem:[#allocation2 + $0x258] sm:$0xff] %v4184
    %4327 = vst [vmem:[#allocation2 + $0x260] sm:$0xff] %v4018
    %4328 = vst [vmem:[#allocation2 + $0x268] sm:$0xff] %v4187
    %4329 = vst [vmem:[#allocation2 + $0x270] sm:$0xff] %v4020
    %4330 = vst [vmem:[#allocation2 + $0x278] sm:$0xff] %v4189
    %4331 = vst [vmem:[#allocation2 + $0x280] sm:$0xff] %v4023
    %4332 = vst [vmem:[#allocation2 + $0x288] sm:$0xff] %v4192
    %4333 = vst [vmem:[#allocation2 + $0x290] sm:$0xff] %v4025
    %4334 = vst [vmem:[#allocation2 + $0x298] sm:$0xff] %v4194
    %4335 = vst [vmem:[#allocation2 + $0x2a0] sm:$0xff] %v4028
    %4336 = vst [vmem:[#allocation2 + $0x2a8] sm:$0xff] %v4197
    %4337 = vst [vmem:[#allocation2 + $0x2b0] sm:$0xff] %v4030
    %4338 = vst [vmem:[#allocation2 + $0x2b8] sm:$0xff] %v4199
    %4339 = vst [vmem:[#allocation2 + $0x2c0] sm:$0xff] %v4033
    %4340 = vst [vmem:[#allocation2 + $0x2c8] sm:$0xff] %v4202
    %4341 = vst [vmem:[#allocation2 + $0x2d0] sm:$0xff] %v4035
    %4342 = vst [vmem:[#allocation2 + $0x2d8] sm:$0xff] %v4204
    %4343 = vst [vmem:[#allocation2 + $0x2e0] sm:$0xff] %v4038
    %4344 = vst [vmem:[#allocation2 + $0x2e8] sm:$0xff] %v4207
    %4345 = vst [vmem:[#allocation2 + $0x2f0] sm:$0xff] %v4040
    %4346 = vst [vmem:[#allocation2 + $0x2f8] sm:$0xff] %v4209
    %4347 = vst [vmem:[#allocation2 + $0x300] sm:$0xff] %v4043
    %4348 = vst [vmem:[#allocation2 + $0x308] sm:$0xff] %v4212
    %4349 = vst [vmem:[#allocation2 + $0x310] sm:$0xff] %v4045
    %4350 = vst [vmem:[#allocation2 + $0x318] sm:$0xff] %v4214
    %4351 = vst [vmem:[#allocation2 + $0x320] sm:$0xff] %v4048
    %4352 = vst [vmem:[#allocation2 + $0x328] sm:$0xff] %v4217
    %4353 = vst [vmem:[#allocation2 + $0x330] sm:$0xff] %v4050
    %4354 = vst [vmem:[#allocation2 + $0x338] sm:$0xff] %v4219
    %4355 = vst [vmem:[#allocation2 + $0x340] sm:$0xff] %v4053
    %4356 = vst [vmem:[#allocation2 + $0x348] sm:$0xff] %v4222
    %4357 = vst [vmem:[#allocation2 + $0x350] sm:$0xff] %v4055
    %4358 = vst [vmem:[#allocation2 + $0x358] sm:$0xff] %v4224
    %4359 = vst [vmem:[#allocation2 + $0x360] sm:$0xff] %v4058
    %4360 = vst [vmem:[#allocation2 + $0x368] sm:$0xff] %v4227
    %4361 = vst [vmem:[#allocation2 + $0x370] sm:$0xff] %v4060
    %4362 = vst [vmem:[#allocation2 + $0x378] sm:$0xff] %v4229
    %4363 = vst [vmem:[#allocation2 + $0x380] sm:$0xff] %v4063
    %4364 = vst [vmem:[#allocation2 + $0x388] sm:$0xff] %v4232
    %4365 = vst [vmem:[#allocation2 + $0x390] sm:$0xff] %v4065
    %4366 = vst [vmem:[#allocation2 + $0x398] sm:$0xff] %v4234
    %4367 = vst [vmem:[#allocation2 + $0x3a0] sm:$0xff] %v4068
    %4368 = vst [vmem:[#allocation2 + $0x3a8] sm:$0xff] %v4237
    %4369 = vst [vmem:[#allocation2 + $0x3b0] sm:$0xff] %v4070
    %4370 = vst [vmem:[#allocation2 + $0x3b8] sm:$0xff] %v4239
    %4371 = vst [vmem:[#allocation2 + $0x3c0] sm:$0xff] %v4073
    %4372 = vst [vmem:[#allocation2 + $0x3c8] sm:$0xff] %v4242
    %4373 = vst [vmem:[#allocation2 + $0x3d0] sm:$0xff] %v4075
    %4374 = vst [vmem:[#allocation2 + $0x3d8] sm:$0xff] %v4244
    %4375 = vst [vmem:[#allocation2 + $0x3e0] sm:$0xff] %v4078
    %4376 = vst [vmem:[#allocation2 + $0x3e8] sm:$0xff] %v4247
    %4377 = vst [vmem:[#allocation2 + $0x3f0] sm:$0xff] %v4080
    %4378 = vst [vmem:[#allocation2 + $0x3f8] sm:$0xff] %v4249
    %v4379 = vpack.c.bf16 %v3925, %v3923
    %v4380 = vpack.c.bf16 %v4094, %v4092
    %v4381 = vpack.c.bf16 %v3930, %v3928
    %v4382 = vpack.c.bf16 %v4099, %v4097
    %v4383 = vpack.c.bf16 %v3935, %v3933
    %v4384 = vpack.c.bf16 %v4104, %v4102
    %v4385 = vpack.c.bf16 %v3940, %v3938
    %v4386 = vpack.c.bf16 %v4109, %v4107
    %v4387 = vpack.c.bf16 %v3945, %v3943
    %v4388 = vpack.c.bf16 %v4114, %v4112
    %v4389 = vpack.c.bf16 %v3950, %v3948
    %v4390 = vpack.c.bf16 %v4119, %v4117
    %v4391 = vpack.c.bf16 %v3955, %v3953
    %v4392 = vpack.c.bf16 %v4124, %v4122
    %v4393 = vpack.c.bf16 %v3960, %v3958
    %v4394 = vpack.c.bf16 %v4129, %v4127
    %v4395 = vpack.c.bf16 %v3965, %v3963
    %v4396 = vpack.c.bf16 %v4134, %v4132
    %v4397 = vpack.c.bf16 %v3970, %v3968
    %v4398 = vpack.c.bf16 %v4139, %v4137
    %v4399 = vpack.c.bf16 %v3975, %v3973
    %v4400 = vpack.c.bf16 %v4144, %v4142
    %v4401 = vpack.c.bf16 %v3980, %v3978
    %v4402 = vpack.c.bf16 %v4149, %v4147
    %v4403 = vpack.c.bf16 %v3985, %v3983
    %v4404 = vpack.c.bf16 %v4154, %v4152
    %v4405 = vpack.c.bf16 %v3990, %v3988
    %v4406 = vpack.c.bf16 %v4159, %v4157
    %v4407 = vpack.c.bf16 %v3995, %v3993
    %v4408 = vpack.c.bf16 %v4164, %v4162
    %v4409 = vpack.c.bf16 %v4000, %v3998
    %v4410 = vpack.c.bf16 %v4169, %v4167
    %v4411 = vpack.c.bf16 %v4005, %v4003
    %v4412 = vpack.c.bf16 %v4174, %v4172
    %v4413 = vpack.c.bf16 %v4010, %v4008
    %v4414 = vpack.c.bf16 %v4179, %v4177
    %v4415 = vpack.c.bf16 %v4015, %v4013
    %v4416 = vpack.c.bf16 %v4184, %v4182
    %v4417 = vpack.c.bf16 %v4020, %v4018
    %v4418 = vpack.c.bf16 %v4189, %v4187
    %v4419 = vpack.c.bf16 %v4025, %v4023
    %v4420 = vpack.c.bf16 %v4194, %v4192
    %v4421 = vpack.c.bf16 %v4030, %v4028
    %v4422 = vpack.c.bf16 %v4199, %v4197
    %v4423 = vpack.c.bf16 %v4035, %v4033
    %v4424 = vpack.c.bf16 %v4204, %v4202
    %v4425 = vpack.c.bf16 %v4040, %v4038
    %v4426 = vpack.c.bf16 %v4209, %v4207
    %v4427 = vpack.c.bf16 %v4045, %v4043
    %v4428 = vpack.c.bf16 %v4214, %v4212
    %v4429 = vpack.c.bf16 %v4050, %v4048
    %v4430 = vpack.c.bf16 %v4219, %v4217
    %v4431 = vpack.c.bf16 %v4055, %v4053
    %v4432 = vpack.c.bf16 %v4224, %v4222
    %v4433 = vpack.c.bf16 %v4060, %v4058
    %v4434 = vpack.c.bf16 %v4229, %v4227
    %v4435 = vpack.c.bf16 %v4065, %v4063
    %v4436 = vpack.c.bf16 %v4234, %v4232
    %v4437 = vpack.c.bf16 %v4070, %v4068
    %v4438 = vpack.c.bf16 %v4239, %v4237
    %v4439 = vpack.c.bf16 %v4075, %v4073
    %v4440 = vpack.c.bf16 %v4244, %v4242
    %v4441 = vpack.c.bf16 %v4080, %v4078
    %v4442 = vpack.c.bf16 %v4249, %v4247
    %4443 = vmatpush.bf16.xpose.msra.mxu0 %v4393
    %4444 = vmatpush.bf16.xpose.msra.mxu0 %v4391
    %4445 = vmatpush.bf16.xpose.msra.mxu0 %v4389
    %4446 = vmatpush.bf16.xpose.msra.mxu0 %v4387
    %4447 = vmatpush.bf16.xpose.msra.mxu0 %v4385
    %4448 = vmatpush.bf16.xpose.msra.mxu0 %v4383
    %4449 = vmatpush.bf16.xpose.msra.mxu0 %v4381
    %4450 = vmatpush.bf16.xpose.msra.mxu0 %v4379
    %4451 = vmatmul.bf16.gmra.mxu0 %v4379
    %v4452 = vpop.f32.mrf.mxu0
    %v4453 = vadd.f32 0.0, %v4452
    %v4454 = vpop.f32.mrf.mxu0
    %v4455 = vadd.f32 0.0, %v4454
    %4456 = vmatmul.bf16.gmra.mxu0 %v4381
    %v4457 = vpop.f32.mrf.mxu0
    %v4458 = vadd.f32 0.0, %v4457
    %v4459 = vpop.f32.mrf.mxu0
    %v4460 = vadd.f32 0.0, %v4459
    %4461 = vmatmul.bf16.gmra.mxu0 %v4383
    %v4462 = vpop.f32.mrf.mxu0
    %v4463 = vadd.f32 0.0, %v4462
    %v4464 = vpop.f32.mrf.mxu0
    %v4465 = vadd.f32 0.0, %v4464
    %4466 = vmatmul.bf16.gmra.mxu0 %v4385
    %v4467 = vpop.f32.mrf.mxu0
    %v4468 = vadd.f32 0.0, %v4467
    %v4469 = vpop.f32.mrf.mxu0
    %v4470 = vadd.f32 0.0, %v4469
    %4471 = vmatmul.bf16.gmra.mxu0 %v4387
    %v4472 = vpop.f32.mrf.mxu0
    %v4473 = vadd.f32 0.0, %v4472
    %v4474 = vpop.f32.mrf.mxu0
    %v4475 = vadd.f32 0.0, %v4474
    %4476 = vmatmul.bf16.gmra.mxu0 %v4389
    %v4477 = vpop.f32.mrf.mxu0
    %v4478 = vadd.f32 0.0, %v4477
    %v4479 = vpop.f32.mrf.mxu0
    %v4480 = vadd.f32 0.0, %v4479
    %4481 = vmatmul.bf16.gmra.mxu0 %v4391
    %v4482 = vpop.f32.mrf.mxu0
    %v4483 = vadd.f32 0.0, %v4482
    %v4484 = vpop.f32.mrf.mxu0
    %v4485 = vadd.f32 0.0, %v4484
    %4486 = vmatmul.bf16.gmra.mxu0 %v4393
    %v4487 = vpop.f32.mrf.mxu0
    %v4488 = vadd.f32 0.0, %v4487
    %v4489 = vpop.f32.mrf.mxu0
    %v4490 = vadd.f32 0.0, %v4489
    %4491 = vmatmul.bf16.gmra.mxu0 %v4395
    %v4492 = vpop.f32.mrf.mxu0
    %v4493 = vadd.f32 0.0, %v4492
    %v4494 = vpop.f32.mrf.mxu0
    %v4495 = vadd.f32 0.0, %v4494
    %4496 = vmatmul.bf16.gmra.mxu0 %v4397
    %v4497 = vpop.f32.mrf.mxu0
    %v4498 = vadd.f32 0.0, %v4497
    %v4499 = vpop.f32.mrf.mxu0
    %v4500 = vadd.f32 0.0, %v4499
    %4501 = vmatmul.bf16.gmra.mxu0 %v4399
    %v4502 = vpop.f32.mrf.mxu0
    %v4503 = vadd.f32 0.0, %v4502
    %v4504 = vpop.f32.mrf.mxu0
    %v4505 = vadd.f32 0.0, %v4504
    %4506 = vmatmul.bf16.gmra.mxu0 %v4401
    %v4507 = vpop.f32.mrf.mxu0
    %v4508 = vadd.f32 0.0, %v4507
    %v4509 = vpop.f32.mrf.mxu0
    %v4510 = vadd.f32 0.0, %v4509
    %4511 = vmatmul.bf16.gmra.mxu0 %v4403
    %v4512 = vpop.f32.mrf.mxu0
    %v4513 = vadd.f32 0.0, %v4512
    %v4514 = vpop.f32.mrf.mxu0
    %v4515 = vadd.f32 0.0, %v4514
    %4516 = vmatmul.bf16.gmra.mxu0 %v4405
    %v4517 = vpop.f32.mrf.mxu0
    %v4518 = vadd.f32 0.0, %v4517
    %v4519 = vpop.f32.mrf.mxu0
    %v4520 = vadd.f32 0.0, %v4519
    %4521 = vmatmul.bf16.gmra.mxu0 %v4407
    %v4522 = vpop.f32.mrf.mxu0
    %v4523 = vadd.f32 0.0, %v4522
    %v4524 = vpop.f32.mrf.mxu0
    %v4525 = vadd.f32 0.0, %v4524
    %4526 = vmatmul.bf16.gmra.mxu0 %v4409
    %v4527 = vpop.f32.mrf.mxu0
    %v4528 = vadd.f32 0.0, %v4527
    %v4529 = vpop.f32.mrf.mxu0
    %v4530 = vadd.f32 0.0, %v4529
    %4531 = vmatmul.bf16.gmra.mxu0 %v4411
    %v4532 = vpop.f32.mrf.mxu0
    %v4533 = vadd.f32 0.0, %v4532
    %v4534 = vpop.f32.mrf.mxu0
    %v4535 = vadd.f32 0.0, %v4534
    %4536 = vmatmul.bf16.gmra.mxu0 %v4413
    %v4537 = vpop.f32.mrf.mxu0
    %v4538 = vadd.f32 0.0, %v4537
    %v4539 = vpop.f32.mrf.mxu0
    %v4540 = vadd.f32 0.0, %v4539
    %4541 = vmatmul.bf16.gmra.mxu0 %v4415
    %v4542 = vpop.f32.mrf.mxu0
    %v4543 = vadd.f32 0.0, %v4542
    %v4544 = vpop.f32.mrf.mxu0
    %v4545 = vadd.f32 0.0, %v4544
    %4546 = vmatmul.bf16.gmra.mxu0 %v4417
    %v4547 = vpop.f32.mrf.mxu0
    %v4548 = vadd.f32 0.0, %v4547
    %v4549 = vpop.f32.mrf.mxu0
    %v4550 = vadd.f32 0.0, %v4549
    %4551 = vmatmul.bf16.gmra.mxu0 %v4419
    %v4552 = vpop.f32.mrf.mxu0
    %v4553 = vadd.f32 0.0, %v4552
    %v4554 = vpop.f32.mrf.mxu0
    %v4555 = vadd.f32 0.0, %v4554
    %4556 = vmatmul.bf16.gmra.mxu0 %v4421
    %v4557 = vpop.f32.mrf.mxu0
    %v4558 = vadd.f32 0.0, %v4557
    %v4559 = vpop.f32.mrf.mxu0
    %v4560 = vadd.f32 0.0, %v4559
    %4561 = vmatmul.bf16.gmra.mxu0 %v4423
    %v4562 = vpop.f32.mrf.mxu0
    %v4563 = vadd.f32 0.0, %v4562
    %v4564 = vpop.f32.mrf.mxu0
    %v4565 = vadd.f32 0.0, %v4564
    %4566 = vmatmul.bf16.gmra.mxu0 %v4425
    %v4567 = vpop.f32.mrf.mxu0
    %v4568 = vadd.f32 0.0, %v4567
    %v4569 = vpop.f32.mrf.mxu0
    %v4570 = vadd.f32 0.0, %v4569
    %4571 = vmatmul.bf16.gmra.mxu0 %v4427
    %v4572 = vpop.f32.mrf.mxu0
    %v4573 = vadd.f32 0.0, %v4572
    %v4574 = vpop.f32.mrf.mxu0
    %v4575 = vadd.f32 0.0, %v4574
    %4576 = vmatmul.bf16.gmra.mxu0 %v4429
    %v4577 = vpop.f32.mrf.mxu0
    %v4578 = vadd.f32 0.0, %v4577
    %v4579 = vpop.f32.mrf.mxu0
    %v4580 = vadd.f32 0.0, %v4579
    %4581 = vmatmul.bf16.gmra.mxu0 %v4431
    %v4582 = vpop.f32.mrf.mxu0
    %v4583 = vadd.f32 0.0, %v4582
    %v4584 = vpop.f32.mrf.mxu0
    %v4585 = vadd.f32 0.0, %v4584
    %4586 = vmatmul.bf16.gmra.mxu0 %v4433
    %v4587 = vpop.f32.mrf.mxu0
    %v4588 = vadd.f32 0.0, %v4587
    %v4589 = vpop.f32.mrf.mxu0
    %v4590 = vadd.f32 0.0, %v4589
    %4591 = vmatmul.bf16.gmra.mxu0 %v4435
    %v4592 = vpop.f32.mrf.mxu0
    %v4593 = vadd.f32 0.0, %v4592
    %v4594 = vpop.f32.mrf.mxu0
    %v4595 = vadd.f32 0.0, %v4594
    %4596 = vmatmul.bf16.gmra.mxu0 %v4437
    %v4597 = vpop.f32.mrf.mxu0
    %v4598 = vadd.f32 0.0, %v4597
    %v4599 = vpop.f32.mrf.mxu0
    %v4600 = vadd.f32 0.0, %v4599
    %4601 = vmatmul.bf16.gmra.mxu0 %v4439
    %v4602 = vpop.f32.mrf.mxu0
    %v4603 = vadd.f32 0.0, %v4602
    %v4604 = vpop.f32.mrf.mxu0
    %v4605 = vadd.f32 0.0, %v4604
    %4606 = vmatmul.bf16.gmra.mxu0 %v4441
    %v4607 = vpop.f32.mrf.mxu0
    %v4608 = vadd.f32 0.0, %v4607
    %v4609 = vpop.f32.mrf.mxu0
    %v4610 = vadd.f32 0.0, %v4609
    %4611 = vdwg.mxu0
    %4612 = vmatpush.bf16.xpose.msra.mxu0 %v4394
    %4613 = vmatpush.bf16.xpose.msra.mxu0 %v4392
    %4614 = vmatpush.bf16.xpose.msra.mxu0 %v4390
    %4615 = vmatpush.bf16.xpose.msra.mxu0 %v4388
    %4616 = vmatpush.bf16.xpose.msra.mxu0 %v4386
    %4617 = vmatpush.bf16.xpose.msra.mxu0 %v4384
    %4618 = vmatpush.bf16.xpose.msra.mxu0 %v4382
    %4619 = vmatpush.bf16.xpose.msra.mxu0 %v4380
    %4620 = vmatmul.bf16.gmra.mxu0 %v4380
    %v4621 = vpop.f32.mrf.mxu0
    %v4622 = vadd.f32 %v4453, %v4621
    %v4623 = vpop.f32.mrf.mxu0
    %v4624 = vadd.f32 %v4455, %v4623
    %4625 = vmatmul.bf16.gmra.mxu0 %v4382
    %v4626 = vpop.f32.mrf.mxu0
    %v4627 = vadd.f32 %v4458, %v4626
    %v4628 = vpop.f32.mrf.mxu0
    %v4629 = vadd.f32 %v4460, %v4628
    %4630 = vmatmul.bf16.gmra.mxu0 %v4384
    %v4631 = vpop.f32.mrf.mxu0
    %v4632 = vadd.f32 %v4463, %v4631
    %v4633 = vpop.f32.mrf.mxu0
    %v4634 = vadd.f32 %v4465, %v4633
    %4635 = vmatmul.bf16.gmra.mxu0 %v4386
    %v4636 = vpop.f32.mrf.mxu0
    %v4637 = vadd.f32 %v4468, %v4636
    %v4638 = vpop.f32.mrf.mxu0
    %v4639 = vadd.f32 %v4470, %v4638
    %4640 = vmatmul.bf16.gmra.mxu0 %v4388
    %v4641 = vpop.f32.mrf.mxu0
    %v4642 = vadd.f32 %v4473, %v4641
    %v4643 = vpop.f32.mrf.mxu0
    %v4644 = vadd.f32 %v4475, %v4643
    %4645 = vmatmul.bf16.gmra.mxu0 %v4390
    %v4646 = vpop.f32.mrf.mxu0
    %v4647 = vadd.f32 %v4478, %v4646
    %v4648 = vpop.f32.mrf.mxu0
    %v4649 = vadd.f32 %v4480, %v4648
    %4650 = vmatmul.bf16.gmra.mxu0 %v4392
    %v4651 = vpop.f32.mrf.mxu0
    %v4652 = vadd.f32 %v4483, %v4651
    %v4653 = vpop.f32.mrf.mxu0
    %v4654 = vadd.f32 %v4485, %v4653
    %4655 = vmatmul.bf16.gmra.mxu0 %v4394
    %v4656 = vpop.f32.mrf.mxu0
    %v4657 = vadd.f32 %v4488, %v4656
    %v4658 = vpop.f32.mrf.mxu0
    %v4659 = vadd.f32 %v4490, %v4658
    %4660 = vmatmul.bf16.gmra.mxu0 %v4396
    %v4661 = vpop.f32.mrf.mxu0
    %v4662 = vadd.f32 %v4493, %v4661
    %v4663 = vpop.f32.mrf.mxu0
    %v4664 = vadd.f32 %v4495, %v4663
    %4665 = vmatmul.bf16.gmra.mxu0 %v4398
    %v4666 = vpop.f32.mrf.mxu0
    %v4667 = vadd.f32 %v4498, %v4666
    %v4668 = vpop.f32.mrf.mxu0
    %v4669 = vadd.f32 %v4500, %v4668
    %4670 = vmatmul.bf16.gmra.mxu0 %v4400
    %v4671 = vpop.f32.mrf.mxu0
    %v4672 = vadd.f32 %v4503, %v4671
    %v4673 = vpop.f32.mrf.mxu0
    %v4674 = vadd.f32 %v4505, %v4673
    %4675 = vmatmul.bf16.gmra.mxu0 %v4402
    %v4676 = vpop.f32.mrf.mxu0
    %v4677 = vadd.f32 %v4508, %v4676
    %v4678 = vpop.f32.mrf.mxu0
    %v4679 = vadd.f32 %v4510, %v4678
    %4680 = vmatmul.bf16.gmra.mxu0 %v4404
    %v4681 = vpop.f32.mrf.mxu0
    %v4682 = vadd.f32 %v4513, %v4681
    %v4683 = vpop.f32.mrf.mxu0
    %v4684 = vadd.f32 %v4515, %v4683
    %4685 = vmatmul.bf16.gmra.mxu0 %v4406
    %v4686 = vpop.f32.mrf.mxu0
    %v4687 = vadd.f32 %v4518, %v4686
    %v4688 = vpop.f32.mrf.mxu0
    %v4689 = vadd.f32 %v4520, %v4688
    %4690 = vmatmul.bf16.gmra.mxu0 %v4408
    %v4691 = vpop.f32.mrf.mxu0
    %v4692 = vadd.f32 %v4523, %v4691
    %v4693 = vpop.f32.mrf.mxu0
    %v4694 = vadd.f32 %v4525, %v4693
    %4695 = vmatmul.bf16.gmra.mxu0 %v4410
    %v4696 = vpop.f32.mrf.mxu0
    %v4697 = vadd.f32 %v4528, %v4696
    %v4698 = vpop.f32.mrf.mxu0
    %v4699 = vadd.f32 %v4530, %v4698
    %4700 = vmatmul.bf16.gmra.mxu0 %v4412
    %v4701 = vpop.f32.mrf.mxu0
    %v4702 = vadd.f32 %v4533, %v4701
    %v4703 = vpop.f32.mrf.mxu0
    %v4704 = vadd.f32 %v4535, %v4703
    %4705 = vmatmul.bf16.gmra.mxu0 %v4414
    %v4706 = vpop.f32.mrf.mxu0
    %v4707 = vadd.f32 %v4538, %v4706
    %v4708 = vpop.f32.mrf.mxu0
    %v4709 = vadd.f32 %v4540, %v4708
    %4710 = vmatmul.bf16.gmra.mxu0 %v4416
    %v4711 = vpop.f32.mrf.mxu0
    %v4712 = vadd.f32 %v4543, %v4711
    %v4713 = vpop.f32.mrf.mxu0
    %v4714 = vadd.f32 %v4545, %v4713
    %4715 = vmatmul.bf16.gmra.mxu0 %v4418
    %v4716 = vpop.f32.mrf.mxu0
    %v4717 = vadd.f32 %v4548, %v4716
    %v4718 = vpop.f32.mrf.mxu0
    %v4719 = vadd.f32 %v4550, %v4718
    %4720 = vmatmul.bf16.gmra.mxu0 %v4420
    %v4721 = vpop.f32.mrf.mxu0
    %v4722 = vadd.f32 %v4553, %v4721
    %v4723 = vpop.f32.mrf.mxu0
    %v4724 = vadd.f32 %v4555, %v4723
    %4725 = vmatmul.bf16.gmra.mxu0 %v4422
    %v4726 = vpop.f32.mrf.mxu0
    %v4727 = vadd.f32 %v4558, %v4726
    %v4728 = vpop.f32.mrf.mxu0
    %v4729 = vadd.f32 %v4560, %v4728
    %4730 = vmatmul.bf16.gmra.mxu0 %v4424
    %v4731 = vpop.f32.mrf.mxu0
    %v4732 = vadd.f32 %v4563, %v4731
    %v4733 = vpop.f32.mrf.mxu0
    %v4734 = vadd.f32 %v4565, %v4733
    %4735 = vmatmul.bf16.gmra.mxu0 %v4426
    %v4736 = vpop.f32.mrf.mxu0
    %v4737 = vadd.f32 %v4568, %v4736
    %v4738 = vpop.f32.mrf.mxu0
    %v4739 = vadd.f32 %v4570, %v4738
    %4740 = vmatmul.bf16.gmra.mxu0 %v4428
    %v4741 = vpop.f32.mrf.mxu0
    %v4742 = vadd.f32 %v4573, %v4741
    %v4743 = vpop.f32.mrf.mxu0
    %v4744 = vadd.f32 %v4575, %v4743
    %4745 = vmatmul.bf16.gmra.mxu0 %v4430
    %v4746 = vpop.f32.mrf.mxu0
    %v4747 = vadd.f32 %v4578, %v4746
    %v4748 = vpop.f32.mrf.mxu0
    %v4749 = vadd.f32 %v4580, %v4748
    %4750 = vmatmul.bf16.gmra.mxu0 %v4432
    %v4751 = vpop.f32.mrf.mxu0
    %v4752 = vadd.f32 %v4583, %v4751
    %v4753 = vpop.f32.mrf.mxu0
    %v4754 = vadd.f32 %v4585, %v4753
    %4755 = vmatmul.bf16.gmra.mxu0 %v4434
    %v4756 = vpop.f32.mrf.mxu0
    %v4757 = vadd.f32 %v4588, %v4756
    %v4758 = vpop.f32.mrf.mxu0
    %v4759 = vadd.f32 %v4590, %v4758
    %4760 = vmatmul.bf16.gmra.mxu0 %v4436
    %v4761 = vpop.f32.mrf.mxu0
    %v4762 = vadd.f32 %v4593, %v4761
    %v4763 = vpop.f32.mrf.mxu0
    %v4764 = vadd.f32 %v4595, %v4763
    %4765 = vmatmul.bf16.gmra.mxu0 %v4438
    %v4766 = vpop.f32.mrf.mxu0
    %v4767 = vadd.f32 %v4598, %v4766
    %v4768 = vpop.f32.mrf.mxu0
    %v4769 = vadd.f32 %v4600, %v4768
    %4770 = vmatmul.bf16.gmra.mxu0 %v4440
    %v4771 = vpop.f32.mrf.mxu0
    %v4772 = vadd.f32 %v4603, %v4771
    %v4773 = vpop.f32.mrf.mxu0
    %v4774 = vadd.f32 %v4605, %v4773
    %4775 = vmatmul.bf16.gmra.mxu0 %v4442
    %v4776 = vpop.f32.mrf.mxu0
    %v4777 = vadd.f32 %v4608, %v4776
    %v4778 = vpop.f32.mrf.mxu0
    %v4779 = vadd.f32 %v4610, %v4778
    %4780 = vdwg.mxu0
    %4781 = vmatpush.bf16.xpose.msra.mxu0 %v4409
    %4782 = vmatpush.bf16.xpose.msra.mxu0 %v4407
    %4783 = vmatpush.bf16.xpose.msra.mxu0 %v4405
    %4784 = vmatpush.bf16.xpose.msra.mxu0 %v4403
    %4785 = vmatpush.bf16.xpose.msra.mxu0 %v4401
    %4786 = vmatpush.bf16.xpose.msra.mxu0 %v4399
    %4787 = vmatpush.bf16.xpose.msra.mxu0 %v4397
    %4788 = vmatpush.bf16.xpose.msra.mxu0 %v4395
    %4789 = vmatmul.bf16.gmra.mxu0 %v4379
    %v4790 = vpop.f32.mrf.mxu0
    %v4791 = vadd.f32 0.0, %v4790
    %v4792 = vpop.f32.mrf.mxu0
    %v4793 = vadd.f32 0.0, %v4792
    %4794 = vmatmul.bf16.gmra.mxu0 %v4381
    %v4795 = vpop.f32.mrf.mxu0
    %v4796 = vadd.f32 0.0, %v4795
    %v4797 = vpop.f32.mrf.mxu0
    %v4798 = vadd.f32 0.0, %v4797
    %4799 = vmatmul.bf16.gmra.mxu0 %v4383
    %v4800 = vpop.f32.mrf.mxu0
    %v4801 = vadd.f32 0.0, %v4800
    %v4802 = vpop.f32.mrf.mxu0
    %v4803 = vadd.f32 0.0, %v4802
    %4804 = vmatmul.bf16.gmra.mxu0 %v4385
    %v4805 = vpop.f32.mrf.mxu0
    %v4806 = vadd.f32 0.0, %v4805
    %v4807 = vpop.f32.mrf.mxu0
    %v4808 = vadd.f32 0.0, %v4807
    %4809 = vmatmul.bf16.gmra.mxu0 %v4387
    %v4810 = vpop.f32.mrf.mxu0
    %v4811 = vadd.f32 0.0, %v4810
    %v4812 = vpop.f32.mrf.mxu0
    %v4813 = vadd.f32 0.0, %v4812
    %4814 = vmatmul.bf16.gmra.mxu0 %v4389
    %v4815 = vpop.f32.mrf.mxu0
    %v4816 = vadd.f32 0.0, %v4815
    %v4817 = vpop.f32.mrf.mxu0
    %v4818 = vadd.f32 0.0, %v4817
    %4819 = vmatmul.bf16.gmra.mxu0 %v4391
    %v4820 = vpop.f32.mrf.mxu0
    %v4821 = vadd.f32 0.0, %v4820
    %v4822 = vpop.f32.mrf.mxu0
    %v4823 = vadd.f32 0.0, %v4822
    %4824 = vmatmul.bf16.gmra.mxu0 %v4393
    %v4825 = vpop.f32.mrf.mxu0
    %v4826 = vadd.f32 0.0, %v4825
    %v4827 = vpop.f32.mrf.mxu0
    %v4828 = vadd.f32 0.0, %v4827
    %4829 = vmatmul.bf16.gmra.mxu0 %v4395
    %v4830 = vpop.f32.mrf.mxu0
    %v4831 = vadd.f32 0.0, %v4830
    %v4832 = vpop.f32.mrf.mxu0
    %v4833 = vadd.f32 0.0, %v4832
    %4834 = vmatmul.bf16.gmra.mxu0 %v4397
    %v4835 = vpop.f32.mrf.mxu0
    %v4836 = vadd.f32 0.0, %v4835
    %v4837 = vpop.f32.mrf.mxu0
    %v4838 = vadd.f32 0.0, %v4837
    %4839 = vmatmul.bf16.gmra.mxu0 %v4399
    %v4840 = vpop.f32.mrf.mxu0
    %v4841 = vadd.f32 0.0, %v4840
    %v4842 = vpop.f32.mrf.mxu0
    %v4843 = vadd.f32 0.0, %v4842
    %4844 = vmatmul.bf16.gmra.mxu0 %v4401
    %v4845 = vpop.f32.mrf.mxu0
    %v4846 = vadd.f32 0.0, %v4845
    %v4847 = vpop.f32.mrf.mxu0
    %v4848 = vadd.f32 0.0, %v4847
    %4849 = vmatmul.bf16.gmra.mxu0 %v4403
    %v4850 = vpop.f32.mrf.mxu0
    %v4851 = vadd.f32 0.0, %v4850
    %v4852 = vpop.f32.mrf.mxu0
    %v4853 = vadd.f32 0.0, %v4852
    %4854 = vmatmul.bf16.gmra.mxu0 %v4405
    %v4855 = vpop.f32.mrf.mxu0
    %v4856 = vadd.f32 0.0, %v4855
    %v4857 = vpop.f32.mrf.mxu0
    %v4858 = vadd.f32 0.0, %v4857
    %4859 = vmatmul.bf16.gmra.mxu0 %v4407
    %v4860 = vpop.f32.mrf.mxu0
    %v4861 = vadd.f32 0.0, %v4860
    %v4862 = vpop.f32.mrf.mxu0
    %v4863 = vadd.f32 0.0, %v4862
    %4864 = vmatmul.bf16.gmra.mxu0 %v4409
    %v4865 = vpop.f32.mrf.mxu0
    %v4866 = vadd.f32 0.0, %v4865
    %v4867 = vpop.f32.mrf.mxu0
    %v4868 = vadd.f32 0.0, %v4867
    %4869 = vmatmul.bf16.gmra.mxu0 %v4411
    %v4870 = vpop.f32.mrf.mxu0
    %v4871 = vadd.f32 0.0, %v4870
    %v4872 = vpop.f32.mrf.mxu0
    %v4873 = vadd.f32 0.0, %v4872
    %4874 = vmatmul.bf16.gmra.mxu0 %v4413
    %v4875 = vpop.f32.mrf.mxu0
    %v4876 = vadd.f32 0.0, %v4875
    %v4877 = vpop.f32.mrf.mxu0
    %v4878 = vadd.f32 0.0, %v4877
    %4879 = vmatmul.bf16.gmra.mxu0 %v4415
    %v4880 = vpop.f32.mrf.mxu0
    %v4881 = vadd.f32 0.0, %v4880
    %v4882 = vpop.f32.mrf.mxu0
    %v4883 = vadd.f32 0.0, %v4882
    %4884 = vmatmul.bf16.gmra.mxu0 %v4417
    %v4885 = vpop.f32.mrf.mxu0
    %v4886 = vadd.f32 0.0, %v4885
    %v4887 = vpop.f32.mrf.mxu0
    %v4888 = vadd.f32 0.0, %v4887
    %4889 = vmatmul.bf16.gmra.mxu0 %v4419
    %v4890 = vpop.f32.mrf.mxu0
    %v4891 = vadd.f32 0.0, %v4890
    %v4892 = vpop.f32.mrf.mxu0
    %v4893 = vadd.f32 0.0, %v4892
    %4894 = vmatmul.bf16.gmra.mxu0 %v4421
    %v4895 = vpop.f32.mrf.mxu0
    %v4896 = vadd.f32 0.0, %v4895
    %v4897 = vpop.f32.mrf.mxu0
    %v4898 = vadd.f32 0.0, %v4897
    %4899 = vmatmul.bf16.gmra.mxu0 %v4423
    %v4900 = vpop.f32.mrf.mxu0
    %v4901 = vadd.f32 0.0, %v4900
    %v4902 = vpop.f32.mrf.mxu0
    %v4903 = vadd.f32 0.0, %v4902
    %4904 = vmatmul.bf16.gmra.mxu0 %v4425
    %v4905 = vpop.f32.mrf.mxu0
    %v4906 = vadd.f32 0.0, %v4905
    %v4907 = vpop.f32.mrf.mxu0
    %v4908 = vadd.f32 0.0, %v4907
    %4909 = vmatmul.bf16.gmra.mxu0 %v4427
    %v4910 = vpop.f32.mrf.mxu0
    %v4911 = vadd.f32 0.0, %v4910
    %v4912 = vpop.f32.mrf.mxu0
    %v4913 = vadd.f32 0.0, %v4912
    %4914 = vmatmul.bf16.gmra.mxu0 %v4429
    %v4915 = vpop.f32.mrf.mxu0
    %v4916 = vadd.f32 0.0, %v4915
    %v4917 = vpop.f32.mrf.mxu0
    %v4918 = vadd.f32 0.0, %v4917
    %4919 = vmatmul.bf16.gmra.mxu0 %v4431
    %v4920 = vpop.f32.mrf.mxu0
    %v4921 = vadd.f32 0.0, %v4920
    %v4922 = vpop.f32.mrf.mxu0
    %v4923 = vadd.f32 0.0, %v4922
    %4924 = vmatmul.bf16.gmra.mxu0 %v4433
    %v4925 = vpop.f32.mrf.mxu0
    %v4926 = vadd.f32 0.0, %v4925
    %v4927 = vpop.f32.mrf.mxu0
    %v4928 = vadd.f32 0.0, %v4927
    %4929 = vmatmul.bf16.gmra.mxu0 %v4435
    %v4930 = vpop.f32.mrf.mxu0
    %v4931 = vadd.f32 0.0, %v4930
    %v4932 = vpop.f32.mrf.mxu0
    %v4933 = vadd.f32 0.0, %v4932
    %4934 = vmatmul.bf16.gmra.mxu0 %v4437
    %v4935 = vpop.f32.mrf.mxu0
    %v4936 = vadd.f32 0.0, %v4935
    %v4937 = vpop.f32.mrf.mxu0
    %v4938 = vadd.f32 0.0, %v4937
    %4939 = vmatmul.bf16.gmra.mxu0 %v4439
    %v4940 = vpop.f32.mrf.mxu0
    %v4941 = vadd.f32 0.0, %v4940
    %v4942 = vpop.f32.mrf.mxu0
    %v4943 = vadd.f32 0.0, %v4942
    %4944 = vmatmul.bf16.gmra.mxu0 %v4441
    %v4945 = vpop.f32.mrf.mxu0
    %v4946 = vadd.f32 0.0, %v4945
    %v4947 = vpop.f32.mrf.mxu0
    %v4948 = vadd.f32 0.0, %v4947
    %4949 = vdwg.mxu0
    %4950 = vmatpush.bf16.xpose.msra.mxu0 %v4410
    %4951 = vmatpush.bf16.xpose.msra.mxu0 %v4408
    %4952 = vmatpush.bf16.xpose.msra.mxu0 %v4406
    %4953 = vmatpush.bf16.xpose.msra.mxu0 %v4404
    %4954 = vmatpush.bf16.xpose.msra.mxu0 %v4402
    %4955 = vmatpush.bf16.xpose.msra.mxu0 %v4400
    %4956 = vmatpush.bf16.xpose.msra.mxu0 %v4398
    %4957 = vmatpush.bf16.xpose.msra.mxu0 %v4396
    %4958 = vmatmul.bf16.gmra.mxu0 %v4380
    %v4959 = vpop.f32.mrf.mxu0
    %v4960 = vadd.f32 %v4791, %v4959
    %v4961 = vpop.f32.mrf.mxu0
    %v4962 = vadd.f32 %v4793, %v4961
    %4963 = vmatmul.bf16.gmra.mxu0 %v4382
    %v4964 = vpop.f32.mrf.mxu0
    %v4965 = vadd.f32 %v4796, %v4964
    %v4966 = vpop.f32.mrf.mxu0
    %v4967 = vadd.f32 %v4798, %v4966
    %4968 = vmatmul.bf16.gmra.mxu0 %v4384
    %v4969 = vpop.f32.mrf.mxu0
    %v4970 = vadd.f32 %v4801, %v4969
    %v4971 = vpop.f32.mrf.mxu0
    %v4972 = vadd.f32 %v4803, %v4971
    %4973 = vmatmul.bf16.gmra.mxu0 %v4386
    %v4974 = vpop.f32.mrf.mxu0
    %v4975 = vadd.f32 %v4806, %v4974
    %v4976 = vpop.f32.mrf.mxu0
    %v4977 = vadd.f32 %v4808, %v4976
    %4978 = vmatmul.bf16.gmra.mxu0 %v4388
    %v4979 = vpop.f32.mrf.mxu0
    %v4980 = vadd.f32 %v4811, %v4979
    %v4981 = vpop.f32.mrf.mxu0
    %v4982 = vadd.f32 %v4813, %v4981
    %4983 = vmatmul.bf16.gmra.mxu0 %v4390
    %v4984 = vpop.f32.mrf.mxu0
    %v4985 = vadd.f32 %v4816, %v4984
    %v4986 = vpop.f32.mrf.mxu0
    %v4987 = vadd.f32 %v4818, %v4986
    %4988 = vmatmul.bf16.gmra.mxu0 %v4392
    %v4989 = vpop.f32.mrf.mxu0
    %v4990 = vadd.f32 %v4821, %v4989
    %v4991 = vpop.f32.mrf.mxu0
    %v4992 = vadd.f32 %v4823, %v4991
    %4993 = vmatmul.bf16.gmra.mxu0 %v4394
    %v4994 = vpop.f32.mrf.mxu0
    %v4995 = vadd.f32 %v4826, %v4994
    %v4996 = vpop.f32.mrf.mxu0
    %v4997 = vadd.f32 %v4828, %v4996
    %4998 = vmatmul.bf16.gmra.mxu0 %v4396
    %v4999 = vpop.f32.mrf.mxu0
    %v5000 = vadd.f32 %v4831, %v4999
    %v5001 = vpop.f32.mrf.mxu0
    %v5002 = vadd.f32 %v4833, %v5001
    %5003 = vmatmul.bf16.gmra.mxu0 %v4398
    %v5004 = vpop.f32.mrf.mxu0
    %v5005 = vadd.f32 %v4836, %v5004
    %v5006 = vpop.f32.mrf.mxu0
    %v5007 = vadd.f32 %v4838, %v5006
    %5008 = vmatmul.bf16.gmra.mxu0 %v4400
    %v5009 = vpop.f32.mrf.mxu0
    %v5010 = vadd.f32 %v4841, %v5009
    %v5011 = vpop.f32.mrf.mxu0
    %v5012 = vadd.f32 %v4843, %v5011
    %5013 = vmatmul.bf16.gmra.mxu0 %v4402
    %v5014 = vpop.f32.mrf.mxu0
    %v5015 = vadd.f32 %v4846, %v5014
    %v5016 = vpop.f32.mrf.mxu0
    %v5017 = vadd.f32 %v4848, %v5016
    %5018 = vmatmul.bf16.gmra.mxu0 %v4404
    %v5019 = vpop.f32.mrf.mxu0
    %v5020 = vadd.f32 %v4851, %v5019
    %v5021 = vpop.f32.mrf.mxu0
    %v5022 = vadd.f32 %v4853, %v5021
    %5023 = vmatmul.bf16.gmra.mxu0 %v4406
    %v5024 = vpop.f32.mrf.mxu0
    %v5025 = vadd.f32 %v4856, %v5024
    %v5026 = vpop.f32.mrf.mxu0
    %v5027 = vadd.f32 %v4858, %v5026
    %5028 = vmatmul.bf16.gmra.mxu0 %v4408
    %v5029 = vpop.f32.mrf.mxu0
    %v5030 = vadd.f32 %v4861, %v5029
    %v5031 = vpop.f32.mrf.mxu0
    %v5032 = vadd.f32 %v4863, %v5031
    %5033 = vmatmul.bf16.gmra.mxu0 %v4410
    %v5034 = vpop.f32.mrf.mxu0
    %v5035 = vadd.f32 %v4866, %v5034
    %v5036 = vpop.f32.mrf.mxu0
    %v5037 = vadd.f32 %v4868, %v5036
    %5038 = vmatmul.bf16.gmra.mxu0 %v4412
    %v5039 = vpop.f32.mrf.mxu0
    %v5040 = vadd.f32 %v4871, %v5039
    %v5041 = vpop.f32.mrf.mxu0
    %v5042 = vadd.f32 %v4873, %v5041
    %5043 = vmatmul.bf16.gmra.mxu0 %v4414
    %v5044 = vpop.f32.mrf.mxu0
    %v5045 = vadd.f32 %v4876, %v5044
    %v5046 = vpop.f32.mrf.mxu0
    %v5047 = vadd.f32 %v4878, %v5046
    %5048 = vmatmul.bf16.gmra.mxu0 %v4416
    %v5049 = vpop.f32.mrf.mxu0
    %v5050 = vadd.f32 %v4881, %v5049
    %v5051 = vpop.f32.mrf.mxu0
    %v5052 = vadd.f32 %v4883, %v5051
    %5053 = vmatmul.bf16.gmra.mxu0 %v4418
    %v5054 = vpop.f32.mrf.mxu0
    %v5055 = vadd.f32 %v4886, %v5054
    %v5056 = vpop.f32.mrf.mxu0
    %v5057 = vadd.f32 %v4888, %v5056
    %5058 = vmatmul.bf16.gmra.mxu0 %v4420
    %v5059 = vpop.f32.mrf.mxu0
    %v5060 = vadd.f32 %v4891, %v5059
    %v5061 = vpop.f32.mrf.mxu0
    %v5062 = vadd.f32 %v4893, %v5061
    %5063 = vmatmul.bf16.gmra.mxu0 %v4422
    %v5064 = vpop.f32.mrf.mxu0
    %v5065 = vadd.f32 %v4896, %v5064
    %v5066 = vpop.f32.mrf.mxu0
    %v5067 = vadd.f32 %v4898, %v5066
    %5068 = vmatmul.bf16.gmra.mxu0 %v4424
    %v5069 = vpop.f32.mrf.mxu0
    %v5070 = vadd.f32 %v4901, %v5069
    %v5071 = vpop.f32.mrf.mxu0
    %v5072 = vadd.f32 %v4903, %v5071
    %5073 = vmatmul.bf16.gmra.mxu0 %v4426
    %v5074 = vpop.f32.mrf.mxu0
    %v5075 = vadd.f32 %v4906, %v5074
    %v5076 = vpop.f32.mrf.mxu0
    %v5077 = vadd.f32 %v4908, %v5076
    %5078 = vmatmul.bf16.gmra.mxu0 %v4428
    %v5079 = vpop.f32.mrf.mxu0
    %v5080 = vadd.f32 %v4911, %v5079
    %v5081 = vpop.f32.mrf.mxu0
    %v5082 = vadd.f32 %v4913, %v5081
    %5083 = vmatmul.bf16.gmra.mxu0 %v4430
    %v5084 = vpop.f32.mrf.mxu0
    %v5085 = vadd.f32 %v4916, %v5084
    %v5086 = vpop.f32.mrf.mxu0
    %v5087 = vadd.f32 %v4918, %v5086
    %5088 = vmatmul.bf16.gmra.mxu0 %v4432
    %v5089 = vpop.f32.mrf.mxu0
    %v5090 = vadd.f32 %v4921, %v5089
    %v5091 = vpop.f32.mrf.mxu0
    %v5092 = vadd.f32 %v4923, %v5091
    %5093 = vmatmul.bf16.gmra.mxu0 %v4434
    %v5094 = vpop.f32.mrf.mxu0
    %v5095 = vadd.f32 %v4926, %v5094
    %v5096 = vpop.f32.mrf.mxu0
    %v5097 = vadd.f32 %v4928, %v5096
    %5098 = vmatmul.bf16.gmra.mxu0 %v4436
    %v5099 = vpop.f32.mrf.mxu0
    %v5100 = vadd.f32 %v4931, %v5099
    %v5101 = vpop.f32.mrf.mxu0
    %v5102 = vadd.f32 %v4933, %v5101
    %5103 = vmatmul.bf16.gmra.mxu0 %v4438
    %v5104 = vpop.f32.mrf.mxu0
    %v5105 = vadd.f32 %v4936, %v5104
    %v5106 = vpop.f32.mrf.mxu0
    %v5107 = vadd.f32 %v4938, %v5106
    %5108 = vmatmul.bf16.gmra.mxu0 %v4440
    %v5109 = vpop.f32.mrf.mxu0
    %v5110 = vadd.f32 %v4941, %v5109
    %v5111 = vpop.f32.mrf.mxu0
    %v5112 = vadd.f32 %v4943, %v5111
    %5113 = vmatmul.bf16.gmra.mxu0 %v4442
    %v5114 = vpop.f32.mrf.mxu0
    %v5115 = vadd.f32 %v4946, %v5114
    %v5116 = vpop.f32.mrf.mxu0
    %v5117 = vadd.f32 %v4948, %v5116
    %5118 = vdwg.mxu0
    %5119 = vmatpush.bf16.xpose.msra.mxu0 %v4425
    %5120 = vmatpush.bf16.xpose.msra.mxu0 %v4423
    %5121 = vmatpush.bf16.xpose.msra.mxu0 %v4421
    %5122 = vmatpush.bf16.xpose.msra.mxu0 %v4419
    %5123 = vmatpush.bf16.xpose.msra.mxu0 %v4417
    %5124 = vmatpush.bf16.xpose.msra.mxu0 %v4415
    %5125 = vmatpush.bf16.xpose.msra.mxu0 %v4413
    %5126 = vmatpush.bf16.xpose.msra.mxu0 %v4411
    %5127 = vmatmul.bf16.gmra.mxu0 %v4379
    %v5128 = vpop.f32.mrf.mxu0
    %v5129 = vadd.f32 0.0, %v5128
    %v5130 = vpop.f32.mrf.mxu0
    %v5131 = vadd.f32 0.0, %v5130
    %5132 = vmatmul.bf16.gmra.mxu0 %v4381
    %v5133 = vpop.f32.mrf.mxu0
    %v5134 = vadd.f32 0.0, %v5133
    %v5135 = vpop.f32.mrf.mxu0
    %v5136 = vadd.f32 0.0, %v5135
    %5137 = vmatmul.bf16.gmra.mxu0 %v4383
    %v5138 = vpop.f32.mrf.mxu0
    %v5139 = vadd.f32 0.0, %v5138
    %v5140 = vpop.f32.mrf.mxu0
    %v5141 = vadd.f32 0.0, %v5140
    %5142 = vmatmul.bf16.gmra.mxu0 %v4385
    %v5143 = vpop.f32.mrf.mxu0
    %v5144 = vadd.f32 0.0, %v5143
    %v5145 = vpop.f32.mrf.mxu0
    %v5146 = vadd.f32 0.0, %v5145
    %5147 = vmatmul.bf16.gmra.mxu0 %v4387
    %v5148 = vpop.f32.mrf.mxu0
    %v5149 = vadd.f32 0.0, %v5148
    %v5150 = vpop.f32.mrf.mxu0
    %v5151 = vadd.f32 0.0, %v5150
    %5152 = vmatmul.bf16.gmra.mxu0 %v4389
    %v5153 = vpop.f32.mrf.mxu0
    %v5154 = vadd.f32 0.0, %v5153
    %v5155 = vpop.f32.mrf.mxu0
    %v5156 = vadd.f32 0.0, %v5155
    %5157 = vmatmul.bf16.gmra.mxu0 %v4391
    %v5158 = vpop.f32.mrf.mxu0
    %v5159 = vadd.f32 0.0, %v5158
    %v5160 = vpop.f32.mrf.mxu0
    %v5161 = vadd.f32 0.0, %v5160
    %5162 = vmatmul.bf16.gmra.mxu0 %v4393
    %v5163 = vpop.f32.mrf.mxu0
    %v5164 = vadd.f32 0.0, %v5163
    %v5165 = vpop.f32.mrf.mxu0
    %v5166 = vadd.f32 0.0, %v5165
    %5167 = vmatmul.bf16.gmra.mxu0 %v4395
    %v5168 = vpop.f32.mrf.mxu0
    %v5169 = vadd.f32 0.0, %v5168
    %v5170 = vpop.f32.mrf.mxu0
    %v5171 = vadd.f32 0.0, %v5170
    %5172 = vmatmul.bf16.gmra.mxu0 %v4397
    %v5173 = vpop.f32.mrf.mxu0
    %v5174 = vadd.f32 0.0, %v5173
    %v5175 = vpop.f32.mrf.mxu0
    %v5176 = vadd.f32 0.0, %v5175
    %5177 = vmatmul.bf16.gmra.mxu0 %v4399
    %v5178 = vpop.f32.mrf.mxu0
    %v5179 = vadd.f32 0.0, %v5178
    %v5180 = vpop.f32.mrf.mxu0
    %v5181 = vadd.f32 0.0, %v5180
    %5182 = vmatmul.bf16.gmra.mxu0 %v4401
    %v5183 = vpop.f32.mrf.mxu0
    %v5184 = vadd.f32 0.0, %v5183
    %v5185 = vpop.f32.mrf.mxu0
    %v5186 = vadd.f32 0.0, %v5185
    %5187 = vmatmul.bf16.gmra.mxu0 %v4403
    %v5188 = vpop.f32.mrf.mxu0
    %v5189 = vadd.f32 0.0, %v5188
    %v5190 = vpop.f32.mrf.mxu0
    %v5191 = vadd.f32 0.0, %v5190
    %5192 = vmatmul.bf16.gmra.mxu0 %v4405
    %v5193 = vpop.f32.mrf.mxu0
    %v5194 = vadd.f32 0.0, %v5193
    %v5195 = vpop.f32.mrf.mxu0
    %v5196 = vadd.f32 0.0, %v5195
    %5197 = vmatmul.bf16.gmra.mxu0 %v4407
    %v5198 = vpop.f32.mrf.mxu0
    %v5199 = vadd.f32 0.0, %v5198
    %v5200 = vpop.f32.mrf.mxu0
    %v5201 = vadd.f32 0.0, %v5200
    %5202 = vmatmul.bf16.gmra.mxu0 %v4409
    %v5203 = vpop.f32.mrf.mxu0
    %v5204 = vadd.f32 0.0, %v5203
    %v5205 = vpop.f32.mrf.mxu0
    %v5206 = vadd.f32 0.0, %v5205
    %5207 = vmatmul.bf16.gmra.mxu0 %v4411
    %v5208 = vpop.f32.mrf.mxu0
    %v5209 = vadd.f32 0.0, %v5208
    %v5210 = vpop.f32.mrf.mxu0
    %v5211 = vadd.f32 0.0, %v5210
    %5212 = vmatmul.bf16.gmra.mxu0 %v4413
    %v5213 = vpop.f32.mrf.mxu0
    %v5214 = vadd.f32 0.0, %v5213
    %v5215 = vpop.f32.mrf.mxu0
    %v5216 = vadd.f32 0.0, %v5215
    %5217 = vmatmul.bf16.gmra.mxu0 %v4415
    %v5218 = vpop.f32.mrf.mxu0
    %v5219 = vadd.f32 0.0, %v5218
    %v5220 = vpop.f32.mrf.mxu0
    %v5221 = vadd.f32 0.0, %v5220
    %5222 = vmatmul.bf16.gmra.mxu0 %v4417
    %v5223 = vpop.f32.mrf.mxu0
    %v5224 = vadd.f32 0.0, %v5223
    %v5225 = vpop.f32.mrf.mxu0
    %v5226 = vadd.f32 0.0, %v5225
    %5227 = vmatmul.bf16.gmra.mxu0 %v4419
    %v5228 = vpop.f32.mrf.mxu0
    %v5229 = vadd.f32 0.0, %v5228
    %v5230 = vpop.f32.mrf.mxu0
    %v5231 = vadd.f32 0.0, %v5230
    %5232 = vmatmul.bf16.gmra.mxu0 %v4421
    %v5233 = vpop.f32.mrf.mxu0
    %v5234 = vadd.f32 0.0, %v5233
    %v5235 = vpop.f32.mrf.mxu0
    %v5236 = vadd.f32 0.0, %v5235
    %5237 = vmatmul.bf16.gmra.mxu0 %v4423
    %v5238 = vpop.f32.mrf.mxu0
    %v5239 = vadd.f32 0.0, %v5238
    %v5240 = vpop.f32.mrf.mxu0
    %v5241 = vadd.f32 0.0, %v5240
    %5242 = vmatmul.bf16.gmra.mxu0 %v4425
    %v5243 = vpop.f32.mrf.mxu0
    %v5244 = vadd.f32 0.0, %v5243
    %v5245 = vpop.f32.mrf.mxu0
    %v5246 = vadd.f32 0.0, %v5245
    %5247 = vmatmul.bf16.gmra.mxu0 %v4427
    %v5248 = vpop.f32.mrf.mxu0
    %v5249 = vadd.f32 0.0, %v5248
    %v5250 = vpop.f32.mrf.mxu0
    %v5251 = vadd.f32 0.0, %v5250
    %5252 = vmatmul.bf16.gmra.mxu0 %v4429
    %v5253 = vpop.f32.mrf.mxu0
    %v5254 = vadd.f32 0.0, %v5253
    %v5255 = vpop.f32.mrf.mxu0
    %v5256 = vadd.f32 0.0, %v5255
    %5257 = vmatmul.bf16.gmra.mxu0 %v4431
    %v5258 = vpop.f32.mrf.mxu0
    %v5259 = vadd.f32 0.0, %v5258
    %v5260 = vpop.f32.mrf.mxu0
    %v5261 = vadd.f32 0.0, %v5260
    %5262 = vmatmul.bf16.gmra.mxu0 %v4433
    %v5263 = vpop.f32.mrf.mxu0
    %v5264 = vadd.f32 0.0, %v5263
    %v5265 = vpop.f32.mrf.mxu0
    %v5266 = vadd.f32 0.0, %v5265
    %5267 = vmatmul.bf16.gmra.mxu0 %v4435
    %v5268 = vpop.f32.mrf.mxu0
    %v5269 = vadd.f32 0.0, %v5268
    %v5270 = vpop.f32.mrf.mxu0
    %v5271 = vadd.f32 0.0, %v5270
    %5272 = vmatmul.bf16.gmra.mxu0 %v4437
    %v5273 = vpop.f32.mrf.mxu0
    %v5274 = vadd.f32 0.0, %v5273
    %v5275 = vpop.f32.mrf.mxu0
    %v5276 = vadd.f32 0.0, %v5275
    %5277 = vmatmul.bf16.gmra.mxu0 %v4439
    %v5278 = vpop.f32.mrf.mxu0
    %v5279 = vadd.f32 0.0, %v5278
    %v5280 = vpop.f32.mrf.mxu0
    %v5281 = vadd.f32 0.0, %v5280
    %5282 = vmatmul.bf16.gmra.mxu0 %v4441
    %v5283 = vpop.f32.mrf.mxu0
    %v5284 = vadd.f32 0.0, %v5283
    %v5285 = vpop.f32.mrf.mxu0
    %v5286 = vadd.f32 0.0, %v5285
    %5287 = vdwg.mxu0
    %5288 = vmatpush.bf16.xpose.msra.mxu0 %v4426
    %5289 = vmatpush.bf16.xpose.msra.mxu0 %v4424
    %5290 = vmatpush.bf16.xpose.msra.mxu0 %v4422
    %5291 = vmatpush.bf16.xpose.msra.mxu0 %v4420
    %5292 = vmatpush.bf16.xpose.msra.mxu0 %v4418
    %5293 = vmatpush.bf16.xpose.msra.mxu0 %v4416
    %5294 = vmatpush.bf16.xpose.msra.mxu0 %v4414
    %5295 = vmatpush.bf16.xpose.msra.mxu0 %v4412
    %5296 = vmatmul.bf16.gmra.mxu0 %v4380
    %v5297 = vpop.f32.mrf.mxu0
    %v5298 = vadd.f32 %v5129, %v5297
    %v5299 = vpop.f32.mrf.mxu0
    %v5300 = vadd.f32 %v5131, %v5299
    %5301 = vmatmul.bf16.gmra.mxu0 %v4382
    %v5302 = vpop.f32.mrf.mxu0
    %v5303 = vadd.f32 %v5134, %v5302
    %v5304 = vpop.f32.mrf.mxu0
    %v5305 = vadd.f32 %v5136, %v5304
    %5306 = vmatmul.bf16.gmra.mxu0 %v4384
    %v5307 = vpop.f32.mrf.mxu0
    %v5308 = vadd.f32 %v5139, %v5307
    %v5309 = vpop.f32.mrf.mxu0
    %v5310 = vadd.f32 %v5141, %v5309
    %5311 = vmatmul.bf16.gmra.mxu0 %v4386
    %v5312 = vpop.f32.mrf.mxu0
    %v5313 = vadd.f32 %v5144, %v5312
    %v5314 = vpop.f32.mrf.mxu0
    %v5315 = vadd.f32 %v5146, %v5314
    %5316 = vmatmul.bf16.gmra.mxu0 %v4388
    %v5317 = vpop.f32.mrf.mxu0
    %v5318 = vadd.f32 %v5149, %v5317
    %v5319 = vpop.f32.mrf.mxu0
    %v5320 = vadd.f32 %v5151, %v5319
    %5321 = vmatmul.bf16.gmra.mxu0 %v4390
    %v5322 = vpop.f32.mrf.mxu0
    %v5323 = vadd.f32 %v5154, %v5322
    %v5324 = vpop.f32.mrf.mxu0
    %v5325 = vadd.f32 %v5156, %v5324
    %5326 = vmatmul.bf16.gmra.mxu0 %v4392
    %v5327 = vpop.f32.mrf.mxu0
    %v5328 = vadd.f32 %v5159, %v5327
    %v5329 = vpop.f32.mrf.mxu0
    %v5330 = vadd.f32 %v5161, %v5329
    %5331 = vmatmul.bf16.gmra.mxu0 %v4394
    %v5332 = vpop.f32.mrf.mxu0
    %v5333 = vadd.f32 %v5164, %v5332
    %v5334 = vpop.f32.mrf.mxu0
    %v5335 = vadd.f32 %v5166, %v5334
    %5336 = vmatmul.bf16.gmra.mxu0 %v4396
    %v5337 = vpop.f32.mrf.mxu0
    %v5338 = vadd.f32 %v5169, %v5337
    %v5339 = vpop.f32.mrf.mxu0
    %v5340 = vadd.f32 %v5171, %v5339
    %5341 = vmatmul.bf16.gmra.mxu0 %v4398
    %v5342 = vpop.f32.mrf.mxu0
    %v5343 = vadd.f32 %v5174, %v5342
    %v5344 = vpop.f32.mrf.mxu0
    %v5345 = vadd.f32 %v5176, %v5344
    %5346 = vmatmul.bf16.gmra.mxu0 %v4400
    %v5347 = vpop.f32.mrf.mxu0
    %v5348 = vadd.f32 %v5179, %v5347
    %v5349 = vpop.f32.mrf.mxu0
    %v5350 = vadd.f32 %v5181, %v5349
    %5351 = vmatmul.bf16.gmra.mxu0 %v4402
    %v5352 = vpop.f32.mrf.mxu0
    %v5353 = vadd.f32 %v5184, %v5352
    %v5354 = vpop.f32.mrf.mxu0
    %v5355 = vadd.f32 %v5186, %v5354
    %5356 = vmatmul.bf16.gmra.mxu0 %v4404
    %v5357 = vpop.f32.mrf.mxu0
    %v5358 = vadd.f32 %v5189, %v5357
    %v5359 = vpop.f32.mrf.mxu0
    %v5360 = vadd.f32 %v5191, %v5359
    %5361 = vmatmul.bf16.gmra.mxu0 %v4406
    %v5362 = vpop.f32.mrf.mxu0
    %v5363 = vadd.f32 %v5194, %v5362
    %v5364 = vpop.f32.mrf.mxu0
    %v5365 = vadd.f32 %v5196, %v5364
    %5366 = vmatmul.bf16.gmra.mxu0 %v4408
    %v5367 = vpop.f32.mrf.mxu0
    %v5368 = vadd.f32 %v5199, %v5367
    %v5369 = vpop.f32.mrf.mxu0
    %v5370 = vadd.f32 %v5201, %v5369
    %5371 = vmatmul.bf16.gmra.mxu0 %v4410
    %v5372 = vpop.f32.mrf.mxu0
    %v5373 = vadd.f32 %v5204, %v5372
    %v5374 = vpop.f32.mrf.mxu0
    %v5375 = vadd.f32 %v5206, %v5374
    %5376 = vmatmul.bf16.gmra.mxu0 %v4412
    %v5377 = vpop.f32.mrf.mxu0
    %v5378 = vadd.f32 %v5209, %v5377
    %v5379 = vpop.f32.mrf.mxu0
    %v5380 = vadd.f32 %v5211, %v5379
    %5381 = vmatmul.bf16.gmra.mxu0 %v4414
    %v5382 = vpop.f32.mrf.mxu0
    %v5383 = vadd.f32 %v5214, %v5382
    %v5384 = vpop.f32.mrf.mxu0
    %v5385 = vadd.f32 %v5216, %v5384
    %5386 = vmatmul.bf16.gmra.mxu0 %v4416
    %v5387 = vpop.f32.mrf.mxu0
    %v5388 = vadd.f32 %v5219, %v5387
    %v5389 = vpop.f32.mrf.mxu0
    %v5390 = vadd.f32 %v5221, %v5389
    %5391 = vmatmul.bf16.gmra.mxu0 %v4418
    %v5392 = vpop.f32.mrf.mxu0
    %v5393 = vadd.f32 %v5224, %v5392
    %v5394 = vpop.f32.mrf.mxu0
    %v5395 = vadd.f32 %v5226, %v5394
    %5396 = vmatmul.bf16.gmra.mxu0 %v4420
    %v5397 = vpop.f32.mrf.mxu0
    %v5398 = vadd.f32 %v5229, %v5397
    %v5399 = vpop.f32.mrf.mxu0
    %v5400 = vadd.f32 %v5231, %v5399
    %5401 = vmatmul.bf16.gmra.mxu0 %v4422
    %v5402 = vpop.f32.mrf.mxu0
    %v5403 = vadd.f32 %v5234, %v5402
    %v5404 = vpop.f32.mrf.mxu0
    %v5405 = vadd.f32 %v5236, %v5404
    %5406 = vmatmul.bf16.gmra.mxu0 %v4424
    %v5407 = vpop.f32.mrf.mxu0
    %v5408 = vadd.f32 %v5239, %v5407
    %v5409 = vpop.f32.mrf.mxu0
    %v5410 = vadd.f32 %v5241, %v5409
    %5411 = vmatmul.bf16.gmra.mxu0 %v4426
    %v5412 = vpop.f32.mrf.mxu0
    %v5413 = vadd.f32 %v5244, %v5412
    %v5414 = vpop.f32.mrf.mxu0
    %v5415 = vadd.f32 %v5246, %v5414
    %5416 = vmatmul.bf16.gmra.mxu0 %v4428
    %v5417 = vpop.f32.mrf.mxu0
    %v5418 = vadd.f32 %v5249, %v5417
    %v5419 = vpop.f32.mrf.mxu0
    %v5420 = vadd.f32 %v5251, %v5419
    %5421 = vmatmul.bf16.gmra.mxu0 %v4430
    %v5422 = vpop.f32.mrf.mxu0
    %v5423 = vadd.f32 %v5254, %v5422
    %v5424 = vpop.f32.mrf.mxu0
    %v5425 = vadd.f32 %v5256, %v5424
    %5426 = vmatmul.bf16.gmra.mxu0 %v4432
    %v5427 = vpop.f32.mrf.mxu0
    %v5428 = vadd.f32 %v5259, %v5427
    %v5429 = vpop.f32.mrf.mxu0
    %v5430 = vadd.f32 %v5261, %v5429
    %5431 = vmatmul.bf16.gmra.mxu0 %v4434
    %v5432 = vpop.f32.mrf.mxu0
    %v5433 = vadd.f32 %v5264, %v5432
    %v5434 = vpop.f32.mrf.mxu0
    %v5435 = vadd.f32 %v5266, %v5434
    %5436 = vmatmul.bf16.gmra.mxu0 %v4436
    %v5437 = vpop.f32.mrf.mxu0
    %v5438 = vadd.f32 %v5269, %v5437
    %v5439 = vpop.f32.mrf.mxu0
    %v5440 = vadd.f32 %v5271, %v5439
    %5441 = vmatmul.bf16.gmra.mxu0 %v4438
    %v5442 = vpop.f32.mrf.mxu0
    %v5443 = vadd.f32 %v5274, %v5442
    %v5444 = vpop.f32.mrf.mxu0
    %v5445 = vadd.f32 %v5276, %v5444
    %5446 = vmatmul.bf16.gmra.mxu0 %v4440
    %v5447 = vpop.f32.mrf.mxu0
    %v5448 = vadd.f32 %v5279, %v5447
    %v5449 = vpop.f32.mrf.mxu0
    %v5450 = vadd.f32 %v5281, %v5449
    %5451 = vmatmul.bf16.gmra.mxu0 %v4442
    %v5452 = vpop.f32.mrf.mxu0
    %v5453 = vadd.f32 %v5284, %v5452
    %v5454 = vpop.f32.mrf.mxu0
    %v5455 = vadd.f32 %v5286, %v5454
    %5456 = vdwg.mxu0
    %5457 = vmatpush.bf16.xpose.msra.mxu0 %v4441
    %5458 = vmatpush.bf16.xpose.msra.mxu0 %v4439
    %5459 = vmatpush.bf16.xpose.msra.mxu0 %v4437
    %5460 = vmatpush.bf16.xpose.msra.mxu0 %v4435
    %5461 = vmatpush.bf16.xpose.msra.mxu0 %v4433
    %5462 = vmatpush.bf16.xpose.msra.mxu0 %v4431
    %5463 = vmatpush.bf16.xpose.msra.mxu0 %v4429
    %5464 = vmatpush.bf16.xpose.msra.mxu0 %v4427
    %5465 = vmatmul.bf16.gmra.mxu0 %v4379
    %v5466 = vpop.f32.mrf.mxu0
    %v5467 = vadd.f32 0.0, %v5466
    %v5468 = vpop.f32.mrf.mxu0
    %v5469 = vadd.f32 0.0, %v5468
    %5470 = vmatmul.bf16.gmra.mxu0 %v4381
    %v5471 = vpop.f32.mrf.mxu0
    %v5472 = vadd.f32 0.0, %v5471
    %v5473 = vpop.f32.mrf.mxu0
    %v5474 = vadd.f32 0.0, %v5473
    %5475 = vmatmul.bf16.gmra.mxu0 %v4383
    %v5476 = vpop.f32.mrf.mxu0
    %v5477 = vadd.f32 0.0, %v5476
    %v5478 = vpop.f32.mrf.mxu0
    %v5479 = vadd.f32 0.0, %v5478
    %5480 = vmatmul.bf16.gmra.mxu0 %v4385
    %v5481 = vpop.f32.mrf.mxu0
    %v5482 = vadd.f32 0.0, %v5481
    %v5483 = vpop.f32.mrf.mxu0
    %v5484 = vadd.f32 0.0, %v5483
    %5485 = vmatmul.bf16.gmra.mxu0 %v4387
    %v5486 = vpop.f32.mrf.mxu0
    %v5487 = vadd.f32 0.0, %v5486
    %v5488 = vpop.f32.mrf.mxu0
    %v5489 = vadd.f32 0.0, %v5488
    %5490 = vmatmul.bf16.gmra.mxu0 %v4389
    %v5491 = vpop.f32.mrf.mxu0
    %v5492 = vadd.f32 0.0, %v5491
    %v5493 = vpop.f32.mrf.mxu0
    %v5494 = vadd.f32 0.0, %v5493
    %5495 = vmatmul.bf16.gmra.mxu0 %v4391
    %v5496 = vpop.f32.mrf.mxu0
    %v5497 = vadd.f32 0.0, %v5496
    %v5498 = vpop.f32.mrf.mxu0
    %v5499 = vadd.f32 0.0, %v5498
    %5500 = vmatmul.bf16.gmra.mxu0 %v4393
    %v5501 = vpop.f32.mrf.mxu0
    %v5502 = vadd.f32 0.0, %v5501
    %v5503 = vpop.f32.mrf.mxu0
    %v5504 = vadd.f32 0.0, %v5503
    %5505 = vmatmul.bf16.gmra.mxu0 %v4395
    %v5506 = vpop.f32.mrf.mxu0
    %v5507 = vadd.f32 0.0, %v5506
    %v5508 = vpop.f32.mrf.mxu0
    %v5509 = vadd.f32 0.0, %v5508
    %5510 = vmatmul.bf16.gmra.mxu0 %v4397
    %v5511 = vpop.f32.mrf.mxu0
    %v5512 = vadd.f32 0.0, %v5511
    %v5513 = vpop.f32.mrf.mxu0
    %v5514 = vadd.f32 0.0, %v5513
    %5515 = vmatmul.bf16.gmra.mxu0 %v4399
    %v5516 = vpop.f32.mrf.mxu0
    %v5517 = vadd.f32 0.0, %v5516
    %v5518 = vpop.f32.mrf.mxu0
    %v5519 = vadd.f32 0.0, %v5518
    %5520 = vmatmul.bf16.gmra.mxu0 %v4401
    %v5521 = vpop.f32.mrf.mxu0
    %v5522 = vadd.f32 0.0, %v5521
    %v5523 = vpop.f32.mrf.mxu0
    %v5524 = vadd.f32 0.0, %v5523
    %5525 = vmatmul.bf16.gmra.mxu0 %v4403
    %v5526 = vpop.f32.mrf.mxu0
    %v5527 = vadd.f32 0.0, %v5526
    %v5528 = vpop.f32.mrf.mxu0
    %v5529 = vadd.f32 0.0, %v5528
    %5530 = vmatmul.bf16.gmra.mxu0 %v4405
    %v5531 = vpop.f32.mrf.mxu0
    %v5532 = vadd.f32 0.0, %v5531
    %v5533 = vpop.f32.mrf.mxu0
    %v5534 = vadd.f32 0.0, %v5533
    %5535 = vmatmul.bf16.gmra.mxu0 %v4407
    %v5536 = vpop.f32.mrf.mxu0
    %v5537 = vadd.f32 0.0, %v5536
    %v5538 = vpop.f32.mrf.mxu0
    %v5539 = vadd.f32 0.0, %v5538
    %5540 = vmatmul.bf16.gmra.mxu0 %v4409
    %v5541 = vpop.f32.mrf.mxu0
    %v5542 = vadd.f32 0.0, %v5541
    %v5543 = vpop.f32.mrf.mxu0
    %v5544 = vadd.f32 0.0, %v5543
    %5545 = vmatmul.bf16.gmra.mxu0 %v4411
    %v5546 = vpop.f32.mrf.mxu0
    %v5547 = vadd.f32 0.0, %v5546
    %v5548 = vpop.f32.mrf.mxu0
    %v5549 = vadd.f32 0.0, %v5548
    %5550 = vmatmul.bf16.gmra.mxu0 %v4413
    %v5551 = vpop.f32.mrf.mxu0
    %v5552 = vadd.f32 0.0, %v5551
    %v5553 = vpop.f32.mrf.mxu0
    %v5554 = vadd.f32 0.0, %v5553
    %5555 = vmatmul.bf16.gmra.mxu0 %v4415
    %v5556 = vpop.f32.mrf.mxu0
    %v5557 = vadd.f32 0.0, %v5556
    %v5558 = vpop.f32.mrf.mxu0
    %v5559 = vadd.f32 0.0, %v5558
    %5560 = vmatmul.bf16.gmra.mxu0 %v4417
    %v5561 = vpop.f32.mrf.mxu0
    %v5562 = vadd.f32 0.0, %v5561
    %v5563 = vpop.f32.mrf.mxu0
    %v5564 = vadd.f32 0.0, %v5563
    %5565 = vmatmul.bf16.gmra.mxu0 %v4419
    %v5566 = vpop.f32.mrf.mxu0
    %v5567 = vadd.f32 0.0, %v5566
    %v5568 = vpop.f32.mrf.mxu0
    %v5569 = vadd.f32 0.0, %v5568
    %5570 = vmatmul.bf16.gmra.mxu0 %v4421
    %v5571 = vpop.f32.mrf.mxu0
    %v5572 = vadd.f32 0.0, %v5571
    %v5573 = vpop.f32.mrf.mxu0
    %v5574 = vadd.f32 0.0, %v5573
    %5575 = vmatmul.bf16.gmra.mxu0 %v4423
    %v5576 = vpop.f32.mrf.mxu0
    %v5577 = vadd.f32 0.0, %v5576
    %v5578 = vpop.f32.mrf.mxu0
    %v5579 = vadd.f32 0.0, %v5578
    %5580 = vmatmul.bf16.gmra.mxu0 %v4425
    %v5581 = vpop.f32.mrf.mxu0
    %v5582 = vadd.f32 0.0, %v5581
    %v5583 = vpop.f32.mrf.mxu0
    %v5584 = vadd.f32 0.0, %v5583
    %5585 = vmatmul.bf16.gmra.mxu0 %v4427
    %v5586 = vpop.f32.mrf.mxu0
    %v5587 = vadd.f32 0.0, %v5586
    %v5588 = vpop.f32.mrf.mxu0
    %v5589 = vadd.f32 0.0, %v5588
    %5590 = vmatmul.bf16.gmra.mxu0 %v4429
    %v5591 = vpop.f32.mrf.mxu0
    %v5592 = vadd.f32 0.0, %v5591
    %v5593 = vpop.f32.mrf.mxu0
    %v5594 = vadd.f32 0.0, %v5593
    %5595 = vmatmul.bf16.gmra.mxu0 %v4431
    %v5596 = vpop.f32.mrf.mxu0
    %v5597 = vadd.f32 0.0, %v5596
    %v5598 = vpop.f32.mrf.mxu0
    %v5599 = vadd.f32 0.0, %v5598
    %5600 = vmatmul.bf16.gmra.mxu0 %v4433
    %v5601 = vpop.f32.mrf.mxu0
    %v5602 = vadd.f32 0.0, %v5601
    %v5603 = vpop.f32.mrf.mxu0
    %v5604 = vadd.f32 0.0, %v5603
    %5605 = vmatmul.bf16.gmra.mxu0 %v4435
    %v5606 = vpop.f32.mrf.mxu0
    %v5607 = vadd.f32 0.0, %v5606
    %v5608 = vpop.f32.mrf.mxu0
    %v5609 = vadd.f32 0.0, %v5608
    %5610 = vmatmul.bf16.gmra.mxu0 %v4437
    %v5611 = vpop.f32.mrf.mxu0
    %v5612 = vadd.f32 0.0, %v5611
    %v5613 = vpop.f32.mrf.mxu0
    %v5614 = vadd.f32 0.0, %v5613
    %5615 = vmatmul.bf16.gmra.mxu0 %v4439
    %v5616 = vpop.f32.mrf.mxu0
    %v5617 = vadd.f32 0.0, %v5616
    %v5618 = vpop.f32.mrf.mxu0
    %v5619 = vadd.f32 0.0, %v5618
    %5620 = vmatmul.bf16.gmra.mxu0 %v4441
    %v5621 = vpop.f32.mrf.mxu0
    %v5622 = vadd.f32 0.0, %v5621
    %v5623 = vpop.f32.mrf.mxu0
    %v5624 = vadd.f32 0.0, %v5623
    %5625 = vdwg.mxu0
    %5626 = vmatpush.bf16.xpose.msra.mxu0 %v4442
    %5627 = vmatpush.bf16.xpose.msra.mxu0 %v4440
    %5628 = vmatpush.bf16.xpose.msra.mxu0 %v4438
    %5629 = vmatpush.bf16.xpose.msra.mxu0 %v4436
    %5630 = vmatpush.bf16.xpose.msra.mxu0 %v4434
    %5631 = vmatpush.bf16.xpose.msra.mxu0 %v4432
    %5632 = vmatpush.bf16.xpose.msra.mxu0 %v4430
    %5633 = vmatpush.bf16.xpose.msra.mxu0 %v4428
    %5634 = vmatmul.bf16.gmra.mxu0 %v4380
    %v5635 = vpop.f32.mrf.mxu0
    %v5636 = vadd.f32 %v5467, %v5635
    %v5637 = vpop.f32.mrf.mxu0
    %v5638 = vadd.f32 %v5469, %v5637
    %5639 = vmatmul.bf16.gmra.mxu0 %v4382
    %v5640 = vpop.f32.mrf.mxu0
    %v5641 = vadd.f32 %v5472, %v5640
    %v5642 = vpop.f32.mrf.mxu0
    %v5643 = vadd.f32 %v5474, %v5642
    %5644 = vmatmul.bf16.gmra.mxu0 %v4384
    %v5645 = vpop.f32.mrf.mxu0
    %v5646 = vadd.f32 %v5477, %v5645
    %v5647 = vpop.f32.mrf.mxu0
    %v5648 = vadd.f32 %v5479, %v5647
    %5649 = vmatmul.bf16.gmra.mxu0 %v4386
    %v5650 = vpop.f32.mrf.mxu0
    %v5651 = vadd.f32 %v5482, %v5650
    %v5652 = vpop.f32.mrf.mxu0
    %v5653 = vadd.f32 %v5484, %v5652
    %5654 = vmatmul.bf16.gmra.mxu0 %v4388
    %v5655 = vpop.f32.mrf.mxu0
    %v5656 = vadd.f32 %v5487, %v5655
    %v5657 = vpop.f32.mrf.mxu0
    %v5658 = vadd.f32 %v5489, %v5657
    %5659 = vmatmul.bf16.gmra.mxu0 %v4390
    %v5660 = vpop.f32.mrf.mxu0
    %v5661 = vadd.f32 %v5492, %v5660
    %v5662 = vpop.f32.mrf.mxu0
    %v5663 = vadd.f32 %v5494, %v5662
    %5664 = vmatmul.bf16.gmra.mxu0 %v4392
    %v5665 = vpop.f32.mrf.mxu0
    %v5666 = vadd.f32 %v5497, %v5665
    %v5667 = vpop.f32.mrf.mxu0
    %v5668 = vadd.f32 %v5499, %v5667
    %5669 = vmatmul.bf16.gmra.mxu0 %v4394
    %v5670 = vpop.f32.mrf.mxu0
    %v5671 = vadd.f32 %v5502, %v5670
    %v5672 = vpop.f32.mrf.mxu0
    %v5673 = vadd.f32 %v5504, %v5672
    %5674 = vmatmul.bf16.gmra.mxu0 %v4396
    %v5675 = vpop.f32.mrf.mxu0
    %v5676 = vadd.f32 %v5507, %v5675
    %v5677 = vpop.f32.mrf.mxu0
    %v5678 = vadd.f32 %v5509, %v5677
    %5679 = vmatmul.bf16.gmra.mxu0 %v4398
    %v5680 = vpop.f32.mrf.mxu0
    %v5681 = vadd.f32 %v5512, %v5680
    %v5682 = vpop.f32.mrf.mxu0
    %v5683 = vadd.f32 %v5514, %v5682
    %5684 = vmatmul.bf16.gmra.mxu0 %v4400
    %v5685 = vpop.f32.mrf.mxu0
    %v5686 = vadd.f32 %v5517, %v5685
    %v5687 = vpop.f32.mrf.mxu0
    %v5688 = vadd.f32 %v5519, %v5687
    %5689 = vmatmul.bf16.gmra.mxu0 %v4402
    %v5690 = vpop.f32.mrf.mxu0
    %v5691 = vadd.f32 %v5522, %v5690
    %v5692 = vpop.f32.mrf.mxu0
    %v5693 = vadd.f32 %v5524, %v5692
    %5694 = vmatmul.bf16.gmra.mxu0 %v4404
    %v5695 = vpop.f32.mrf.mxu0
    %v5696 = vadd.f32 %v5527, %v5695
    %v5697 = vpop.f32.mrf.mxu0
    %v5698 = vadd.f32 %v5529, %v5697
    %5699 = vmatmul.bf16.gmra.mxu0 %v4406
    %v5700 = vpop.f32.mrf.mxu0
    %v5701 = vadd.f32 %v5532, %v5700
    %v5702 = vpop.f32.mrf.mxu0
    %v5703 = vadd.f32 %v5534, %v5702
    %5704 = vmatmul.bf16.gmra.mxu0 %v4408
    %v5705 = vpop.f32.mrf.mxu0
    %v5706 = vadd.f32 %v5537, %v5705
    %v5707 = vpop.f32.mrf.mxu0
    %v5708 = vadd.f32 %v5539, %v5707
    %5709 = vmatmul.bf16.gmra.mxu0 %v4410
    %v5710 = vpop.f32.mrf.mxu0
    %v5711 = vadd.f32 %v5542, %v5710
    %v5712 = vpop.f32.mrf.mxu0
    %v5713 = vadd.f32 %v5544, %v5712
    %5714 = vmatmul.bf16.gmra.mxu0 %v4412
    %v5715 = vpop.f32.mrf.mxu0
    %v5716 = vadd.f32 %v5547, %v5715
    %v5717 = vpop.f32.mrf.mxu0
    %v5718 = vadd.f32 %v5549, %v5717
    %5719 = vmatmul.bf16.gmra.mxu0 %v4414
    %v5720 = vpop.f32.mrf.mxu0
    %v5721 = vadd.f32 %v5552, %v5720
    %v5722 = vpop.f32.mrf.mxu0
    %v5723 = vadd.f32 %v5554, %v5722
    %5724 = vmatmul.bf16.gmra.mxu0 %v4416
    %v5725 = vpop.f32.mrf.mxu0
    %v5726 = vadd.f32 %v5557, %v5725
    %v5727 = vpop.f32.mrf.mxu0
    %v5728 = vadd.f32 %v5559, %v5727
    %5729 = vmatmul.bf16.gmra.mxu0 %v4418
    %v5730 = vpop.f32.mrf.mxu0
    %v5731 = vadd.f32 %v5562, %v5730
    %v5732 = vpop.f32.mrf.mxu0
    %v5733 = vadd.f32 %v5564, %v5732
    %5734 = vmatmul.bf16.gmra.mxu0 %v4420
    %v5735 = vpop.f32.mrf.mxu0
    %v5736 = vadd.f32 %v5567, %v5735
    %v5737 = vpop.f32.mrf.mxu0
    %v5738 = vadd.f32 %v5569, %v5737
    %5739 = vmatmul.bf16.gmra.mxu0 %v4422
    %v5740 = vpop.f32.mrf.mxu0
    %v5741 = vadd.f32 %v5572, %v5740
    %v5742 = vpop.f32.mrf.mxu0
    %v5743 = vadd.f32 %v5574, %v5742
    %5744 = vmatmul.bf16.gmra.mxu0 %v4424
    %v5745 = vpop.f32.mrf.mxu0
    %v5746 = vadd.f32 %v5577, %v5745
    %v5747 = vpop.f32.mrf.mxu0
    %v5748 = vadd.f32 %v5579, %v5747
    %5749 = vmatmul.bf16.gmra.mxu0 %v4426
    %v5750 = vpop.f32.mrf.mxu0
    %v5751 = vadd.f32 %v5582, %v5750
    %v5752 = vpop.f32.mrf.mxu0
    %v5753 = vadd.f32 %v5584, %v5752
    %5754 = vmatmul.bf16.gmra.mxu0 %v4428
    %v5755 = vpop.f32.mrf.mxu0
    %v5756 = vadd.f32 %v5587, %v5755
    %v5757 = vpop.f32.mrf.mxu0
    %v5758 = vadd.f32 %v5589, %v5757
    %5759 = vmatmul.bf16.gmra.mxu0 %v4430
    %v5760 = vpop.f32.mrf.mxu0
    %v5761 = vadd.f32 %v5592, %v5760
    %v5762 = vpop.f32.mrf.mxu0
    %v5763 = vadd.f32 %v5594, %v5762
    %5764 = vmatmul.bf16.gmra.mxu0 %v4432
    %v5765 = vpop.f32.mrf.mxu0
    %v5766 = vadd.f32 %v5597, %v5765
    %v5767 = vpop.f32.mrf.mxu0
    %v5768 = vadd.f32 %v5599, %v5767
    %5769 = vmatmul.bf16.gmra.mxu0 %v4434
    %v5770 = vpop.f32.mrf.mxu0
    %v5771 = vadd.f32 %v5602, %v5770
    %v5772 = vpop.f32.mrf.mxu0
    %v5773 = vadd.f32 %v5604, %v5772
    %5774 = vmatmul.bf16.gmra.mxu0 %v4436
    %v5775 = vpop.f32.mrf.mxu0
    %v5776 = vadd.f32 %v5607, %v5775
    %v5777 = vpop.f32.mrf.mxu0
    %v5778 = vadd.f32 %v5609, %v5777
    %5779 = vmatmul.bf16.gmra.mxu0 %v4438
    %v5780 = vpop.f32.mrf.mxu0
    %v5781 = vadd.f32 %v5612, %v5780
    %v5782 = vpop.f32.mrf.mxu0
    %v5783 = vadd.f32 %v5614, %v5782
    %5784 = vmatmul.bf16.gmra.mxu0 %v4440
    %v5785 = vpop.f32.mrf.mxu0
    %v5786 = vadd.f32 %v5617, %v5785
    %v5787 = vpop.f32.mrf.mxu0
    %v5788 = vadd.f32 %v5619, %v5787
    %5789 = vmatmul.bf16.gmra.mxu0 %v4442
    %v5790 = vpop.f32.mrf.mxu0
    %v5791 = vadd.f32 %v5622, %v5790
    %v5792 = vpop.f32.mrf.mxu0
    %v5793 = vadd.f32 %v5624, %v5792
    %5794 = vdwg.mxu0
    %v5795 = vmax.f32 %v4622, -60.0
    %v5796 = vmax.f32 %v4960, -60.0
    %v5797 = vmax.f32 %v5298, -60.0
    %v5798 = vmax.f32 %v5636, -60.0
    %v5799 = vmax.f32 %v4624, -60.0
    %v5800 = vmax.f32 %v4962, -60.0
    %v5801 = vmax.f32 %v5300, -60.0
    %v5802 = vmax.f32 %v5638, -60.0
    %v5803 = vmax.f32 %v4627, -60.0
    %v5804 = vmax.f32 %v4965, -60.0
    %v5805 = vmax.f32 %v5303, -60.0
    %v5806 = vmax.f32 %v5641, -60.0
    %v5807 = vmax.f32 %v4629, -60.0
    %v5808 = vmax.f32 %v4967, -60.0
    %v5809 = vmax.f32 %v5305, -60.0
    %v5810 = vmax.f32 %v5643, -60.0
    %v5811 = vmax.f32 %v4632, -60.0
    %v5812 = vmax.f32 %v4970, -60.0
    %v5813 = vmax.f32 %v5308, -60.0
    %v5814 = vmax.f32 %v5646, -60.0
    %v5815 = vmax.f32 %v4634, -60.0
    %v5816 = vmax.f32 %v4972, -60.0
    %v5817 = vmax.f32 %v5310, -60.0
    %v5818 = vmax.f32 %v5648, -60.0
    %v5819 = vmax.f32 %v4637, -60.0
    %v5820 = vmax.f32 %v4975, -60.0
    %v5821 = vmax.f32 %v5313, -60.0
    %v5822 = vmax.f32 %v5651, -60.0
    %v5823 = vmax.f32 %v4639, -60.0
    %v5824 = vmax.f32 %v4977, -60.0
    %v5825 = vmax.f32 %v5315, -60.0
    %v5826 = vmax.f32 %v5653, -60.0
    %v5827 = vmax.f32 %v4642, -60.0
    %v5828 = vmax.f32 %v4980, -60.0
    %v5829 = vmax.f32 %v5318, -60.0
    %v5830 = vmax.f32 %v5656, -60.0
    %v5831 = vmax.f32 %v4644, -60.0
    %v5832 = vmax.f32 %v4982, -60.0
    %v5833 = vmax.f32 %v5320, -60.0
    %v5834 = vmax.f32 %v5658, -60.0
    %v5835 = vmax.f32 %v4647, -60.0
    %v5836 = vmax.f32 %v4985, -60.0
    %v5837 = vmax.f32 %v5323, -60.0
    %v5838 = vmax.f32 %v5661, -60.0
    %v5839 = vmax.f32 %v4649, -60.0
    %v5840 = vmax.f32 %v4987, -60.0
    %v5841 = vmax.f32 %v5325, -60.0
    %v5842 = vmax.f32 %v5663, -60.0
    %v5843 = vmax.f32 %v4652, -60.0
    %v5844 = vmax.f32 %v4990, -60.0
    %v5845 = vmax.f32 %v5328, -60.0
    %v5846 = vmax.f32 %v5666, -60.0
    %v5847 = vmax.f32 %v4654, -60.0
    %v5848 = vmax.f32 %v4992, -60.0
    %v5849 = vmax.f32 %v5330, -60.0
    %v5850 = vmax.f32 %v5668, -60.0
    %v5851 = vmax.f32 %v4657, -60.0
    %v5852 = vmax.f32 %v4995, -60.0
    %v5853 = vmax.f32 %v5333, -60.0
    %v5854 = vmax.f32 %v5671, -60.0
    %v5855 = vmax.f32 %v4659, -60.0
    %v5856 = vmax.f32 %v4997, -60.0
    %v5857 = vmax.f32 %v5335, -60.0
    %v5858 = vmax.f32 %v5673, -60.0
    %v5859 = vmax.f32 %v4662, -60.0
    %v5860 = vmax.f32 %v5000, -60.0
    %v5861 = vmax.f32 %v5338, -60.0
    %v5862 = vmax.f32 %v5676, -60.0
    %v5863 = vmax.f32 %v4664, -60.0
    %v5864 = vmax.f32 %v5002, -60.0
    %v5865 = vmax.f32 %v5340, -60.0
    %v5866 = vmax.f32 %v5678, -60.0
    %v5867 = vmax.f32 %v4667, -60.0
    %v5868 = vmax.f32 %v5005, -60.0
    %v5869 = vmax.f32 %v5343, -60.0
    %v5870 = vmax.f32 %v5681, -60.0
    %v5871 = vmax.f32 %v4669, -60.0
    %v5872 = vmax.f32 %v5007, -60.0
    %v5873 = vmax.f32 %v5345, -60.0
    %v5874 = vmax.f32 %v5683, -60.0
    %v5875 = vmax.f32 %v4672, -60.0
    %v5876 = vmax.f32 %v5010, -60.0
    %v5877 = vmax.f32 %v5348, -60.0
    %v5878 = vmax.f32 %v5686, -60.0
    %v5879 = vmax.f32 %v4674, -60.0
    %v5880 = vmax.f32 %v5012, -60.0
    %v5881 = vmax.f32 %v5350, -60.0
    %v5882 = vmax.f32 %v5688, -60.0
    %v5883 = vmax.f32 %v4677, -60.0
    %v5884 = vmax.f32 %v5015, -60.0
    %v5885 = vmax.f32 %v5353, -60.0
    %v5886 = vmax.f32 %v5691, -60.0
    %v5887 = vmax.f32 %v4679, -60.0
    %v5888 = vmax.f32 %v5017, -60.0
    %v5889 = vmax.f32 %v5355, -60.0
    %v5890 = vmax.f32 %v5693, -60.0
    %v5891 = vmax.f32 %v4682, -60.0
    %v5892 = vmax.f32 %v5020, -60.0
    %v5893 = vmax.f32 %v5358, -60.0
    %v5894 = vmax.f32 %v5696, -60.0
    %v5895 = vmax.f32 %v4684, -60.0
    %v5896 = vmax.f32 %v5022, -60.0
    %v5897 = vmax.f32 %v5360, -60.0
    %v5898 = vmax.f32 %v5698, -60.0
    %v5899 = vmax.f32 %v4687, -60.0
    %v5900 = vmax.f32 %v5025, -60.0
    %v5901 = vmax.f32 %v5363, -60.0
    %v5902 = vmax.f32 %v5701, -60.0
    %v5903 = vmax.f32 %v4689, -60.0
    %v5904 = vmax.f32 %v5027, -60.0
    %v5905 = vmax.f32 %v5365, -60.0
    %v5906 = vmax.f32 %v5703, -60.0
    %v5907 = vmax.f32 %v4692, -60.0
    %v5908 = vmax.f32 %v5030, -60.0
    %v5909 = vmax.f32 %v5368, -60.0
    %v5910 = vmax.f32 %v5706, -60.0
    %v5911 = vmax.f32 %v4694, -60.0
    %v5912 = vmax.f32 %v5032, -60.0
    %v5913 = vmax.f32 %v5370, -60.0
    %v5914 = vmax.f32 %v5708, -60.0
    %v5915 = vmax.f32 %v4697, -60.0
    %v5916 = vmax.f32 %v5035, -60.0
    %v5917 = vmax.f32 %v5373, -60.0
    %v5918 = vmax.f32 %v5711, -60.0
    %v5919 = vmax.f32 %v4699, -60.0
    %v5920 = vmax.f32 %v5037, -60.0
    %v5921 = vmax.f32 %v5375, -60.0
    %v5922 = vmax.f32 %v5713, -60.0
    %v5923 = vmax.f32 %v4702, -60.0
    %v5924 = vmax.f32 %v5040, -60.0
    %v5925 = vmax.f32 %v5378, -60.0
    %v5926 = vmax.f32 %v5716, -60.0
    %v5927 = vmax.f32 %v4704, -60.0
    %v5928 = vmax.f32 %v5042, -60.0
    %v5929 = vmax.f32 %v5380, -60.0
    %v5930 = vmax.f32 %v5718, -60.0
    %v5931 = vmax.f32 %v4707, -60.0
    %v5932 = vmax.f32 %v5045, -60.0
    %v5933 = vmax.f32 %v5383, -60.0
    %v5934 = vmax.f32 %v5721, -60.0
    %v5935 = vmax.f32 %v4709, -60.0
    %v5936 = vmax.f32 %v5047, -60.0
    %v5937 = vmax.f32 %v5385, -60.0
    %v5938 = vmax.f32 %v5723, -60.0
    %v5939 = vmax.f32 %v4712, -60.0
    %v5940 = vmax.f32 %v5050, -60.0
    %v5941 = vmax.f32 %v5388, -60.0
    %v5942 = vmax.f32 %v5726, -60.0
    %v5943 = vmax.f32 %v4714, -60.0
    %v5944 = vmax.f32 %v5052, -60.0
    %v5945 = vmax.f32 %v5390, -60.0
    %v5946 = vmax.f32 %v5728, -60.0
    %v5947 = vmax.f32 %v4717, -60.0
    %v5948 = vmax.f32 %v5055, -60.0
    %v5949 = vmax.f32 %v5393, -60.0
    %v5950 = vmax.f32 %v5731, -60.0
    %v5951 = vmax.f32 %v4719, -60.0
    %v5952 = vmax.f32 %v5057, -60.0
    %v5953 = vmax.f32 %v5395, -60.0
    %v5954 = vmax.f32 %v5733, -60.0
    %v5955 = vmax.f32 %v4722, -60.0
    %v5956 = vmax.f32 %v5060, -60.0
    %v5957 = vmax.f32 %v5398, -60.0
    %v5958 = vmax.f32 %v5736, -60.0
    %v5959 = vmax.f32 %v4724, -60.0
    %v5960 = vmax.f32 %v5062, -60.0
    %v5961 = vmax.f32 %v5400, -60.0
    %v5962 = vmax.f32 %v5738, -60.0
    %v5963 = vmax.f32 %v4727, -60.0
    %v5964 = vmax.f32 %v5065, -60.0
    %v5965 = vmax.f32 %v5403, -60.0
    %v5966 = vmax.f32 %v5741, -60.0
    %v5967 = vmax.f32 %v4729, -60.0
    %v5968 = vmax.f32 %v5067, -60.0
    %v5969 = vmax.f32 %v5405, -60.0
    %v5970 = vmax.f32 %v5743, -60.0
    %v5971 = vmax.f32 %v4732, -60.0
    %v5972 = vmax.f32 %v5070, -60.0
    %v5973 = vmax.f32 %v5408, -60.0
    %v5974 = vmax.f32 %v5746, -60.0
    %v5975 = vmax.f32 %v4734, -60.0
    %v5976 = vmax.f32 %v5072, -60.0
    %v5977 = vmax.f32 %v5410, -60.0
    %v5978 = vmax.f32 %v5748, -60.0
    %v5979 = vmax.f32 %v4737, -60.0
    %v5980 = vmax.f32 %v5075, -60.0
    %v5981 = vmax.f32 %v5413, -60.0
    %v5982 = vmax.f32 %v5751, -60.0
    %v5983 = vmax.f32 %v4739, -60.0
    %v5984 = vmax.f32 %v5077, -60.0
    %v5985 = vmax.f32 %v5415, -60.0
    %v5986 = vmax.f32 %v5753, -60.0
    %v5987 = vmax.f32 %v4742, -60.0
    %v5988 = vmax.f32 %v5080, -60.0
    %v5989 = vmax.f32 %v5418, -60.0
    %v5990 = vmax.f32 %v5756, -60.0
    %v5991 = vmax.f32 %v4744, -60.0
    %v5992 = vmax.f32 %v5082, -60.0
    %v5993 = vmax.f32 %v5420, -60.0
    %v5994 = vmax.f32 %v5758, -60.0
    %v5995 = vmax.f32 %v4747, -60.0
    %v5996 = vmax.f32 %v5085, -60.0
    %v5997 = vmax.f32 %v5423, -60.0
    %v5998 = vmax.f32 %v5761, -60.0
    %v5999 = vmax.f32 %v4749, -60.0
    %v6000 = vmax.f32 %v5087, -60.0
    %v6001 = vmax.f32 %v5425, -60.0
    %v6002 = vmax.f32 %v5763, -60.0
    %v6003 = vmax.f32 %v4752, -60.0
    %v6004 = vmax.f32 %v5090, -60.0
    %v6005 = vmax.f32 %v5428, -60.0
    %v6006 = vmax.f32 %v5766, -60.0
    %v6007 = vmax.f32 %v4754, -60.0
    %v6008 = vmax.f32 %v5092, -60.0
    %v6009 = vmax.f32 %v5430, -60.0
    %v6010 = vmax.f32 %v5768, -60.0
    %v6011 = vmax.f32 %v4757, -60.0
    %v6012 = vmax.f32 %v5095, -60.0
    %v6013 = vmax.f32 %v5433, -60.0
    %v6014 = vmax.f32 %v5771, -60.0
    %v6015 = vmax.f32 %v4759, -60.0
    %v6016 = vmax.f32 %v5097, -60.0
    %v6017 = vmax.f32 %v5435, -60.0
    %v6018 = vmax.f32 %v5773, -60.0
    %v6019 = vmax.f32 %v4762, -60.0
    %v6020 = vmax.f32 %v5100, -60.0
    %v6021 = vmax.f32 %v5438, -60.0
    %v6022 = vmax.f32 %v5776, -60.0
    %v6023 = vmax.f32 %v4764, -60.0
    %v6024 = vmax.f32 %v5102, -60.0
    %v6025 = vmax.f32 %v5440, -60.0
    %v6026 = vmax.f32 %v5778, -60.0
    %v6027 = vmax.f32 %v4767, -60.0
    %v6028 = vmax.f32 %v5105, -60.0
    %v6029 = vmax.f32 %v5443, -60.0
    %v6030 = vmax.f32 %v5781, -60.0
    %v6031 = vmax.f32 %v4769, -60.0
    %v6032 = vmax.f32 %v5107, -60.0
    %v6033 = vmax.f32 %v5445, -60.0
    %v6034 = vmax.f32 %v5783, -60.0
    %v6035 = vmax.f32 %v4772, -60.0
    %v6036 = vmax.f32 %v5110, -60.0
    %v6037 = vmax.f32 %v5448, -60.0
    %v6038 = vmax.f32 %v5786, -60.0
    %v6039 = vmax.f32 %v4774, -60.0
    %v6040 = vmax.f32 %v5112, -60.0
    %v6041 = vmax.f32 %v5450, -60.0
    %v6042 = vmax.f32 %v5788, -60.0
    %v6043 = vmax.f32 %v4777, -60.0
    %v6044 = vmax.f32 %v5115, -60.0
    %v6045 = vmax.f32 %v5453, -60.0
    %v6046 = vmax.f32 %v5791, -60.0
    %v6047 = vmax.f32 %v4779, -60.0
    %v6048 = vmax.f32 %v5117, -60.0
    %v6049 = vmax.f32 %v5455, -60.0
    %v6050 = vmax.f32 %v5793, -60.0
    %v6051 = vmin.f32 %v5795, 60.0
    %v6052 = vmin.f32 %v5796, 60.0
    %v6053 = vmin.f32 %v5797, 60.0
    %v6054 = vmin.f32 %v5798, 60.0
    %v6055 = vmin.f32 %v5799, 60.0
    %v6056 = vmin.f32 %v5800, 60.0
    %v6057 = vmin.f32 %v5801, 60.0
    %v6058 = vmin.f32 %v5802, 60.0
    %v6059 = vmin.f32 %v5803, 60.0
    %v6060 = vmin.f32 %v5804, 60.0
    %v6061 = vmin.f32 %v5805, 60.0
    %v6062 = vmin.f32 %v5806, 60.0
    %v6063 = vmin.f32 %v5807, 60.0
    %v6064 = vmin.f32 %v5808, 60.0
    %v6065 = vmin.f32 %v5809, 60.0
    %v6066 = vmin.f32 %v5810, 60.0
    %v6067 = vmin.f32 %v5811, 60.0
    %v6068 = vmin.f32 %v5812, 60.0
    %v6069 = vmin.f32 %v5813, 60.0
    %v6070 = vmin.f32 %v5814, 60.0
    %v6071 = vmin.f32 %v5815, 60.0
    %v6072 = vmin.f32 %v5816, 60.0
    %v6073 = vmin.f32 %v5817, 60.0
    %v6074 = vmin.f32 %v5818, 60.0
    %v6075 = vmin.f32 %v5819, 60.0
    %v6076 = vmin.f32 %v5820, 60.0
    %v6077 = vmin.f32 %v5821, 60.0
    %v6078 = vmin.f32 %v5822, 60.0
    %v6079 = vmin.f32 %v5823, 60.0
    %v6080 = vmin.f32 %v5824, 60.0
    %v6081 = vmin.f32 %v5825, 60.0
    %v6082 = vmin.f32 %v5826, 60.0
    %v6083 = vmin.f32 %v5827, 60.0
    %v6084 = vmin.f32 %v5828, 60.0
    %v6085 = vmin.f32 %v5829, 60.0
    %v6086 = vmin.f32 %v5830, 60.0
    %v6087 = vmin.f32 %v5831, 60.0
    %v6088 = vmin.f32 %v5832, 60.0
    %v6089 = vmin.f32 %v5833, 60.0
    %v6090 = vmin.f32 %v5834, 60.0
    %v6091 = vmin.f32 %v5835, 60.0
    %v6092 = vmin.f32 %v5836, 60.0
    %v6093 = vmin.f32 %v5837, 60.0
    %v6094 = vmin.f32 %v5838, 60.0
    %v6095 = vmin.f32 %v5839, 60.0
    %v6096 = vmin.f32 %v5840, 60.0
    %v6097 = vmin.f32 %v5841, 60.0
    %v6098 = vmin.f32 %v5842, 60.0
    %v6099 = vmin.f32 %v5843, 60.0
    %v6100 = vmin.f32 %v5844, 60.0
    %v6101 = vmin.f32 %v5845, 60.0
    %v6102 = vmin.f32 %v5846, 60.0
    %v6103 = vmin.f32 %v5847, 60.0
    %v6104 = vmin.f32 %v5848, 60.0
    %v6105 = vmin.f32 %v5849, 60.0
    %v6106 = vmin.f32 %v5850, 60.0
    %v6107 = vmin.f32 %v5851, 60.0
    %v6108 = vmin.f32 %v5852, 60.0
    %v6109 = vmin.f32 %v5853, 60.0
    %v6110 = vmin.f32 %v5854, 60.0
    %v6111 = vmin.f32 %v5855, 60.0
    %v6112 = vmin.f32 %v5856, 60.0
    %v6113 = vmin.f32 %v5857, 60.0
    %v6114 = vmin.f32 %v5858, 60.0
    %v6115 = vmin.f32 %v5859, 60.0
    %v6116 = vmin.f32 %v5860, 60.0
    %v6117 = vmin.f32 %v5861, 60.0
    %v6118 = vmin.f32 %v5862, 60.0
    %v6119 = vmin.f32 %v5863, 60.0
    %v6120 = vmin.f32 %v5864, 60.0
    %v6121 = vmin.f32 %v5865, 60.0
    %v6122 = vmin.f32 %v5866, 60.0
    %v6123 = vmin.f32 %v5867, 60.0
    %v6124 = vmin.f32 %v5868, 60.0
    %v6125 = vmin.f32 %v5869, 60.0
    %v6126 = vmin.f32 %v5870, 60.0
    %v6127 = vmin.f32 %v5871, 60.0
    %v6128 = vmin.f32 %v5872, 60.0
    %v6129 = vmin.f32 %v5873, 60.0
    %v6130 = vmin.f32 %v5874, 60.0
    %v6131 = vmin.f32 %v5875, 60.0
    %v6132 = vmin.f32 %v5876, 60.0
    %v6133 = vmin.f32 %v5877, 60.0
    %v6134 = vmin.f32 %v5878, 60.0
    %v6135 = vmin.f32 %v5879, 60.0
    %v6136 = vmin.f32 %v5880, 60.0
    %v6137 = vmin.f32 %v5881, 60.0
    %v6138 = vmin.f32 %v5882, 60.0
    %v6139 = vmin.f32 %v5883, 60.0
    %v6140 = vmin.f32 %v5884, 60.0
    %v6141 = vmin.f32 %v5885, 60.0
    %v6142 = vmin.f32 %v5886, 60.0
    %v6143 = vmin.f32 %v5887, 60.0
    %v6144 = vmin.f32 %v5888, 60.0
    %v6145 = vmin.f32 %v5889, 60.0
    %v6146 = vmin.f32 %v5890, 60.0
    %v6147 = vmin.f32 %v5891, 60.0
    %v6148 = vmin.f32 %v5892, 60.0
    %v6149 = vmin.f32 %v5893, 60.0
    %v6150 = vmin.f32 %v5894, 60.0
    %v6151 = vmin.f32 %v5895, 60.0
    %v6152 = vmin.f32 %v5896, 60.0
    %v6153 = vmin.f32 %v5897, 60.0
    %v6154 = vmin.f32 %v5898, 60.0
    %v6155 = vmin.f32 %v5899, 60.0
    %v6156 = vmin.f32 %v5900, 60.0
    %v6157 = vmin.f32 %v5901, 60.0
    %v6158 = vmin.f32 %v5902, 60.0
    %v6159 = vmin.f32 %v5903, 60.0
    %v6160 = vmin.f32 %v5904, 60.0
    %v6161 = vmin.f32 %v5905, 60.0
    %v6162 = vmin.f32 %v5906, 60.0
    %v6163 = vmin.f32 %v5907, 60.0
    %v6164 = vmin.f32 %v5908, 60.0
    %v6165 = vmin.f32 %v5909, 60.0
    %v6166 = vmin.f32 %v5910, 60.0
    %v6167 = vmin.f32 %v5911, 60.0
    %v6168 = vmin.f32 %v5912, 60.0
    %v6169 = vmin.f32 %v5913, 60.0
    %v6170 = vmin.f32 %v5914, 60.0
    %v6171 = vmin.f32 %v5915, 60.0
    %v6172 = vmin.f32 %v5916, 60.0
    %v6173 = vmin.f32 %v5917, 60.0
    %v6174 = vmin.f32 %v5918, 60.0
    %v6175 = vmin.f32 %v5919, 60.0
    %v6176 = vmin.f32 %v5920, 60.0
    %v6177 = vmin.f32 %v5921, 60.0
    %v6178 = vmin.f32 %v5922, 60.0
    %v6179 = vmin.f32 %v5923, 60.0
    %v6180 = vmin.f32 %v5924, 60.0
    %v6181 = vmin.f32 %v5925, 60.0
    %v6182 = vmin.f32 %v5926, 60.0
    %v6183 = vmin.f32 %v5927, 60.0
    %v6184 = vmin.f32 %v5928, 60.0
    %v6185 = vmin.f32 %v5929, 60.0
    %v6186 = vmin.f32 %v5930, 60.0
    %v6187 = vmin.f32 %v5931, 60.0
    %v6188 = vmin.f32 %v5932, 60.0
    %v6189 = vmin.f32 %v5933, 60.0
    %v6190 = vmin.f32 %v5934, 60.0
    %v6191 = vmin.f32 %v5935, 60.0
    %v6192 = vmin.f32 %v5936, 60.0
    %v6193 = vmin.f32 %v5937, 60.0
    %v6194 = vmin.f32 %v5938, 60.0
    %v6195 = vmin.f32 %v5939, 60.0
    %v6196 = vmin.f32 %v5940, 60.0
    %v6197 = vmin.f32 %v5941, 60.0
    %v6198 = vmin.f32 %v5942, 60.0
    %v6199 = vmin.f32 %v5943, 60.0
    %v6200 = vmin.f32 %v5944, 60.0
    %v6201 = vmin.f32 %v5945, 60.0
    %v6202 = vmin.f32 %v5946, 60.0
    %v6203 = vmin.f32 %v5947, 60.0
    %v6204 = vmin.f32 %v5948, 60.0
    %v6205 = vmin.f32 %v5949, 60.0
    %v6206 = vmin.f32 %v5950, 60.0
    %v6207 = vmin.f32 %v5951, 60.0
    %v6208 = vmin.f32 %v5952, 60.0
    %v6209 = vmin.f32 %v5953, 60.0
    %v6210 = vmin.f32 %v5954, 60.0
    %v6211 = vmin.f32 %v5955, 60.0
    %v6212 = vmin.f32 %v5956, 60.0
    %v6213 = vmin.f32 %v5957, 60.0
    %v6214 = vmin.f32 %v5958, 60.0
    %v6215 = vmin.f32 %v5959, 60.0
    %v6216 = vmin.f32 %v5960, 60.0
    %v6217 = vmin.f32 %v5961, 60.0
    %v6218 = vmin.f32 %v5962, 60.0
    %v6219 = vmin.f32 %v5963, 60.0
    %v6220 = vmin.f32 %v5964, 60.0
    %v6221 = vmin.f32 %v5965, 60.0
    %v6222 = vmin.f32 %v5966, 60.0
    %v6223 = vmin.f32 %v5967, 60.0
    %v6224 = vmin.f32 %v5968, 60.0
    %v6225 = vmin.f32 %v5969, 60.0
    %v6226 = vmin.f32 %v5970, 60.0
    %v6227 = vmin.f32 %v5971, 60.0
    %v6228 = vmin.f32 %v5972, 60.0
    %v6229 = vmin.f32 %v5973, 60.0
    %v6230 = vmin.f32 %v5974, 60.0
    %v6231 = vmin.f32 %v5975, 60.0
    %v6232 = vmin.f32 %v5976, 60.0
    %v6233 = vmin.f32 %v5977, 60.0
    %v6234 = vmin.f32 %v5978, 60.0
    %v6235 = vmin.f32 %v5979, 60.0
    %v6236 = vmin.f32 %v5980, 60.0
    %v6237 = vmin.f32 %v5981, 60.0
    %v6238 = vmin.f32 %v5982, 60.0
    %v6239 = vmin.f32 %v5983, 60.0
    %v6240 = vmin.f32 %v5984, 60.0
    %v6241 = vmin.f32 %v5985, 60.0
    %v6242 = vmin.f32 %v5986, 60.0
    %v6243 = vmin.f32 %v5987, 60.0
    %v6244 = vmin.f32 %v5988, 60.0
    %v6245 = vmin.f32 %v5989, 60.0
    %v6246 = vmin.f32 %v5990, 60.0
    %v6247 = vmin.f32 %v5991, 60.0
    %v6248 = vmin.f32 %v5992, 60.0
    %v6249 = vmin.f32 %v5993, 60.0
    %v6250 = vmin.f32 %v5994, 60.0
    %v6251 = vmin.f32 %v5995, 60.0
    %v6252 = vmin.f32 %v5996, 60.0
    %v6253 = vmin.f32 %v5997, 60.0
    %v6254 = vmin.f32 %v5998, 60.0
    %v6255 = vmin.f32 %v5999, 60.0
    %v6256 = vmin.f32 %v6000, 60.0
    %v6257 = vmin.f32 %v6001, 60.0
    %v6258 = vmin.f32 %v6002, 60.0
    %v6259 = vmin.f32 %v6003, 60.0
    %v6260 = vmin.f32 %v6004, 60.0
    %v6261 = vmin.f32 %v6005, 60.0
    %v6262 = vmin.f32 %v6006, 60.0
    %v6263 = vmin.f32 %v6007, 60.0
    %v6264 = vmin.f32 %v6008, 60.0
    %v6265 = vmin.f32 %v6009, 60.0
    %v6266 = vmin.f32 %v6010, 60.0
    %v6267 = vmin.f32 %v6011, 60.0
    %v6268 = vmin.f32 %v6012, 60.0
    %v6269 = vmin.f32 %v6013, 60.0
    %v6270 = vmin.f32 %v6014, 60.0
    %v6271 = vmin.f32 %v6015, 60.0
    %v6272 = vmin.f32 %v6016, 60.0
    %v6273 = vmin.f32 %v6017, 60.0
    %v6274 = vmin.f32 %v6018, 60.0
    %v6275 = vmin.f32 %v6019, 60.0
    %v6276 = vmin.f32 %v6020, 60.0
    %v6277 = vmin.f32 %v6021, 60.0
    %v6278 = vmin.f32 %v6022, 60.0
    %v6279 = vmin.f32 %v6023, 60.0
    %v6280 = vmin.f32 %v6024, 60.0
    %v6281 = vmin.f32 %v6025, 60.0
    %v6282 = vmin.f32 %v6026, 60.0
    %v6283 = vmin.f32 %v6027, 60.0
    %v6284 = vmin.f32 %v6028, 60.0
    %v6285 = vmin.f32 %v6029, 60.0
    %v6286 = vmin.f32 %v6030, 60.0
    %v6287 = vmin.f32 %v6031, 60.0
    %v6288 = vmin.f32 %v6032, 60.0
    %v6289 = vmin.f32 %v6033, 60.0
    %v6290 = vmin.f32 %v6034, 60.0
    %v6291 = vmin.f32 %v6035, 60.0
    %v6292 = vmin.f32 %v6036, 60.0
    %v6293 = vmin.f32 %v6037, 60.0
    %v6294 = vmin.f32 %v6038, 60.0
    %v6295 = vmin.f32 %v6039, 60.0
    %v6296 = vmin.f32 %v6040, 60.0
    %v6297 = vmin.f32 %v6041, 60.0
    %v6298 = vmin.f32 %v6042, 60.0
    %v6299 = vmin.f32 %v6043, 60.0
    %v6300 = vmin.f32 %v6044, 60.0
    %v6301 = vmin.f32 %v6045, 60.0
    %v6302 = vmin.f32 %v6046, 60.0
    %v6303 = vmin.f32 %v6047, 60.0
    %v6304 = vmin.f32 %v6048, 60.0
    %v6305 = vmin.f32 %v6049, 60.0
    %v6306 = vmin.f32 %v6050, 60.0
    %v6307 = vsub.f32 0.0, %v6051
    %v6308 = vsub.f32 0.0, %v6052
    %v6309 = vsub.f32 0.0, %v6053
    %v6310 = vsub.f32 0.0, %v6054
    %v6311 = vsub.f32 0.0, %v6055
    %v6312 = vsub.f32 0.0, %v6056
    %v6313 = vsub.f32 0.0, %v6057
    %v6314 = vsub.f32 0.0, %v6058
    %v6315 = vsub.f32 0.0, %v6059
    %v6316 = vsub.f32 0.0, %v6060
    %v6317 = vsub.f32 0.0, %v6061
    %v6318 = vsub.f32 0.0, %v6062
    %v6319 = vsub.f32 0.0, %v6063
    %v6320 = vsub.f32 0.0, %v6064
    %v6321 = vsub.f32 0.0, %v6065
    %v6322 = vsub.f32 0.0, %v6066
    %v6323 = vsub.f32 0.0, %v6067
    %v6324 = vsub.f32 0.0, %v6068
    %v6325 = vsub.f32 0.0, %v6069
    %v6326 = vsub.f32 0.0, %v6070
    %v6327 = vsub.f32 0.0, %v6071
    %v6328 = vsub.f32 0.0, %v6072
    %v6329 = vsub.f32 0.0, %v6073
    %v6330 = vsub.f32 0.0, %v6074
    %v6331 = vsub.f32 0.0, %v6075
    %v6332 = vsub.f32 0.0, %v6076
    %v6333 = vsub.f32 0.0, %v6077
    %v6334 = vsub.f32 0.0, %v6078
    %v6335 = vsub.f32 0.0, %v6079
    %v6336 = vsub.f32 0.0, %v6080
    %v6337 = vsub.f32 0.0, %v6081
    %v6338 = vsub.f32 0.0, %v6082
    %v6339 = vsub.f32 0.0, %v6083
    %v6340 = vsub.f32 0.0, %v6084
    %v6341 = vsub.f32 0.0, %v6085
    %v6342 = vsub.f32 0.0, %v6086
    %v6343 = vsub.f32 0.0, %v6087
    %v6344 = vsub.f32 0.0, %v6088
    %v6345 = vsub.f32 0.0, %v6089
    %v6346 = vsub.f32 0.0, %v6090
    %v6347 = vsub.f32 0.0, %v6091
    %v6348 = vsub.f32 0.0, %v6092
    %v6349 = vsub.f32 0.0, %v6093
    %v6350 = vsub.f32 0.0, %v6094
    %v6351 = vsub.f32 0.0, %v6095
    %v6352 = vsub.f32 0.0, %v6096
    %v6353 = vsub.f32 0.0, %v6097
    %v6354 = vsub.f32 0.0, %v6098
    %v6355 = vsub.f32 0.0, %v6099
    %v6356 = vsub.f32 0.0, %v6100
    %v6357 = vsub.f32 0.0, %v6101
    %v6358 = vsub.f32 0.0, %v6102
    %v6359 = vsub.f32 0.0, %v6103
    %v6360 = vsub.f32 0.0, %v6104
    %v6361 = vsub.f32 0.0, %v6105
    %v6362 = vsub.f32 0.0, %v6106
    %v6363 = vsub.f32 0.0, %v6107
    %v6364 = vsub.f32 0.0, %v6108
    %v6365 = vsub.f32 0.0, %v6109
    %v6366 = vsub.f32 0.0, %v6110
    %v6367 = vsub.f32 0.0, %v6111
    %v6368 = vsub.f32 0.0, %v6112
    %v6369 = vsub.f32 0.0, %v6113
    %v6370 = vsub.f32 0.0, %v6114
    %v6371 = vsub.f32 0.0, %v6115
    %v6372 = vsub.f32 0.0, %v6116
    %v6373 = vsub.f32 0.0, %v6117
    %v6374 = vsub.f32 0.0, %v6118
    %v6375 = vsub.f32 0.0, %v6119
    %v6376 = vsub.f32 0.0, %v6120
    %v6377 = vsub.f32 0.0, %v6121
    %v6378 = vsub.f32 0.0, %v6122
    %v6379 = vsub.f32 0.0, %v6123
    %v6380 = vsub.f32 0.0, %v6124
    %v6381 = vsub.f32 0.0, %v6125
    %v6382 = vsub.f32 0.0, %v6126
    %v6383 = vsub.f32 0.0, %v6127
    %v6384 = vsub.f32 0.0, %v6128
    %v6385 = vsub.f32 0.0, %v6129
    %v6386 = vsub.f32 0.0, %v6130
    %v6387 = vsub.f32 0.0, %v6131
    %v6388 = vsub.f32 0.0, %v6132
    %v6389 = vsub.f32 0.0, %v6133
    %v6390 = vsub.f32 0.0, %v6134
    %v6391 = vsub.f32 0.0, %v6135
    %v6392 = vsub.f32 0.0, %v6136
    %v6393 = vsub.f32 0.0, %v6137
    %v6394 = vsub.f32 0.0, %v6138
    %v6395 = vsub.f32 0.0, %v6139
    %v6396 = vsub.f32 0.0, %v6140
    %v6397 = vsub.f32 0.0, %v6141
    %v6398 = vsub.f32 0.0, %v6142
    %v6399 = vsub.f32 0.0, %v6143
    %v6400 = vsub.f32 0.0, %v6144
    %v6401 = vsub.f32 0.0, %v6145
    %v6402 = vsub.f32 0.0, %v6146
    %v6403 = vsub.f32 0.0, %v6147
    %v6404 = vsub.f32 0.0, %v6148
    %v6405 = vsub.f32 0.0, %v6149
    %v6406 = vsub.f32 0.0, %v6150
    %v6407 = vsub.f32 0.0, %v6151
    %v6408 = vsub.f32 0.0, %v6152
    %v6409 = vsub.f32 0.0, %v6153
    %v6410 = vsub.f32 0.0, %v6154
    %v6411 = vsub.f32 0.0, %v6155
    %v6412 = vsub.f32 0.0, %v6156
    %v6413 = vsub.f32 0.0, %v6157
    %v6414 = vsub.f32 0.0, %v6158
    %v6415 = vsub.f32 0.0, %v6159
    %v6416 = vsub.f32 0.0, %v6160
    %v6417 = vsub.f32 0.0, %v6161
    %v6418 = vsub.f32 0.0, %v6162
    %v6419 = vsub.f32 0.0, %v6163
    %v6420 = vsub.f32 0.0, %v6164
    %v6421 = vsub.f32 0.0, %v6165
    %v6422 = vsub.f32 0.0, %v6166
    %v6423 = vsub.f32 0.0, %v6167
    %v6424 = vsub.f32 0.0, %v6168
    %v6425 = vsub.f32 0.0, %v6169
    %v6426 = vsub.f32 0.0, %v6170
    %v6427 = vsub.f32 0.0, %v6171
    %v6428 = vsub.f32 0.0, %v6172
    %v6429 = vsub.f32 0.0, %v6173
    %v6430 = vsub.f32 0.0, %v6174
    %v6431 = vsub.f32 0.0, %v6175
    %v6432 = vsub.f32 0.0, %v6176
    %v6433 = vsub.f32 0.0, %v6177
    %v6434 = vsub.f32 0.0, %v6178
    %v6435 = vsub.f32 0.0, %v6179
    %v6436 = vsub.f32 0.0, %v6180
    %v6437 = vsub.f32 0.0, %v6181
    %v6438 = vsub.f32 0.0, %v6182
    %v6439 = vsub.f32 0.0, %v6183
    %v6440 = vsub.f32 0.0, %v6184
    %v6441 = vsub.f32 0.0, %v6185
    %v6442 = vsub.f32 0.0, %v6186
    %v6443 = vsub.f32 0.0, %v6187
    %v6444 = vsub.f32 0.0, %v6188
    %v6445 = vsub.f32 0.0, %v6189
    %v6446 = vsub.f32 0.0, %v6190
    %v6447 = vsub.f32 0.0, %v6191
    %v6448 = vsub.f32 0.0, %v6192
    %v6449 = vsub.f32 0.0, %v6193
    %v6450 = vsub.f32 0.0, %v6194
    %v6451 = vsub.f32 0.0, %v6195
    %v6452 = vsub.f32 0.0, %v6196
    %v6453 = vsub.f32 0.0, %v6197
    %v6454 = vsub.f32 0.0, %v6198
    %v6455 = vsub.f32 0.0, %v6199
    %v6456 = vsub.f32 0.0, %v6200
    %v6457 = vsub.f32 0.0, %v6201
    %v6458 = vsub.f32 0.0, %v6202
    %v6459 = vsub.f32 0.0, %v6203
    %v6460 = vsub.f32 0.0, %v6204
    %v6461 = vsub.f32 0.0, %v6205
    %v6462 = vsub.f32 0.0, %v6206
    %v6463 = vsub.f32 0.0, %v6207
    %v6464 = vsub.f32 0.0, %v6208
    %v6465 = vsub.f32 0.0, %v6209
    %v6466 = vsub.f32 0.0, %v6210
    %v6467 = vsub.f32 0.0, %v6211
    %v6468 = vsub.f32 0.0, %v6212
    %v6469 = vsub.f32 0.0, %v6213
    %v6470 = vsub.f32 0.0, %v6214
    %v6471 = vsub.f32 0.0, %v6215
    %v6472 = vsub.f32 0.0, %v6216
    %v6473 = vsub.f32 0.0, %v6217
    %v6474 = vsub.f32 0.0, %v6218
    %v6475 = vsub.f32 0.0, %v6219
    %v6476 = vsub.f32 0.0, %v6220
    %v6477 = vsub.f32 0.0, %v6221
    %v6478 = vsub.f32 0.0, %v6222
    %v6479 = vsub.f32 0.0, %v6223
    %v6480 = vsub.f32 0.0, %v6224
    %v6481 = vsub.f32 0.0, %v6225
    %v6482 = vsub.f32 0.0, %v6226
    %v6483 = vsub.f32 0.0, %v6227
    %v6484 = vsub.f32 0.0, %v6228
    %v6485 = vsub.f32 0.0, %v6229
    %v6486 = vsub.f32 0.0, %v6230
    %v6487 = vsub.f32 0.0, %v6231
    %v6488 = vsub.f32 0.0, %v6232
    %v6489 = vsub.f32 0.0, %v6233
    %v6490 = vsub.f32 0.0, %v6234
    %v6491 = vsub.f32 0.0, %v6235
    %v6492 = vsub.f32 0.0, %v6236
    %v6493 = vsub.f32 0.0, %v6237
    %v6494 = vsub.f32 0.0, %v6238
    %v6495 = vsub.f32 0.0, %v6239
    %v6496 = vsub.f32 0.0, %v6240
    %v6497 = vsub.f32 0.0, %v6241
    %v6498 = vsub.f32 0.0, %v6242
    %v6499 = vsub.f32 0.0, %v6243
    %v6500 = vsub.f32 0.0, %v6244
    %v6501 = vsub.f32 0.0, %v6245
    %v6502 = vsub.f32 0.0, %v6246
    %v6503 = vsub.f32 0.0, %v6247
    %v6504 = vsub.f32 0.0, %v6248
    %v6505 = vsub.f32 0.0, %v6249
    %v6506 = vsub.f32 0.0, %v6250
    %v6507 = vsub.f32 0.0, %v6251
    %v6508 = vsub.f32 0.0, %v6252
    %v6509 = vsub.f32 0.0, %v6253
    %v6510 = vsub.f32 0.0, %v6254
    %v6511 = vsub.f32 0.0, %v6255
    %v6512 = vsub.f32 0.0, %v6256
    %v6513 = vsub.f32 0.0, %v6257
    %v6514 = vsub.f32 0.0, %v6258
    %v6515 = vsub.f32 0.0, %v6259
    %v6516 = vsub.f32 0.0, %v6260
    %v6517 = vsub.f32 0.0, %v6261
    %v6518 = vsub.f32 0.0, %v6262
    %v6519 = vsub.f32 0.0, %v6263
    %v6520 = vsub.f32 0.0, %v6264
    %v6521 = vsub.f32 0.0, %v6265
    %v6522 = vsub.f32 0.0, %v6266
    %v6523 = vsub.f32 0.0, %v6267
    %v6524 = vsub.f32 0.0, %v6268
    %v6525 = vsub.f32 0.0, %v6269
    %v6526 = vsub.f32 0.0, %v6270
    %v6527 = vsub.f32 0.0, %v6271
    %v6528 = vsub.f32 0.0, %v6272
    %v6529 = vsub.f32 0.0, %v6273
    %v6530 = vsub.f32 0.0, %v6274
    %v6531 = vsub.f32 0.0, %v6275
    %v6532 = vsub.f32 0.0, %v6276
    %v6533 = vsub.f32 0.0, %v6277
    %v6534 = vsub.f32 0.0, %v6278
    %v6535 = vsub.f32 0.0, %v6279
    %v6536 = vsub.f32 0.0, %v6280
    %v6537 = vsub.f32 0.0, %v6281
    %v6538 = vsub.f32 0.0, %v6282
    %v6539 = vsub.f32 0.0, %v6283
    %v6540 = vsub.f32 0.0, %v6284
    %v6541 = vsub.f32 0.0, %v6285
    %v6542 = vsub.f32 0.0, %v6286
    %v6543 = vsub.f32 0.0, %v6287
    %v6544 = vsub.f32 0.0, %v6288
    %v6545 = vsub.f32 0.0, %v6289
    %v6546 = vsub.f32 0.0, %v6290
    %v6547 = vsub.f32 0.0, %v6291
    %v6548 = vsub.f32 0.0, %v6292
    %v6549 = vsub.f32 0.0, %v6293
    %v6550 = vsub.f32 0.0, %v6294
    %v6551 = vsub.f32 0.0, %v6295
    %v6552 = vsub.f32 0.0, %v6296
    %v6553 = vsub.f32 0.0, %v6297
    %v6554 = vsub.f32 0.0, %v6298
    %v6555 = vsub.f32 0.0, %v6299
    %v6556 = vsub.f32 0.0, %v6300
    %v6557 = vsub.f32 0.0, %v6301
    %v6558 = vsub.f32 0.0, %v6302
    %v6559 = vsub.f32 0.0, %v6303
    %v6560 = vsub.f32 0.0, %v6304
    %v6561 = vsub.f32 0.0, %v6305
    %v6562 = vsub.f32 0.0, %v6306
    %v6563 = vmul.f32 %v6307, 1.442695
    %v6564 = vpow.pop %v6563
    %v6565 = vmul.f32 %v6308, 1.442695
    %v6566 = vpow.pop %v6565
    %v6567 = vmul.f32 %v6309, 1.442695
    %v6568 = vpow.pop %v6567
    %v6569 = vmul.f32 %v6310, 1.442695
    %v6570 = vpow.pop %v6569
    %v6571 = vmul.f32 %v6311, 1.442695
    %v6572 = vpow.pop %v6571
    %v6573 = vmul.f32 %v6312, 1.442695
    %v6574 = vpow.pop %v6573
    %v6575 = vmul.f32 %v6313, 1.442695
    %v6576 = vpow.pop %v6575
    %v6577 = vmul.f32 %v6314, 1.442695
    %v6578 = vpow.pop %v6577
    %v6579 = vmul.f32 %v6315, 1.442695
    %v6580 = vpow.pop %v6579
    %v6581 = vmul.f32 %v6316, 1.442695
    %v6582 = vpow.pop %v6581
    %v6583 = vmul.f32 %v6317, 1.442695
    %v6584 = vpow.pop %v6583
    %v6585 = vmul.f32 %v6318, 1.442695
    %v6586 = vpow.pop %v6585
    %v6587 = vmul.f32 %v6319, 1.442695
    %v6588 = vpow.pop %v6587
    %v6589 = vmul.f32 %v6320, 1.442695
    %v6590 = vpow.pop %v6589
    %v6591 = vmul.f32 %v6321, 1.442695
    %v6592 = vpow.pop %v6591
    %v6593 = vmul.f32 %v6322, 1.442695
    %v6594 = vpow.pop %v6593
    %v6595 = vmul.f32 %v6323, 1.442695
    %v6596 = vpow.pop %v6595
    %v6597 = vmul.f32 %v6324, 1.442695
    %v6598 = vpow.pop %v6597
    %v6599 = vmul.f32 %v6325, 1.442695
    %v6600 = vpow.pop %v6599
    %v6601 = vmul.f32 %v6326, 1.442695
    %v6602 = vpow.pop %v6601
    %v6603 = vmul.f32 %v6327, 1.442695
    %v6604 = vpow.pop %v6603
    %v6605 = vmul.f32 %v6328, 1.442695
    %v6606 = vpow.pop %v6605
    %v6607 = vmul.f32 %v6329, 1.442695
    %v6608 = vpow.pop %v6607
    %v6609 = vmul.f32 %v6330, 1.442695
    %v6610 = vpow.pop %v6609
    %v6611 = vmul.f32 %v6331, 1.442695
    %v6612 = vpow.pop %v6611
    %v6613 = vmul.f32 %v6332, 1.442695
    %v6614 = vpow.pop %v6613
    %v6615 = vmul.f32 %v6333, 1.442695
    %v6616 = vpow.pop %v6615
    %v6617 = vmul.f32 %v6334, 1.442695
    %v6618 = vpow.pop %v6617
    %v6619 = vmul.f32 %v6335, 1.442695
    %v6620 = vpow.pop %v6619
    %v6621 = vmul.f32 %v6336, 1.442695
    %v6622 = vpow.pop %v6621
    %v6623 = vmul.f32 %v6337, 1.442695
    %v6624 = vpow.pop %v6623
    %v6625 = vmul.f32 %v6338, 1.442695
    %v6626 = vpow.pop %v6625
    %v6627 = vmul.f32 %v6339, 1.442695
    %v6628 = vpow.pop %v6627
    %v6629 = vmul.f32 %v6340, 1.442695
    %v6630 = vpow.pop %v6629
    %v6631 = vmul.f32 %v6341, 1.442695
    %v6632 = vpow.pop %v6631
    %v6633 = vmul.f32 %v6342, 1.442695
    %v6634 = vpow.pop %v6633
    %v6635 = vmul.f32 %v6343, 1.442695
    %v6636 = vpow.pop %v6635
    %v6637 = vmul.f32 %v6344, 1.442695
    %v6638 = vpow.pop %v6637
    %v6639 = vmul.f32 %v6345, 1.442695
    %v6640 = vpow.pop %v6639
    %v6641 = vmul.f32 %v6346, 1.442695
    %v6642 = vpow.pop %v6641
    %v6643 = vmul.f32 %v6347, 1.442695
    %v6644 = vpow.pop %v6643
    %v6645 = vmul.f32 %v6348, 1.442695
    %v6646 = vpow.pop %v6645
    %v6647 = vmul.f32 %v6349, 1.442695
    %v6648 = vpow.pop %v6647
    %v6649 = vmul.f32 %v6350, 1.442695
    %v6650 = vpow.pop %v6649
    %v6651 = vmul.f32 %v6351, 1.442695
    %v6652 = vpow.pop %v6651
    %v6653 = vmul.f32 %v6352, 1.442695
    %v6654 = vpow.pop %v6653
    %v6655 = vmul.f32 %v6353, 1.442695
    %v6656 = vpow.pop %v6655
    %v6657 = vmul.f32 %v6354, 1.442695
    %v6658 = vpow.pop %v6657
    %v6659 = vmul.f32 %v6355, 1.442695
    %v6660 = vpow.pop %v6659
    %v6661 = vmul.f32 %v6356, 1.442695
    %v6662 = vpow.pop %v6661
    %v6663 = vmul.f32 %v6357, 1.442695
    %v6664 = vpow.pop %v6663
    %v6665 = vmul.f32 %v6358, 1.442695
    %v6666 = vpow.pop %v6665
    %v6667 = vmul.f32 %v6359, 1.442695
    %v6668 = vpow.pop %v6667
    %v6669 = vmul.f32 %v6360, 1.442695
    %v6670 = vpow.pop %v6669
    %v6671 = vmul.f32 %v6361, 1.442695
    %v6672 = vpow.pop %v6671
    %v6673 = vmul.f32 %v6362, 1.442695
    %v6674 = vpow.pop %v6673
    %v6675 = vmul.f32 %v6363, 1.442695
    %v6676 = vpow.pop %v6675
    %v6677 = vmul.f32 %v6364, 1.442695
    %v6678 = vpow.pop %v6677
    %v6679 = vmul.f32 %v6365, 1.442695
    %v6680 = vpow.pop %v6679
    %v6681 = vmul.f32 %v6366, 1.442695
    %v6682 = vpow.pop %v6681
    %v6683 = vmul.f32 %v6367, 1.442695
    %v6684 = vpow.pop %v6683
    %v6685 = vmul.f32 %v6368, 1.442695
    %v6686 = vpow.pop %v6685
    %v6687 = vmul.f32 %v6369, 1.442695
    %v6688 = vpow.pop %v6687
    %v6689 = vmul.f32 %v6370, 1.442695
    %v6690 = vpow.pop %v6689
    %v6691 = vmul.f32 %v6371, 1.442695
    %v6692 = vpow.pop %v6691
    %v6693 = vmul.f32 %v6372, 1.442695
    %v6694 = vpow.pop %v6693
    %v6695 = vmul.f32 %v6373, 1.442695
    %v6696 = vpow.pop %v6695
    %v6697 = vmul.f32 %v6374, 1.442695
    %v6698 = vpow.pop %v6697
    %v6699 = vmul.f32 %v6375, 1.442695
    %v6700 = vpow.pop %v6699
    %v6701 = vmul.f32 %v6376, 1.442695
    %v6702 = vpow.pop %v6701
    %v6703 = vmul.f32 %v6377, 1.442695
    %v6704 = vpow.pop %v6703
    %v6705 = vmul.f32 %v6378, 1.442695
    %v6706 = vpow.pop %v6705
    %v6707 = vmul.f32 %v6379, 1.442695
    %v6708 = vpow.pop %v6707
    %v6709 = vmul.f32 %v6380, 1.442695
    %v6710 = vpow.pop %v6709
    %v6711 = vmul.f32 %v6381, 1.442695
    %v6712 = vpow.pop %v6711
    %v6713 = vmul.f32 %v6382, 1.442695
    %v6714 = vpow.pop %v6713
    %v6715 = vmul.f32 %v6383, 1.442695
    %v6716 = vpow.pop %v6715
    %v6717 = vmul.f32 %v6384, 1.442695
    %v6718 = vpow.pop %v6717
    %v6719 = vmul.f32 %v6385, 1.442695
    %v6720 = vpow.pop %v6719
    %v6721 = vmul.f32 %v6386, 1.442695
    %v6722 = vpow.pop %v6721
    %v6723 = vmul.f32 %v6387, 1.442695
    %v6724 = vpow.pop %v6723
    %v6725 = vmul.f32 %v6388, 1.442695
    %v6726 = vpow.pop %v6725
    %v6727 = vmul.f32 %v6389, 1.442695
    %v6728 = vpow.pop %v6727
    %v6729 = vmul.f32 %v6390, 1.442695
    %v6730 = vpow.pop %v6729
    %v6731 = vmul.f32 %v6391, 1.442695
    %v6732 = vpow.pop %v6731
    %v6733 = vmul.f32 %v6392, 1.442695
    %v6734 = vpow.pop %v6733
    %v6735 = vmul.f32 %v6393, 1.442695
    %v6736 = vpow.pop %v6735
    %v6737 = vmul.f32 %v6394, 1.442695
    %v6738 = vpow.pop %v6737
    %v6739 = vmul.f32 %v6395, 1.442695
    %v6740 = vpow.pop %v6739
    %v6741 = vmul.f32 %v6396, 1.442695
    %v6742 = vpow.pop %v6741
    %v6743 = vmul.f32 %v6397, 1.442695
    %v6744 = vpow.pop %v6743
    %v6745 = vmul.f32 %v6398, 1.442695
    %v6746 = vpow.pop %v6745
    %v6747 = vmul.f32 %v6399, 1.442695
    %v6748 = vpow.pop %v6747
    %v6749 = vmul.f32 %v6400, 1.442695
    %v6750 = vpow.pop %v6749
    %v6751 = vmul.f32 %v6401, 1.442695
    %v6752 = vpow.pop %v6751
    %v6753 = vmul.f32 %v6402, 1.442695
    %v6754 = vpow.pop %v6753
    %v6755 = vmul.f32 %v6403, 1.442695
    %v6756 = vpow.pop %v6755
    %v6757 = vmul.f32 %v6404, 1.442695
    %v6758 = vpow.pop %v6757
    %v6759 = vmul.f32 %v6405, 1.442695
    %v6760 = vpow.pop %v6759
    %v6761 = vmul.f32 %v6406, 1.442695
    %v6762 = vpow.pop %v6761
    %v6763 = vmul.f32 %v6407, 1.442695
    %v6764 = vpow.pop %v6763
    %v6765 = vmul.f32 %v6408, 1.442695
    %v6766 = vpow.pop %v6765
    %v6767 = vmul.f32 %v6409, 1.442695
    %v6768 = vpow.pop %v6767
    %v6769 = vmul.f32 %v6410, 1.442695
    %v6770 = vpow.pop %v6769
    %v6771 = vmul.f32 %v6411, 1.442695
    %v6772 = vpow.pop %v6771
    %v6773 = vmul.f32 %v6412, 1.442695
    %v6774 = vpow.pop %v6773
    %v6775 = vmul.f32 %v6413, 1.442695
    %v6776 = vpow.pop %v6775
    %v6777 = vmul.f32 %v6414, 1.442695
    %v6778 = vpow.pop %v6777
    %v6779 = vmul.f32 %v6415, 1.442695
    %v6780 = vpow.pop %v6779
    %v6781 = vmul.f32 %v6416, 1.442695
    %v6782 = vpow.pop %v6781
    %v6783 = vmul.f32 %v6417, 1.442695
    %v6784 = vpow.pop %v6783
    %v6785 = vmul.f32 %v6418, 1.442695
    %v6786 = vpow.pop %v6785
    %v6787 = vmul.f32 %v6419, 1.442695
    %v6788 = vpow.pop %v6787
    %v6789 = vmul.f32 %v6420, 1.442695
    %v6790 = vpow.pop %v6789
    %v6791 = vmul.f32 %v6421, 1.442695
    %v6792 = vpow.pop %v6791
    %v6793 = vmul.f32 %v6422, 1.442695
    %v6794 = vpow.pop %v6793
    %v6795 = vmul.f32 %v6423, 1.442695
    %v6796 = vpow.pop %v6795
    %v6797 = vmul.f32 %v6424, 1.442695
    %v6798 = vpow.pop %v6797
    %v6799 = vmul.f32 %v6425, 1.442695
    %v6800 = vpow.pop %v6799
    %v6801 = vmul.f32 %v6426, 1.442695
    %v6802 = vpow.pop %v6801
    %v6803 = vmul.f32 %v6427, 1.442695
    %v6804 = vpow.pop %v6803
    %v6805 = vmul.f32 %v6428, 1.442695
    %v6806 = vpow.pop %v6805
    %v6807 = vmul.f32 %v6429, 1.442695
    %v6808 = vpow.pop %v6807
    %v6809 = vmul.f32 %v6430, 1.442695
    %v6810 = vpow.pop %v6809
    %v6811 = vmul.f32 %v6431, 1.442695
    %v6812 = vpow.pop %v6811
    %v6813 = vmul.f32 %v6432, 1.442695
    %v6814 = vpow.pop %v6813
    %v6815 = vmul.f32 %v6433, 1.442695
    %v6816 = vpow.pop %v6815
    %v6817 = vmul.f32 %v6434, 1.442695
    %v6818 = vpow.pop %v6817
    %v6819 = vmul.f32 %v6435, 1.442695
    %v6820 = vpow.pop %v6819
    %v6821 = vmul.f32 %v6436, 1.442695
    %v6822 = vpow.pop %v6821
    %v6823 = vmul.f32 %v6437, 1.442695
    %v6824 = vpow.pop %v6823
    %v6825 = vmul.f32 %v6438, 1.442695
    %v6826 = vpow.pop %v6825
    %v6827 = vmul.f32 %v6439, 1.442695
    %v6828 = vpow.pop %v6827
    %v6829 = vmul.f32 %v6440, 1.442695
    %v6830 = vpow.pop %v6829
    %v6831 = vmul.f32 %v6441, 1.442695
    %v6832 = vpow.pop %v6831
    %v6833 = vmul.f32 %v6442, 1.442695
    %v6834 = vpow.pop %v6833
    %v6835 = vmul.f32 %v6443, 1.442695
    %v6836 = vpow.pop %v6835
    %v6837 = vmul.f32 %v6444, 1.442695
    %v6838 = vpow.pop %v6837
    %v6839 = vmul.f32 %v6445, 1.442695
    %v6840 = vpow.pop %v6839
    %v6841 = vmul.f32 %v6446, 1.442695
    %v6842 = vpow.pop %v6841
    %v6843 = vmul.f32 %v6447, 1.442695
    %v6844 = vpow.pop %v6843
    %v6845 = vmul.f32 %v6448, 1.442695
    %v6846 = vpow.pop %v6845
    %v6847 = vmul.f32 %v6449, 1.442695
    %v6848 = vpow.pop %v6847
    %v6849 = vmul.f32 %v6450, 1.442695
    %v6850 = vpow.pop %v6849
    %v6851 = vmul.f32 %v6451, 1.442695
    %v6852 = vpow.pop %v6851
    %v6853 = vmul.f32 %v6452, 1.442695
    %v6854 = vpow.pop %v6853
    %v6855 = vmul.f32 %v6453, 1.442695
    %v6856 = vpow.pop %v6855
    %v6857 = vmul.f32 %v6454, 1.442695
    %v6858 = vpow.pop %v6857
    %v6859 = vmul.f32 %v6455, 1.442695
    %v6860 = vpow.pop %v6859
    %v6861 = vmul.f32 %v6456, 1.442695
    %v6862 = vpow.pop %v6861
    %v6863 = vmul.f32 %v6457, 1.442695
    %v6864 = vpow.pop %v6863
    %v6865 = vmul.f32 %v6458, 1.442695
    %v6866 = vpow.pop %v6865
    %v6867 = vmul.f32 %v6459, 1.442695
    %v6868 = vpow.pop %v6867
    %v6869 = vmul.f32 %v6460, 1.442695
    %v6870 = vpow.pop %v6869
    %v6871 = vmul.f32 %v6461, 1.442695
    %v6872 = vpow.pop %v6871
    %v6873 = vmul.f32 %v6462, 1.442695
    %v6874 = vpow.pop %v6873
    %v6875 = vmul.f32 %v6463, 1.442695
    %v6876 = vpow.pop %v6875
    %v6877 = vmul.f32 %v6464, 1.442695
    %v6878 = vpow.pop %v6877
    %v6879 = vmul.f32 %v6465, 1.442695
    %v6880 = vpow.pop %v6879
    %v6881 = vmul.f32 %v6466, 1.442695
    %v6882 = vpow.pop %v6881
    %v6883 = vmul.f32 %v6467, 1.442695
    %v6884 = vpow.pop %v6883
    %v6885 = vmul.f32 %v6468, 1.442695
    %v6886 = vpow.pop %v6885
    %v6887 = vmul.f32 %v6469, 1.442695
    %v6888 = vpow.pop %v6887
    %v6889 = vmul.f32 %v6470, 1.442695
    %v6890 = vpow.pop %v6889
    %v6891 = vmul.f32 %v6471, 1.442695
    %v6892 = vpow.pop %v6891
    %v6893 = vmul.f32 %v6472, 1.442695
    %v6894 = vpow.pop %v6893
    %v6895 = vmul.f32 %v6473, 1.442695
    %v6896 = vpow.pop %v6895
    %v6897 = vmul.f32 %v6474, 1.442695
    %v6898 = vpow.pop %v6897
    %v6899 = vmul.f32 %v6475, 1.442695
    %v6900 = vpow.pop %v6899
    %v6901 = vmul.f32 %v6476, 1.442695
    %v6902 = vpow.pop %v6901
    %v6903 = vmul.f32 %v6477, 1.442695
    %v6904 = vpow.pop %v6903
    %v6905 = vmul.f32 %v6478, 1.442695
    %v6906 = vpow.pop %v6905
    %v6907 = vmul.f32 %v6479, 1.442695
    %v6908 = vpow.pop %v6907
    %v6909 = vmul.f32 %v6480, 1.442695
    %v6910 = vpow.pop %v6909
    %v6911 = vmul.f32 %v6481, 1.442695
    %v6912 = vpow.pop %v6911
    %v6913 = vmul.f32 %v6482, 1.442695
    %v6914 = vpow.pop %v6913
    %v6915 = vmul.f32 %v6483, 1.442695
    %v6916 = vpow.pop %v6915
    %v6917 = vmul.f32 %v6484, 1.442695
    %v6918 = vpow.pop %v6917
    %v6919 = vmul.f32 %v6485, 1.442695
    %v6920 = vpow.pop %v6919
    %v6921 = vmul.f32 %v6486, 1.442695
    %v6922 = vpow.pop %v6921
    %v6923 = vmul.f32 %v6487, 1.442695
    %v6924 = vpow.pop %v6923
    %v6925 = vmul.f32 %v6488, 1.442695
    %v6926 = vpow.pop %v6925
    %v6927 = vmul.f32 %v6489, 1.442695
    %v6928 = vpow.pop %v6927
    %v6929 = vmul.f32 %v6490, 1.442695
    %v6930 = vpow.pop %v6929
    %v6931 = vmul.f32 %v6491, 1.442695
    %v6932 = vpow.pop %v6931
    %v6933 = vmul.f32 %v6492, 1.442695
    %v6934 = vpow.pop %v6933
    %v6935 = vmul.f32 %v6493, 1.442695
    %v6936 = vpow.pop %v6935
    %v6937 = vmul.f32 %v6494, 1.442695
    %v6938 = vpow.pop %v6937
    %v6939 = vmul.f32 %v6495, 1.442695
    %v6940 = vpow.pop %v6939
    %v6941 = vmul.f32 %v6496, 1.442695
    %v6942 = vpow.pop %v6941
    %v6943 = vmul.f32 %v6497, 1.442695
    %v6944 = vpow.pop %v6943
    %v6945 = vmul.f32 %v6498, 1.442695
    %v6946 = vpow.pop %v6945
    %v6947 = vmul.f32 %v6499, 1.442695
    %v6948 = vpow.pop %v6947
    %v6949 = vmul.f32 %v6500, 1.442695
    %v6950 = vpow.pop %v6949
    %v6951 = vmul.f32 %v6501, 1.442695
    %v6952 = vpow.pop %v6951
    %v6953 = vmul.f32 %v6502, 1.442695
    %v6954 = vpow.pop %v6953
    %v6955 = vmul.f32 %v6503, 1.442695
    %v6956 = vpow.pop %v6955
    %v6957 = vmul.f32 %v6504, 1.442695
    %v6958 = vpow.pop %v6957
    %v6959 = vmul.f32 %v6505, 1.442695
    %v6960 = vpow.pop %v6959
    %v6961 = vmul.f32 %v6506, 1.442695
    %v6962 = vpow.pop %v6961
    %v6963 = vmul.f32 %v6507, 1.442695
    %v6964 = vpow.pop %v6963
    %v6965 = vmul.f32 %v6508, 1.442695
    %v6966 = vpow.pop %v6965
    %v6967 = vmul.f32 %v6509, 1.442695
    %v6968 = vpow.pop %v6967
    %v6969 = vmul.f32 %v6510, 1.442695
    %v6970 = vpow.pop %v6969
    %v6971 = vmul.f32 %v6511, 1.442695
    %v6972 = vpow.pop %v6971
    %v6973 = vmul.f32 %v6512, 1.442695
    %v6974 = vpow.pop %v6973
    %v6975 = vmul.f32 %v6513, 1.442695
    %v6976 = vpow.pop %v6975
    %v6977 = vmul.f32 %v6514, 1.442695
    %v6978 = vpow.pop %v6977
    %v6979 = vmul.f32 %v6515, 1.442695
    %v6980 = vpow.pop %v6979
    %v6981 = vmul.f32 %v6516, 1.442695
    %v6982 = vpow.pop %v6981
    %v6983 = vmul.f32 %v6517, 1.442695
    %v6984 = vpow.pop %v6983
    %v6985 = vmul.f32 %v6518, 1.442695
    %v6986 = vpow.pop %v6985
    %v6987 = vmul.f32 %v6519, 1.442695
    %v6988 = vpow.pop %v6987
    %v6989 = vmul.f32 %v6520, 1.442695
    %v6990 = vpow.pop %v6989
    %v6991 = vmul.f32 %v6521, 1.442695
    %v6992 = vpow.pop %v6991
    %v6993 = vmul.f32 %v6522, 1.442695
    %v6994 = vpow.pop %v6993
    %v6995 = vmul.f32 %v6523, 1.442695
    %v6996 = vpow.pop %v6995
    %v6997 = vmul.f32 %v6524, 1.442695
    %v6998 = vpow.pop %v6997
    %v6999 = vmul.f32 %v6525, 1.442695
    %v7000 = vpow.pop %v6999
    %v7001 = vmul.f32 %v6526, 1.442695
    %v7002 = vpow.pop %v7001
    %v7003 = vmul.f32 %v6527, 1.442695
    %v7004 = vpow.pop %v7003
    %v7005 = vmul.f32 %v6528, 1.442695
    %v7006 = vpow.pop %v7005
    %v7007 = vmul.f32 %v6529, 1.442695
    %v7008 = vpow.pop %v7007
    %v7009 = vmul.f32 %v6530, 1.442695
    %v7010 = vpow.pop %v7009
    %v7011 = vmul.f32 %v6531, 1.442695
    %v7012 = vpow.pop %v7011
    %v7013 = vmul.f32 %v6532, 1.442695
    %v7014 = vpow.pop %v7013
    %v7015 = vmul.f32 %v6533, 1.442695
    %v7016 = vpow.pop %v7015
    %v7017 = vmul.f32 %v6534, 1.442695
    %v7018 = vpow.pop %v7017
    %v7019 = vmul.f32 %v6535, 1.442695
    %v7020 = vpow.pop %v7019
    %v7021 = vmul.f32 %v6536, 1.442695
    %v7022 = vpow.pop %v7021
    %v7023 = vmul.f32 %v6537, 1.442695
    %v7024 = vpow.pop %v7023
    %v7025 = vmul.f32 %v6538, 1.442695
    %v7026 = vpow.pop %v7025
    %v7027 = vmul.f32 %v6539, 1.442695
    %v7028 = vpow.pop %v7027
    %v7029 = vmul.f32 %v6540, 1.442695
    %v7030 = vpow.pop %v7029
    %v7031 = vmul.f32 %v6541, 1.442695
    %v7032 = vpow.pop %v7031
    %v7033 = vmul.f32 %v6542, 1.442695
    %v7034 = vpow.pop %v7033
    %v7035 = vmul.f32 %v6543, 1.442695
    %v7036 = vpow.pop %v7035
    %v7037 = vmul.f32 %v6544, 1.442695
    %v7038 = vpow.pop %v7037
    %v7039 = vmul.f32 %v6545, 1.442695
    %v7040 = vpow.pop %v7039
    %v7041 = vmul.f32 %v6546, 1.442695
    %v7042 = vpow.pop %v7041
    %v7043 = vmul.f32 %v6547, 1.442695
    %v7044 = vpow.pop %v7043
    %v7045 = vmul.f32 %v6548, 1.442695
    %v7046 = vpow.pop %v7045
    %v7047 = vmul.f32 %v6549, 1.442695
    %v7048 = vpow.pop %v7047
    %v7049 = vmul.f32 %v6550, 1.442695
    %v7050 = vpow.pop %v7049
    %v7051 = vmul.f32 %v6551, 1.442695
    %v7052 = vpow.pop %v7051
    %v7053 = vmul.f32 %v6552, 1.442695
    %v7054 = vpow.pop %v7053
    %v7055 = vmul.f32 %v6553, 1.442695
    %v7056 = vpow.pop %v7055
    %v7057 = vmul.f32 %v6554, 1.442695
    %v7058 = vpow.pop %v7057
    %v7059 = vmul.f32 %v6555, 1.442695
    %v7060 = vpow.pop %v7059
    %v7061 = vmul.f32 %v6556, 1.442695
    %v7062 = vpow.pop %v7061
    %v7063 = vmul.f32 %v6557, 1.442695
    %v7064 = vpow.pop %v7063
    %v7065 = vmul.f32 %v6558, 1.442695
    %v7066 = vpow.pop %v7065
    %v7067 = vmul.f32 %v6559, 1.442695
    %v7068 = vpow.pop %v7067
    %v7069 = vmul.f32 %v6560, 1.442695
    %v7070 = vpow.pop %v7069
    %v7071 = vmul.f32 %v6561, 1.442695
    %v7072 = vpow.pop %v7071
    %v7073 = vmul.f32 %v6562, 1.442695
    %v7074 = vpow.pop %v7073
    %v7075 = vadd.f32 %v6564, 1.0
    %v7076 = vadd.f32 %v6566, 1.0
    %v7077 = vadd.f32 %v6568, 1.0
    %v7078 = vadd.f32 %v6570, 1.0
    %v7079 = vadd.f32 %v6572, 1.0
    %v7080 = vadd.f32 %v6574, 1.0
    %v7081 = vadd.f32 %v6576, 1.0
    %v7082 = vadd.f32 %v6578, 1.0
    %v7083 = vadd.f32 %v6580, 1.0
    %v7084 = vadd.f32 %v6582, 1.0
    %v7085 = vadd.f32 %v6584, 1.0
    %v7086 = vadd.f32 %v6586, 1.0
    %v7087 = vadd.f32 %v6588, 1.0
    %v7088 = vadd.f32 %v6590, 1.0
    %v7089 = vadd.f32 %v6592, 1.0
    %v7090 = vadd.f32 %v6594, 1.0
    %v7091 = vadd.f32 %v6596, 1.0
    %v7092 = vadd.f32 %v6598, 1.0
    %v7093 = vadd.f32 %v6600, 1.0
    %v7094 = vadd.f32 %v6602, 1.0
    %v7095 = vadd.f32 %v6604, 1.0
    %v7096 = vadd.f32 %v6606, 1.0
    %v7097 = vadd.f32 %v6608, 1.0
    %v7098 = vadd.f32 %v6610, 1.0
    %v7099 = vadd.f32 %v6612, 1.0
    %v7100 = vadd.f32 %v6614, 1.0
    %v7101 = vadd.f32 %v6616, 1.0
    %v7102 = vadd.f32 %v6618, 1.0
    %v7103 = vadd.f32 %v6620, 1.0
    %v7104 = vadd.f32 %v6622, 1.0
    %v7105 = vadd.f32 %v6624, 1.0
    %v7106 = vadd.f32 %v6626, 1.0
    %v7107 = vadd.f32 %v6628, 1.0
    %v7108 = vadd.f32 %v6630, 1.0
    %v7109 = vadd.f32 %v6632, 1.0
    %v7110 = vadd.f32 %v6634, 1.0
    %v7111 = vadd.f32 %v6636, 1.0
    %v7112 = vadd.f32 %v6638, 1.0
    %v7113 = vadd.f32 %v6640, 1.0
    %v7114 = vadd.f32 %v6642, 1.0
    %v7115 = vadd.f32 %v6644, 1.0
    %v7116 = vadd.f32 %v6646, 1.0
    %v7117 = vadd.f32 %v6648, 1.0
    %v7118 = vadd.f32 %v6650, 1.0
    %v7119 = vadd.f32 %v6652, 1.0
    %v7120 = vadd.f32 %v6654, 1.0
    %v7121 = vadd.f32 %v6656, 1.0
    %v7122 = vadd.f32 %v6658, 1.0
    %v7123 = vadd.f32 %v6660, 1.0
    %v7124 = vadd.f32 %v6662, 1.0
    %v7125 = vadd.f32 %v6664, 1.0
    %v7126 = vadd.f32 %v6666, 1.0
    %v7127 = vadd.f32 %v6668, 1.0
    %v7128 = vadd.f32 %v6670, 1.0
    %v7129 = vadd.f32 %v6672, 1.0
    %v7130 = vadd.f32 %v6674, 1.0
    %v7131 = vadd.f32 %v6676, 1.0
    %v7132 = vadd.f32 %v6678, 1.0
    %v7133 = vadd.f32 %v6680, 1.0
    %v7134 = vadd.f32 %v6682, 1.0
    %v7135 = vadd.f32 %v6684, 1.0
    %v7136 = vadd.f32 %v6686, 1.0
    %v7137 = vadd.f32 %v6688, 1.0
    %v7138 = vadd.f32 %v6690, 1.0
    %v7139 = vadd.f32 %v6692, 1.0
    %v7140 = vadd.f32 %v6694, 1.0
    %v7141 = vadd.f32 %v6696, 1.0
    %v7142 = vadd.f32 %v6698, 1.0
    %v7143 = vadd.f32 %v6700, 1.0
    %v7144 = vadd.f32 %v6702, 1.0
    %v7145 = vadd.f32 %v6704, 1.0
    %v7146 = vadd.f32 %v6706, 1.0
    %v7147 = vadd.f32 %v6708, 1.0
    %v7148 = vadd.f32 %v6710, 1.0
    %v7149 = vadd.f32 %v6712, 1.0
    %v7150 = vadd.f32 %v6714, 1.0
    %v7151 = vadd.f32 %v6716, 1.0
    %v7152 = vadd.f32 %v6718, 1.0
    %v7153 = vadd.f32 %v6720, 1.0
    %v7154 = vadd.f32 %v6722, 1.0
    %v7155 = vadd.f32 %v6724, 1.0
    %v7156 = vadd.f32 %v6726, 1.0
    %v7157 = vadd.f32 %v6728, 1.0
    %v7158 = vadd.f32 %v6730, 1.0
    %v7159 = vadd.f32 %v6732, 1.0
    %v7160 = vadd.f32 %v6734, 1.0
    %v7161 = vadd.f32 %v6736, 1.0
    %v7162 = vadd.f32 %v6738, 1.0
    %v7163 = vadd.f32 %v6740, 1.0
    %v7164 = vadd.f32 %v6742, 1.0
    %v7165 = vadd.f32 %v6744, 1.0
    %v7166 = vadd.f32 %v6746, 1.0
    %v7167 = vadd.f32 %v6748, 1.0
    %v7168 = vadd.f32 %v6750, 1.0
    %v7169 = vadd.f32 %v6752, 1.0
    %v7170 = vadd.f32 %v6754, 1.0
    %v7171 = vadd.f32 %v6756, 1.0
    %v7172 = vadd.f32 %v6758, 1.0
    %v7173 = vadd.f32 %v6760, 1.0
    %v7174 = vadd.f32 %v6762, 1.0
    %v7175 = vadd.f32 %v6764, 1.0
    %v7176 = vadd.f32 %v6766, 1.0
    %v7177 = vadd.f32 %v6768, 1.0
    %v7178 = vadd.f32 %v6770, 1.0
    %v7179 = vadd.f32 %v6772, 1.0
    %v7180 = vadd.f32 %v6774, 1.0
    %v7181 = vadd.f32 %v6776, 1.0
    %v7182 = vadd.f32 %v6778, 1.0
    %v7183 = vadd.f32 %v6780, 1.0
    %v7184 = vadd.f32 %v6782, 1.0
    %v7185 = vadd.f32 %v6784, 1.0
    %v7186 = vadd.f32 %v6786, 1.0
    %v7187 = vadd.f32 %v6788, 1.0
    %v7188 = vadd.f32 %v6790, 1.0
    %v7189 = vadd.f32 %v6792, 1.0
    %v7190 = vadd.f32 %v6794, 1.0
    %v7191 = vadd.f32 %v6796, 1.0
    %v7192 = vadd.f32 %v6798, 1.0
    %v7193 = vadd.f32 %v6800, 1.0
    %v7194 = vadd.f32 %v6802, 1.0
    %v7195 = vadd.f32 %v6804, 1.0
    %v7196 = vadd.f32 %v6806, 1.0
    %v7197 = vadd.f32 %v6808, 1.0
    %v7198 = vadd.f32 %v6810, 1.0
    %v7199 = vadd.f32 %v6812, 1.0
    %v7200 = vadd.f32 %v6814, 1.0
    %v7201 = vadd.f32 %v6816, 1.0
    %v7202 = vadd.f32 %v6818, 1.0
    %v7203 = vadd.f32 %v6820, 1.0
    %v7204 = vadd.f32 %v6822, 1.0
    %v7205 = vadd.f32 %v6824, 1.0
    %v7206 = vadd.f32 %v6826, 1.0
    %v7207 = vadd.f32 %v6828, 1.0
    %v7208 = vadd.f32 %v6830, 1.0
    %v7209 = vadd.f32 %v6832, 1.0
    %v7210 = vadd.f32 %v6834, 1.0
    %v7211 = vadd.f32 %v6836, 1.0
    %v7212 = vadd.f32 %v6838, 1.0
    %v7213 = vadd.f32 %v6840, 1.0
    %v7214 = vadd.f32 %v6842, 1.0
    %v7215 = vadd.f32 %v6844, 1.0
    %v7216 = vadd.f32 %v6846, 1.0
    %v7217 = vadd.f32 %v6848, 1.0
    %v7218 = vadd.f32 %v6850, 1.0
    %v7219 = vadd.f32 %v6852, 1.0
    %v7220 = vadd.f32 %v6854, 1.0
    %v7221 = vadd.f32 %v6856, 1.0
    %v7222 = vadd.f32 %v6858, 1.0
    %v7223 = vadd.f32 %v6860, 1.0
    %v7224 = vadd.f32 %v6862, 1.0
    %v7225 = vadd.f32 %v6864, 1.0
    %v7226 = vadd.f32 %v6866, 1.0
    %v7227 = vadd.f32 %v6868, 1.0
    %v7228 = vadd.f32 %v6870, 1.0
    %v7229 = vadd.f32 %v6872, 1.0
    %v7230 = vadd.f32 %v6874, 1.0
    %v7231 = vadd.f32 %v6876, 1.0
    %v7232 = vadd.f32 %v6878, 1.0
    %v7233 = vadd.f32 %v6880, 1.0
    %v7234 = vadd.f32 %v6882, 1.0
    %v7235 = vadd.f32 %v6884, 1.0
    %v7236 = vadd.f32 %v6886, 1.0
    %v7237 = vadd.f32 %v6888, 1.0
    %v7238 = vadd.f32 %v6890, 1.0
    %v7239 = vadd.f32 %v6892, 1.0
    %v7240 = vadd.f32 %v6894, 1.0
    %v7241 = vadd.f32 %v6896, 1.0
    %v7242 = vadd.f32 %v6898, 1.0
    %v7243 = vadd.f32 %v6900, 1.0
    %v7244 = vadd.f32 %v6902, 1.0
    %v7245 = vadd.f32 %v6904, 1.0
    %v7246 = vadd.f32 %v6906, 1.0
    %v7247 = vadd.f32 %v6908, 1.0
    %v7248 = vadd.f32 %v6910, 1.0
    %v7249 = vadd.f32 %v6912, 1.0
    %v7250 = vadd.f32 %v6914, 1.0
    %v7251 = vadd.f32 %v6916, 1.0
    %v7252 = vadd.f32 %v6918, 1.0
    %v7253 = vadd.f32 %v6920, 1.0
    %v7254 = vadd.f32 %v6922, 1.0
    %v7255 = vadd.f32 %v6924, 1.0
    %v7256 = vadd.f32 %v6926, 1.0
    %v7257 = vadd.f32 %v6928, 1.0
    %v7258 = vadd.f32 %v6930, 1.0
    %v7259 = vadd.f32 %v6932, 1.0
    %v7260 = vadd.f32 %v6934, 1.0
    %v7261 = vadd.f32 %v6936, 1.0
    %v7262 = vadd.f32 %v6938, 1.0
    %v7263 = vadd.f32 %v6940, 1.0
    %v7264 = vadd.f32 %v6942, 1.0
    %v7265 = vadd.f32 %v6944, 1.0
    %v7266 = vadd.f32 %v6946, 1.0
    %v7267 = vadd.f32 %v6948, 1.0
    %v7268 = vadd.f32 %v6950, 1.0
    %v7269 = vadd.f32 %v6952, 1.0
    %v7270 = vadd.f32 %v6954, 1.0
    %v7271 = vadd.f32 %v6956, 1.0
    %v7272 = vadd.f32 %v6958, 1.0
    %v7273 = vadd.f32 %v6960, 1.0
    %v7274 = vadd.f32 %v6962, 1.0
    %v7275 = vadd.f32 %v6964, 1.0
    %v7276 = vadd.f32 %v6966, 1.0
    %v7277 = vadd.f32 %v6968, 1.0
    %v7278 = vadd.f32 %v6970, 1.0
    %v7279 = vadd.f32 %v6972, 1.0
    %v7280 = vadd.f32 %v6974, 1.0
    %v7281 = vadd.f32 %v6976, 1.0
    %v7282 = vadd.f32 %v6978, 1.0
    %v7283 = vadd.f32 %v6980, 1.0
    %v7284 = vadd.f32 %v6982, 1.0
    %v7285 = vadd.f32 %v6984, 1.0
    %v7286 = vadd.f32 %v6986, 1.0
    %v7287 = vadd.f32 %v6988, 1.0
    %v7288 = vadd.f32 %v6990, 1.0
    %v7289 = vadd.f32 %v6992, 1.0
    %v7290 = vadd.f32 %v6994, 1.0
    %v7291 = vadd.f32 %v6996, 1.0
    %v7292 = vadd.f32 %v6998, 1.0
    %v7293 = vadd.f32 %v7000, 1.0
    %v7294 = vadd.f32 %v7002, 1.0
    %v7295 = vadd.f32 %v7004, 1.0
    %v7296 = vadd.f32 %v7006, 1.0
    %v7297 = vadd.f32 %v7008, 1.0
    %v7298 = vadd.f32 %v7010, 1.0
    %v7299 = vadd.f32 %v7012, 1.0
    %v7300 = vadd.f32 %v7014, 1.0
    %v7301 = vadd.f32 %v7016, 1.0
    %v7302 = vadd.f32 %v7018, 1.0
    %v7303 = vadd.f32 %v7020, 1.0
    %v7304 = vadd.f32 %v7022, 1.0
    %v7305 = vadd.f32 %v7024, 1.0
    %v7306 = vadd.f32 %v7026, 1.0
    %v7307 = vadd.f32 %v7028, 1.0
    %v7308 = vadd.f32 %v7030, 1.0
    %v7309 = vadd.f32 %v7032, 1.0
    %v7310 = vadd.f32 %v7034, 1.0
    %v7311 = vadd.f32 %v7036, 1.0
    %v7312 = vadd.f32 %v7038, 1.0
    %v7313 = vadd.f32 %v7040, 1.0
    %v7314 = vadd.f32 %v7042, 1.0
    %v7315 = vadd.f32 %v7044, 1.0
    %v7316 = vadd.f32 %v7046, 1.0
    %v7317 = vadd.f32 %v7048, 1.0
    %v7318 = vadd.f32 %v7050, 1.0
    %v7319 = vadd.f32 %v7052, 1.0
    %v7320 = vadd.f32 %v7054, 1.0
    %v7321 = vadd.f32 %v7056, 1.0
    %v7322 = vadd.f32 %v7058, 1.0
    %v7323 = vadd.f32 %v7060, 1.0
    %v7324 = vadd.f32 %v7062, 1.0
    %v7325 = vadd.f32 %v7064, 1.0
    %v7326 = vadd.f32 %v7066, 1.0
    %v7327 = vadd.f32 %v7068, 1.0
    %v7328 = vadd.f32 %v7070, 1.0
    %v7329 = vadd.f32 %v7072, 1.0
    %v7330 = vadd.f32 %v7074, 1.0
    %v7331 = vrcp.pop %v7075
    %v7332 = vrcp.pop %v7076
    %v7333 = vrcp.pop %v7077
    %v7334 = vrcp.pop %v7078
    %v7335 = vrcp.pop %v7079
    %v7336 = vrcp.pop %v7080
    %v7337 = vrcp.pop %v7081
    %v7338 = vrcp.pop %v7082
    %v7339 = vrcp.pop %v7083
    %v7340 = vrcp.pop %v7084
    %v7341 = vrcp.pop %v7085
    %v7342 = vrcp.pop %v7086
    %v7343 = vrcp.pop %v7087
    %v7344 = vrcp.pop %v7088
    %v7345 = vrcp.pop %v7089
    %v7346 = vrcp.pop %v7090
    %v7347 = vrcp.pop %v7091
    %v7348 = vrcp.pop %v7092
    %v7349 = vrcp.pop %v7093
    %v7350 = vrcp.pop %v7094
    %v7351 = vrcp.pop %v7095
    %v7352 = vrcp.pop %v7096
    %v7353 = vrcp.pop %v7097
    %v7354 = vrcp.pop %v7098
    %v7355 = vrcp.pop %v7099
    %v7356 = vrcp.pop %v7100
    %v7357 = vrcp.pop %v7101
    %v7358 = vrcp.pop %v7102
    %v7359 = vrcp.pop %v7103
    %v7360 = vrcp.pop %v7104
    %v7361 = vrcp.pop %v7105
    %v7362 = vrcp.pop %v7106
    %v7363 = vrcp.pop %v7107
    %v7364 = vrcp.pop %v7108
    %v7365 = vrcp.pop %v7109
    %v7366 = vrcp.pop %v7110
    %v7367 = vrcp.pop %v7111
    %v7368 = vrcp.pop %v7112
    %v7369 = vrcp.pop %v7113
    %v7370 = vrcp.pop %v7114
    %v7371 = vrcp.pop %v7115
    %v7372 = vrcp.pop %v7116
    %v7373 = vrcp.pop %v7117
    %v7374 = vrcp.pop %v7118
    %v7375 = vrcp.pop %v7119
    %v7376 = vrcp.pop %v7120
    %v7377 = vrcp.pop %v7121
    %v7378 = vrcp.pop %v7122
    %v7379 = vrcp.pop %v7123
    %v7380 = vrcp.pop %v7124
    %v7381 = vrcp.pop %v7125
    %v7382 = vrcp.pop %v7126
    %v7383 = vrcp.pop %v7127
    %v7384 = vrcp.pop %v7128
    %v7385 = vrcp.pop %v7129
    %v7386 = vrcp.pop %v7130
    %v7387 = vrcp.pop %v7131
    %v7388 = vrcp.pop %v7132
    %v7389 = vrcp.pop %v7133
    %v7390 = vrcp.pop %v7134
    %v7391 = vrcp.pop %v7135
    %v7392 = vrcp.pop %v7136
    %v7393 = vrcp.pop %v7137
    %v7394 = vrcp.pop %v7138
    %v7395 = vrcp.pop %v7139
    %v7396 = vrcp.pop %v7140
    %v7397 = vrcp.pop %v7141
    %v7398 = vrcp.pop %v7142
    %v7399 = vrcp.pop %v7143
    %v7400 = vrcp.pop %v7144
    %v7401 = vrcp.pop %v7145
    %v7402 = vrcp.pop %v7146
    %v7403 = vrcp.pop %v7147
    %v7404 = vrcp.pop %v7148
    %v7405 = vrcp.pop %v7149
    %v7406 = vrcp.pop %v7150
    %v7407 = vrcp.pop %v7151
    %v7408 = vrcp.pop %v7152
    %v7409 = vrcp.pop %v7153
    %v7410 = vrcp.pop %v7154
    %v7411 = vrcp.pop %v7155
    %v7412 = vrcp.pop %v7156
    %v7413 = vrcp.pop %v7157
    %v7414 = vrcp.pop %v7158
    %v7415 = vrcp.pop %v7159
    %v7416 = vrcp.pop %v7160
    %v7417 = vrcp.pop %v7161
    %v7418 = vrcp.pop %v7162
    %v7419 = vrcp.pop %v7163
    %v7420 = vrcp.pop %v7164
    %v7421 = vrcp.pop %v7165
    %v7422 = vrcp.pop %v7166
    %v7423 = vrcp.pop %v7167
    %v7424 = vrcp.pop %v7168
    %v7425 = vrcp.pop %v7169
    %v7426 = vrcp.pop %v7170
    %v7427 = vrcp.pop %v7171
    %v7428 = vrcp.pop %v7172
    %v7429 = vrcp.pop %v7173
    %v7430 = vrcp.pop %v7174
    %v7431 = vrcp.pop %v7175
    %v7432 = vrcp.pop %v7176
    %v7433 = vrcp.pop %v7177
    %v7434 = vrcp.pop %v7178
    %v7435 = vrcp.pop %v7179
    %v7436 = vrcp.pop %v7180
    %v7437 = vrcp.pop %v7181
    %v7438 = vrcp.pop %v7182
    %v7439 = vrcp.pop %v7183
    %v7440 = vrcp.pop %v7184
    %v7441 = vrcp.pop %v7185
    %v7442 = vrcp.pop %v7186
    %v7443 = vrcp.pop %v7187
    %v7444 = vrcp.pop %v7188
    %v7445 = vrcp.pop %v7189
    %v7446 = vrcp.pop %v7190
    %v7447 = vrcp.pop %v7191
    %v7448 = vrcp.pop %v7192
    %v7449 = vrcp.pop %v7193
    %v7450 = vrcp.pop %v7194
    %v7451 = vrcp.pop %v7195
    %v7452 = vrcp.pop %v7196
    %v7453 = vrcp.pop %v7197
    %v7454 = vrcp.pop %v7198
    %v7455 = vrcp.pop %v7199
    %v7456 = vrcp.pop %v7200
    %v7457 = vrcp.pop %v7201
    %v7458 = vrcp.pop %v7202
    %v7459 = vrcp.pop %v7203
    %v7460 = vrcp.pop %v7204
    %v7461 = vrcp.pop %v7205
    %v7462 = vrcp.pop %v7206
    %v7463 = vrcp.pop %v7207
    %v7464 = vrcp.pop %v7208
    %v7465 = vrcp.pop %v7209
    %v7466 = vrcp.pop %v7210
    %v7467 = vrcp.pop %v7211
    %v7468 = vrcp.pop %v7212
    %v7469 = vrcp.pop %v7213
    %v7470 = vrcp.pop %v7214
    %v7471 = vrcp.pop %v7215
    %v7472 = vrcp.pop %v7216
    %v7473 = vrcp.pop %v7217
    %v7474 = vrcp.pop %v7218
    %v7475 = vrcp.pop %v7219
    %v7476 = vrcp.pop %v7220
    %v7477 = vrcp.pop %v7221
    %v7478 = vrcp.pop %v7222
    %v7479 = vrcp.pop %v7223
    %v7480 = vrcp.pop %v7224
    %v7481 = vrcp.pop %v7225
    %v7482 = vrcp.pop %v7226
    %v7483 = vrcp.pop %v7227
    %v7484 = vrcp.pop %v7228
    %v7485 = vrcp.pop %v7229
    %v7486 = vrcp.pop %v7230
    %v7487 = vrcp.pop %v7231
    %v7488 = vrcp.pop %v7232
    %v7489 = vrcp.pop %v7233
    %v7490 = vrcp.pop %v7234
    %v7491 = vrcp.pop %v7235
    %v7492 = vrcp.pop %v7236
    %v7493 = vrcp.pop %v7237
    %v7494 = vrcp.pop %v7238
    %v7495 = vrcp.pop %v7239
    %v7496 = vrcp.pop %v7240
    %v7497 = vrcp.pop %v7241
    %v7498 = vrcp.pop %v7242
    %v7499 = vrcp.pop %v7243
    %v7500 = vrcp.pop %v7244
    %v7501 = vrcp.pop %v7245
    %v7502 = vrcp.pop %v7246
    %v7503 = vrcp.pop %v7247
    %v7504 = vrcp.pop %v7248
    %v7505 = vrcp.pop %v7249
    %v7506 = vrcp.pop %v7250
    %v7507 = vrcp.pop %v7251
    %v7508 = vrcp.pop %v7252
    %v7509 = vrcp.pop %v7253
    %v7510 = vrcp.pop %v7254
    %v7511 = vrcp.pop %v7255
    %v7512 = vrcp.pop %v7256
    %v7513 = vrcp.pop %v7257
    %v7514 = vrcp.pop %v7258
    %v7515 = vrcp.pop %v7259
    %v7516 = vrcp.pop %v7260
    %v7517 = vrcp.pop %v7261
    %v7518 = vrcp.pop %v7262
    %v7519 = vrcp.pop %v7263
    %v7520 = vrcp.pop %v7264
    %v7521 = vrcp.pop %v7265
    %v7522 = vrcp.pop %v7266
    %v7523 = vrcp.pop %v7267
    %v7524 = vrcp.pop %v7268
    %v7525 = vrcp.pop %v7269
    %v7526 = vrcp.pop %v7270
    %v7527 = vrcp.pop %v7271
    %v7528 = vrcp.pop %v7272
    %v7529 = vrcp.pop %v7273
    %v7530 = vrcp.pop %v7274
    %v7531 = vrcp.pop %v7275
    %v7532 = vrcp.pop %v7276
    %v7533 = vrcp.pop %v7277
    %v7534 = vrcp.pop %v7278
    %v7535 = vrcp.pop %v7279
    %v7536 = vrcp.pop %v7280
    %v7537 = vrcp.pop %v7281
    %v7538 = vrcp.pop %v7282
    %v7539 = vrcp.pop %v7283
    %v7540 = vrcp.pop %v7284
    %v7541 = vrcp.pop %v7285
    %v7542 = vrcp.pop %v7286
    %v7543 = vrcp.pop %v7287
    %v7544 = vrcp.pop %v7288
    %v7545 = vrcp.pop %v7289
    %v7546 = vrcp.pop %v7290
    %v7547 = vrcp.pop %v7291
    %v7548 = vrcp.pop %v7292
    %v7549 = vrcp.pop %v7293
    %v7550 = vrcp.pop %v7294
    %v7551 = vrcp.pop %v7295
    %v7552 = vrcp.pop %v7296
    %v7553 = vrcp.pop %v7297
    %v7554 = vrcp.pop %v7298
    %v7555 = vrcp.pop %v7299
    %v7556 = vrcp.pop %v7300
    %v7557 = vrcp.pop %v7301
    %v7558 = vrcp.pop %v7302
    %v7559 = vrcp.pop %v7303
    %v7560 = vrcp.pop %v7304
    %v7561 = vrcp.pop %v7305
    %v7562 = vrcp.pop %v7306
    %v7563 = vrcp.pop %v7307
    %v7564 = vrcp.pop %v7308
    %v7565 = vrcp.pop %v7309
    %v7566 = vrcp.pop %v7310
    %v7567 = vrcp.pop %v7311
    %v7568 = vrcp.pop %v7312
    %v7569 = vrcp.pop %v7313
    %v7570 = vrcp.pop %v7314
    %v7571 = vrcp.pop %v7315
    %v7572 = vrcp.pop %v7316
    %v7573 = vrcp.pop %v7317
    %v7574 = vrcp.pop %v7318
    %v7575 = vrcp.pop %v7319
    %v7576 = vrcp.pop %v7320
    %v7577 = vrcp.pop %v7321
    %v7578 = vrcp.pop %v7322
    %v7579 = vrcp.pop %v7323
    %v7580 = vrcp.pop %v7324
    %v7581 = vrcp.pop %v7325
    %v7582 = vrcp.pop %v7326
    %v7583 = vrcp.pop %v7327
    %v7584 = vrcp.pop %v7328
    %v7585 = vrcp.pop %v7329
    %v7586 = vrcp.pop %v7330
    %7587 = vst [vmem:[#allocation4] sm:$0xff] %v7331
    %7588 = vst [vmem:[#allocation4 + $0x8] sm:$0xff] %v7332
    %7589 = vst [vmem:[#allocation4 + $0x10] sm:$0xff] %v7333
    %7590 = vst [vmem:[#allocation4 + $0x18] sm:$0xff] %v7334
    %7591 = vst [vmem:[#allocation4 + $0x20] sm:$0xff] %v7335
    %7592 = vst [vmem:[#allocation4 + $0x28] sm:$0xff] %v7336
    %7593 = vst [vmem:[#allocation4 + $0x30] sm:$0xff] %v7337
    %7594 = vst [vmem:[#allocation4 + $0x38] sm:$0xff] %v7338
    %7595 = vst [vmem:[#allocation4 + $0x40] sm:$0xff] %v7339
    %7596 = vst [vmem:[#allocation4 + $0x48] sm:$0xff] %v7340
    %7597 = vst [vmem:[#allocation4 + $0x50] sm:$0xff] %v7341
    %7598 = vst [vmem:[#allocation4 + $0x58] sm:$0xff] %v7342
    %7599 = vst [vmem:[#allocation4 + $0x60] sm:$0xff] %v7343
    %7600 = vst [vmem:[#allocation4 + $0x68] sm:$0xff] %v7344
    %7601 = vst [vmem:[#allocation4 + $0x70] sm:$0xff] %v7345
    %7602 = vst [vmem:[#allocation4 + $0x78] sm:$0xff] %v7346
    %7603 = vst [vmem:[#allocation4 + $0x80] sm:$0xff] %v7347
    %7604 = vst [vmem:[#allocation4 + $0x88] sm:$0xff] %v7348
    %7605 = vst [vmem:[#allocation4 + $0x90] sm:$0xff] %v7349
    %7606 = vst [vmem:[#allocation4 + $0x98] sm:$0xff] %v7350
    %7607 = vst [vmem:[#allocation4 + $0xa0] sm:$0xff] %v7351
    %7608 = vst [vmem:[#allocation4 + $0xa8] sm:$0xff] %v7352
    %7609 = vst [vmem:[#allocation4 + $0xb0] sm:$0xff] %v7353
    %7610 = vst [vmem:[#allocation4 + $0xb8] sm:$0xff] %v7354
    %7611 = vst [vmem:[#allocation4 + $0xc0] sm:$0xff] %v7355
    %7612 = vst [vmem:[#allocation4 + $0xc8] sm:$0xff] %v7356
    %7613 = vst [vmem:[#allocation4 + $0xd0] sm:$0xff] %v7357
    %7614 = vst [vmem:[#allocation4 + $0xd8] sm:$0xff] %v7358
    %7615 = vst [vmem:[#allocation4 + $0xe0] sm:$0xff] %v7359
    %7616 = vst [vmem:[#allocation4 + $0xe8] sm:$0xff] %v7360
    %7617 = vst [vmem:[#allocation4 + $0xf0] sm:$0xff] %v7361
    %7618 = vst [vmem:[#allocation4 + $0xf8] sm:$0xff] %v7362
    %7619 = vst [vmem:[#allocation4 + $0x100] sm:$0xff] %v7363
    %7620 = vst [vmem:[#allocation4 + $0x108] sm:$0xff] %v7364
    %7621 = vst [vmem:[#allocation4 + $0x110] sm:$0xff] %v7365
    %7622 = vst [vmem:[#allocation4 + $0x118] sm:$0xff] %v7366
    %7623 = vst [vmem:[#allocation4 + $0x120] sm:$0xff] %v7367
    %7624 = vst [vmem:[#allocation4 + $0x128] sm:$0xff] %v7368
    %7625 = vst [vmem:[#allocation4 + $0x130] sm:$0xff] %v7369
    %7626 = vst [vmem:[#allocation4 + $0x138] sm:$0xff] %v7370
    %7627 = vst [vmem:[#allocation4 + $0x140] sm:$0xff] %v7371
    %7628 = vst [vmem:[#allocation4 + $0x148] sm:$0xff] %v7372
    %7629 = vst [vmem:[#allocation4 + $0x150] sm:$0xff] %v7373
    %7630 = vst [vmem:[#allocation4 + $0x158] sm:$0xff] %v7374
    %7631 = vst [vmem:[#allocation4 + $0x160] sm:$0xff] %v7375
    %7632 = vst [vmem:[#allocation4 + $0x168] sm:$0xff] %v7376
    %7633 = vst [vmem:[#allocation4 + $0x170] sm:$0xff] %v7377
    %7634 = vst [vmem:[#allocation4 + $0x178] sm:$0xff] %v7378
    %7635 = vst [vmem:[#allocation4 + $0x180] sm:$0xff] %v7379
    %7636 = vst [vmem:[#allocation4 + $0x188] sm:$0xff] %v7380
    %7637 = vst [vmem:[#allocation4 + $0x190] sm:$0xff] %v7381
    %7638 = vst [vmem:[#allocation4 + $0x198] sm:$0xff] %v7382
    %7639 = vst [vmem:[#allocation4 + $0x1a0] sm:$0xff] %v7383
    %7640 = vst [vmem:[#allocation4 + $0x1a8] sm:$0xff] %v7384
    %7641 = vst [vmem:[#allocation4 + $0x1b0] sm:$0xff] %v7385
    %7642 = vst [vmem:[#allocation4 + $0x1b8] sm:$0xff] %v7386
    %7643 = vst [vmem:[#allocation4 + $0x1c0] sm:$0xff] %v7387
    %7644 = vst [vmem:[#allocation4 + $0x1c8] sm:$0xff] %v7388
    %7645 = vst [vmem:[#allocation4 + $0x1d0] sm:$0xff] %v7389
    %7646 = vst [vmem:[#allocation4 + $0x1d8] sm:$0xff] %v7390
    %7647 = vst [vmem:[#allocation4 + $0x1e0] sm:$0xff] %v7391
    %7648 = vst [vmem:[#allocation4 + $0x1e8] sm:$0xff] %v7392
    %7649 = vst [vmem:[#allocation4 + $0x1f0] sm:$0xff] %v7393
    %7650 = vst [vmem:[#allocation4 + $0x1f8] sm:$0xff] %v7394
    %7651 = vst [vmem:[#allocation4 + $0x200] sm:$0xff] %v7395
    %7652 = vst [vmem:[#allocation4 + $0x208] sm:$0xff] %v7396
    %7653 = vst [vmem:[#allocation4 + $0x210] sm:$0xff] %v7397
    %7654 = vst [vmem:[#allocation4 + $0x218] sm:$0xff] %v7398
    %7655 = vst [vmem:[#allocation4 + $0x220] sm:$0xff] %v7399
    %7656 = vst [vmem:[#allocation4 + $0x228] sm:$0xff] %v7400
    %7657 = vst [vmem:[#allocation4 + $0x230] sm:$0xff] %v7401
    %7658 = vst [vmem:[#allocation4 + $0x238] sm:$0xff] %v7402
    %7659 = vst [vmem:[#allocation4 + $0x240] sm:$0xff] %v7403
    %7660 = vst [vmem:[#allocation4 + $0x248] sm:$0xff] %v7404
    %7661 = vst [vmem:[#allocation4 + $0x250] sm:$0xff] %v7405
    %7662 = vst [vmem:[#allocation4 + $0x258] sm:$0xff] %v7406
    %7663 = vst [vmem:[#allocation4 + $0x260] sm:$0xff] %v7407
    %7664 = vst [vmem:[#allocation4 + $0x268] sm:$0xff] %v7408
    %7665 = vst [vmem:[#allocation4 + $0x270] sm:$0xff] %v7409
    %7666 = vst [vmem:[#allocation4 + $0x278] sm:$0xff] %v7410
    %7667 = vst [vmem:[#allocation4 + $0x280] sm:$0xff] %v7411
    %7668 = vst [vmem:[#allocation4 + $0x288] sm:$0xff] %v7412
    %7669 = vst [vmem:[#allocation4 + $0x290] sm:$0xff] %v7413
    %7670 = vst [vmem:[#allocation4 + $0x298] sm:$0xff] %v7414
    %7671 = vst [vmem:[#allocation4 + $0x2a0] sm:$0xff] %v7415
    %7672 = vst [vmem:[#allocation4 + $0x2a8] sm:$0xff] %v7416
    %7673 = vst [vmem:[#allocation4 + $0x2b0] sm:$0xff] %v7417
    %7674 = vst [vmem:[#allocation4 + $0x2b8] sm:$0xff] %v7418
    %7675 = vst [vmem:[#allocation4 + $0x2c0] sm:$0xff] %v7419
    %7676 = vst [vmem:[#allocation4 + $0x2c8] sm:$0xff] %v7420
    %7677 = vst [vmem:[#allocation4 + $0x2d0] sm:$0xff] %v7421
    %7678 = vst [vmem:[#allocation4 + $0x2d8] sm:$0xff] %v7422
    %7679 = vst [vmem:[#allocation4 + $0x2e0] sm:$0xff] %v7423
    %7680 = vst [vmem:[#allocation4 + $0x2e8] sm:$0xff] %v7424
    %7681 = vst [vmem:[#allocation4 + $0x2f0] sm:$0xff] %v7425
    %7682 = vst [vmem:[#allocation4 + $0x2f8] sm:$0xff] %v7426
    %7683 = vst [vmem:[#allocation4 + $0x300] sm:$0xff] %v7427
    %7684 = vst [vmem:[#allocation4 + $0x308] sm:$0xff] %v7428
    %7685 = vst [vmem:[#allocation4 + $0x310] sm:$0xff] %v7429
    %7686 = vst [vmem:[#allocation4 + $0x318] sm:$0xff] %v7430
    %7687 = vst [vmem:[#allocation4 + $0x320] sm:$0xff] %v7431
    %7688 = vst [vmem:[#allocation4 + $0x328] sm:$0xff] %v7432
    %7689 = vst [vmem:[#allocation4 + $0x330] sm:$0xff] %v7433
    %7690 = vst [vmem:[#allocation4 + $0x338] sm:$0xff] %v7434
    %7691 = vst [vmem:[#allocation4 + $0x340] sm:$0xff] %v7435
    %7692 = vst [vmem:[#allocation4 + $0x348] sm:$0xff] %v7436
    %7693 = vst [vmem:[#allocation4 + $0x350] sm:$0xff] %v7437
    %7694 = vst [vmem:[#allocation4 + $0x358] sm:$0xff] %v7438
    %7695 = vst [vmem:[#allocation4 + $0x360] sm:$0xff] %v7439
    %7696 = vst [vmem:[#allocation4 + $0x368] sm:$0xff] %v7440
    %7697 = vst [vmem:[#allocation4 + $0x370] sm:$0xff] %v7441
    %7698 = vst [vmem:[#allocation4 + $0x378] sm:$0xff] %v7442
    %7699 = vst [vmem:[#allocation4 + $0x380] sm:$0xff] %v7443
    %7700 = vst [vmem:[#allocation4 + $0x388] sm:$0xff] %v7444
    %7701 = vst [vmem:[#allocation4 + $0x390] sm:$0xff] %v7445
    %7702 = vst [vmem:[#allocation4 + $0x398] sm:$0xff] %v7446
    %7703 = vst [vmem:[#allocation4 + $0x3a0] sm:$0xff] %v7447
    %7704 = vst [vmem:[#allocation4 + $0x3a8] sm:$0xff] %v7448
    %7705 = vst [vmem:[#allocation4 + $0x3b0] sm:$0xff] %v7449
    %7706 = vst [vmem:[#allocation4 + $0x3b8] sm:$0xff] %v7450
    %7707 = vst [vmem:[#allocation4 + $0x3c0] sm:$0xff] %v7451
    %7708 = vst [vmem:[#allocation4 + $0x3c8] sm:$0xff] %v7452
    %7709 = vst [vmem:[#allocation4 + $0x3d0] sm:$0xff] %v7453
    %7710 = vst [vmem:[#allocation4 + $0x3d8] sm:$0xff] %v7454
    %7711 = vst [vmem:[#allocation4 + $0x3e0] sm:$0xff] %v7455
    %7712 = vst [vmem:[#allocation4 + $0x3e8] sm:$0xff] %v7456
    %7713 = vst [vmem:[#allocation4 + $0x3f0] sm:$0xff] %v7457
    %7714 = vst [vmem:[#allocation4 + $0x3f8] sm:$0xff] %v7458
    %7715 = vst [vmem:[#allocation4 + $0x400] sm:$0xff] %v7459
    %7716 = vst [vmem:[#allocation4 + $0x408] sm:$0xff] %v7460
    %7717 = vst [vmem:[#allocation4 + $0x410] sm:$0xff] %v7461
    %7718 = vst [vmem:[#allocation4 + $0x418] sm:$0xff] %v7462
    %7719 = vst [vmem:[#allocation4 + $0x420] sm:$0xff] %v7463
    %7720 = vst [vmem:[#allocation4 + $0x428] sm:$0xff] %v7464
    %7721 = vst [vmem:[#allocation4 + $0x430] sm:$0xff] %v7465
    %7722 = vst [vmem:[#allocation4 + $0x438] sm:$0xff] %v7466
    %7723 = vst [vmem:[#allocation4 + $0x440] sm:$0xff] %v7467
    %7724 = vst [vmem:[#allocation4 + $0x448] sm:$0xff] %v7468
    %7725 = vst [vmem:[#allocation4 + $0x450] sm:$0xff] %v7469
    %7726 = vst [vmem:[#allocation4 + $0x458] sm:$0xff] %v7470
    %7727 = vst [vmem:[#allocation4 + $0x460] sm:$0xff] %v7471
    %7728 = vst [vmem:[#allocation4 + $0x468] sm:$0xff] %v7472
    %7729 = vst [vmem:[#allocation4 + $0x470] sm:$0xff] %v7473
    %7730 = vst [vmem:[#allocation4 + $0x478] sm:$0xff] %v7474
    %7731 = vst [vmem:[#allocation4 + $0x480] sm:$0xff] %v7475
    %7732 = vst [vmem:[#allocation4 + $0x488] sm:$0xff] %v7476
    %7733 = vst [vmem:[#allocation4 + $0x490] sm:$0xff] %v7477
    %7734 = vst [vmem:[#allocation4 + $0x498] sm:$0xff] %v7478
    %7735 = vst [vmem:[#allocation4 + $0x4a0] sm:$0xff] %v7479
    %7736 = vst [vmem:[#allocation4 + $0x4a8] sm:$0xff] %v7480
    %7737 = vst [vmem:[#allocation4 + $0x4b0] sm:$0xff] %v7481
    %7738 = vst [vmem:[#allocation4 + $0x4b8] sm:$0xff] %v7482
    %7739 = vst [vmem:[#allocation4 + $0x4c0] sm:$0xff] %v7483
    %7740 = vst [vmem:[#allocation4 + $0x4c8] sm:$0xff] %v7484
    %7741 = vst [vmem:[#allocation4 + $0x4d0] sm:$0xff] %v7485
    %7742 = vst [vmem:[#allocation4 + $0x4d8] sm:$0xff] %v7486
    %7743 = vst [vmem:[#allocation4 + $0x4e0] sm:$0xff] %v7487
    %7744 = vst [vmem:[#allocation4 + $0x4e8] sm:$0xff] %v7488
    %7745 = vst [vmem:[#allocation4 + $0x4f0] sm:$0xff] %v7489
    %7746 = vst [vmem:[#allocation4 + $0x4f8] sm:$0xff] %v7490
    %7747 = vst [vmem:[#allocation4 + $0x500] sm:$0xff] %v7491
    %7748 = vst [vmem:[#allocation4 + $0x508] sm:$0xff] %v7492
    %7749 = vst [vmem:[#allocation4 + $0x510] sm:$0xff] %v7493
    %7750 = vst [vmem:[#allocation4 + $0x518] sm:$0xff] %v7494
    %7751 = vst [vmem:[#allocation4 + $0x520] sm:$0xff] %v7495
    %7752 = vst [vmem:[#allocation4 + $0x528] sm:$0xff] %v7496
    %7753 = vst [vmem:[#allocation4 + $0x530] sm:$0xff] %v7497
    %7754 = vst [vmem:[#allocation4 + $0x538] sm:$0xff] %v7498
    %7755 = vst [vmem:[#allocation4 + $0x540] sm:$0xff] %v7499
    %7756 = vst [vmem:[#allocation4 + $0x548] sm:$0xff] %v7500
    %7757 = vst [vmem:[#allocation4 + $0x550] sm:$0xff] %v7501
    %7758 = vst [vmem:[#allocation4 + $0x558] sm:$0xff] %v7502
    %7759 = vst [vmem:[#allocation4 + $0x560] sm:$0xff] %v7503
    %7760 = vst [vmem:[#allocation4 + $0x568] sm:$0xff] %v7504
    %7761 = vst [vmem:[#allocation4 + $0x570] sm:$0xff] %v7505
    %7762 = vst [vmem:[#allocation4 + $0x578] sm:$0xff] %v7506
    %7763 = vst [vmem:[#allocation4 + $0x580] sm:$0xff] %v7507
    %7764 = vst [vmem:[#allocation4 + $0x588] sm:$0xff] %v7508
    %7765 = vst [vmem:[#allocation4 + $0x590] sm:$0xff] %v7509
    %7766 = vst [vmem:[#allocation4 + $0x598] sm:$0xff] %v7510
    %7767 = vst [vmem:[#allocation4 + $0x5a0] sm:$0xff] %v7511
    %7768 = vst [vmem:[#allocation4 + $0x5a8] sm:$0xff] %v7512
    %7769 = vst [vmem:[#allocation4 + $0x5b0] sm:$0xff] %v7513
    %7770 = vst [vmem:[#allocation4 + $0x5b8] sm:$0xff] %v7514
    %7771 = vst [vmem:[#allocation4 + $0x5c0] sm:$0xff] %v7515
    %7772 = vst [vmem:[#allocation4 + $0x5c8] sm:$0xff] %v7516
    %7773 = vst [vmem:[#allocation4 + $0x5d0] sm:$0xff] %v7517
    %7774 = vst [vmem:[#allocation4 + $0x5d8] sm:$0xff] %v7518
    %7775 = vst [vmem:[#allocation4 + $0x5e0] sm:$0xff] %v7519
    %7776 = vst [vmem:[#allocation4 + $0x5e8] sm:$0xff] %v7520
    %7777 = vst [vmem:[#allocation4 + $0x5f0] sm:$0xff] %v7521
    %7778 = vst [vmem:[#allocation4 + $0x5f8] sm:$0xff] %v7522
    %7779 = vst [vmem:[#allocation4 + $0x600] sm:$0xff] %v7523
    %7780 = vst [vmem:[#allocation4 + $0x608] sm:$0xff] %v7524
    %7781 = vst [vmem:[#allocation4 + $0x610] sm:$0xff] %v7525
    %7782 = vst [vmem:[#allocation4 + $0x618] sm:$0xff] %v7526
    %7783 = vst [vmem:[#allocation4 + $0x620] sm:$0xff] %v7527
    %7784 = vst [vmem:[#allocation4 + $0x628] sm:$0xff] %v7528
    %7785 = vst [vmem:[#allocation4 + $0x630] sm:$0xff] %v7529
    %7786 = vst [vmem:[#allocation4 + $0x638] sm:$0xff] %v7530
    %7787 = vst [vmem:[#allocation4 + $0x640] sm:$0xff] %v7531
    %7788 = vst [vmem:[#allocation4 + $0x648] sm:$0xff] %v7532
    %7789 = vst [vmem:[#allocation4 + $0x650] sm:$0xff] %v7533
    %7790 = vst [vmem:[#allocation4 + $0x658] sm:$0xff] %v7534
    %7791 = vst [vmem:[#allocation4 + $0x660] sm:$0xff] %v7535
    %7792 = vst [vmem:[#allocation4 + $0x668] sm:$0xff] %v7536
    %7793 = vst [vmem:[#allocation4 + $0x670] sm:$0xff] %v7537
    %7794 = vst [vmem:[#allocation4 + $0x678] sm:$0xff] %v7538
    %7795 = vst [vmem:[#allocation4 + $0x680] sm:$0xff] %v7539
    %7796 = vst [vmem:[#allocation4 + $0x688] sm:$0xff] %v7540
    %7797 = vst [vmem:[#allocation4 + $0x690] sm:$0xff] %v7541
    %7798 = vst [vmem:[#allocation4 + $0x698] sm:$0xff] %v7542
    %7799 = vst [vmem:[#allocation4 + $0x6a0] sm:$0xff] %v7543
    %7800 = vst [vmem:[#allocation4 + $0x6a8] sm:$0xff] %v7544
    %7801 = vst [vmem:[#allocation4 + $0x6b0] sm:$0xff] %v7545
    %7802 = vst [vmem:[#allocation4 + $0x6b8] sm:$0xff] %v7546
    %7803 = vst [vmem:[#allocation4 + $0x6c0] sm:$0xff] %v7547
    %7804 = vst [vmem:[#allocation4 + $0x6c8] sm:$0xff] %v7548
    %7805 = vst [vmem:[#allocation4 + $0x6d0] sm:$0xff] %v7549
    %7806 = vst [vmem:[#allocation4 + $0x6d8] sm:$0xff] %v7550
    %7807 = vst [vmem:[#allocation4 + $0x6e0] sm:$0xff] %v7551
    %7808 = vst [vmem:[#allocation4 + $0x6e8] sm:$0xff] %v7552
    %7809 = vst [vmem:[#allocation4 + $0x6f0] sm:$0xff] %v7553
    %7810 = vst [vmem:[#allocation4 + $0x6f8] sm:$0xff] %v7554
    %7811 = vst [vmem:[#allocation4 + $0x700] sm:$0xff] %v7555
    %7812 = vst [vmem:[#allocation4 + $0x708] sm:$0xff] %v7556
    %7813 = vst [vmem:[#allocation4 + $0x710] sm:$0xff] %v7557
    %7814 = vst [vmem:[#allocation4 + $0x718] sm:$0xff] %v7558
    %7815 = vst [vmem:[#allocation4 + $0x720] sm:$0xff] %v7559
    %7816 = vst [vmem:[#allocation4 + $0x728] sm:$0xff] %v7560
    %7817 = vst [vmem:[#allocation4 + $0x730] sm:$0xff] %v7561
    %7818 = vst [vmem:[#allocation4 + $0x738] sm:$0xff] %v7562
    %7819 = vst [vmem:[#allocation4 + $0x740] sm:$0xff] %v7563
    %7820 = vst [vmem:[#allocation4 + $0x748] sm:$0xff] %v7564
    %7821 = vst [vmem:[#allocation4 + $0x750] sm:$0xff] %v7565
    %7822 = vst [vmem:[#allocation4 + $0x758] sm:$0xff] %v7566
    %7823 = vst [vmem:[#allocation4 + $0x760] sm:$0xff] %v7567
    %7824 = vst [vmem:[#allocation4 + $0x768] sm:$0xff] %v7568
    %7825 = vst [vmem:[#allocation4 + $0x770] sm:$0xff] %v7569
    %7826 = vst [vmem:[#allocation4 + $0x778] sm:$0xff] %v7570
    %7827 = vst [vmem:[#allocation4 + $0x780] sm:$0xff] %v7571
    %7828 = vst [vmem:[#allocation4 + $0x788] sm:$0xff] %v7572
    %7829 = vst [vmem:[#allocation4 + $0x790] sm:$0xff] %v7573
    %7830 = vst [vmem:[#allocation4 + $0x798] sm:$0xff] %v7574
    %7831 = vst [vmem:[#allocation4 + $0x7a0] sm:$0xff] %v7575
    %7832 = vst [vmem:[#allocation4 + $0x7a8] sm:$0xff] %v7576
    %7833 = vst [vmem:[#allocation4 + $0x7b0] sm:$0xff] %v7577
    %7834 = vst [vmem:[#allocation4 + $0x7b8] sm:$0xff] %v7578
    %7835 = vst [vmem:[#allocation4 + $0x7c0] sm:$0xff] %v7579
    %7836 = vst [vmem:[#allocation4 + $0x7c8] sm:$0xff] %v7580
    %7837 = vst [vmem:[#allocation4 + $0x7d0] sm:$0xff] %v7581
    %7838 = vst [vmem:[#allocation4 + $0x7d8] sm:$0xff] %v7582
    %7839 = vst [vmem:[#allocation4 + $0x7e0] sm:$0xff] %v7583
    %7840 = vst [vmem:[#allocation4 + $0x7e8] sm:$0xff] %v7584
    %7841 = vst [vmem:[#allocation4 + $0x7f0] sm:$0xff] %v7585
    %7842 = vst [vmem:[#allocation4 + $0x7f8] sm:$0xff] %v7586
    // Predicated region
    $region22: #{sgae_decoder.1} parent=1 // pred_check
      _
    $region23: #{sgae_decoder.1} parent=1 // pred_check_branch
      %7844 = sbr.rel (0) target = $region25
    $region24: #{sgae_decoder.1} parent=1 // pred_region
      %7846 = vsyncadd [#allocation3], 0
      %s7847 = sshll.u32 [#allocation2], 4
      %s7848 = int_to_ptr.vmem [resolvable:$true] %s7847
      %s7849 = sshll.u32 %s5, 4
      %s7850 = int_to_ptr.hbm [resolvable:$true] %s7849
      %7855 = dma.vmem_to_hbm [thread:$0]  %s7848, 16384, %s7850, [#allocation3], 256, 256, 16
    $region25: #{sgae_decoder.1} parent=1 // pred_fallthru
      _
    // Predicated region
    $region26: #{sgae_decoder.1} parent=1 // pred_check
      _
    $region27: #{sgae_decoder.1} parent=1 // pred_check_branch
      %7857 = sbr.rel (0) target = $region29
    $region28: #{sgae_decoder.1} parent=1 // pred_region
      %7859 = vsyncadd [#allocation5], 0
      %s7860 = sshll.u32 [#allocation4], 4
      %s7861 = int_to_ptr.vmem [resolvable:$true] %s7860
      %s7862 = sshll.u32 %s6, 4
      %s7863 = int_to_ptr.hbm [resolvable:$true] %s7862
      %7868 = dma.vmem_to_hbm [thread:$0]  %s7861, 32768, %s7863, [#allocation5], 512, 512, 32
    $region29: #{sgae_decoder.1} parent=1 // pred_fallthru
      _
    // Predicated region
    $region30: #{sgae_decoder.1} parent=1 // pred_check
      _
    $region31: #{sgae_decoder.1} parent=1 // pred_check_branch
      %7870 = sbr.rel (0) target = $region33
    $region32: #{sgae_decoder.1} parent=1 // pred_region
      %7872 = dma.done [#allocation3], 16384
    $region33: #{sgae_decoder.1} parent=1 // pred_fallthru
      _
    // Predicated region
    $region34: #{sgae_decoder.1} parent=1 // pred_check
      _
    $region35: #{sgae_decoder.1} parent=1 // pred_check_branch
      %7874 = sbr.rel (0) target = $region37
    $region36: #{sgae_decoder.1} parent=1 // pred_region
      %7876 = dma.done [#allocation5], 32768
    $region37: #{sgae_decoder.1} parent=1 // pred_fallthru
      _
    %7877 = vsyncpa [#allocation3], 1
    %7878 = vsyncpa [#allocation5], 1

</llo_original>
